<compile_context>
chip_gen: v7x
topology: tpu7x:2x2x1
jax: 0.10.0
libtpu: 0.0.40
codegen_flags: <defaults>
</compile_context>

<pallas_src>
import numpy as np
import jax
import jax.numpy as jnp
from jax.experimental import pallas as pl
from jax.experimental.pallas import tpu as pltpu

# ---------------- config (small but consistent with the module) --------------
B = 2
T = 16                 # sequence length  (<= max_seq_len)
D_MODEL = 32           # transformer.encoder_hidden
N_LAYERS = 2           # transformer.encoder_layer
N_HEAD = 2             # transformer.encoder_head
D_K = D_MODEL // N_HEAD
D_V = D_MODEL // N_HEAD
D_INNER = 64           # transformer.conv_filter_size
KERNEL_SIZE = (9, 1)   # transformer.conv_kernel_size
MAX_SEQ_LEN = 32       # config.max_seq_len
LN_EPS = 1e-5
IN_EPS = 1e-5
NEG_BIAS = -1e9        # finite "masked" additive bias (avoids -inf NaN hazard)


# ------------------------- sinusoid position table ---------------------------
def get_sinusoid_encoding_table(n_position, d_hid):
    pos = np.arange(n_position, dtype=np.float64)[:, None]
    hid = np.arange(d_hid, dtype=np.float64)[None, :]
    angle = pos / np.power(10000.0, 2.0 * np.floor(hid / 2.0) / d_hid)
    table = angle.copy()
    table[:, 0::2] = np.sin(angle[:, 0::2])
    table[:, 1::2] = np.cos(angle[:, 1::2])
    return jnp.asarray(table, dtype=jnp.float32)


# ------------------------------- helpers --------------------------------------
def _layer_norm(x, gamma, beta):
    mean = jnp.mean(x, axis=-1, keepdims=True)
    var = jnp.mean(jnp.square(x - mean), axis=-1, keepdims=True)
    return (x - mean) * jax.lax.rsqrt(var + LN_EPS) * gamma + beta


# ------------------------------- kernel ---------------------------------------
def _make_kernel(bb):
    """Build a kernel that processes `bb` batch elements per grid step."""
    inv_temp = 1.0 / float(np.sqrt(D_K))
    k_taps = KERNEL_SIZE[0]
    pad = (k_taps - 1) // 2

    def kernel(src_ref, mrow_ref, mcol_ref, pos_ref,
               wq_ref, bq_ref, wk_ref, bk_ref, wv_ref, bv_ref,
               fcw_ref, fcb_ref, ln1g_ref, ln1b_ref,
               c1w_ref, c1b_ref, c2w_ref, c2b_ref,
               ln2g_ref, ln2b_ref, out_ref):
        pos = pos_ref[...]                                         # (T, D)
        # hoisted constants / masks (emitted once, reused across layers & heads)
        zpad = jnp.zeros((pad, D_MODEL), jnp.float32) if pad > 0 else None
        xs = [src_ref[b] + pos for b in range(bb)]                 # (T, D) per batch
        key_bias = [jnp.where(mrow_ref[b] > 0.5, NEG_BIAS, 0.0)    # (1, T) additive bias
                    for b in range(bb)]
        row_pad = [mcol_ref[b] > 0.5 for b in range(bb)]           # (T, 1) padded query rows

        for l in range(N_LAYERS):
            ln1g = ln1g_ref[pl.ds(l, 1), :]
            ln1b = ln1b_ref[pl.ds(l, 1), :]
            ln2g = ln2g_ref[pl.ds(l, 1), :]
            ln2b = ln2b_ref[pl.ds(l, 1), :]
            fcb = fcb_ref[pl.ds(l, 1), :]
            c1w = c1w_ref[l]                                       # (k*D, D_inner) im2col weight
            c1b = c1b_ref[pl.ds(l, 1), :]
            c2w = c2w_ref[l]                                       # (D_inner, D)   k=1 conv
            c2b = c2b_ref[pl.ds(l, 1), :]

            for b in range(bb):
                x = xs[b]

                # ------------------ multi-head self-attention ------------------
                residual = x
                o = None
                for h in range(N_HEAD):
                    # full-width (T, D) x (D, D_k) dots: no lane slicing of activations
                    q = jnp.dot(x, wq_ref[l, h],
                                preferred_element_type=jnp.float32) + bq_ref[l, h]
                    k = jnp.dot(x, wk_ref[l, h],
                                preferred_element_type=jnp.float32) + bk_ref[l, h]
                    v = jnp.dot(x, wv_ref[l, h],
                                preferred_element_type=jnp.float32) + bv_ref[l, h]
                    s = jax.lax.dot_general(q, k, (((1,), (1,)), ((), ())),
                                            preferred_element_type=jnp.float32)
                    s = s * inv_temp + key_bias[b]                 # finite masked bias
                    s = s - jnp.max(s, axis=-1, keepdims=True)
                    e = jnp.exp(s)
                    attn = e * pl.reciprocal(jnp.sum(e, axis=-1, keepdims=True),
                                             approx=True)
                    ctx = jnp.dot(attn, v, preferred_element_type=jnp.float32)
                    # concat(heads) @ W_fc == sum_h ctx_h @ W_fc[h]  (no lane concat)
                    ph = jnp.dot(ctx, fcw_ref[l, h],
                                 preferred_element_type=jnp.float32)
                    o = ph if o is None else o + ph
                o = o + fcb
                x = _layer_norm(o + residual, ln1g, ln1b)
                x = jnp.where(row_pad[b], 0.0, x)                  # masked_fill(mask, 0)

                # -------------- position-wise conv feed-forward ----------------
                residual = x
                if pad > 0:
                    xp = jnp.concatenate([zpad, x, zpad], axis=0)  # (T+2p, D)
                else:
                    xp = x
                if k_taps > 1:                                     # im2col slab: (T, k*D)
                    slab = jnp.concatenate([xp[j:j + T, :] for j in range(k_taps)],
                                           axis=-1)
                else:
                    slab = xp
                h1 = jnp.maximum(
                    jnp.dot(slab, c1w, preferred_element_type=jnp.float32) + c1b, 0.0)
                h2 = jnp.dot(h1, c2w, preferred_element_type=jnp.float32) + c2b
                x = _layer_norm(h2 + residual, ln2g, ln2b)
                x = jnp.where(row_pad[b], 0.0, x)                  # masked_fill(mask, 0)

                xs[b] = x

        # -------- InstanceNorm1d over the time axis, per (batch, channel) --------
        for b in range(bb):
            x = xs[b]
            mean = jnp.mean(x, axis=0, keepdims=True)
            var = jnp.mean(jnp.square(x - mean), axis=0, keepdims=True)
            out_ref[b] = (x - mean) * jax.lax.rsqrt(var + IN_EPS)

    return kernel


# ------------------------------ wrapper --------------------------------------
def _default_batch_block(b):
    # v7x has 2 TensorCores/chip -> keep a parallel batch grid so both TCs run.
    # v5e / v6e have a single TC -> collapse the batch grid (per-grid-step
    # pipeline overhead dominates at these tiny shapes).
    try:
        kind = jax.devices()[0].device_kind.lower()
    except Exception:
        kind = ""
    if "v7" in kind and b % 2 == 0:
        return b // 2
    return b


def mel_encoder_forward(src_seq, mask, params, batch_block=None):
    b, t, d = src_seq.shape
    bb = batch_block if batch_block is not None else _default_batch_block(b)
    assert b % bb == 0
    mask_f = mask.astype(jnp.float32)
    mask_row = mask_f.reshape(b, 1, t)
    mask_col = mask_f.reshape(b, t, 1)
    pos = params["pos_table"][:t, :]

    inputs = (src_seq, mask_row, mask_col, pos,
              params["wq"], params["bq"], params["wk"], params["bk"],
              params["wv"], params["bv"], params["fcw"], params["fcb"],
              params["ln1g"], params["ln1b"],
              params["c1w_flat"], params["c1b"], params["c2w"], params["c2b"],
              params["ln2g"], params["ln2b"])

    def full_spec(a):
        nd = a.ndim
        return pl.BlockSpec(a.shape, lambda i, _nd=nd: (0,) * _nd)

    in_specs = [pl.BlockSpec((bb, t, d), lambda i: (i, 0, 0)),
                pl.BlockSpec((bb, 1, t), lambda i: (i, 0, 0)),
                pl.BlockSpec((bb, t, 1), lambda i: (i, 0, 0))] + \
               [full_spec(a) for a in inputs[3:]]
    # Output stays (B, T, D) to preserve the module's interface; a lane-dense
    # packed (B, T*D//128, 128) output would need a consumer-side layout change.
    out_spec = pl.BlockSpec((bb, t, d), lambda i: (i, 0, 0))

    return pl.pallas_call(
        _make_kernel(bb),
        out_shape=jax.ShapeDtypeStruct((b, t, d), jnp.float32),
        grid_spec=pltpu.PrefetchScalarGridSpec(
            num_scalar_prefetch=0,
            grid=(b // bb,),
            in_specs=in_specs,
            out_specs=out_spec),
        compiler_params=pltpu.CompilerParams(
            dimension_semantics=("parallel",)),
    )(*inputs)


# ------------------------- deterministic parameters --------------------------
def init_params(key):
    keys = jax.random.split(key, 8)
    s = 0.05
    p = {}
    p["pos_table"] = get_sinusoid_encoding_table(MAX_SEQ_LEN + 1, D_MODEL)
    # attention projections stored as (in, out) = transposed torch Linear weight,
    # then pre-split per head: (L, H, D, D_k) so the kernel never slices lanes.
    wq = s * jax.random.normal(keys[0], (N_LAYERS, D_MODEL, N_HEAD * D_K), jnp.float32)
    wk = s * jax.random.normal(keys[1], (N_LAYERS, D_MODEL, N_HEAD * D_K), jnp.float32)
    wv = s * jax.random.normal(keys[2], (N_LAYERS, D_MODEL, N_HEAD * D_V), jnp.float32)
    p["wq"] = wq.reshape(N_LAYERS, D_MODEL, N_HEAD, D_K).transpose(0, 2, 1, 3)
    p["wk"] = wk.reshape(N_LAYERS, D_MODEL, N_HEAD, D_K).transpose(0, 2, 1, 3)
    p["wv"] = wv.reshape(N_LAYERS, D_MODEL, N_HEAD, D_V).transpose(0, 2, 1, 3)
    p["bq"] = jnp.zeros((N_LAYERS, N_HEAD, 1, D_K), jnp.float32)
    p["bk"] = jnp.zeros((N_LAYERS, N_HEAD, 1, D_K), jnp.float32)
    p["bv"] = jnp.zeros((N_LAYERS, N_HEAD, 1, D_V), jnp.float32)
    # output projection split by head-rows: concat(heads) @ W == sum_h head_h @ W[h]
    fcw = s * jax.random.normal(keys[3], (N_LAYERS, N_HEAD * D_V, D_MODEL), jnp.float32)
    p["fcw"] = fcw.reshape(N_LAYERS, N_HEAD, D_V, D_MODEL)
    p["fcb"] = jnp.zeros((N_LAYERS, D_MODEL), jnp.float32)
    # conv feed-forward: torch Conv1d weight (out, in, k) stored as (k, in, out),
    # then flattened tap-major to the im2col weight (k*in, out).
    c1w = s * jax.random.normal(keys[4], (N_LAYERS, KERNEL_SIZE[0], D_MODEL, D_INNER), jnp.float32)
    p["c1w_flat"] = c1w.reshape(N_LAYERS, KERNEL_SIZE[0] * D_MODEL, D_INNER)
    p["c1b"] = 0.01 * jax.random.normal(keys[5], (N_LAYERS, D_INNER), jnp.float32)
    c2w = s * jax.random.normal(keys[6], (N_LAYERS, KERNEL_SIZE[1], D_INNER, D_MODEL), jnp.float32)
    p["c2w"] = c2w.reshape(N_LAYERS, D_INNER, D_MODEL)   # k=1 conv == plain matmul
    p["c2b"] = 0.01 * jax.random.normal(keys[7], (N_LAYERS, D_MODEL), jnp.float32)
    # LayerNorm affine params (PyTorch default init: gamma=1, beta=0)
    p["ln1g"] = jnp.ones((N_LAYERS, D_MODEL), jnp.float32)
    p["ln1b"] = jnp.zeros((N_LAYERS, D_MODEL), jnp.float32)
    p["ln2g"] = jnp.ones((N_LAYERS, D_MODEL), jnp.float32)
    p["ln2b"] = jnp.zeros((N_LAYERS, D_MODEL), jnp.float32)
    return p


if __name__ == "__main__":
    key = jax.random.PRNGKey(0)
    pkey, xkey = jax.random.split(key)
    params = init_params(pkey)

    src_seq = jax.random.normal(xkey, (B, T, D_MODEL), jnp.float32)
    # mask: True = padded position (second sequence has its last 4 steps padded)
    mask = jnp.zeros((B, T), dtype=bool).at[1, T - 4:].set(True)

    out = mel_encoder_forward(src_seq, mask, params)
    out = jax.block_until_ready(out)
    assert out.shape == (B, T, D_MODEL)
    assert bool(jnp.all(jnp.isfinite(out)))
    print("KERNEL_OK")
</pallas_src>

<mosaic_0001>
module attributes {stable_mosaic.version = 11 : i64} {
  func.func @kernel(%arg0: i32, %arg1: memref<2x16x32xf32, #tpu.memory_space<vmem>>, %arg2: memref<2x1x16xf32, #tpu.memory_space<vmem>>, %arg3: memref<2x16x1xf32, #tpu.memory_space<vmem>>, %arg4: memref<16x32xf32, #tpu.memory_space<vmem>>, %arg5: memref<2x2x32x16xf32, #tpu.memory_space<vmem>>, %arg6: memref<2x2x1x16xf32, #tpu.memory_space<vmem>>, %arg7: memref<2x2x32x16xf32, #tpu.memory_space<vmem>>, %arg8: memref<2x2x1x16xf32, #tpu.memory_space<vmem>>, %arg9: memref<2x2x32x16xf32, #tpu.memory_space<vmem>>, %arg10: memref<2x2x1x16xf32, #tpu.memory_space<vmem>>, %arg11: memref<2x2x16x32xf32, #tpu.memory_space<vmem>>, %arg12: memref<2x32xf32, #tpu.memory_space<vmem>>, %arg13: memref<2x32xf32, #tpu.memory_space<vmem>>, %arg14: memref<2x32xf32, #tpu.memory_space<vmem>>, %arg15: memref<2x288x64xf32, #tpu.memory_space<vmem>>, %arg16: memref<2x64xf32, #tpu.memory_space<vmem>>, %arg17: memref<2x64x32xf32, #tpu.memory_space<vmem>>, %arg18: memref<2x32xf32, #tpu.memory_space<vmem>>, %arg19: memref<2x32xf32, #tpu.memory_space<vmem>>, %arg20: memref<2x32xf32, #tpu.memory_space<vmem>>, %arg21: memref<2x16x32xf32, #tpu.memory_space<vmem>>) attributes {dimension_semantics = [#tpu.dimension_semantics<parallel>], iteration_bounds = array<i64: 1>, scalar_prefetch = 0 : i64, scratch_operands = 0 : i64, tpu.core_type = #tpu.core_type<tc>, window_params = [{transform_indices = @transform_0, window_bounds = array<i64: 2, 16, 32>}, {transform_indices = @transform_1, window_bounds = array<i64: 2, 1, 16>}, {transform_indices = @transform_2, window_bounds = array<i64: 2, 16, 1>}, {pipeline_mode = #tpu.pipeline_mode<synchronous>, transform_indices = @transform_3, window_bounds = array<i64: 16, 32>}, {pipeline_mode = #tpu.pipeline_mode<synchronous>, transform_indices = @transform_4, window_bounds = array<i64: 2, 2, 32, 16>}, {pipeline_mode = #tpu.pipeline_mode<synchronous>, transform_indices = @transform_5, window_bounds = array<i64: 2, 2, 1, 16>}, {pipeline_mode = #tpu.pipeline_mode<synchronous>, transform_indices = @transform_6, window_bounds = array<i64: 2, 2, 32, 16>}, {pipeline_mode = #tpu.pipeline_mode<synchronous>, transform_indices = @transform_7, window_bounds = array<i64: 2, 2, 1, 16>}, {pipeline_mode = #tpu.pipeline_mode<synchronous>, transform_indices = @transform_8, window_bounds = array<i64: 2, 2, 32, 16>}, {pipeline_mode = #tpu.pipeline_mode<synchronous>, transform_indices = @transform_9, window_bounds = array<i64: 2, 2, 1, 16>}, {pipeline_mode = #tpu.pipeline_mode<synchronous>, transform_indices = @transform_10, window_bounds = array<i64: 2, 2, 16, 32>}, {pipeline_mode = #tpu.pipeline_mode<synchronous>, transform_indices = @transform_11, window_bounds = array<i64: 2, 32>}, {pipeline_mode = #tpu.pipeline_mode<synchronous>, transform_indices = @transform_12, window_bounds = array<i64: 2, 32>}, {pipeline_mode = #tpu.pipeline_mode<synchronous>, transform_indices = @transform_13, window_bounds = array<i64: 2, 32>}, {pipeline_mode = #tpu.pipeline_mode<synchronous>, transform_indices = @transform_14, window_bounds = array<i64: 2, 288, 64>}, {pipeline_mode = #tpu.pipeline_mode<synchronous>, transform_indices = @transform_15, window_bounds = array<i64: 2, 64>}, {pipeline_mode = #tpu.pipeline_mode<synchronous>, transform_indices = @transform_16, window_bounds = array<i64: 2, 64, 32>}, {pipeline_mode = #tpu.pipeline_mode<synchronous>, transform_indices = @transform_17, window_bounds = array<i64: 2, 32>}, {pipeline_mode = #tpu.pipeline_mode<synchronous>, transform_indices = @transform_18, window_bounds = array<i64: 2, 32>}, {pipeline_mode = #tpu.pipeline_mode<synchronous>, transform_indices = @transform_19, window_bounds = array<i64: 2, 32>}, {transform_indices = @transform_20, window_bounds = array<i64: 2, 16, 32>}]} {
    %c0 = arith.constant 0 : index
    %c0_0 = arith.constant 0 : index
    %0 = vector.load %arg4[%c0, %c0_0] : memref<16x32xf32, #tpu.memory_space<vmem>>, vector<16x32xf32>
    %cst = arith.constant 0.000000e+00 : f32
    %1 = vector.broadcast %cst : f32 to vector<4x32xf32>
    %c0_1 = arith.constant 0 : index
    %c0_2 = arith.constant 0 : index
    %c0_3 = arith.constant 0 : index
    %2 = vector.load %arg1[%c0_1, %c0_2, %c0_3] : memref<2x16x32xf32, #tpu.memory_space<vmem>>, vector<1x16x32xf32>
    %3 = vector.shape_cast %2 : vector<1x16x32xf32> to vector<16x32xf32>
    %4 = arith.addf %3, %0 : vector<16x32xf32>
    %c1 = arith.constant 1 : index
    %c0_4 = arith.constant 0 : index
    %c0_5 = arith.constant 0 : index
    %5 = vector.load %arg1[%c1, %c0_4, %c0_5] : memref<2x16x32xf32, #tpu.memory_space<vmem>>, vector<1x16x32xf32>
    %6 = vector.shape_cast %5 : vector<1x16x32xf32> to vector<16x32xf32>
    %7 = arith.addf %6, %0 : vector<16x32xf32>
    %c0_6 = arith.constant 0 : index
    %c0_7 = arith.constant 0 : index
    %c0_8 = arith.constant 0 : index
    %8 = vector.load %arg2[%c0_6, %c0_7, %c0_8] : memref<2x1x16xf32, #tpu.memory_space<vmem>>, vector<1x1x16xf32>
    %9 = vector.shape_cast %8 : vector<1x1x16xf32> to vector<1x16xf32>
    %cst_9 = arith.constant 5.000000e-01 : f32
    %10 = vector.broadcast %cst_9 : f32 to vector<1x16xf32>
    %11 = arith.cmpf ogt, %9, %10 : vector<1x16xf32>
    %cst_10 = arith.constant -1.000000e+09 : f32
    %cst_11 = arith.constant 0.000000e+00 : f32
    %12 = vector.broadcast %cst_10 : f32 to vector<1x16xf32>
    %13 = vector.broadcast %cst_11 : f32 to vector<1x16xf32>
    %14 = arith.select %11, %12, %13 : vector<1x16xi1>, vector<1x16xf32>
    %c1_12 = arith.constant 1 : index
    %c0_13 = arith.constant 0 : index
    %c0_14 = arith.constant 0 : index
    %15 = vector.load %arg2[%c1_12, %c0_13, %c0_14] : memref<2x1x16xf32, #tpu.memory_space<vmem>>, vector<1x1x16xf32>
    %16 = vector.shape_cast %15 : vector<1x1x16xf32> to vector<1x16xf32>
    %cst_15 = arith.constant 5.000000e-01 : f32
    %17 = vector.broadcast %cst_15 : f32 to vector<1x16xf32>
    %18 = arith.cmpf ogt, %16, %17 : vector<1x16xf32>
    %cst_16 = arith.constant -1.000000e+09 : f32
    %cst_17 = arith.constant 0.000000e+00 : f32
    %19 = vector.broadcast %cst_16 : f32 to vector<1x16xf32>
    %20 = vector.broadcast %cst_17 : f32 to vector<1x16xf32>
    %21 = arith.select %18, %19, %20 : vector<1x16xi1>, vector<1x16xf32>
    %c0_18 = arith.constant 0 : index
    %c0_19 = arith.constant 0 : index
    %c0_20 = arith.constant 0 : index
    %22 = vector.load %arg3[%c0_18, %c0_19, %c0_20] : memref<2x16x1xf32, #tpu.memory_space<vmem>>, vector<1x16x1xf32>
    %23 = vector.shape_cast %22 : vector<1x16x1xf32> to vector<16x1xf32>
    %cst_21 = arith.constant 5.000000e-01 : f32
    %24 = vector.broadcast %cst_21 : f32 to vector<16x1xf32>
    %25 = arith.cmpf ogt, %23, %24 : vector<16x1xf32>
    %c1_22 = arith.constant 1 : index
    %c0_23 = arith.constant 0 : index
    %c0_24 = arith.constant 0 : index
    %26 = vector.load %arg3[%c1_22, %c0_23, %c0_24] : memref<2x16x1xf32, #tpu.memory_space<vmem>>, vector<1x16x1xf32>
    %27 = vector.shape_cast %26 : vector<1x16x1xf32> to vector<16x1xf32>
    %cst_25 = arith.constant 5.000000e-01 : f32
    %28 = vector.broadcast %cst_25 : f32 to vector<16x1xf32>
    %29 = arith.cmpf ogt, %27, %28 : vector<16x1xf32>
    %c0_26 = arith.constant 0 : index
    %c0_27 = arith.constant 0 : index
    %30 = vector.load %arg13[%c0_26, %c0_27] : memref<2x32xf32, #tpu.memory_space<vmem>>, vector<1x32xf32>
    %c0_28 = arith.constant 0 : index
    %c0_29 = arith.constant 0 : index
    %31 = vector.load %arg14[%c0_28, %c0_29] : memref<2x32xf32, #tpu.memory_space<vmem>>, vector<1x32xf32>
    %c0_30 = arith.constant 0 : index
    %c0_31 = arith.constant 0 : index
    %32 = vector.load %arg19[%c0_30, %c0_31] : memref<2x32xf32, #tpu.memory_space<vmem>>, vector<1x32xf32>
    %c0_32 = arith.constant 0 : index
    %c0_33 = arith.constant 0 : index
    %33 = vector.load %arg20[%c0_32, %c0_33] : memref<2x32xf32, #tpu.memory_space<vmem>>, vector<1x32xf32>
    %c0_34 = arith.constant 0 : index
    %c0_35 = arith.constant 0 : index
    %34 = vector.load %arg12[%c0_34, %c0_35] : memref<2x32xf32, #tpu.memory_space<vmem>>, vector<1x32xf32>
    %c0_36 = arith.constant 0 : index
    %c0_37 = arith.constant 0 : index
    %c0_38 = arith.constant 0 : index
    %35 = vector.load %arg15[%c0_36, %c0_37, %c0_38] : memref<2x288x64xf32, #tpu.memory_space<vmem>>, vector<1x288x64xf32>
    %36 = vector.shape_cast %35 : vector<1x288x64xf32> to vector<288x64xf32>
    %c0_39 = arith.constant 0 : index
    %c0_40 = arith.constant 0 : index
    %37 = vector.load %arg16[%c0_39, %c0_40] : memref<2x64xf32, #tpu.memory_space<vmem>>, vector<1x64xf32>
    %c0_41 = arith.constant 0 : index
    %c0_42 = arith.constant 0 : index
    %c0_43 = arith.constant 0 : index
    %38 = vector.load %arg17[%c0_41, %c0_42, %c0_43] : memref<2x64x32xf32, #tpu.memory_space<vmem>>, vector<1x64x32xf32>
    %39 = vector.shape_cast %38 : vector<1x64x32xf32> to vector<64x32xf32>
    %c0_44 = arith.constant 0 : index
    %c0_45 = arith.constant 0 : index
    %40 = vector.load %arg18[%c0_44, %c0_45] : memref<2x32xf32, #tpu.memory_space<vmem>>, vector<1x32xf32>
    %c0_46 = arith.constant 0 : index
    %c0_47 = arith.constant 0 : index
    %c0_48 = arith.constant 0 : index
    %c0_49 = arith.constant 0 : index
    %41 = vector.load %arg5[%c0_46, %c0_47, %c0_48, %c0_49] : memref<2x2x32x16xf32, #tpu.memory_space<vmem>>, vector<1x1x32x16xf32>
    %42 = vector.shape_cast %41 : vector<1x1x32x16xf32> to vector<32x16xf32>
    %cst_50 = arith.constant dense<0.000000e+00> : vector<16x16xf32>
    %43 = tpu.matmul %4, %42, %cst_50 {dimension_numbers = #tpu.dot_dimension_numbers<[1], [0], [0], [1], [0, 0, 1, 1], [], []>} : vector<16x32xf32>, vector<32x16xf32>, vector<16x16xf32> -> vector<16x16xf32>
    %c0_51 = arith.constant 0 : index
    %c0_52 = arith.constant 0 : index
    %c0_53 = arith.constant 0 : index
    %c0_54 = arith.constant 0 : index
    %44 = vector.load %arg6[%c0_51, %c0_52, %c0_53, %c0_54] : memref<2x2x1x16xf32, #tpu.memory_space<vmem>>, vector<1x1x1x16xf32>
    %45 = vector.shape_cast %44 : vector<1x1x1x16xf32> to vector<1x16xf32>
    %46 = vector.broadcast %45 : vector<1x16xf32> to vector<16x16xf32>
    %47 = arith.addf %43, %46 : vector<16x16xf32>
    %c0_55 = arith.constant 0 : index
    %c0_56 = arith.constant 0 : index
    %c0_57 = arith.constant 0 : index
    %c0_58 = arith.constant 0 : index
    %48 = vector.load %arg7[%c0_55, %c0_56, %c0_57, %c0_58] : memref<2x2x32x16xf32, #tpu.memory_space<vmem>>, vector<1x1x32x16xf32>
    %49 = vector.shape_cast %48 : vector<1x1x32x16xf32> to vector<32x16xf32>
    %cst_59 = arith.constant dense<0.000000e+00> : vector<16x16xf32>
    %50 = tpu.matmul %4, %49, %cst_59 {dimension_numbers = #tpu.dot_dimension_numbers<[1], [0], [0], [1], [0, 0, 1, 1], [], []>} : vector<16x32xf32>, vector<32x16xf32>, vector<16x16xf32> -> vector<16x16xf32>
    %c0_60 = arith.constant 0 : index
    %c0_61 = arith.constant 0 : index
    %c0_62 = arith.constant 0 : index
    %c0_63 = arith.constant 0 : index
    %51 = vector.load %arg8[%c0_60, %c0_61, %c0_62, %c0_63] : memref<2x2x1x16xf32, #tpu.memory_space<vmem>>, vector<1x1x1x16xf32>
    %52 = vector.shape_cast %51 : vector<1x1x1x16xf32> to vector<1x16xf32>
    %53 = vector.broadcast %52 : vector<1x16xf32> to vector<16x16xf32>
    %54 = arith.addf %50, %53 : vector<16x16xf32>
    %c0_64 = arith.constant 0 : index
    %c0_65 = arith.constant 0 : index
    %c0_66 = arith.constant 0 : index
    %c0_67 = arith.constant 0 : index
    %55 = vector.load %arg9[%c0_64, %c0_65, %c0_66, %c0_67] : memref<2x2x32x16xf32, #tpu.memory_space<vmem>>, vector<1x1x32x16xf32>
    %56 = vector.shape_cast %55 : vector<1x1x32x16xf32> to vector<32x16xf32>
    %cst_68 = arith.constant dense<0.000000e+00> : vector<16x16xf32>
    %57 = tpu.matmul %4, %56, %cst_68 {dimension_numbers = #tpu.dot_dimension_numbers<[1], [0], [0], [1], [0, 0, 1, 1], [], []>} : vector<16x32xf32>, vector<32x16xf32>, vector<16x16xf32> -> vector<16x16xf32>
    %c0_69 = arith.constant 0 : index
    %c0_70 = arith.constant 0 : index
    %c0_71 = arith.constant 0 : index
    %c0_72 = arith.constant 0 : index
    %58 = vector.load %arg10[%c0_69, %c0_70, %c0_71, %c0_72] : memref<2x2x1x16xf32, #tpu.memory_space<vmem>>, vector<1x1x1x16xf32>
    %59 = vector.shape_cast %58 : vector<1x1x1x16xf32> to vector<1x16xf32>
    %60 = vector.broadcast %59 : vector<1x16xf32> to vector<16x16xf32>
    %61 = arith.addf %57, %60 : vector<16x16xf32>
    %cst_73 = arith.constant dense<0.000000e+00> : vector<16x16xf32>
    %62 = tpu.matmul %47, %54, %cst_73 {dimension_numbers = #tpu.dot_dimension_numbers<[1], [1], [0], [0], [0, 0, 1, 0], [], []>} : vector<16x16xf32>, vector<16x16xf32>, vector<16x16xf32> -> vector<16x16xf32>
    %cst_74 = arith.constant 2.500000e-01 : f32
    %63 = vector.broadcast %cst_74 : f32 to vector<16x16xf32>
    %64 = arith.mulf %62, %63 : vector<16x16xf32>
    %65 = vector.broadcast %14 : vector<1x16xf32> to vector<16x16xf32>
    %66 = arith.addf %64, %65 : vector<16x16xf32>
    %cst_75 = arith.constant dense<0xFF800000> : vector<16xf32>
    %67 = vector.multi_reduction <maximumf>, %66, %cst_75 [1] : vector<16x16xf32> to vector<16xf32>
    %68 = vector.shape_cast %67 : vector<16xf32> to vector<16x1xf32>
    %69 = vector.broadcast %68 : vector<16x1xf32> to vector<16x16xf32>
    %70 = arith.subf %66, %69 : vector<16x16xf32>
    %71 = math.exp %70 : vector<16x16xf32>
    %cst_76 = arith.constant dense<0.000000e+00> : vector<16xf32>
    %72 = vector.multi_reduction <add>, %71, %cst_76 [1] : vector<16x16xf32> to vector<16xf32>
    %73 = vector.shape_cast %72 : vector<16xf32> to vector<16x1xf32>
    %74 = tpu.reciprocal %73 {approx = true} : vector<16x1xf32> -> vector<16x1xf32>
    %75 = vector.broadcast %74 : vector<16x1xf32> to vector<16x16xf32>
    %76 = arith.mulf %71, %75 : vector<16x16xf32>
    %cst_77 = arith.constant dense<0.000000e+00> : vector<16x16xf32>
    %77 = tpu.matmul %76, %61, %cst_77 {dimension_numbers = #tpu.dot_dimension_numbers<[1], [0], [0], [1], [0, 0, 1, 1], [], []>} : vector<16x16xf32>, vector<16x16xf32>, vector<16x16xf32> -> vector<16x16xf32>
    %c0_78 = arith.constant 0 : index
    %c0_79 = arith.constant 0 : index
    %c0_80 = arith.constant 0 : index
    %c0_81 = arith.constant 0 : index
    %78 = vector.load %arg11[%c0_78, %c0_79, %c0_80, %c0_81] : memref<2x2x16x32xf32, #tpu.memory_space<vmem>>, vector<1x1x16x32xf32>
    %79 = vector.shape_cast %78 : vector<1x1x16x32xf32> to vector<16x32xf32>
    %cst_82 = arith.constant dense<0.000000e+00> : vector<16x32xf32>
    %80 = tpu.matmul %77, %79, %cst_82 {dimension_numbers = #tpu.dot_dimension_numbers<[1], [0], [0], [1], [0, 0, 1, 1], [], []>} : vector<16x16xf32>, vector<16x32xf32>, vector<16x32xf32> -> vector<16x32xf32>
    %c0_83 = arith.constant 0 : index
    %c1_84 = arith.constant 1 : index
    %c0_85 = arith.constant 0 : index
    %c0_86 = arith.constant 0 : index
    %81 = vector.load %arg5[%c0_83, %c1_84, %c0_85, %c0_86] : memref<2x2x32x16xf32, #tpu.memory_space<vmem>>, vector<1x1x32x16xf32>
    %82 = vector.shape_cast %81 : vector<1x1x32x16xf32> to vector<32x16xf32>
    %cst_87 = arith.constant dense<0.000000e+00> : vector<16x16xf32>
    %83 = tpu.matmul %4, %82, %cst_87 {dimension_numbers = #tpu.dot_dimension_numbers<[1], [0], [0], [1], [0, 0, 1, 1], [], []>} : vector<16x32xf32>, vector<32x16xf32>, vector<16x16xf32> -> vector<16x16xf32>
    %c0_88 = arith.constant 0 : index
    %c1_89 = arith.constant 1 : index
    %c0_90 = arith.constant 0 : index
    %c0_91 = arith.constant 0 : index
    %84 = vector.load %arg6[%c0_88, %c1_89, %c0_90, %c0_91] : memref<2x2x1x16xf32, #tpu.memory_space<vmem>>, vector<1x1x1x16xf32>
    %85 = vector.shape_cast %84 : vector<1x1x1x16xf32> to vector<1x16xf32>
    %86 = vector.broadcast %85 : vector<1x16xf32> to vector<16x16xf32>
    %87 = arith.addf %83, %86 : vector<16x16xf32>
    %c0_92 = arith.constant 0 : index
    %c1_93 = arith.constant 1 : index
    %c0_94 = arith.constant 0 : index
    %c0_95 = arith.constant 0 : index
    %88 = vector.load %arg7[%c0_92, %c1_93, %c0_94, %c0_95] : memref<2x2x32x16xf32, #tpu.memory_space<vmem>>, vector<1x1x32x16xf32>
    %89 = vector.shape_cast %88 : vector<1x1x32x16xf32> to vector<32x16xf32>
    %cst_96 = arith.constant dense<0.000000e+00> : vector<16x16xf32>
    %90 = tpu.matmul %4, %89, %cst_96 {dimension_numbers = #tpu.dot_dimension_numbers<[1], [0], [0], [1], [0, 0, 1, 1], [], []>} : vector<16x32xf32>, vector<32x16xf32>, vector<16x16xf32> -> vector<16x16xf32>
    %c0_97 = arith.constant 0 : index
    %c1_98 = arith.constant 1 : index
    %c0_99 = arith.constant 0 : index
    %c0_100 = arith.constant 0 : index
    %91 = vector.load %arg8[%c0_97, %c1_98, %c0_99, %c0_100] : memref<2x2x1x16xf32, #tpu.memory_space<vmem>>, vector<1x1x1x16xf32>
    %92 = vector.shape_cast %91 : vector<1x1x1x16xf32> to vector<1x16xf32>
    %93 = vector.broadcast %92 : vector<1x16xf32> to vector<16x16xf32>
    %94 = arith.addf %90, %93 : vector<16x16xf32>
    %c0_101 = arith.constant 0 : index
    %c1_102 = arith.constant 1 : index
    %c0_103 = arith.constant 0 : index
    %c0_104 = arith.constant 0 : index
    %95 = vector.load %arg9[%c0_101, %c1_102, %c0_103, %c0_104] : memref<2x2x32x16xf32, #tpu.memory_space<vmem>>, vector<1x1x32x16xf32>
    %96 = vector.shape_cast %95 : vector<1x1x32x16xf32> to vector<32x16xf32>
    %cst_105 = arith.constant dense<0.000000e+00> : vector<16x16xf32>
    %97 = tpu.matmul %4, %96, %cst_105 {dimension_numbers = #tpu.dot_dimension_numbers<[1], [0], [0], [1], [0, 0, 1, 1], [], []>} : vector<16x32xf32>, vector<32x16xf32>, vector<16x16xf32> -> vector<16x16xf32>
    %c0_106 = arith.constant 0 : index
    %c1_107 = arith.constant 1 : index
    %c0_108 = arith.constant 0 : index
    %c0_109 = arith.constant 0 : index
    %98 = vector.load %arg10[%c0_106, %c1_107, %c0_108, %c0_109] : memref<2x2x1x16xf32, #tpu.memory_space<vmem>>, vector<1x1x1x16xf32>
    %99 = vector.shape_cast %98 : vector<1x1x1x16xf32> to vector<1x16xf32>
    %100 = vector.broadcast %99 : vector<1x16xf32> to vector<16x16xf32>
    %101 = arith.addf %97, %100 : vector<16x16xf32>
    %cst_110 = arith.constant dense<0.000000e+00> : vector<16x16xf32>
    %102 = tpu.matmul %87, %94, %cst_110 {dimension_numbers = #tpu.dot_dimension_numbers<[1], [1], [0], [0], [0, 0, 1, 0], [], []>} : vector<16x16xf32>, vector<16x16xf32>, vector<16x16xf32> -> vector<16x16xf32>
    %cst_111 = arith.constant 2.500000e-01 : f32
    %103 = vector.broadcast %cst_111 : f32 to vector<16x16xf32>
    %104 = arith.mulf %102, %103 : vector<16x16xf32>
    %105 = vector.broadcast %14 : vector<1x16xf32> to vector<16x16xf32>
    %106 = arith.addf %104, %105 : vector<16x16xf32>
    %cst_112 = arith.constant dense<0xFF800000> : vector<16xf32>
    %107 = vector.multi_reduction <maximumf>, %106, %cst_112 [1] : vector<16x16xf32> to vector<16xf32>
    %108 = vector.shape_cast %107 : vector<16xf32> to vector<16x1xf32>
    %109 = vector.broadcast %108 : vector<16x1xf32> to vector<16x16xf32>
    %110 = arith.subf %106, %109 : vector<16x16xf32>
    %111 = math.exp %110 : vector<16x16xf32>
    %cst_113 = arith.constant dense<0.000000e+00> : vector<16xf32>
    %112 = vector.multi_reduction <add>, %111, %cst_113 [1] : vector<16x16xf32> to vector<16xf32>
    %113 = vector.shape_cast %112 : vector<16xf32> to vector<16x1xf32>
    %114 = tpu.reciprocal %113 {approx = true} : vector<16x1xf32> -> vector<16x1xf32>
    %115 = vector.broadcast %114 : vector<16x1xf32> to vector<16x16xf32>
    %116 = arith.mulf %111, %115 : vector<16x16xf32>
    %cst_114 = arith.constant dense<0.000000e+00> : vector<16x16xf32>
    %117 = tpu.matmul %116, %101, %cst_114 {dimension_numbers = #tpu.dot_dimension_numbers<[1], [0], [0], [1], [0, 0, 1, 1], [], []>} : vector<16x16xf32>, vector<16x16xf32>, vector<16x16xf32> -> vector<16x16xf32>
    %c0_115 = arith.constant 0 : index
    %c1_116 = arith.constant 1 : index
    %c0_117 = arith.constant 0 : index
    %c0_118 = arith.constant 0 : index
    %118 = vector.load %arg11[%c0_115, %c1_116, %c0_117, %c0_118] : memref<2x2x16x32xf32, #tpu.memory_space<vmem>>, vector<1x1x16x32xf32>
    %119 = vector.shape_cast %118 : vector<1x1x16x32xf32> to vector<16x32xf32>
    %cst_119 = arith.constant dense<0.000000e+00> : vector<16x32xf32>
    %120 = tpu.matmul %117, %119, %cst_119 {dimension_numbers = #tpu.dot_dimension_numbers<[1], [0], [0], [1], [0, 0, 1, 1], [], []>} : vector<16x16xf32>, vector<16x32xf32>, vector<16x32xf32> -> vector<16x32xf32>
    %121 = arith.addf %80, %120 : vector<16x32xf32>
    %122 = vector.broadcast %34 : vector<1x32xf32> to vector<16x32xf32>
    %123 = arith.addf %121, %122 : vector<16x32xf32>
    %124 = arith.addf %123, %4 : vector<16x32xf32>
    %cst_120 = arith.constant dense<0.000000e+00> : vector<16xf32>
    %125 = vector.multi_reduction <add>, %124, %cst_120 [1] : vector<16x32xf32> to vector<16xf32>
    %126 = vector.shape_cast %125 : vector<16xf32> to vector<16x1xf32>
    %cst_121 = arith.constant 3.200000e+01 : f32
    %127 = vector.broadcast %cst_121 : f32 to vector<16x1xf32>
    %128 = arith.divf %126, %127 : vector<16x1xf32>
    %129 = vector.broadcast %128 : vector<16x1xf32> to vector<16x32xf32>
    %130 = arith.subf %124, %129 : vector<16x32xf32>
    %131 = arith.mulf %130, %130 : vector<16x32xf32>
    %cst_122 = arith.constant dense<0.000000e+00> : vector<16xf32>
    %132 = vector.multi_reduction <add>, %131, %cst_122 [1] : vector<16x32xf32> to vector<16xf32>
    %133 = vector.shape_cast %132 : vector<16xf32> to vector<16x1xf32>
    %cst_123 = arith.constant 3.200000e+01 : f32
    %134 = vector.broadcast %cst_123 : f32 to vector<16x1xf32>
    %135 = arith.divf %133, %134 : vector<16x1xf32>
    %136 = vector.broadcast %128 : vector<16x1xf32> to vector<16x32xf32>
    %137 = arith.subf %124, %136 : vector<16x32xf32>
    %cst_124 = arith.constant 9.99999974E-6 : f32
    %138 = vector.broadcast %cst_124 : f32 to vector<16x1xf32>
    %139 = arith.addf %135, %138 : vector<16x1xf32>
    %140 = math.rsqrt %139 : vector<16x1xf32>
    %141 = vector.broadcast %140 : vector<16x1xf32> to vector<16x32xf32>
    %142 = arith.mulf %137, %141 : vector<16x32xf32>
    %143 = vector.broadcast %30 : vector<1x32xf32> to vector<16x32xf32>
    %144 = arith.mulf %142, %143 : vector<16x32xf32>
    %145 = vector.broadcast %31 : vector<1x32xf32> to vector<16x32xf32>
    %146 = arith.addf %144, %145 : vector<16x32xf32>
    %cst_125 = arith.constant 0.000000e+00 : f32
    %147 = vector.shape_cast %25 : vector<16x1xi1> to vector<16x1xi1>
    %148 = vector.broadcast %147 : vector<16x1xi1> to vector<16x32xi1>
    %149 = vector.broadcast %cst_125 : f32 to vector<16x32xf32>
    %150 = arith.select %148, %149, %146 : vector<16x32xi1>, vector<16x32xf32>
    %151 = tpu.concatenate %1, %150, %1 in 0 : vector<4x32xf32>, vector<16x32xf32>, vector<4x32xf32> -> vector<24x32xf32>
    %152 = vector.extract_strided_slice %151 {offsets = [0, 0], sizes = [16, 32], strides = [1, 1]} : vector<24x32xf32> to vector<16x32xf32>
    %153 = vector.extract_strided_slice %151 {offsets = [1, 0], sizes = [16, 32], strides = [1, 1]} : vector<24x32xf32> to vector<16x32xf32>
    %154 = vector.extract_strided_slice %151 {offsets = [2, 0], sizes = [16, 32], strides = [1, 1]} : vector<24x32xf32> to vector<16x32xf32>
    %155 = vector.extract_strided_slice %151 {offsets = [3, 0], sizes = [16, 32], strides = [1, 1]} : vector<24x32xf32> to vector<16x32xf32>
    %156 = vector.extract_strided_slice %151 {offsets = [4, 0], sizes = [16, 32], strides = [1, 1]} : vector<24x32xf32> to vector<16x32xf32>
    %157 = vector.extract_strided_slice %151 {offsets = [5, 0], sizes = [16, 32], strides = [1, 1]} : vector<24x32xf32> to vector<16x32xf32>
    %158 = vector.extract_strided_slice %151 {offsets = [6, 0], sizes = [16, 32], strides = [1, 1]} : vector<24x32xf32> to vector<16x32xf32>
    %159 = vector.extract_strided_slice %151 {offsets = [7, 0], sizes = [16, 32], strides = [1, 1]} : vector<24x32xf32> to vector<16x32xf32>
    %160 = vector.extract_strided_slice %151 {offsets = [8, 0], sizes = [16, 32], strides = [1, 1]} : vector<24x32xf32> to vector<16x32xf32>
    %161 = tpu.concatenate %152, %153, %154, %155, %156, %157, %158, %159, %160 in 1 : vector<16x32xf32>, vector<16x32xf32>, vector<16x32xf32>, vector<16x32xf32>, vector<16x32xf32>, vector<16x32xf32>, vector<16x32xf32>, vector<16x32xf32>, vector<16x32xf32> -> vector<16x288xf32>
    %cst_126 = arith.constant dense<0.000000e+00> : vector<16x64xf32>
    %162 = tpu.matmul %161, %36, %cst_126 {dimension_numbers = #tpu.dot_dimension_numbers<[1], [0], [0], [1], [0, 0, 1, 1], [], []>} : vector<16x288xf32>, vector<288x64xf32>, vector<16x64xf32> -> vector<16x64xf32>
    %163 = vector.broadcast %37 : vector<1x64xf32> to vector<16x64xf32>
    %164 = arith.addf %162, %163 : vector<16x64xf32>
    %cst_127 = arith.constant 0.000000e+00 : f32
    %165 = vector.broadcast %cst_127 : f32 to vector<16x64xf32>
    %166 = arith.maximumf %164, %165 : vector<16x64xf32>
    %cst_128 = arith.constant dense<0.000000e+00> : vector<16x32xf32>
    %167 = tpu.matmul %166, %39, %cst_128 {dimension_numbers = #tpu.dot_dimension_numbers<[1], [0], [0], [1], [0, 0, 1, 1], [], []>} : vector<16x64xf32>, vector<64x32xf32>, vector<16x32xf32> -> vector<16x32xf32>
    %168 = vector.broadcast %40 : vector<1x32xf32> to vector<16x32xf32>
    %169 = arith.addf %167, %168 : vector<16x32xf32>
    %170 = arith.addf %169, %150 : vector<16x32xf32>
    %cst_129 = arith.constant dense<0.000000e+00> : vector<16xf32>
    %171 = vector.multi_reduction <add>, %170, %cst_129 [1] : vector<16x32xf32> to vector<16xf32>
    %172 = vector.shape_cast %171 : vector<16xf32> to vector<16x1xf32>
    %cst_130 = arith.constant 3.200000e+01 : f32
    %173 = vector.broadcast %cst_130 : f32 to vector<16x1xf32>
    %174 = arith.divf %172, %173 : vector<16x1xf32>
    %175 = vector.broadcast %174 : vector<16x1xf32> to vector<16x32xf32>
    %176 = arith.subf %170, %175 : vector<16x32xf32>
    %177 = arith.mulf %176, %176 : vector<16x32xf32>
    %cst_131 = arith.constant dense<0.000000e+00> : vector<16xf32>
    %178 = vector.multi_reduction <add>, %177, %cst_131 [1] : vector<16x32xf32> to vector<16xf32>
    %179 = vector.shape_cast %178 : vector<16xf32> to vector<16x1xf32>
    %cst_132 = arith.constant 3.200000e+01 : f32
    %180 = vector.broadcast %cst_132 : f32 to vector<16x1xf32>
    %181 = arith.divf %179, %180 : vector<16x1xf32>
    %182 = vector.broadcast %174 : vector<16x1xf32> to vector<16x32xf32>
    %183 = arith.subf %170, %182 : vector<16x32xf32>
    %cst_133 = arith.constant 9.99999974E-6 : f32
    %184 = vector.broadcast %cst_133 : f32 to vector<16x1xf32>
    %185 = arith.addf %181, %184 : vector<16x1xf32>
    %186 = math.rsqrt %185 : vector<16x1xf32>
    %187 = vector.broadcast %186 : vector<16x1xf32> to vector<16x32xf32>
    %188 = arith.mulf %183, %187 : vector<16x32xf32>
    %189 = vector.broadcast %32 : vector<1x32xf32> to vector<16x32xf32>
    %190 = arith.mulf %188, %189 : vector<16x32xf32>
    %191 = vector.broadcast %33 : vector<1x32xf32> to vector<16x32xf32>
    %192 = arith.addf %190, %191 : vector<16x32xf32>
    %cst_134 = arith.constant 0.000000e+00 : f32
    %193 = vector.shape_cast %25 : vector<16x1xi1> to vector<16x1xi1>
    %194 = vector.broadcast %193 : vector<16x1xi1> to vector<16x32xi1>
    %195 = vector.broadcast %cst_134 : f32 to vector<16x32xf32>
    %196 = arith.select %194, %195, %192 : vector<16x32xi1>, vector<16x32xf32>
    %c0_135 = arith.constant 0 : index
    %c0_136 = arith.constant 0 : index
    %c0_137 = arith.constant 0 : index
    %c0_138 = arith.constant 0 : index
    %197 = vector.load %arg5[%c0_135, %c0_136, %c0_137, %c0_138] : memref<2x2x32x16xf32, #tpu.memory_space<vmem>>, vector<1x1x32x16xf32>
    %198 = vector.shape_cast %197 : vector<1x1x32x16xf32> to vector<32x16xf32>
    %cst_139 = arith.constant dense<0.000000e+00> : vector<16x16xf32>
    %199 = tpu.matmul %7, %198, %cst_139 {dimension_numbers = #tpu.dot_dimension_numbers<[1], [0], [0], [1], [0, 0, 1, 1], [], []>} : vector<16x32xf32>, vector<32x16xf32>, vector<16x16xf32> -> vector<16x16xf32>
    %c0_140 = arith.constant 0 : index
    %c0_141 = arith.constant 0 : index
    %c0_142 = arith.constant 0 : index
    %c0_143 = arith.constant 0 : index
    %200 = vector.load %arg6[%c0_140, %c0_141, %c0_142, %c0_143] : memref<2x2x1x16xf32, #tpu.memory_space<vmem>>, vector<1x1x1x16xf32>
    %201 = vector.shape_cast %200 : vector<1x1x1x16xf32> to vector<1x16xf32>
    %202 = vector.broadcast %201 : vector<1x16xf32> to vector<16x16xf32>
    %203 = arith.addf %199, %202 : vector<16x16xf32>
    %c0_144 = arith.constant 0 : index
    %c0_145 = arith.constant 0 : index
    %c0_146 = arith.constant 0 : index
    %c0_147 = arith.constant 0 : index
    %204 = vector.load %arg7[%c0_144, %c0_145, %c0_146, %c0_147] : memref<2x2x32x16xf32, #tpu.memory_space<vmem>>, vector<1x1x32x16xf32>
    %205 = vector.shape_cast %204 : vector<1x1x32x16xf32> to vector<32x16xf32>
    %cst_148 = arith.constant dense<0.000000e+00> : vector<16x16xf32>
    %206 = tpu.matmul %7, %205, %cst_148 {dimension_numbers = #tpu.dot_dimension_numbers<[1], [0], [0], [1], [0, 0, 1, 1], [], []>} : vector<16x32xf32>, vector<32x16xf32>, vector<16x16xf32> -> vector<16x16xf32>
    %c0_149 = arith.constant 0 : index
    %c0_150 = arith.constant 0 : index
    %c0_151 = arith.constant 0 : index
    %c0_152 = arith.constant 0 : index
    %207 = vector.load %arg8[%c0_149, %c0_150, %c0_151, %c0_152] : memref<2x2x1x16xf32, #tpu.memory_space<vmem>>, vector<1x1x1x16xf32>
    %208 = vector.shape_cast %207 : vector<1x1x1x16xf32> to vector<1x16xf32>
    %209 = vector.broadcast %208 : vector<1x16xf32> to vector<16x16xf32>
    %210 = arith.addf %206, %209 : vector<16x16xf32>
    %c0_153 = arith.constant 0 : index
    %c0_154 = arith.constant 0 : index
    %c0_155 = arith.constant 0 : index
    %c0_156 = arith.constant 0 : index
    %211 = vector.load %arg9[%c0_153, %c0_154, %c0_155, %c0_156] : memref<2x2x32x16xf32, #tpu.memory_space<vmem>>, vector<1x1x32x16xf32>
    %212 = vector.shape_cast %211 : vector<1x1x32x16xf32> to vector<32x16xf32>
    %cst_157 = arith.constant dense<0.000000e+00> : vector<16x16xf32>
    %213 = tpu.matmul %7, %212, %cst_157 {dimension_numbers = #tpu.dot_dimension_numbers<[1], [0], [0], [1], [0, 0, 1, 1], [], []>} : vector<16x32xf32>, vector<32x16xf32>, vector<16x16xf32> -> vector<16x16xf32>
    %c0_158 = arith.constant 0 : index
    %c0_159 = arith.constant 0 : index
    %c0_160 = arith.constant 0 : index
    %c0_161 = arith.constant 0 : index
    %214 = vector.load %arg10[%c0_158, %c0_159, %c0_160, %c0_161] : memref<2x2x1x16xf32, #tpu.memory_space<vmem>>, vector<1x1x1x16xf32>
    %215 = vector.shape_cast %214 : vector<1x1x1x16xf32> to vector<1x16xf32>
    %216 = vector.broadcast %215 : vector<1x16xf32> to vector<16x16xf32>
    %217 = arith.addf %213, %216 : vector<16x16xf32>
    %cst_162 = arith.constant dense<0.000000e+00> : vector<16x16xf32>
    %218 = tpu.matmul %203, %210, %cst_162 {dimension_numbers = #tpu.dot_dimension_numbers<[1], [1], [0], [0], [0, 0, 1, 0], [], []>} : vector<16x16xf32>, vector<16x16xf32>, vector<16x16xf32> -> vector<16x16xf32>
    %cst_163 = arith.constant 2.500000e-01 : f32
    %219 = vector.broadcast %cst_163 : f32 to vector<16x16xf32>
    %220 = arith.mulf %218, %219 : vector<16x16xf32>
    %221 = vector.broadcast %21 : vector<1x16xf32> to vector<16x16xf32>
    %222 = arith.addf %220, %221 : vector<16x16xf32>
    %cst_164 = arith.constant dense<0xFF800000> : vector<16xf32>
    %223 = vector.multi_reduction <maximumf>, %222, %cst_164 [1] : vector<16x16xf32> to vector<16xf32>
    %224 = vector.shape_cast %223 : vector<16xf32> to vector<16x1xf32>
    %225 = vector.broadcast %224 : vector<16x1xf32> to vector<16x16xf32>
    %226 = arith.subf %222, %225 : vector<16x16xf32>
    %227 = math.exp %226 : vector<16x16xf32>
    %cst_165 = arith.constant dense<0.000000e+00> : vector<16xf32>
    %228 = vector.multi_reduction <add>, %227, %cst_165 [1] : vector<16x16xf32> to vector<16xf32>
    %229 = vector.shape_cast %228 : vector<16xf32> to vector<16x1xf32>
    %230 = tpu.reciprocal %229 {approx = true} : vector<16x1xf32> -> vector<16x1xf32>
    %231 = vector.broadcast %230 : vector<16x1xf32> to vector<16x16xf32>
    %232 = arith.mulf %227, %231 : vector<16x16xf32>
    %cst_166 = arith.constant dense<0.000000e+00> : vector<16x16xf32>
    %233 = tpu.matmul %232, %217, %cst_166 {dimension_numbers = #tpu.dot_dimension_numbers<[1], [0], [0], [1], [0, 0, 1, 1], [], []>} : vector<16x16xf32>, vector<16x16xf32>, vector<16x16xf32> -> vector<16x16xf32>
    %c0_167 = arith.constant 0 : index
    %c0_168 = arith.constant 0 : index
    %c0_169 = arith.constant 0 : index
    %c0_170 = arith.constant 0 : index
    %234 = vector.load %arg11[%c0_167, %c0_168, %c0_169, %c0_170] : memref<2x2x16x32xf32, #tpu.memory_space<vmem>>, vector<1x1x16x32xf32>
    %235 = vector.shape_cast %234 : vector<1x1x16x32xf32> to vector<16x32xf32>
    %cst_171 = arith.constant dense<0.000000e+00> : vector<16x32xf32>
    %236 = tpu.matmul %233, %235, %cst_171 {dimension_numbers = #tpu.dot_dimension_numbers<[1], [0], [0], [1], [0, 0, 1, 1], [], []>} : vector<16x16xf32>, vector<16x32xf32>, vector<16x32xf32> -> vector<16x32xf32>
    %c0_172 = arith.constant 0 : index
    %c1_173 = arith.constant 1 : index
    %c0_174 = arith.constant 0 : index
    %c0_175 = arith.constant 0 : index
    %237 = vector.load %arg5[%c0_172, %c1_173, %c0_174, %c0_175] : memref<2x2x32x16xf32, #tpu.memory_space<vmem>>, vector<1x1x32x16xf32>
    %238 = vector.shape_cast %237 : vector<1x1x32x16xf32> to vector<32x16xf32>
    %cst_176 = arith.constant dense<0.000000e+00> : vector<16x16xf32>
    %239 = tpu.matmul %7, %238, %cst_176 {dimension_numbers = #tpu.dot_dimension_numbers<[1], [0], [0], [1], [0, 0, 1, 1], [], []>} : vector<16x32xf32>, vector<32x16xf32>, vector<16x16xf32> -> vector<16x16xf32>
    %c0_177 = arith.constant 0 : index
    %c1_178 = arith.constant 1 : index
    %c0_179 = arith.constant 0 : index
    %c0_180 = arith.constant 0 : index
    %240 = vector.load %arg6[%c0_177, %c1_178, %c0_179, %c0_180] : memref<2x2x1x16xf32, #tpu.memory_space<vmem>>, vector<1x1x1x16xf32>
    %241 = vector.shape_cast %240 : vector<1x1x1x16xf32> to vector<1x16xf32>
    %242 = vector.broadcast %241 : vector<1x16xf32> to vector<16x16xf32>
    %243 = arith.addf %239, %242 : vector<16x16xf32>
    %c0_181 = arith.constant 0 : index
    %c1_182 = arith.constant 1 : index
    %c0_183 = arith.constant 0 : index
    %c0_184 = arith.constant 0 : index
    %244 = vector.load %arg7[%c0_181, %c1_182, %c0_183, %c0_184] : memref<2x2x32x16xf32, #tpu.memory_space<vmem>>, vector<1x1x32x16xf32>
    %245 = vector.shape_cast %244 : vector<1x1x32x16xf32> to vector<32x16xf32>
    %cst_185 = arith.constant dense<0.000000e+00> : vector<16x16xf32>
    %246 = tpu.matmul %7, %245, %cst_185 {dimension_numbers = #tpu.dot_dimension_numbers<[1], [0], [0], [1], [0, 0, 1, 1], [], []>} : vector<16x32xf32>, vector<32x16xf32>, vector<16x16xf32> -> vector<16x16xf32>
    %c0_186 = arith.constant 0 : index
    %c1_187 = arith.constant 1 : index
    %c0_188 = arith.constant 0 : index
    %c0_189 = arith.constant 0 : index
    %247 = vector.load %arg8[%c0_186, %c1_187, %c0_188, %c0_189] : memref<2x2x1x16xf32, #tpu.memory_space<vmem>>, vector<1x1x1x16xf32>
    %248 = vector.shape_cast %247 : vector<1x1x1x16xf32> to vector<1x16xf32>
    %249 = vector.broadcast %248 : vector<1x16xf32> to vector<16x16xf32>
    %250 = arith.addf %246, %249 : vector<16x16xf32>
    %c0_190 = arith.constant 0 : index
    %c1_191 = arith.constant 1 : index
    %c0_192 = arith.constant 0 : index
    %c0_193 = arith.constant 0 : index
    %251 = vector.load %arg9[%c0_190, %c1_191, %c0_192, %c0_193] : memref<2x2x32x16xf32, #tpu.memory_space<vmem>>, vector<1x1x32x16xf32>
    %252 = vector.shape_cast %251 : vector<1x1x32x16xf32> to vector<32x16xf32>
    %cst_194 = arith.constant dense<0.000000e+00> : vector<16x16xf32>
    %253 = tpu.matmul %7, %252, %cst_194 {dimension_numbers = #tpu.dot_dimension_numbers<[1], [0], [0], [1], [0, 0, 1, 1], [], []>} : vector<16x32xf32>, vector<32x16xf32>, vector<16x16xf32> -> vector<16x16xf32>
    %c0_195 = arith.constant 0 : index
    %c1_196 = arith.constant 1 : index
    %c0_197 = arith.constant 0 : index
    %c0_198 = arith.constant 0 : index
    %254 = vector.load %arg10[%c0_195, %c1_196, %c0_197, %c0_198] : memref<2x2x1x16xf32, #tpu.memory_space<vmem>>, vector<1x1x1x16xf32>
    %255 = vector.shape_cast %254 : vector<1x1x1x16xf32> to vector<1x16xf32>
    %256 = vector.broadcast %255 : vector<1x16xf32> to vector<16x16xf32>
    %257 = arith.addf %253, %256 : vector<16x16xf32>
    %cst_199 = arith.constant dense<0.000000e+00> : vector<16x16xf32>
    %258 = tpu.matmul %243, %250, %cst_199 {dimension_numbers = #tpu.dot_dimension_numbers<[1], [1], [0], [0], [0, 0, 1, 0], [], []>} : vector<16x16xf32>, vector<16x16xf32>, vector<16x16xf32> -> vector<16x16xf32>
    %cst_200 = arith.constant 2.500000e-01 : f32
    %259 = vector.broadcast %cst_200 : f32 to vector<16x16xf32>
    %260 = arith.mulf %258, %259 : vector<16x16xf32>
    %261 = vector.broadcast %21 : vector<1x16xf32> to vector<16x16xf32>
    %262 = arith.addf %260, %261 : vector<16x16xf32>
    %cst_201 = arith.constant dense<0xFF800000> : vector<16xf32>
    %263 = vector.multi_reduction <maximumf>, %262, %cst_201 [1] : vector<16x16xf32> to vector<16xf32>
    %264 = vector.shape_cast %263 : vector<16xf32> to vector<16x1xf32>
    %265 = vector.broadcast %264 : vector<16x1xf32> to vector<16x16xf32>
    %266 = arith.subf %262, %265 : vector<16x16xf32>
    %267 = math.exp %266 : vector<16x16xf32>
    %cst_202 = arith.constant dense<0.000000e+00> : vector<16xf32>
    %268 = vector.multi_reduction <add>, %267, %cst_202 [1] : vector<16x16xf32> to vector<16xf32>
    %269 = vector.shape_cast %268 : vector<16xf32> to vector<16x1xf32>
    %270 = tpu.reciprocal %269 {approx = true} : vector<16x1xf32> -> vector<16x1xf32>
    %271 = vector.broadcast %270 : vector<16x1xf32> to vector<16x16xf32>
    %272 = arith.mulf %267, %271 : vector<16x16xf32>
    %cst_203 = arith.constant dense<0.000000e+00> : vector<16x16xf32>
    %273 = tpu.matmul %272, %257, %cst_203 {dimension_numbers = #tpu.dot_dimension_numbers<[1], [0], [0], [1], [0, 0, 1, 1], [], []>} : vector<16x16xf32>, vector<16x16xf32>, vector<16x16xf32> -> vector<16x16xf32>
    %c0_204 = arith.constant 0 : index
    %c1_205 = arith.constant 1 : index
    %c0_206 = arith.constant 0 : index
    %c0_207 = arith.constant 0 : index
    %274 = vector.load %arg11[%c0_204, %c1_205, %c0_206, %c0_207] : memref<2x2x16x32xf32, #tpu.memory_space<vmem>>, vector<1x1x16x32xf32>
    %275 = vector.shape_cast %274 : vector<1x1x16x32xf32> to vector<16x32xf32>
    %cst_208 = arith.constant dense<0.000000e+00> : vector<16x32xf32>
    %276 = tpu.matmul %273, %275, %cst_208 {dimension_numbers = #tpu.dot_dimension_numbers<[1], [0], [0], [1], [0, 0, 1, 1], [], []>} : vector<16x16xf32>, vector<16x32xf32>, vector<16x32xf32> -> vector<16x32xf32>
    %277 = arith.addf %236, %276 : vector<16x32xf32>
    %278 = vector.broadcast %34 : vector<1x32xf32> to vector<16x32xf32>
    %279 = arith.addf %277, %278 : vector<16x32xf32>
    %280 = arith.addf %279, %7 : vector<16x32xf32>
    %cst_209 = arith.constant dense<0.000000e+00> : vector<16xf32>
    %281 = vector.multi_reduction <add>, %280, %cst_209 [1] : vector<16x32xf32> to vector<16xf32>
    %282 = vector.shape_cast %281 : vector<16xf32> to vector<16x1xf32>
    %cst_210 = arith.constant 3.200000e+01 : f32
    %283 = vector.broadcast %cst_210 : f32 to vector<16x1xf32>
    %284 = arith.divf %282, %283 : vector<16x1xf32>
    %285 = vector.broadcast %284 : vector<16x1xf32> to vector<16x32xf32>
    %286 = arith.subf %280, %285 : vector<16x32xf32>
    %287 = arith.mulf %286, %286 : vector<16x32xf32>
    %cst_211 = arith.constant dense<0.000000e+00> : vector<16xf32>
    %288 = vector.multi_reduction <add>, %287, %cst_211 [1] : vector<16x32xf32> to vector<16xf32>
    %289 = vector.shape_cast %288 : vector<16xf32> to vector<16x1xf32>
    %cst_212 = arith.constant 3.200000e+01 : f32
    %290 = vector.broadcast %cst_212 : f32 to vector<16x1xf32>
    %291 = arith.divf %289, %290 : vector<16x1xf32>
    %292 = vector.broadcast %284 : vector<16x1xf32> to vector<16x32xf32>
    %293 = arith.subf %280, %292 : vector<16x32xf32>
    %cst_213 = arith.constant 9.99999974E-6 : f32
    %294 = vector.broadcast %cst_213 : f32 to vector<16x1xf32>
    %295 = arith.addf %291, %294 : vector<16x1xf32>
    %296 = math.rsqrt %295 : vector<16x1xf32>
    %297 = vector.broadcast %296 : vector<16x1xf32> to vector<16x32xf32>
    %298 = arith.mulf %293, %297 : vector<16x32xf32>
    %299 = vector.broadcast %30 : vector<1x32xf32> to vector<16x32xf32>
    %300 = arith.mulf %298, %299 : vector<16x32xf32>
    %301 = vector.broadcast %31 : vector<1x32xf32> to vector<16x32xf32>
    %302 = arith.addf %300, %301 : vector<16x32xf32>
    %cst_214 = arith.constant 0.000000e+00 : f32
    %303 = vector.shape_cast %29 : vector<16x1xi1> to vector<16x1xi1>
    %304 = vector.broadcast %303 : vector<16x1xi1> to vector<16x32xi1>
    %305 = vector.broadcast %cst_214 : f32 to vector<16x32xf32>
    %306 = arith.select %304, %305, %302 : vector<16x32xi1>, vector<16x32xf32>
    %307 = tpu.concatenate %1, %306, %1 in 0 : vector<4x32xf32>, vector<16x32xf32>, vector<4x32xf32> -> vector<24x32xf32>
    %308 = vector.extract_strided_slice %307 {offsets = [0, 0], sizes = [16, 32], strides = [1, 1]} : vector<24x32xf32> to vector<16x32xf32>
    %309 = vector.extract_strided_slice %307 {offsets = [1, 0], sizes = [16, 32], strides = [1, 1]} : vector<24x32xf32> to vector<16x32xf32>
    %310 = vector.extract_strided_slice %307 {offsets = [2, 0], sizes = [16, 32], strides = [1, 1]} : vector<24x32xf32> to vector<16x32xf32>
    %311 = vector.extract_strided_slice %307 {offsets = [3, 0], sizes = [16, 32], strides = [1, 1]} : vector<24x32xf32> to vector<16x32xf32>
    %312 = vector.extract_strided_slice %307 {offsets = [4, 0], sizes = [16, 32], strides = [1, 1]} : vector<24x32xf32> to vector<16x32xf32>
    %313 = vector.extract_strided_slice %307 {offsets = [5, 0], sizes = [16, 32], strides = [1, 1]} : vector<24x32xf32> to vector<16x32xf32>
    %314 = vector.extract_strided_slice %307 {offsets = [6, 0], sizes = [16, 32], strides = [1, 1]} : vector<24x32xf32> to vector<16x32xf32>
    %315 = vector.extract_strided_slice %307 {offsets = [7, 0], sizes = [16, 32], strides = [1, 1]} : vector<24x32xf32> to vector<16x32xf32>
    %316 = vector.extract_strided_slice %307 {offsets = [8, 0], sizes = [16, 32], strides = [1, 1]} : vector<24x32xf32> to vector<16x32xf32>
    %317 = tpu.concatenate %308, %309, %310, %311, %312, %313, %314, %315, %316 in 1 : vector<16x32xf32>, vector<16x32xf32>, vector<16x32xf32>, vector<16x32xf32>, vector<16x32xf32>, vector<16x32xf32>, vector<16x32xf32>, vector<16x32xf32>, vector<16x32xf32> -> vector<16x288xf32>
    %cst_215 = arith.constant dense<0.000000e+00> : vector<16x64xf32>
    %318 = tpu.matmul %317, %36, %cst_215 {dimension_numbers = #tpu.dot_dimension_numbers<[1], [0], [0], [1], [0, 0, 1, 1], [], []>} : vector<16x288xf32>, vector<288x64xf32>, vector<16x64xf32> -> vector<16x64xf32>
    %319 = vector.broadcast %37 : vector<1x64xf32> to vector<16x64xf32>
    %320 = arith.addf %318, %319 : vector<16x64xf32>
    %cst_216 = arith.constant 0.000000e+00 : f32
    %321 = vector.broadcast %cst_216 : f32 to vector<16x64xf32>
    %322 = arith.maximumf %320, %321 : vector<16x64xf32>
    %cst_217 = arith.constant dense<0.000000e+00> : vector<16x32xf32>
    %323 = tpu.matmul %322, %39, %cst_217 {dimension_numbers = #tpu.dot_dimension_numbers<[1], [0], [0], [1], [0, 0, 1, 1], [], []>} : vector<16x64xf32>, vector<64x32xf32>, vector<16x32xf32> -> vector<16x32xf32>
    %324 = vector.broadcast %40 : vector<1x32xf32> to vector<16x32xf32>
    %325 = arith.addf %323, %324 : vector<16x32xf32>
    %326 = arith.addf %325, %306 : vector<16x32xf32>
    %cst_218 = arith.constant dense<0.000000e+00> : vector<16xf32>
    %327 = vector.multi_reduction <add>, %326, %cst_218 [1] : vector<16x32xf32> to vector<16xf32>
    %328 = vector.shape_cast %327 : vector<16xf32> to vector<16x1xf32>
    %cst_219 = arith.constant 3.200000e+01 : f32
    %329 = vector.broadcast %cst_219 : f32 to vector<16x1xf32>
    %330 = arith.divf %328, %329 : vector<16x1xf32>
    %331 = vector.broadcast %330 : vector<16x1xf32> to vector<16x32xf32>
    %332 = arith.subf %326, %331 : vector<16x32xf32>
    %333 = arith.mulf %332, %332 : vector<16x32xf32>
    %cst_220 = arith.constant dense<0.000000e+00> : vector<16xf32>
    %334 = vector.multi_reduction <add>, %333, %cst_220 [1] : vector<16x32xf32> to vector<16xf32>
    %335 = vector.shape_cast %334 : vector<16xf32> to vector<16x1xf32>
    %cst_221 = arith.constant 3.200000e+01 : f32
    %336 = vector.broadcast %cst_221 : f32 to vector<16x1xf32>
    %337 = arith.divf %335, %336 : vector<16x1xf32>
    %338 = vector.broadcast %330 : vector<16x1xf32> to vector<16x32xf32>
    %339 = arith.subf %326, %338 : vector<16x32xf32>
    %cst_222 = arith.constant 9.99999974E-6 : f32
    %340 = vector.broadcast %cst_222 : f32 to vector<16x1xf32>
    %341 = arith.addf %337, %340 : vector<16x1xf32>
    %342 = math.rsqrt %341 : vector<16x1xf32>
    %343 = vector.broadcast %342 : vector<16x1xf32> to vector<16x32xf32>
    %344 = arith.mulf %339, %343 : vector<16x32xf32>
    %345 = vector.broadcast %32 : vector<1x32xf32> to vector<16x32xf32>
    %346 = arith.mulf %344, %345 : vector<16x32xf32>
    %347 = vector.broadcast %33 : vector<1x32xf32> to vector<16x32xf32>
    %348 = arith.addf %346, %347 : vector<16x32xf32>
    %cst_223 = arith.constant 0.000000e+00 : f32
    %349 = vector.shape_cast %29 : vector<16x1xi1> to vector<16x1xi1>
    %350 = vector.broadcast %349 : vector<16x1xi1> to vector<16x32xi1>
    %351 = vector.broadcast %cst_223 : f32 to vector<16x32xf32>
    %352 = arith.select %350, %351, %348 : vector<16x32xi1>, vector<16x32xf32>
    %c1_224 = arith.constant 1 : index
    %c0_225 = arith.constant 0 : index
    %353 = vector.load %arg13[%c1_224, %c0_225] : memref<2x32xf32, #tpu.memory_space<vmem>>, vector<1x32xf32>
    %c1_226 = arith.constant 1 : index
    %c0_227 = arith.constant 0 : index
    %354 = vector.load %arg14[%c1_226, %c0_227] : memref<2x32xf32, #tpu.memory_space<vmem>>, vector<1x32xf32>
    %c1_228 = arith.constant 1 : index
    %c0_229 = arith.constant 0 : index
    %355 = vector.load %arg19[%c1_228, %c0_229] : memref<2x32xf32, #tpu.memory_space<vmem>>, vector<1x32xf32>
    %c1_230 = arith.constant 1 : index
    %c0_231 = arith.constant 0 : index
    %356 = vector.load %arg20[%c1_230, %c0_231] : memref<2x32xf32, #tpu.memory_space<vmem>>, vector<1x32xf32>
    %c1_232 = arith.constant 1 : index
    %c0_233 = arith.constant 0 : index
    %357 = vector.load %arg12[%c1_232, %c0_233] : memref<2x32xf32, #tpu.memory_space<vmem>>, vector<1x32xf32>
    %c1_234 = arith.constant 1 : index
    %c0_235 = arith.constant 0 : index
    %c0_236 = arith.constant 0 : index
    %358 = vector.load %arg15[%c1_234, %c0_235, %c0_236] : memref<2x288x64xf32, #tpu.memory_space<vmem>>, vector<1x288x64xf32>
    %359 = vector.shape_cast %358 : vector<1x288x64xf32> to vector<288x64xf32>
    %c1_237 = arith.constant 1 : index
    %c0_238 = arith.constant 0 : index
    %360 = vector.load %arg16[%c1_237, %c0_238] : memref<2x64xf32, #tpu.memory_space<vmem>>, vector<1x64xf32>
    %c1_239 = arith.constant 1 : index
    %c0_240 = arith.constant 0 : index
    %c0_241 = arith.constant 0 : index
    %361 = vector.load %arg17[%c1_239, %c0_240, %c0_241] : memref<2x64x32xf32, #tpu.memory_space<vmem>>, vector<1x64x32xf32>
    %362 = vector.shape_cast %361 : vector<1x64x32xf32> to vector<64x32xf32>
    %c1_242 = arith.constant 1 : index
    %c0_243 = arith.constant 0 : index
    %363 = vector.load %arg18[%c1_242, %c0_243] : memref<2x32xf32, #tpu.memory_space<vmem>>, vector<1x32xf32>
    %c1_244 = arith.constant 1 : index
    %c0_245 = arith.constant 0 : index
    %c0_246 = arith.constant 0 : index
    %c0_247 = arith.constant 0 : index
    %364 = vector.load %arg5[%c1_244, %c0_245, %c0_246, %c0_247] : memref<2x2x32x16xf32, #tpu.memory_space<vmem>>, vector<1x1x32x16xf32>
    %365 = vector.shape_cast %364 : vector<1x1x32x16xf32> to vector<32x16xf32>
    %cst_248 = arith.constant dense<0.000000e+00> : vector<16x16xf32>
    %366 = tpu.matmul %196, %365, %cst_248 {dimension_numbers = #tpu.dot_dimension_numbers<[1], [0], [0], [1], [0, 0, 1, 1], [], []>} : vector<16x32xf32>, vector<32x16xf32>, vector<16x16xf32> -> vector<16x16xf32>
    %c1_249 = arith.constant 1 : index
    %c0_250 = arith.constant 0 : index
    %c0_251 = arith.constant 0 : index
    %c0_252 = arith.constant 0 : index
    %367 = vector.load %arg6[%c1_249, %c0_250, %c0_251, %c0_252] : memref<2x2x1x16xf32, #tpu.memory_space<vmem>>, vector<1x1x1x16xf32>
    %368 = vector.shape_cast %367 : vector<1x1x1x16xf32> to vector<1x16xf32>
    %369 = vector.broadcast %368 : vector<1x16xf32> to vector<16x16xf32>
    %370 = arith.addf %366, %369 : vector<16x16xf32>
    %c1_253 = arith.constant 1 : index
    %c0_254 = arith.constant 0 : index
    %c0_255 = arith.constant 0 : index
    %c0_256 = arith.constant 0 : index
    %371 = vector.load %arg7[%c1_253, %c0_254, %c0_255, %c0_256] : memref<2x2x32x16xf32, #tpu.memory_space<vmem>>, vector<1x1x32x16xf32>
    %372 = vector.shape_cast %371 : vector<1x1x32x16xf32> to vector<32x16xf32>
    %cst_257 = arith.constant dense<0.000000e+00> : vector<16x16xf32>
    %373 = tpu.matmul %196, %372, %cst_257 {dimension_numbers = #tpu.dot_dimension_numbers<[1], [0], [0], [1], [0, 0, 1, 1], [], []>} : vector<16x32xf32>, vector<32x16xf32>, vector<16x16xf32> -> vector<16x16xf32>
    %c1_258 = arith.constant 1 : index
    %c0_259 = arith.constant 0 : index
    %c0_260 = arith.constant 0 : index
    %c0_261 = arith.constant 0 : index
    %374 = vector.load %arg8[%c1_258, %c0_259, %c0_260, %c0_261] : memref<2x2x1x16xf32, #tpu.memory_space<vmem>>, vector<1x1x1x16xf32>
    %375 = vector.shape_cast %374 : vector<1x1x1x16xf32> to vector<1x16xf32>
    %376 = vector.broadcast %375 : vector<1x16xf32> to vector<16x16xf32>
    %377 = arith.addf %373, %376 : vector<16x16xf32>
    %c1_262 = arith.constant 1 : index
    %c0_263 = arith.constant 0 : index
    %c0_264 = arith.constant 0 : index
    %c0_265 = arith.constant 0 : index
    %378 = vector.load %arg9[%c1_262, %c0_263, %c0_264, %c0_265] : memref<2x2x32x16xf32, #tpu.memory_space<vmem>>, vector<1x1x32x16xf32>
    %379 = vector.shape_cast %378 : vector<1x1x32x16xf32> to vector<32x16xf32>
    %cst_266 = arith.constant dense<0.000000e+00> : vector<16x16xf32>
    %380 = tpu.matmul %196, %379, %cst_266 {dimension_numbers = #tpu.dot_dimension_numbers<[1], [0], [0], [1], [0, 0, 1, 1], [], []>} : vector<16x32xf32>, vector<32x16xf32>, vector<16x16xf32> -> vector<16x16xf32>
    %c1_267 = arith.constant 1 : index
    %c0_268 = arith.constant 0 : index
    %c0_269 = arith.constant 0 : index
    %c0_270 = arith.constant 0 : index
    %381 = vector.load %arg10[%c1_267, %c0_268, %c0_269, %c0_270] : memref<2x2x1x16xf32, #tpu.memory_space<vmem>>, vector<1x1x1x16xf32>
    %382 = vector.shape_cast %381 : vector<1x1x1x16xf32> to vector<1x16xf32>
    %383 = vector.broadcast %382 : vector<1x16xf32> to vector<16x16xf32>
    %384 = arith.addf %380, %383 : vector<16x16xf32>
    %cst_271 = arith.constant dense<0.000000e+00> : vector<16x16xf32>
    %385 = tpu.matmul %370, %377, %cst_271 {dimension_numbers = #tpu.dot_dimension_numbers<[1], [1], [0], [0], [0, 0, 1, 0], [], []>} : vector<16x16xf32>, vector<16x16xf32>, vector<16x16xf32> -> vector<16x16xf32>
    %cst_272 = arith.constant 2.500000e-01 : f32
    %386 = vector.broadcast %cst_272 : f32 to vector<16x16xf32>
    %387 = arith.mulf %385, %386 : vector<16x16xf32>
    %388 = vector.broadcast %14 : vector<1x16xf32> to vector<16x16xf32>
    %389 = arith.addf %387, %388 : vector<16x16xf32>
    %cst_273 = arith.constant dense<0xFF800000> : vector<16xf32>
    %390 = vector.multi_reduction <maximumf>, %389, %cst_273 [1] : vector<16x16xf32> to vector<16xf32>
    %391 = vector.shape_cast %390 : vector<16xf32> to vector<16x1xf32>
    %392 = vector.broadcast %391 : vector<16x1xf32> to vector<16x16xf32>
    %393 = arith.subf %389, %392 : vector<16x16xf32>
    %394 = math.exp %393 : vector<16x16xf32>
    %cst_274 = arith.constant dense<0.000000e+00> : vector<16xf32>
    %395 = vector.multi_reduction <add>, %394, %cst_274 [1] : vector<16x16xf32> to vector<16xf32>
    %396 = vector.shape_cast %395 : vector<16xf32> to vector<16x1xf32>
    %397 = tpu.reciprocal %396 {approx = true} : vector<16x1xf32> -> vector<16x1xf32>
    %398 = vector.broadcast %397 : vector<16x1xf32> to vector<16x16xf32>
    %399 = arith.mulf %394, %398 : vector<16x16xf32>
    %cst_275 = arith.constant dense<0.000000e+00> : vector<16x16xf32>
    %400 = tpu.matmul %399, %384, %cst_275 {dimension_numbers = #tpu.dot_dimension_numbers<[1], [0], [0], [1], [0, 0, 1, 1], [], []>} : vector<16x16xf32>, vector<16x16xf32>, vector<16x16xf32> -> vector<16x16xf32>
    %c1_276 = arith.constant 1 : index
    %c0_277 = arith.constant 0 : index
    %c0_278 = arith.constant 0 : index
    %c0_279 = arith.constant 0 : index
    %401 = vector.load %arg11[%c1_276, %c0_277, %c0_278, %c0_279] : memref<2x2x16x32xf32, #tpu.memory_space<vmem>>, vector<1x1x16x32xf32>
    %402 = vector.shape_cast %401 : vector<1x1x16x32xf32> to vector<16x32xf32>
    %cst_280 = arith.constant dense<0.000000e+00> : vector<16x32xf32>
    %403 = tpu.matmul %400, %402, %cst_280 {dimension_numbers = #tpu.dot_dimension_numbers<[1], [0], [0], [1], [0, 0, 1, 1], [], []>} : vector<16x16xf32>, vector<16x32xf32>, vector<16x32xf32> -> vector<16x32xf32>
    %c1_281 = arith.constant 1 : index
    %c1_282 = arith.constant 1 : index
    %c0_283 = arith.constant 0 : index
    %c0_284 = arith.constant 0 : index
    %404 = vector.load %arg5[%c1_281, %c1_282, %c0_283, %c0_284] : memref<2x2x32x16xf32, #tpu.memory_space<vmem>>, vector<1x1x32x16xf32>
    %405 = vector.shape_cast %404 : vector<1x1x32x16xf32> to vector<32x16xf32>
    %cst_285 = arith.constant dense<0.000000e+00> : vector<16x16xf32>
    %406 = tpu.matmul %196, %405, %cst_285 {dimension_numbers = #tpu.dot_dimension_numbers<[1], [0], [0], [1], [0, 0, 1, 1], [], []>} : vector<16x32xf32>, vector<32x16xf32>, vector<16x16xf32> -> vector<16x16xf32>
    %c1_286 = arith.constant 1 : index
    %c1_287 = arith.constant 1 : index
    %c0_288 = arith.constant 0 : index
    %c0_289 = arith.constant 0 : index
    %407 = vector.load %arg6[%c1_286, %c1_287, %c0_288, %c0_289] : memref<2x2x1x16xf32, #tpu.memory_space<vmem>>, vector<1x1x1x16xf32>
    %408 = vector.shape_cast %407 : vector<1x1x1x16xf32> to vector<1x16xf32>
    %409 = vector.broadcast %408 : vector<1x16xf32> to vector<16x16xf32>
    %410 = arith.addf %406, %409 : vector<16x16xf32>
    %c1_290 = arith.constant 1 : index
    %c1_291 = arith.constant 1 : index
    %c0_292 = arith.constant 0 : index
    %c0_293 = arith.constant 0 : index
    %411 = vector.load %arg7[%c1_290, %c1_291, %c0_292, %c0_293] : memref<2x2x32x16xf32, #tpu.memory_space<vmem>>, vector<1x1x32x16xf32>
    %412 = vector.shape_cast %411 : vector<1x1x32x16xf32> to vector<32x16xf32>
    %cst_294 = arith.constant dense<0.000000e+00> : vector<16x16xf32>
    %413 = tpu.matmul %196, %412, %cst_294 {dimension_numbers = #tpu.dot_dimension_numbers<[1], [0], [0], [1], [0, 0, 1, 1], [], []>} : vector<16x32xf32>, vector<32x16xf32>, vector<16x16xf32> -> vector<16x16xf32>
    %c1_295 = arith.constant 1 : index
    %c1_296 = arith.constant 1 : index
    %c0_297 = arith.constant 0 : index
    %c0_298 = arith.constant 0 : index
    %414 = vector.load %arg8[%c1_295, %c1_296, %c0_297, %c0_298] : memref<2x2x1x16xf32, #tpu.memory_space<vmem>>, vector<1x1x1x16xf32>
    %415 = vector.shape_cast %414 : vector<1x1x1x16xf32> to vector<1x16xf32>
    %416 = vector.broadcast %415 : vector<1x16xf32> to vector<16x16xf32>
    %417 = arith.addf %413, %416 : vector<16x16xf32>
    %c1_299 = arith.constant 1 : index
    %c1_300 = arith.constant 1 : index
    %c0_301 = arith.constant 0 : index
    %c0_302 = arith.constant 0 : index
    %418 = vector.load %arg9[%c1_299, %c1_300, %c0_301, %c0_302] : memref<2x2x32x16xf32, #tpu.memory_space<vmem>>, vector<1x1x32x16xf32>
    %419 = vector.shape_cast %418 : vector<1x1x32x16xf32> to vector<32x16xf32>
    %cst_303 = arith.constant dense<0.000000e+00> : vector<16x16xf32>
    %420 = tpu.matmul %196, %419, %cst_303 {dimension_numbers = #tpu.dot_dimension_numbers<[1], [0], [0], [1], [0, 0, 1, 1], [], []>} : vector<16x32xf32>, vector<32x16xf32>, vector<16x16xf32> -> vector<16x16xf32>
    %c1_304 = arith.constant 1 : index
    %c1_305 = arith.constant 1 : index
    %c0_306 = arith.constant 0 : index
    %c0_307 = arith.constant 0 : index
    %421 = vector.load %arg10[%c1_304, %c1_305, %c0_306, %c0_307] : memref<2x2x1x16xf32, #tpu.memory_space<vmem>>, vector<1x1x1x16xf32>
    %422 = vector.shape_cast %421 : vector<1x1x1x16xf32> to vector<1x16xf32>
    %423 = vector.broadcast %422 : vector<1x16xf32> to vector<16x16xf32>
    %424 = arith.addf %420, %423 : vector<16x16xf32>
    %cst_308 = arith.constant dense<0.000000e+00> : vector<16x16xf32>
    %425 = tpu.matmul %410, %417, %cst_308 {dimension_numbers = #tpu.dot_dimension_numbers<[1], [1], [0], [0], [0, 0, 1, 0], [], []>} : vector<16x16xf32>, vector<16x16xf32>, vector<16x16xf32> -> vector<16x16xf32>
    %cst_309 = arith.constant 2.500000e-01 : f32
    %426 = vector.broadcast %cst_309 : f32 to vector<16x16xf32>
    %427 = arith.mulf %425, %426 : vector<16x16xf32>
    %428 = vector.broadcast %14 : vector<1x16xf32> to vector<16x16xf32>
    %429 = arith.addf %427, %428 : vector<16x16xf32>
    %cst_310 = arith.constant dense<0xFF800000> : vector<16xf32>
    %430 = vector.multi_reduction <maximumf>, %429, %cst_310 [1] : vector<16x16xf32> to vector<16xf32>
    %431 = vector.shape_cast %430 : vector<16xf32> to vector<16x1xf32>
    %432 = vector.broadcast %431 : vector<16x1xf32> to vector<16x16xf32>
    %433 = arith.subf %429, %432 : vector<16x16xf32>
    %434 = math.exp %433 : vector<16x16xf32>
    %cst_311 = arith.constant dense<0.000000e+00> : vector<16xf32>
    %435 = vector.multi_reduction <add>, %434, %cst_311 [1] : vector<16x16xf32> to vector<16xf32>
    %436 = vector.shape_cast %435 : vector<16xf32> to vector<16x1xf32>
    %437 = tpu.reciprocal %436 {approx = true} : vector<16x1xf32> -> vector<16x1xf32>
    %438 = vector.broadcast %437 : vector<16x1xf32> to vector<16x16xf32>
    %439 = arith.mulf %434, %438 : vector<16x16xf32>
    %cst_312 = arith.constant dense<0.000000e+00> : vector<16x16xf32>
    %440 = tpu.matmul %439, %424, %cst_312 {dimension_numbers = #tpu.dot_dimension_numbers<[1], [0], [0], [1], [0, 0, 1, 1], [], []>} : vector<16x16xf32>, vector<16x16xf32>, vector<16x16xf32> -> vector<16x16xf32>
    %c1_313 = arith.constant 1 : index
    %c1_314 = arith.constant 1 : index
    %c0_315 = arith.constant 0 : index
    %c0_316 = arith.constant 0 : index
    %441 = vector.load %arg11[%c1_313, %c1_314, %c0_315, %c0_316] : memref<2x2x16x32xf32, #tpu.memory_space<vmem>>, vector<1x1x16x32xf32>
    %442 = vector.shape_cast %441 : vector<1x1x16x32xf32> to vector<16x32xf32>
    %cst_317 = arith.constant dense<0.000000e+00> : vector<16x32xf32>
    %443 = tpu.matmul %440, %442, %cst_317 {dimension_numbers = #tpu.dot_dimension_numbers<[1], [0], [0], [1], [0, 0, 1, 1], [], []>} : vector<16x16xf32>, vector<16x32xf32>, vector<16x32xf32> -> vector<16x32xf32>
    %444 = arith.addf %403, %443 : vector<16x32xf32>
    %445 = vector.broadcast %357 : vector<1x32xf32> to vector<16x32xf32>
    %446 = arith.addf %444, %445 : vector<16x32xf32>
    %447 = arith.addf %446, %196 : vector<16x32xf32>
    %cst_318 = arith.constant dense<0.000000e+00> : vector<16xf32>
    %448 = vector.multi_reduction <add>, %447, %cst_318 [1] : vector<16x32xf32> to vector<16xf32>
    %449 = vector.shape_cast %448 : vector<16xf32> to vector<16x1xf32>
    %cst_319 = arith.constant 3.200000e+01 : f32
    %450 = vector.broadcast %cst_319 : f32 to vector<16x1xf32>
    %451 = arith.divf %449, %450 : vector<16x1xf32>
    %452 = vector.broadcast %451 : vector<16x1xf32> to vector<16x32xf32>
    %453 = arith.subf %447, %452 : vector<16x32xf32>
    %454 = arith.mulf %453, %453 : vector<16x32xf32>
    %cst_320 = arith.constant dense<0.000000e+00> : vector<16xf32>
    %455 = vector.multi_reduction <add>, %454, %cst_320 [1] : vector<16x32xf32> to vector<16xf32>
    %456 = vector.shape_cast %455 : vector<16xf32> to vector<16x1xf32>
    %cst_321 = arith.constant 3.200000e+01 : f32
    %457 = vector.broadcast %cst_321 : f32 to vector<16x1xf32>
    %458 = arith.divf %456, %457 : vector<16x1xf32>
    %459 = vector.broadcast %451 : vector<16x1xf32> to vector<16x32xf32>
    %460 = arith.subf %447, %459 : vector<16x32xf32>
    %cst_322 = arith.constant 9.99999974E-6 : f32
    %461 = vector.broadcast %cst_322 : f32 to vector<16x1xf32>
    %462 = arith.addf %458, %461 : vector<16x1xf32>
    %463 = math.rsqrt %462 : vector<16x1xf32>
    %464 = vector.broadcast %463 : vector<16x1xf32> to vector<16x32xf32>
    %465 = arith.mulf %460, %464 : vector<16x32xf32>
    %466 = vector.broadcast %353 : vector<1x32xf32> to vector<16x32xf32>
    %467 = arith.mulf %465, %466 : vector<16x32xf32>
    %468 = vector.broadcast %354 : vector<1x32xf32> to vector<16x32xf32>
    %469 = arith.addf %467, %468 : vector<16x32xf32>
    %cst_323 = arith.constant 0.000000e+00 : f32
    %470 = vector.shape_cast %25 : vector<16x1xi1> to vector<16x1xi1>
    %471 = vector.broadcast %470 : vector<16x1xi1> to vector<16x32xi1>
    %472 = vector.broadcast %cst_323 : f32 to vector<16x32xf32>
    %473 = arith.select %471, %472, %469 : vector<16x32xi1>, vector<16x32xf32>
    %474 = tpu.concatenate %1, %473, %1 in 0 : vector<4x32xf32>, vector<16x32xf32>, vector<4x32xf32> -> vector<24x32xf32>
    %475 = vector.extract_strided_slice %474 {offsets = [0, 0], sizes = [16, 32], strides = [1, 1]} : vector<24x32xf32> to vector<16x32xf32>
    %476 = vector.extract_strided_slice %474 {offsets = [1, 0], sizes = [16, 32], strides = [1, 1]} : vector<24x32xf32> to vector<16x32xf32>
    %477 = vector.extract_strided_slice %474 {offsets = [2, 0], sizes = [16, 32], strides = [1, 1]} : vector<24x32xf32> to vector<16x32xf32>
    %478 = vector.extract_strided_slice %474 {offsets = [3, 0], sizes = [16, 32], strides = [1, 1]} : vector<24x32xf32> to vector<16x32xf32>
    %479 = vector.extract_strided_slice %474 {offsets = [4, 0], sizes = [16, 32], strides = [1, 1]} : vector<24x32xf32> to vector<16x32xf32>
    %480 = vector.extract_strided_slice %474 {offsets = [5, 0], sizes = [16, 32], strides = [1, 1]} : vector<24x32xf32> to vector<16x32xf32>
    %481 = vector.extract_strided_slice %474 {offsets = [6, 0], sizes = [16, 32], strides = [1, 1]} : vector<24x32xf32> to vector<16x32xf32>
    %482 = vector.extract_strided_slice %474 {offsets = [7, 0], sizes = [16, 32], strides = [1, 1]} : vector<24x32xf32> to vector<16x32xf32>
    %483 = vector.extract_strided_slice %474 {offsets = [8, 0], sizes = [16, 32], strides = [1, 1]} : vector<24x32xf32> to vector<16x32xf32>
    %484 = tpu.concatenate %475, %476, %477, %478, %479, %480, %481, %482, %483 in 1 : vector<16x32xf32>, vector<16x32xf32>, vector<16x32xf32>, vector<16x32xf32>, vector<16x32xf32>, vector<16x32xf32>, vector<16x32xf32>, vector<16x32xf32>, vector<16x32xf32> -> vector<16x288xf32>
    %cst_324 = arith.constant dense<0.000000e+00> : vector<16x64xf32>
    %485 = tpu.matmul %484, %359, %cst_324 {dimension_numbers = #tpu.dot_dimension_numbers<[1], [0], [0], [1], [0, 0, 1, 1], [], []>} : vector<16x288xf32>, vector<288x64xf32>, vector<16x64xf32> -> vector<16x64xf32>
    %486 = vector.broadcast %360 : vector<1x64xf32> to vector<16x64xf32>
    %487 = arith.addf %485, %486 : vector<16x64xf32>
    %cst_325 = arith.constant 0.000000e+00 : f32
    %488 = vector.broadcast %cst_325 : f32 to vector<16x64xf32>
    %489 = arith.maximumf %487, %488 : vector<16x64xf32>
    %cst_326 = arith.constant dense<0.000000e+00> : vector<16x32xf32>
    %490 = tpu.matmul %489, %362, %cst_326 {dimension_numbers = #tpu.dot_dimension_numbers<[1], [0], [0], [1], [0, 0, 1, 1], [], []>} : vector<16x64xf32>, vector<64x32xf32>, vector<16x32xf32> -> vector<16x32xf32>
    %491 = vector.broadcast %363 : vector<1x32xf32> to vector<16x32xf32>
    %492 = arith.addf %490, %491 : vector<16x32xf32>
    %493 = arith.addf %492, %473 : vector<16x32xf32>
    %cst_327 = arith.constant dense<0.000000e+00> : vector<16xf32>
    %494 = vector.multi_reduction <add>, %493, %cst_327 [1] : vector<16x32xf32> to vector<16xf32>
    %495 = vector.shape_cast %494 : vector<16xf32> to vector<16x1xf32>
    %cst_328 = arith.constant 3.200000e+01 : f32
    %496 = vector.broadcast %cst_328 : f32 to vector<16x1xf32>
    %497 = arith.divf %495, %496 : vector<16x1xf32>
    %498 = vector.broadcast %497 : vector<16x1xf32> to vector<16x32xf32>
    %499 = arith.subf %493, %498 : vector<16x32xf32>
    %500 = arith.mulf %499, %499 : vector<16x32xf32>
    %cst_329 = arith.constant dense<0.000000e+00> : vector<16xf32>
    %501 = vector.multi_reduction <add>, %500, %cst_329 [1] : vector<16x32xf32> to vector<16xf32>
    %502 = vector.shape_cast %501 : vector<16xf32> to vector<16x1xf32>
    %cst_330 = arith.constant 3.200000e+01 : f32
    %503 = vector.broadcast %cst_330 : f32 to vector<16x1xf32>
    %504 = arith.divf %502, %503 : vector<16x1xf32>
    %505 = vector.broadcast %497 : vector<16x1xf32> to vector<16x32xf32>
    %506 = arith.subf %493, %505 : vector<16x32xf32>
    %cst_331 = arith.constant 9.99999974E-6 : f32
    %507 = vector.broadcast %cst_331 : f32 to vector<16x1xf32>
    %508 = arith.addf %504, %507 : vector<16x1xf32>
    %509 = math.rsqrt %508 : vector<16x1xf32>
    %510 = vector.broadcast %509 : vector<16x1xf32> to vector<16x32xf32>
    %511 = arith.mulf %506, %510 : vector<16x32xf32>
    %512 = vector.broadcast %355 : vector<1x32xf32> to vector<16x32xf32>
    %513 = arith.mulf %511, %512 : vector<16x32xf32>
    %514 = vector.broadcast %356 : vector<1x32xf32> to vector<16x32xf32>
    %515 = arith.addf %513, %514 : vector<16x32xf32>
    %cst_332 = arith.constant 0.000000e+00 : f32
    %516 = vector.shape_cast %25 : vector<16x1xi1> to vector<16x1xi1>
    %517 = vector.broadcast %516 : vector<16x1xi1> to vector<16x32xi1>
    %518 = vector.broadcast %cst_332 : f32 to vector<16x32xf32>
    %519 = arith.select %517, %518, %515 : vector<16x32xi1>, vector<16x32xf32>
    %c1_333 = arith.constant 1 : index
    %c0_334 = arith.constant 0 : index
    %c0_335 = arith.constant 0 : index
    %c0_336 = arith.constant 0 : index
    %520 = vector.load %arg5[%c1_333, %c0_334, %c0_335, %c0_336] : memref<2x2x32x16xf32, #tpu.memory_space<vmem>>, vector<1x1x32x16xf32>
    %521 = vector.shape_cast %520 : vector<1x1x32x16xf32> to vector<32x16xf32>
    %cst_337 = arith.constant dense<0.000000e+00> : vector<16x16xf32>
    %522 = tpu.matmul %352, %521, %cst_337 {dimension_numbers = #tpu.dot_dimension_numbers<[1], [0], [0], [1], [0, 0, 1, 1], [], []>} : vector<16x32xf32>, vector<32x16xf32>, vector<16x16xf32> -> vector<16x16xf32>
    %c1_338 = arith.constant 1 : index
    %c0_339 = arith.constant 0 : index
    %c0_340 = arith.constant 0 : index
    %c0_341 = arith.constant 0 : index
    %523 = vector.load %arg6[%c1_338, %c0_339, %c0_340, %c0_341] : memref<2x2x1x16xf32, #tpu.memory_space<vmem>>, vector<1x1x1x16xf32>
    %524 = vector.shape_cast %523 : vector<1x1x1x16xf32> to vector<1x16xf32>
    %525 = vector.broadcast %524 : vector<1x16xf32> to vector<16x16xf32>
    %526 = arith.addf %522, %525 : vector<16x16xf32>
    %c1_342 = arith.constant 1 : index
    %c0_343 = arith.constant 0 : index
    %c0_344 = arith.constant 0 : index
    %c0_345 = arith.constant 0 : index
    %527 = vector.load %arg7[%c1_342, %c0_343, %c0_344, %c0_345] : memref<2x2x32x16xf32, #tpu.memory_space<vmem>>, vector<1x1x32x16xf32>
    %528 = vector.shape_cast %527 : vector<1x1x32x16xf32> to vector<32x16xf32>
    %cst_346 = arith.constant dense<0.000000e+00> : vector<16x16xf32>
    %529 = tpu.matmul %352, %528, %cst_346 {dimension_numbers = #tpu.dot_dimension_numbers<[1], [0], [0], [1], [0, 0, 1, 1], [], []>} : vector<16x32xf32>, vector<32x16xf32>, vector<16x16xf32> -> vector<16x16xf32>
    %c1_347 = arith.constant 1 : index
    %c0_348 = arith.constant 0 : index
    %c0_349 = arith.constant 0 : index
    %c0_350 = arith.constant 0 : index
    %530 = vector.load %arg8[%c1_347, %c0_348, %c0_349, %c0_350] : memref<2x2x1x16xf32, #tpu.memory_space<vmem>>, vector<1x1x1x16xf32>
    %531 = vector.shape_cast %530 : vector<1x1x1x16xf32> to vector<1x16xf32>
    %532 = vector.broadcast %531 : vector<1x16xf32> to vector<16x16xf32>
    %533 = arith.addf %529, %532 : vector<16x16xf32>
    %c1_351 = arith.constant 1 : index
    %c0_352 = arith.constant 0 : index
    %c0_353 = arith.constant 0 : index
    %c0_354 = arith.constant 0 : index
    %534 = vector.load %arg9[%c1_351, %c0_352, %c0_353, %c0_354] : memref<2x2x32x16xf32, #tpu.memory_space<vmem>>, vector<1x1x32x16xf32>
    %535 = vector.shape_cast %534 : vector<1x1x32x16xf32> to vector<32x16xf32>
    %cst_355 = arith.constant dense<0.000000e+00> : vector<16x16xf32>
    %536 = tpu.matmul %352, %535, %cst_355 {dimension_numbers = #tpu.dot_dimension_numbers<[1], [0], [0], [1], [0, 0, 1, 1], [], []>} : vector<16x32xf32>, vector<32x16xf32>, vector<16x16xf32> -> vector<16x16xf32>
    %c1_356 = arith.constant 1 : index
    %c0_357 = arith.constant 0 : index
    %c0_358 = arith.constant 0 : index
    %c0_359 = arith.constant 0 : index
    %537 = vector.load %arg10[%c1_356, %c0_357, %c0_358, %c0_359] : memref<2x2x1x16xf32, #tpu.memory_space<vmem>>, vector<1x1x1x16xf32>
    %538 = vector.shape_cast %537 : vector<1x1x1x16xf32> to vector<1x16xf32>
    %539 = vector.broadcast %538 : vector<1x16xf32> to vector<16x16xf32>
    %540 = arith.addf %536, %539 : vector<16x16xf32>
    %cst_360 = arith.constant dense<0.000000e+00> : vector<16x16xf32>
    %541 = tpu.matmul %526, %533, %cst_360 {dimension_numbers = #tpu.dot_dimension_numbers<[1], [1], [0], [0], [0, 0, 1, 0], [], []>} : vector<16x16xf32>, vector<16x16xf32>, vector<16x16xf32> -> vector<16x16xf32>
    %cst_361 = arith.constant 2.500000e-01 : f32
    %542 = vector.broadcast %cst_361 : f32 to vector<16x16xf32>
    %543 = arith.mulf %541, %542 : vector<16x16xf32>
    %544 = vector.broadcast %21 : vector<1x16xf32> to vector<16x16xf32>
    %545 = arith.addf %543, %544 : vector<16x16xf32>
    %cst_362 = arith.constant dense<0xFF800000> : vector<16xf32>
    %546 = vector.multi_reduction <maximumf>, %545, %cst_362 [1] : vector<16x16xf32> to vector<16xf32>
    %547 = vector.shape_cast %546 : vector<16xf32> to vector<16x1xf32>
    %548 = vector.broadcast %547 : vector<16x1xf32> to vector<16x16xf32>
    %549 = arith.subf %545, %548 : vector<16x16xf32>
    %550 = math.exp %549 : vector<16x16xf32>
    %cst_363 = arith.constant dense<0.000000e+00> : vector<16xf32>
    %551 = vector.multi_reduction <add>, %550, %cst_363 [1] : vector<16x16xf32> to vector<16xf32>
    %552 = vector.shape_cast %551 : vector<16xf32> to vector<16x1xf32>
    %553 = tpu.reciprocal %552 {approx = true} : vector<16x1xf32> -> vector<16x1xf32>
    %554 = vector.broadcast %553 : vector<16x1xf32> to vector<16x16xf32>
    %555 = arith.mulf %550, %554 : vector<16x16xf32>
    %cst_364 = arith.constant dense<0.000000e+00> : vector<16x16xf32>
    %556 = tpu.matmul %555, %540, %cst_364 {dimension_numbers = #tpu.dot_dimension_numbers<[1], [0], [0], [1], [0, 0, 1, 1], [], []>} : vector<16x16xf32>, vector<16x16xf32>, vector<16x16xf32> -> vector<16x16xf32>
    %c1_365 = arith.constant 1 : index
    %c0_366 = arith.constant 0 : index
    %c0_367 = arith.constant 0 : index
    %c0_368 = arith.constant 0 : index
    %557 = vector.load %arg11[%c1_365, %c0_366, %c0_367, %c0_368] : memref<2x2x16x32xf32, #tpu.memory_space<vmem>>, vector<1x1x16x32xf32>
    %558 = vector.shape_cast %557 : vector<1x1x16x32xf32> to vector<16x32xf32>
    %cst_369 = arith.constant dense<0.000000e+00> : vector<16x32xf32>
    %559 = tpu.matmul %556, %558, %cst_369 {dimension_numbers = #tpu.dot_dimension_numbers<[1], [0], [0], [1], [0, 0, 1, 1], [], []>} : vector<16x16xf32>, vector<16x32xf32>, vector<16x32xf32> -> vector<16x32xf32>
    %c1_370 = arith.constant 1 : index
    %c1_371 = arith.constant 1 : index
    %c0_372 = arith.constant 0 : index
    %c0_373 = arith.constant 0 : index
    %560 = vector.load %arg5[%c1_370, %c1_371, %c0_372, %c0_373] : memref<2x2x32x16xf32, #tpu.memory_space<vmem>>, vector<1x1x32x16xf32>
    %561 = vector.shape_cast %560 : vector<1x1x32x16xf32> to vector<32x16xf32>
    %cst_374 = arith.constant dense<0.000000e+00> : vector<16x16xf32>
    %562 = tpu.matmul %352, %561, %cst_374 {dimension_numbers = #tpu.dot_dimension_numbers<[1], [0], [0], [1], [0, 0, 1, 1], [], []>} : vector<16x32xf32>, vector<32x16xf32>, vector<16x16xf32> -> vector<16x16xf32>
    %c1_375 = arith.constant 1 : index
    %c1_376 = arith.constant 1 : index
    %c0_377 = arith.constant 0 : index
    %c0_378 = arith.constant 0 : index
    %563 = vector.load %arg6[%c1_375, %c1_376, %c0_377, %c0_378] : memref<2x2x1x16xf32, #tpu.memory_space<vmem>>, vector<1x1x1x16xf32>
    %564 = vector.shape_cast %563 : vector<1x1x1x16xf32> to vector<1x16xf32>
    %565 = vector.broadcast %564 : vector<1x16xf32> to vector<16x16xf32>
    %566 = arith.addf %562, %565 : vector<16x16xf32>
    %c1_379 = arith.constant 1 : index
    %c1_380 = arith.constant 1 : index
    %c0_381 = arith.constant 0 : index
    %c0_382 = arith.constant 0 : index
    %567 = vector.load %arg7[%c1_379, %c1_380, %c0_381, %c0_382] : memref<2x2x32x16xf32, #tpu.memory_space<vmem>>, vector<1x1x32x16xf32>
    %568 = vector.shape_cast %567 : vector<1x1x32x16xf32> to vector<32x16xf32>
    %cst_383 = arith.constant dense<0.000000e+00> : vector<16x16xf32>
    %569 = tpu.matmul %352, %568, %cst_383 {dimension_numbers = #tpu.dot_dimension_numbers<[1], [0], [0], [1], [0, 0, 1, 1], [], []>} : vector<16x32xf32>, vector<32x16xf32>, vector<16x16xf32> -> vector<16x16xf32>
    %c1_384 = arith.constant 1 : index
    %c1_385 = arith.constant 1 : index
    %c0_386 = arith.constant 0 : index
    %c0_387 = arith.constant 0 : index
    %570 = vector.load %arg8[%c1_384, %c1_385, %c0_386, %c0_387] : memref<2x2x1x16xf32, #tpu.memory_space<vmem>>, vector<1x1x1x16xf32>
    %571 = vector.shape_cast %570 : vector<1x1x1x16xf32> to vector<1x16xf32>
    %572 = vector.broadcast %571 : vector<1x16xf32> to vector<16x16xf32>
    %573 = arith.addf %569, %572 : vector<16x16xf32>
    %c1_388 = arith.constant 1 : index
    %c1_389 = arith.constant 1 : index
    %c0_390 = arith.constant 0 : index
    %c0_391 = arith.constant 0 : index
    %574 = vector.load %arg9[%c1_388, %c1_389, %c0_390, %c0_391] : memref<2x2x32x16xf32, #tpu.memory_space<vmem>>, vector<1x1x32x16xf32>
    %575 = vector.shape_cast %574 : vector<1x1x32x16xf32> to vector<32x16xf32>
    %cst_392 = arith.constant dense<0.000000e+00> : vector<16x16xf32>
    %576 = tpu.matmul %352, %575, %cst_392 {dimension_numbers = #tpu.dot_dimension_numbers<[1], [0], [0], [1], [0, 0, 1, 1], [], []>} : vector<16x32xf32>, vector<32x16xf32>, vector<16x16xf32> -> vector<16x16xf32>
    %c1_393 = arith.constant 1 : index
    %c1_394 = arith.constant 1 : index
    %c0_395 = arith.constant 0 : index
    %c0_396 = arith.constant 0 : index
    %577 = vector.load %arg10[%c1_393, %c1_394, %c0_395, %c0_396] : memref<2x2x1x16xf32, #tpu.memory_space<vmem>>, vector<1x1x1x16xf32>
    %578 = vector.shape_cast %577 : vector<1x1x1x16xf32> to vector<1x16xf32>
    %579 = vector.broadcast %578 : vector<1x16xf32> to vector<16x16xf32>
    %580 = arith.addf %576, %579 : vector<16x16xf32>
    %cst_397 = arith.constant dense<0.000000e+00> : vector<16x16xf32>
    %581 = tpu.matmul %566, %573, %cst_397 {dimension_numbers = #tpu.dot_dimension_numbers<[1], [1], [0], [0], [0, 0, 1, 0], [], []>} : vector<16x16xf32>, vector<16x16xf32>, vector<16x16xf32> -> vector<16x16xf32>
    %cst_398 = arith.constant 2.500000e-01 : f32
    %582 = vector.broadcast %cst_398 : f32 to vector<16x16xf32>
    %583 = arith.mulf %581, %582 : vector<16x16xf32>
    %584 = vector.broadcast %21 : vector<1x16xf32> to vector<16x16xf32>
    %585 = arith.addf %583, %584 : vector<16x16xf32>
    %cst_399 = arith.constant dense<0xFF800000> : vector<16xf32>
    %586 = vector.multi_reduction <maximumf>, %585, %cst_399 [1] : vector<16x16xf32> to vector<16xf32>
    %587 = vector.shape_cast %586 : vector<16xf32> to vector<16x1xf32>
    %588 = vector.broadcast %587 : vector<16x1xf32> to vector<16x16xf32>
    %589 = arith.subf %585, %588 : vector<16x16xf32>
    %590 = math.exp %589 : vector<16x16xf32>
    %cst_400 = arith.constant dense<0.000000e+00> : vector<16xf32>
    %591 = vector.multi_reduction <add>, %590, %cst_400 [1] : vector<16x16xf32> to vector<16xf32>
    %592 = vector.shape_cast %591 : vector<16xf32> to vector<16x1xf32>
    %593 = tpu.reciprocal %592 {approx = true} : vector<16x1xf32> -> vector<16x1xf32>
    %594 = vector.broadcast %593 : vector<16x1xf32> to vector<16x16xf32>
    %595 = arith.mulf %590, %594 : vector<16x16xf32>
    %cst_401 = arith.constant dense<0.000000e+00> : vector<16x16xf32>
    %596 = tpu.matmul %595, %580, %cst_401 {dimension_numbers = #tpu.dot_dimension_numbers<[1], [0], [0], [1], [0, 0, 1, 1], [], []>} : vector<16x16xf32>, vector<16x16xf32>, vector<16x16xf32> -> vector<16x16xf32>
    %c1_402 = arith.constant 1 : index
    %c1_403 = arith.constant 1 : index
    %c0_404 = arith.constant 0 : index
    %c0_405 = arith.constant 0 : index
    %597 = vector.load %arg11[%c1_402, %c1_403, %c0_404, %c0_405] : memref<2x2x16x32xf32, #tpu.memory_space<vmem>>, vector<1x1x16x32xf32>
    %598 = vector.shape_cast %597 : vector<1x1x16x32xf32> to vector<16x32xf32>
    %cst_406 = arith.constant dense<0.000000e+00> : vector<16x32xf32>
    %599 = tpu.matmul %596, %598, %cst_406 {dimension_numbers = #tpu.dot_dimension_numbers<[1], [0], [0], [1], [0, 0, 1, 1], [], []>} : vector<16x16xf32>, vector<16x32xf32>, vector<16x32xf32> -> vector<16x32xf32>
    %600 = arith.addf %559, %599 : vector<16x32xf32>
    %601 = vector.broadcast %357 : vector<1x32xf32> to vector<16x32xf32>
    %602 = arith.addf %600, %601 : vector<16x32xf32>
    %603 = arith.addf %602, %352 : vector<16x32xf32>
    %cst_407 = arith.constant dense<0.000000e+00> : vector<16xf32>
    %604 = vector.multi_reduction <add>, %603, %cst_407 [1] : vector<16x32xf32> to vector<16xf32>
    %605 = vector.shape_cast %604 : vector<16xf32> to vector<16x1xf32>
    %cst_408 = arith.constant 3.200000e+01 : f32
    %606 = vector.broadcast %cst_408 : f32 to vector<16x1xf32>
    %607 = arith.divf %605, %606 : vector<16x1xf32>
    %608 = vector.broadcast %607 : vector<16x1xf32> to vector<16x32xf32>
    %609 = arith.subf %603, %608 : vector<16x32xf32>
    %610 = arith.mulf %609, %609 : vector<16x32xf32>
    %cst_409 = arith.constant dense<0.000000e+00> : vector<16xf32>
    %611 = vector.multi_reduction <add>, %610, %cst_409 [1] : vector<16x32xf32> to vector<16xf32>
    %612 = vector.shape_cast %611 : vector<16xf32> to vector<16x1xf32>
    %cst_410 = arith.constant 3.200000e+01 : f32
    %613 = vector.broadcast %cst_410 : f32 to vector<16x1xf32>
    %614 = arith.divf %612, %613 : vector<16x1xf32>
    %615 = vector.broadcast %607 : vector<16x1xf32> to vector<16x32xf32>
    %616 = arith.subf %603, %615 : vector<16x32xf32>
    %cst_411 = arith.constant 9.99999974E-6 : f32
    %617 = vector.broadcast %cst_411 : f32 to vector<16x1xf32>
    %618 = arith.addf %614, %617 : vector<16x1xf32>
    %619 = math.rsqrt %618 : vector<16x1xf32>
    %620 = vector.broadcast %619 : vector<16x1xf32> to vector<16x32xf32>
    %621 = arith.mulf %616, %620 : vector<16x32xf32>
    %622 = vector.broadcast %353 : vector<1x32xf32> to vector<16x32xf32>
    %623 = arith.mulf %621, %622 : vector<16x32xf32>
    %624 = vector.broadcast %354 : vector<1x32xf32> to vector<16x32xf32>
    %625 = arith.addf %623, %624 : vector<16x32xf32>
    %cst_412 = arith.constant 0.000000e+00 : f32
    %626 = vector.shape_cast %29 : vector<16x1xi1> to vector<16x1xi1>
    %627 = vector.broadcast %626 : vector<16x1xi1> to vector<16x32xi1>
    %628 = vector.broadcast %cst_412 : f32 to vector<16x32xf32>
    %629 = arith.select %627, %628, %625 : vector<16x32xi1>, vector<16x32xf32>
    %630 = tpu.concatenate %1, %629, %1 in 0 : vector<4x32xf32>, vector<16x32xf32>, vector<4x32xf32> -> vector<24x32xf32>
    %631 = vector.extract_strided_slice %630 {offsets = [0, 0], sizes = [16, 32], strides = [1, 1]} : vector<24x32xf32> to vector<16x32xf32>
    %632 = vector.extract_strided_slice %630 {offsets = [1, 0], sizes = [16, 32], strides = [1, 1]} : vector<24x32xf32> to vector<16x32xf32>
    %633 = vector.extract_strided_slice %630 {offsets = [2, 0], sizes = [16, 32], strides = [1, 1]} : vector<24x32xf32> to vector<16x32xf32>
    %634 = vector.extract_strided_slice %630 {offsets = [3, 0], sizes = [16, 32], strides = [1, 1]} : vector<24x32xf32> to vector<16x32xf32>
    %635 = vector.extract_strided_slice %630 {offsets = [4, 0], sizes = [16, 32], strides = [1, 1]} : vector<24x32xf32> to vector<16x32xf32>
    %636 = vector.extract_strided_slice %630 {offsets = [5, 0], sizes = [16, 32], strides = [1, 1]} : vector<24x32xf32> to vector<16x32xf32>
    %637 = vector.extract_strided_slice %630 {offsets = [6, 0], sizes = [16, 32], strides = [1, 1]} : vector<24x32xf32> to vector<16x32xf32>
    %638 = vector.extract_strided_slice %630 {offsets = [7, 0], sizes = [16, 32], strides = [1, 1]} : vector<24x32xf32> to vector<16x32xf32>
    %639 = vector.extract_strided_slice %630 {offsets = [8, 0], sizes = [16, 32], strides = [1, 1]} : vector<24x32xf32> to vector<16x32xf32>
    %640 = tpu.concatenate %631, %632, %633, %634, %635, %636, %637, %638, %639 in 1 : vector<16x32xf32>, vector<16x32xf32>, vector<16x32xf32>, vector<16x32xf32>, vector<16x32xf32>, vector<16x32xf32>, vector<16x32xf32>, vector<16x32xf32>, vector<16x32xf32> -> vector<16x288xf32>
    %cst_413 = arith.constant dense<0.000000e+00> : vector<16x64xf32>
    %641 = tpu.matmul %640, %359, %cst_413 {dimension_numbers = #tpu.dot_dimension_numbers<[1], [0], [0], [1], [0, 0, 1, 1], [], []>} : vector<16x288xf32>, vector<288x64xf32>, vector<16x64xf32> -> vector<16x64xf32>
    %642 = vector.broadcast %360 : vector<1x64xf32> to vector<16x64xf32>
    %643 = arith.addf %641, %642 : vector<16x64xf32>
    %cst_414 = arith.constant 0.000000e+00 : f32
    %644 = vector.broadcast %cst_414 : f32 to vector<16x64xf32>
    %645 = arith.maximumf %643, %644 : vector<16x64xf32>
    %cst_415 = arith.constant dense<0.000000e+00> : vector<16x32xf32>
    %646 = tpu.matmul %645, %362, %cst_415 {dimension_numbers = #tpu.dot_dimension_numbers<[1], [0], [0], [1], [0, 0, 1, 1], [], []>} : vector<16x64xf32>, vector<64x32xf32>, vector<16x32xf32> -> vector<16x32xf32>
    %647 = vector.broadcast %363 : vector<1x32xf32> to vector<16x32xf32>
    %648 = arith.addf %646, %647 : vector<16x32xf32>
    %649 = arith.addf %648, %629 : vector<16x32xf32>
    %cst_416 = arith.constant dense<0.000000e+00> : vector<16xf32>
    %650 = vector.multi_reduction <add>, %649, %cst_416 [1] : vector<16x32xf32> to vector<16xf32>
    %651 = vector.shape_cast %650 : vector<16xf32> to vector<16x1xf32>
    %cst_417 = arith.constant 3.200000e+01 : f32
    %652 = vector.broadcast %cst_417 : f32 to vector<16x1xf32>
    %653 = arith.divf %651, %652 : vector<16x1xf32>
    %654 = vector.broadcast %653 : vector<16x1xf32> to vector<16x32xf32>
    %655 = arith.subf %649, %654 : vector<16x32xf32>
    %656 = arith.mulf %655, %655 : vector<16x32xf32>
    %cst_418 = arith.constant dense<0.000000e+00> : vector<16xf32>
    %657 = vector.multi_reduction <add>, %656, %cst_418 [1] : vector<16x32xf32> to vector<16xf32>
    %658 = vector.shape_cast %657 : vector<16xf32> to vector<16x1xf32>
    %cst_419 = arith.constant 3.200000e+01 : f32
    %659 = vector.broadcast %cst_419 : f32 to vector<16x1xf32>
    %660 = arith.divf %658, %659 : vector<16x1xf32>
    %661 = vector.broadcast %653 : vector<16x1xf32> to vector<16x32xf32>
    %662 = arith.subf %649, %661 : vector<16x32xf32>
    %cst_420 = arith.constant 9.99999974E-6 : f32
    %663 = vector.broadcast %cst_420 : f32 to vector<16x1xf32>
    %664 = arith.addf %660, %663 : vector<16x1xf32>
    %665 = math.rsqrt %664 : vector<16x1xf32>
    %666 = vector.broadcast %665 : vector<16x1xf32> to vector<16x32xf32>
    %667 = arith.mulf %662, %666 : vector<16x32xf32>
    %668 = vector.broadcast %355 : vector<1x32xf32> to vector<16x32xf32>
    %669 = arith.mulf %667, %668 : vector<16x32xf32>
    %670 = vector.broadcast %356 : vector<1x32xf32> to vector<16x32xf32>
    %671 = arith.addf %669, %670 : vector<16x32xf32>
    %cst_421 = arith.constant 0.000000e+00 : f32
    %672 = vector.shape_cast %29 : vector<16x1xi1> to vector<16x1xi1>
    %673 = vector.broadcast %672 : vector<16x1xi1> to vector<16x32xi1>
    %674 = vector.broadcast %cst_421 : f32 to vector<16x32xf32>
    %675 = arith.select %673, %674, %671 : vector<16x32xi1>, vector<16x32xf32>
    %cst_422 = arith.constant dense<0.000000e+00> : vector<32xf32>
    %676 = vector.multi_reduction <add>, %519, %cst_422 [0] : vector<16x32xf32> to vector<32xf32>
    %677 = vector.shape_cast %676 : vector<32xf32> to vector<1x32xf32>
    %cst_423 = arith.constant 1.600000e+01 : f32
    %678 = vector.broadcast %cst_423 : f32 to vector<1x32xf32>
    %679 = arith.divf %677, %678 : vector<1x32xf32>
    %680 = vector.broadcast %679 : vector<1x32xf32> to vector<16x32xf32>
    %681 = arith.subf %519, %680 : vector<16x32xf32>
    %682 = arith.mulf %681, %681 : vector<16x32xf32>
    %cst_424 = arith.constant dense<0.000000e+00> : vector<32xf32>
    %683 = vector.multi_reduction <add>, %682, %cst_424 [0] : vector<16x32xf32> to vector<32xf32>
    %684 = vector.shape_cast %683 : vector<32xf32> to vector<1x32xf32>
    %cst_425 = arith.constant 1.600000e+01 : f32
    %685 = vector.broadcast %cst_425 : f32 to vector<1x32xf32>
    %686 = arith.divf %684, %685 : vector<1x32xf32>
    %687 = vector.broadcast %679 : vector<1x32xf32> to vector<16x32xf32>
    %688 = arith.subf %519, %687 : vector<16x32xf32>
    %cst_426 = arith.constant 9.99999974E-6 : f32
    %689 = vector.broadcast %cst_426 : f32 to vector<1x32xf32>
    %690 = arith.addf %686, %689 : vector<1x32xf32>
    %691 = math.rsqrt %690 : vector<1x32xf32>
    %692 = vector.broadcast %691 : vector<1x32xf32> to vector<16x32xf32>
    %693 = arith.mulf %688, %692 : vector<16x32xf32>
    %c0_427 = arith.constant 0 : index
    %c0_428 = arith.constant 0 : index
    %c0_429 = arith.constant 0 : index
    %694 = vector.load %arg21[%c0_427, %c0_428, %c0_429] : memref<2x16x32xf32, #tpu.memory_space<vmem>>, vector<1x16x32xf32>
    %695 = vector.shape_cast %694 : vector<1x16x32xf32> to vector<16x32xf32>
    %696 = vector.shape_cast %693 : vector<16x32xf32> to vector<1x16x32xf32>
    tpu.vector_store %arg21[%c0_427, %c0_428, %c0_429], %696 {strides = array<i32>} : memref<2x16x32xf32, #tpu.memory_space<vmem>>, vector<1x16x32xf32>,
    %cst_430 = arith.constant dense<0.000000e+00> : vector<32xf32>
    %697 = vector.multi_reduction <add>, %675, %cst_430 [0] : vector<16x32xf32> to vector<32xf32>
    %698 = vector.shape_cast %697 : vector<32xf32> to vector<1x32xf32>
    %cst_431 = arith.constant 1.600000e+01 : f32
    %699 = vector.broadcast %cst_431 : f32 to vector<1x32xf32>
    %700 = arith.divf %698, %699 : vector<1x32xf32>
    %701 = vector.broadcast %700 : vector<1x32xf32> to vector<16x32xf32>
    %702 = arith.subf %675, %701 : vector<16x32xf32>
    %703 = arith.mulf %702, %702 : vector<16x32xf32>
    %cst_432 = arith.constant dense<0.000000e+00> : vector<32xf32>
    %704 = vector.multi_reduction <add>, %703, %cst_432 [0] : vector<16x32xf32> to vector<32xf32>
    %705 = vector.shape_cast %704 : vector<32xf32> to vector<1x32xf32>
    %cst_433 = arith.constant 1.600000e+01 : f32
    %706 = vector.broadcast %cst_433 : f32 to vector<1x32xf32>
    %707 = arith.divf %705, %706 : vector<1x32xf32>
    %708 = vector.broadcast %700 : vector<1x32xf32> to vector<16x32xf32>
    %709 = arith.subf %675, %708 : vector<16x32xf32>
    %cst_434 = arith.constant 9.99999974E-6 : f32
    %710 = vector.broadcast %cst_434 : f32 to vector<1x32xf32>
    %711 = arith.addf %707, %710 : vector<1x32xf32>
    %712 = math.rsqrt %711 : vector<1x32xf32>
    %713 = vector.broadcast %712 : vector<1x32xf32> to vector<16x32xf32>
    %714 = arith.mulf %709, %713 : vector<16x32xf32>
    %c1_435 = arith.constant 1 : index
    %c0_436 = arith.constant 0 : index
    %c0_437 = arith.constant 0 : index
    %715 = vector.load %arg21[%c1_435, %c0_436, %c0_437] : memref<2x16x32xf32, #tpu.memory_space<vmem>>, vector<1x16x32xf32>
    %716 = vector.shape_cast %715 : vector<1x16x32xf32> to vector<16x32xf32>
    %717 = vector.shape_cast %714 : vector<16x32xf32> to vector<1x16x32xf32>
    tpu.vector_store %arg21[%c1_435, %c0_436, %c0_437], %717 {strides = array<i32>} : memref<2x16x32xf32, #tpu.memory_space<vmem>>, vector<1x16x32xf32>,
    return
  }
  func.func @transform_0(%arg0: i32) -> (i32, i32, i32) {
    %c0_i32 = arith.constant 0 : i32
    %c0_i32_0 = arith.constant 0 : i32
    %c0_i32_1 = arith.constant 0 : i32
    return %arg0, %c0_i32, %c0_i32_0 : i32, i32, i32
  }
  func.func @transform_1(%arg0: i32) -> (i32, i32, i32) {
    %c0_i32 = arith.constant 0 : i32
    %c0_i32_0 = arith.constant 0 : i32
    %c0_i32_1 = arith.constant 0 : i32
    return %arg0, %c0_i32, %c0_i32_0 : i32, i32, i32
  }
  func.func @transform_2(%arg0: i32) -> (i32, i32, i32) {
    %c0_i32 = arith.constant 0 : i32
    %c0_i32_0 = arith.constant 0 : i32
    %c0_i32_1 = arith.constant 0 : i32
    return %arg0, %c0_i32, %c0_i32_0 : i32, i32, i32
  }
  func.func @transform_3(%arg0: i32) -> (i32, i32) {
    %c0_i32 = arith.constant 0 : i32
    %c0_i32_0 = arith.constant 0 : i32
    %c0_i32_1 = arith.constant 0 : i32
    return %c0_i32, %c0_i32_0 : i32, i32
  }
  func.func @transform_4(%arg0: i32) -> (i32, i32, i32, i32) {
    %c0_i32 = arith.constant 0 : i32
    %c0_i32_0 = arith.constant 0 : i32
    %c0_i32_1 = arith.constant 0 : i32
    %c0_i32_2 = arith.constant 0 : i32
    %c0_i32_3 = arith.constant 0 : i32
    return %c0_i32, %c0_i32_0, %c0_i32_1, %c0_i32_2 : i32, i32, i32, i32
  }
  func.func @transform_5(%arg0: i32) -> (i32, i32, i32, i32) {
    %c0_i32 = arith.constant 0 : i32
    %c0_i32_0 = arith.constant 0 : i32
    %c0_i32_1 = arith.constant 0 : i32
    %c0_i32_2 = arith.constant 0 : i32
    %c0_i32_3 = arith.constant 0 : i32
    return %c0_i32, %c0_i32_0, %c0_i32_1, %c0_i32_2 : i32, i32, i32, i32
  }
  func.func @transform_6(%arg0: i32) -> (i32, i32, i32, i32) {
    %c0_i32 = arith.constant 0 : i32
    %c0_i32_0 = arith.constant 0 : i32
    %c0_i32_1 = arith.constant 0 : i32
    %c0_i32_2 = arith.constant 0 : i32
    %c0_i32_3 = arith.constant 0 : i32
    return %c0_i32, %c0_i32_0, %c0_i32_1, %c0_i32_2 : i32, i32, i32, i32
  }
  func.func @transform_7(%arg0: i32) -> (i32, i32, i32, i32) {
    %c0_i32 = arith.constant 0 : i32
    %c0_i32_0 = arith.constant 0 : i32
    %c0_i32_1 = arith.constant 0 : i32
    %c0_i32_2 = arith.constant 0 : i32
    %c0_i32_3 = arith.constant 0 : i32
    return %c0_i32, %c0_i32_0, %c0_i32_1, %c0_i32_2 : i32, i32, i32, i32
  }
  func.func @transform_8(%arg0: i32) -> (i32, i32, i32, i32) {
    %c0_i32 = arith.constant 0 : i32
    %c0_i32_0 = arith.constant 0 : i32
    %c0_i32_1 = arith.constant 0 : i32
    %c0_i32_2 = arith.constant 0 : i32
    %c0_i32_3 = arith.constant 0 : i32
    return %c0_i32, %c0_i32_0, %c0_i32_1, %c0_i32_2 : i32, i32, i32, i32
  }
  func.func @transform_9(%arg0: i32) -> (i32, i32, i32, i32) {
    %c0_i32 = arith.constant 0 : i32
    %c0_i32_0 = arith.constant 0 : i32
    %c0_i32_1 = arith.constant 0 : i32
    %c0_i32_2 = arith.constant 0 : i32
    %c0_i32_3 = arith.constant 0 : i32
    return %c0_i32, %c0_i32_0, %c0_i32_1, %c0_i32_2 : i32, i32, i32, i32
  }
  func.func @transform_10(%arg0: i32) -> (i32, i32, i32, i32) {
    %c0_i32 = arith.constant 0 : i32
    %c0_i32_0 = arith.constant 0 : i32
    %c0_i32_1 = arith.constant 0 : i32
    %c0_i32_2 = arith.constant 0 : i32
    %c0_i32_3 = arith.constant 0 : i32
    return %c0_i32, %c0_i32_0, %c0_i32_1, %c0_i32_2 : i32, i32, i32, i32
  }
  func.func @transform_11(%arg0: i32) -> (i32, i32) {
    %c0_i32 = arith.constant 0 : i32
    %c0_i32_0 = arith.constant 0 : i32
    %c0_i32_1 = arith.constant 0 : i32
    return %c0_i32, %c0_i32_0 : i32, i32
  }
  func.func @transform_12(%arg0: i32) -> (i32, i32) {
    %c0_i32 = arith.constant 0 : i32
    %c0_i32_0 = arith.constant 0 : i32
    %c0_i32_1 = arith.constant 0 : i32
    return %c0_i32, %c0_i32_0 : i32, i32
  }
  func.func @transform_13(%arg0: i32) -> (i32, i32) {
    %c0_i32 = arith.constant 0 : i32
    %c0_i32_0 = arith.constant 0 : i32
    %c0_i32_1 = arith.constant 0 : i32
    return %c0_i32, %c0_i32_0 : i32, i32
  }
  func.func @transform_14(%arg0: i32) -> (i32, i32, i32) {
    %c0_i32 = arith.constant 0 : i32
    %c0_i32_0 = arith.constant 0 : i32
    %c0_i32_1 = arith.constant 0 : i32
    %c0_i32_2 = arith.constant 0 : i32
    return %c0_i32, %c0_i32_0, %c0_i32_1 : i32, i32, i32
  }
  func.func @transform_15(%arg0: i32) -> (i32, i32) {
    %c0_i32 = arith.constant 0 : i32
    %c0_i32_0 = arith.constant 0 : i32
    %c0_i32_1 = arith.constant 0 : i32
    return %c0_i32, %c0_i32_0 : i32, i32
  }
  func.func @transform_16(%arg0: i32) -> (i32, i32, i32) {
    %c0_i32 = arith.constant 0 : i32
    %c0_i32_0 = arith.constant 0 : i32
    %c0_i32_1 = arith.constant 0 : i32
    %c0_i32_2 = arith.constant 0 : i32
    return %c0_i32, %c0_i32_0, %c0_i32_1 : i32, i32, i32
  }
  func.func @transform_17(%arg0: i32) -> (i32, i32) {
    %c0_i32 = arith.constant 0 : i32
    %c0_i32_0 = arith.constant 0 : i32
    %c0_i32_1 = arith.constant 0 : i32
    return %c0_i32, %c0_i32_0 : i32, i32
  }
  func.func @transform_18(%arg0: i32) -> (i32, i32) {
    %c0_i32 = arith.constant 0 : i32
    %c0_i32_0 = arith.constant 0 : i32
    %c0_i32_1 = arith.constant 0 : i32
    return %c0_i32, %c0_i32_0 : i32, i32
  }
  func.func @transform_19(%arg0: i32) -> (i32, i32) {
    %c0_i32 = arith.constant 0 : i32
    %c0_i32_0 = arith.constant 0 : i32
    %c0_i32_1 = arith.constant 0 : i32
    return %c0_i32, %c0_i32_0 : i32, i32
  }
  func.func @transform_20(%arg0: i32) -> (i32, i32, i32) {
    %c0_i32 = arith.constant 0 : i32
    %c0_i32_0 = arith.constant 0 : i32
    %c0_i32_1 = arith.constant 0 : i32
    return %arg0, %c0_i32, %c0_i32_0 : i32, i32, i32
  }
}

</mosaic_0001>

<llo_original>
// kernel: tpu_custom_call.1
$region0: #{tpu_custom_call.1}
  #allocation0 [shape = 'u32[]', space=smem, size = 0x4, offset = 0x4, fixed_abs, tag = 'smem constant byte address 0x4 - core index']
  #allocation1 [shape = 'u32[144,128]{1,0:T(1,128)}', space=vmem, size = 0x12000, scoped, tag = 'internal scratch']
  %s0 = inlined_call_operand.vmem [shape: f32[2,16,32], index: 0, kind: input, shape index: {}]
  %s1 = inlined_call_operand.vmem [shape: f32[2,1,16], index: 1, kind: input, shape index: {}]
  %s2 = inlined_call_operand.vmem [shape: f32[2,16,1], index: 2, kind: input, shape index: {}]
  %s3 = inlined_call_operand.vmem [shape: f32[16,32], index: 3, kind: input, shape index: {}]
  %s4 = inlined_call_operand.vmem [shape: f32[2,2,32,16], index: 4, kind: input, shape index: {}]
  %s5 = inlined_call_operand.vmem [shape: f32[2,2,1,16], index: 5, kind: input, shape index: {}]
  %s6 = inlined_call_operand.vmem [shape: f32[2,2,32,16], index: 6, kind: input, shape index: {}]
  %s7 = inlined_call_operand.vmem [shape: f32[2,2,1,16], index: 7, kind: input, shape index: {}]
  %s8 = inlined_call_operand.vmem [shape: f32[2,2,32,16], index: 8, kind: input, shape index: {}]
  %s9 = inlined_call_operand.vmem [shape: f32[2,2,1,16], index: 9, kind: input, shape index: {}]
  %s10 = inlined_call_operand.vmem [shape: f32[2,2,16,32], index: 10, kind: input, shape index: {}]
  %s11 = inlined_call_operand.vmem [shape: f32[2,32], index: 11, kind: input, shape index: {}]
  %s12 = inlined_call_operand.vmem [shape: f32[2,32], index: 12, kind: input, shape index: {}]
  %s13 = inlined_call_operand.vmem [shape: f32[2,32], index: 13, kind: input, shape index: {}]
  %s14 = inlined_call_operand.vmem [shape: f32[2,288,64], index: 14, kind: input, shape index: {}]
  %s15 = inlined_call_operand.vmem [shape: f32[2,64], index: 15, kind: input, shape index: {}]
  %s16 = inlined_call_operand.vmem [shape: f32[2,64,32], index: 16, kind: input, shape index: {}]
  %s17 = inlined_call_operand.vmem [shape: f32[2,32], index: 17, kind: input, shape index: {}]
  %s18 = inlined_call_operand.vmem [shape: f32[2,32], index: 18, kind: input, shape index: {}]
  %s19 = inlined_call_operand.vmem [shape: f32[2,32], index: 19, kind: input, shape index: {}]
  %s20 = inlined_call_operand.hbm [shape: f32[2,16,32], index: 20, kind: output, shape index: {}]
  %s21 = sld [smem:[#allocation0]]
  $region90: #{tpu_custom_call.1} parent=0
    _
  %s23 = ssub.s32 1, %s21
  %s24 = scalar_select 0, %s23, %s21
  $region1: #{tpu_custom_call.1} parent=0
    #allocation2 [shape = 'u8[16384]{0}', space=vmem, size = 0x4000, scoped, tag = 'output window, operand 0, single buffered']
    #allocation3 [shape = 's32[1]{0}', space=sflag, size = 0x4, scoped, tag = 'scoped memory for tpu_custom_call.1']
    %25 = vsyncpa [#allocation3], 0
    // Predicated region
    $region2: #{tpu_custom_call.1} parent=1 // pred_check
      _
    $region3: #{tpu_custom_call.1} parent=1 // pred_check_branch
      %27 = sbr.rel (0) target = $region5
    $region4: #{tpu_custom_call.1} parent=1 // pred_region
      _
    $region5: #{tpu_custom_call.1} parent=1 // pred_fallthru
      _
    // Predicated region
    $region6: #{tpu_custom_call.1} parent=1 // pred_check
      _
    $region7: #{tpu_custom_call.1} parent=1 // pred_check_branch
      %29 = sbr.rel (0) target = $region9
    $region8: #{tpu_custom_call.1} parent=1 // pred_region
      _
    $region9: #{tpu_custom_call.1} parent=1 // pred_fallthru
      _
    // Predicated region
    $region10: #{tpu_custom_call.1} parent=1 // pred_check
      _
    $region11: #{tpu_custom_call.1} parent=1 // pred_check_branch
      %31 = sbr.rel (0) target = $region13
    $region12: #{tpu_custom_call.1} parent=1 // pred_region
      _
    $region13: #{tpu_custom_call.1} parent=1 // pred_fallthru
      _
    // Predicated region
    $region14: #{tpu_custom_call.1} parent=1 // pred_check
      _
    $region15: #{tpu_custom_call.1} parent=1 // pred_check_branch
      %33 = sbr.rel (0) target = $region17
    $region16: #{tpu_custom_call.1} parent=1 // pred_region
      _
    $region17: #{tpu_custom_call.1} parent=1 // pred_fallthru
      _
    // Predicated region
    $region18: #{tpu_custom_call.1} parent=1 // pred_check
      _
    $region19: #{tpu_custom_call.1} parent=1 // pred_check_branch
      %35 = sbr.rel (0) target = $region21
    $region20: #{tpu_custom_call.1} parent=1 // pred_region
      _
    $region21: #{tpu_custom_call.1} parent=1 // pred_fallthru
      _
    // Predicated region
    $region22: #{tpu_custom_call.1} parent=1 // pred_check
      _
    $region23: #{tpu_custom_call.1} parent=1 // pred_check_branch
      %37 = sbr.rel (0) target = $region25
    $region24: #{tpu_custom_call.1} parent=1 // pred_region
      _
    $region25: #{tpu_custom_call.1} parent=1 // pred_fallthru
      _
    // Predicated region
    $region26: #{tpu_custom_call.1} parent=1 // pred_check
      _
    $region27: #{tpu_custom_call.1} parent=1 // pred_check_branch
      %39 = sbr.rel (0) target = $region29
    $region28: #{tpu_custom_call.1} parent=1 // pred_region
      _
    $region29: #{tpu_custom_call.1} parent=1 // pred_fallthru
      _
    // Predicated region
    $region30: #{tpu_custom_call.1} parent=1 // pred_check
      _
    $region31: #{tpu_custom_call.1} parent=1 // pred_check_branch
      %41 = sbr.rel (0) target = $region33
    $region32: #{tpu_custom_call.1} parent=1 // pred_region
      _
    $region33: #{tpu_custom_call.1} parent=1 // pred_fallthru
      _
    // Predicated region
    $region34: #{tpu_custom_call.1} parent=1 // pred_check
      _
    $region35: #{tpu_custom_call.1} parent=1 // pred_check_branch
      %43 = sbr.rel (0) target = $region37
    $region36: #{tpu_custom_call.1} parent=1 // pred_region
      _
    $region37: #{tpu_custom_call.1} parent=1 // pred_fallthru
      _
    // Predicated region
    $region38: #{tpu_custom_call.1} parent=1 // pred_check
      _
    $region39: #{tpu_custom_call.1} parent=1 // pred_check_branch
      %45 = sbr.rel (0) target = $region41
    $region40: #{tpu_custom_call.1} parent=1 // pred_region
      _
    $region41: #{tpu_custom_call.1} parent=1 // pred_fallthru
      _
    // Predicated region
    $region42: #{tpu_custom_call.1} parent=1 // pred_check
      _
    $region43: #{tpu_custom_call.1} parent=1 // pred_check_branch
      %47 = sbr.rel (0) target = $region45
    $region44: #{tpu_custom_call.1} parent=1 // pred_region
      _
    $region45: #{tpu_custom_call.1} parent=1 // pred_fallthru
      _
    // Predicated region
    $region46: #{tpu_custom_call.1} parent=1 // pred_check
      _
    $region47: #{tpu_custom_call.1} parent=1 // pred_check_branch
      %49 = sbr.rel (0) target = $region49
    $region48: #{tpu_custom_call.1} parent=1 // pred_region
      _
    $region49: #{tpu_custom_call.1} parent=1 // pred_fallthru
      _
    // Predicated region
    $region50: #{tpu_custom_call.1} parent=1 // pred_check
      _
    $region51: #{tpu_custom_call.1} parent=1 // pred_check_branch
      %51 = sbr.rel (0) target = $region53
    $region52: #{tpu_custom_call.1} parent=1 // pred_region
      _
    $region53: #{tpu_custom_call.1} parent=1 // pred_fallthru
      _
    // Predicated region
    $region54: #{tpu_custom_call.1} parent=1 // pred_check
      _
    $region55: #{tpu_custom_call.1} parent=1 // pred_check_branch
      %53 = sbr.rel (0) target = $region57
    $region56: #{tpu_custom_call.1} parent=1 // pred_region
      _
    $region57: #{tpu_custom_call.1} parent=1 // pred_fallthru
      _
    // Predicated region
    $region58: #{tpu_custom_call.1} parent=1 // pred_check
      _
    $region59: #{tpu_custom_call.1} parent=1 // pred_check_branch
      %55 = sbr.rel (0) target = $region61
    $region60: #{tpu_custom_call.1} parent=1 // pred_region
      _
    $region61: #{tpu_custom_call.1} parent=1 // pred_fallthru
      _
    // Predicated region
    $region62: #{tpu_custom_call.1} parent=1 // pred_check
      _
    $region63: #{tpu_custom_call.1} parent=1 // pred_check_branch
      %57 = sbr.rel (0) target = $region65
    $region64: #{tpu_custom_call.1} parent=1 // pred_region
      _
    $region65: #{tpu_custom_call.1} parent=1 // pred_fallthru
      _
    // Predicated region
    $region66: #{tpu_custom_call.1} parent=1 // pred_check
      _
    $region67: #{tpu_custom_call.1} parent=1 // pred_check_branch
      %59 = sbr.rel (0) target = $region69
    $region68: #{tpu_custom_call.1} parent=1 // pred_region
      _
    $region69: #{tpu_custom_call.1} parent=1 // pred_fallthru
      _
    // Predicated region
    $region70: #{tpu_custom_call.1} parent=1 // pred_check
      _
    $region71: #{tpu_custom_call.1} parent=1 // pred_check_branch
      %61 = sbr.rel (0) target = $region73
    $region72: #{tpu_custom_call.1} parent=1 // pred_region
      _
    $region73: #{tpu_custom_call.1} parent=1 // pred_fallthru
      _
    // Predicated region
    $region74: #{tpu_custom_call.1} parent=1 // pred_check
      _
    $region75: #{tpu_custom_call.1} parent=1 // pred_check_branch
      %63 = sbr.rel (0) target = $region77
    $region76: #{tpu_custom_call.1} parent=1 // pred_region
      _
    $region77: #{tpu_custom_call.1} parent=1 // pred_fallthru
      _
    // Predicated region
    $region78: #{tpu_custom_call.1} parent=1 // pred_check
      _
    $region79: #{tpu_custom_call.1} parent=1 // pred_check_branch
      %65 = sbr.rel (0) target = $region81
    $region80: #{tpu_custom_call.1} parent=1 // pred_region
      _
    $region81: #{tpu_custom_call.1} parent=1 // pred_fallthru
      _
    %v66 = vld [vmem:[%s3] sm:$0xff]
    %v67 = vld [vmem:[%s3 + $0x8] sm:$0xff]
    %v68 = vld [vmem:[%s0] sm:$0xff]
    %v69 = vld [vmem:[%s0 + $0x8] sm:$0xff]
    %v70 = vadd.f32 %v68, %v66
    %v71 = vadd.f32 %v69, %v67
    %s72 = scalar_lea.vmem %s0, 16
    %v73 = vld [vmem:[%s72] sm:$0xff]
    %v74 = vld [vmem:[%s72 + $0x8] sm:$0xff]
    %v75 = vadd.f32 %v73, %v66
    %v76 = vadd.f32 %v74, %v67
    %v77 = vld [vmem:[%s1] sm:$0x1]
    %vm78 = vcmp.gt.f32.partialorder %v77, 0.5
    %v79 = vsel %vm78, -1e+09, 0.0
    %s80 = scalar_lea.vmem %s1, 1
    %v81 = vld [vmem:[%s80] sm:$0x1]
    %vm82 = vcmp.gt.f32.partialorder %v81, 0.5
    %v83 = vsel %vm82, -1e+09, 0.0
    %v84 = vld [vmem:[%s2] sm:$0xff]
    %v85 = vld [vmem:[%s2 + $0x8] sm:$0xff]
    %vm86 = vcmp.gt.f32.partialorder %v84, 0.5
    %vm87 = vcmp.gt.f32.partialorder %v85, 0.5
    %s88 = scalar_lea.vmem %s2, 16
    %v89 = vld [vmem:[%s88] sm:$0xff]
    %v90 = vld [vmem:[%s88 + $0x8] sm:$0xff]
    %vm91 = vcmp.gt.f32.partialorder %v89, 0.5
    %vm92 = vcmp.gt.f32.partialorder %v90, 0.5
    %v93 = vld [vmem:[%s12] sm:$0x1]
    %v94 = vld [vmem:[%s13] sm:$0x1]
    %v95 = vld [vmem:[%s18] sm:$0x1]
    %v96 = vld [vmem:[%s19] sm:$0x1]
    %v97 = vld [vmem:[%s11] sm:$0x1]
    %v98 = vld [vmem:[%s14] sm:$0xff]
    %v99 = vld [vmem:[%s14 + $0x8] sm:$0xff]
    %v100 = vld [vmem:[%s14 + $0x10] sm:$0xff]
    %v101 = vld [vmem:[%s14 + $0x18] sm:$0xff]
    %v102 = vld [vmem:[%s14 + $0x20] sm:$0xff]
    %v103 = vld [vmem:[%s14 + $0x28] sm:$0xff]
    %v104 = vld [vmem:[%s14 + $0x30] sm:$0xff]
    %v105 = vld [vmem:[%s14 + $0x38] sm:$0xff]
    %v106 = vld [vmem:[%s14 + $0x40] sm:$0xff]
    %v107 = vld [vmem:[%s14 + $0x48] sm:$0xff]
    %v108 = vld [vmem:[%s14 + $0x50] sm:$0xff]
    %v109 = vld [vmem:[%s14 + $0x58] sm:$0xff]
    %v110 = vld [vmem:[%s14 + $0x60] sm:$0xff]
    %v111 = vld [vmem:[%s14 + $0x68] sm:$0xff]
    %v112 = vld [vmem:[%s14 + $0x70] sm:$0xff]
    %v113 = vld [vmem:[%s14 + $0x78] sm:$0xff]
    %v114 = vld [vmem:[%s14 + $0x80] sm:$0xff]
    %v115 = vld [vmem:[%s14 + $0x88] sm:$0xff]
    %v116 = vld [vmem:[%s14 + $0x90] sm:$0xff]
    %v117 = vld [vmem:[%s14 + $0x98] sm:$0xff]
    %v118 = vld [vmem:[%s14 + $0xa0] sm:$0xff]
    %v119 = vld [vmem:[%s14 + $0xa8] sm:$0xff]
    %v120 = vld [vmem:[%s14 + $0xb0] sm:$0xff]
    %v121 = vld [vmem:[%s14 + $0xb8] sm:$0xff]
    %v122 = vld [vmem:[%s14 + $0xc0] sm:$0xff]
    %v123 = vld [vmem:[%s14 + $0xc8] sm:$0xff]
    %v124 = vld [vmem:[%s14 + $0xd0] sm:$0xff]
    %v125 = vld [vmem:[%s14 + $0xd8] sm:$0xff]
    %v126 = vld [vmem:[%s14 + $0xe0] sm:$0xff]
    %v127 = vld [vmem:[%s14 + $0xe8] sm:$0xff]
    %v128 = vld [vmem:[%s14 + $0xf0] sm:$0xff]
    %v129 = vld [vmem:[%s14 + $0xf8] sm:$0xff]
    %v130 = vld [vmem:[%s14 + $0x100] sm:$0xff]
    %v131 = vld [vmem:[%s14 + $0x108] sm:$0xff]
    %v132 = vld [vmem:[%s14 + $0x110] sm:$0xff]
    %v133 = vld [vmem:[%s14 + $0x118] sm:$0xff]
    %v134 = vld [vmem:[%s15] sm:$0x1]
    %v135 = vld [vmem:[%s16] sm:$0xff]
    %v136 = vld [vmem:[%s16 + $0x8] sm:$0xff]
    %v137 = vld [vmem:[%s16 + $0x10] sm:$0xff]
    %v138 = vld [vmem:[%s16 + $0x18] sm:$0xff]
    %v139 = vld [vmem:[%s16 + $0x20] sm:$0xff]
    %v140 = vld [vmem:[%s16 + $0x28] sm:$0xff]
    %v141 = vld [vmem:[%s16 + $0x30] sm:$0xff]
    %v142 = vld [vmem:[%s16 + $0x38] sm:$0xff]
    %v143 = vld [vmem:[%s17] sm:$0x1]
    %v144 = vld [vmem:[%s4] sm:$0xff]
    %v145 = vld [vmem:[%s4 + $0x8] sm:$0xff]
    %v146 = vld [vmem:[%s4 + $0x10] sm:$0xff]
    %v147 = vld [vmem:[%s4 + $0x18] sm:$0xff]
    %v148 = vld [vmem:[%s5] sm:$0x1]
    %v150 = vlaneseq
    %v151 = vshrl.u32 %v150, 7
    %v152 = vsub.s32 0, %v151
    %v153 = vrot.slane %v148, %v152
    %vm155 = vcmask 261120
    %v157 = vsel %vm155, %v70, 0
    %v160 = vsel %vm155, %v71, 0
    %162 = vmatprep.subr.mxu0 0.0
    %163 = vmatpush1.msra.mxu0 %v144
    %164 = vmatprep.subr.mxu0 0.0
    %165 = vmatpush1.msra.mxu0 %v145
    %166 = vmatprep.subr.mxu0 0.0
    %167 = vmatpush1.msra.mxu0 %v146
    %168 = vmatprep.subr.mxu0 0.0
    %169 = vmatpush1.msra.mxu0 %v147
    %170 = vmatprep.subr.mxu0 0.0
    %171 = vmatpush1.msra.mxu0 0.0
    %172 = vmatprep.subr.mxu0 0.0
    %173 = vmatpush1.msra.mxu0 0.0
    %174 = vmatprep.subr.mxu0 0.0
    %175 = vmatpush1.msra.mxu0 0.0
    %176 = vmatprep.subr.mxu0 0.0
    %177 = vmatpush1.msra.mxu0 0.0
    %178 = vmatprep.subr.mxu0 0.0
    %179 = vmatpush1.msra.mxu0 0.0
    %180 = vmatprep.subr.mxu0 0.0
    %181 = vmatpush1.msra.mxu0 0.0
    %182 = vmatprep.subr.mxu0 0.0
    %183 = vmatpush1.msra.mxu0 0.0
    %184 = vmatprep.subr.mxu0 0.0
    %185 = vmatpush1.msra.mxu0 0.0
    %186 = vmatprep.subr.mxu0 0.0
    %187 = vmatpush1.msra.mxu0 0.0
    %188 = vmatprep.subr.mxu0 0.0
    %189 = vmatpush1.msra.mxu0 0.0
    %190 = vmatprep.subr.mxu0 0.0
    %191 = vmatpush1.msra.mxu0 0.0
    %192 = vmatprep.subr.mxu0 0.0
    %193 = vmatpush1.msra.mxu0 0.0
    %194 = vmatprep.subr.mxu0 0.0
    %195 = vmatpush1.msra.mxu0 0.0
    %196 = vmatprep.subr.mxu0 0.0
    %197 = vmatpush1.msra.mxu0 0.0
    %198 = vmatprep.subr.mxu0 0.0
    %199 = vmatpush1.msra.mxu0 0.0
    %200 = vmatprep.subr.mxu0 0.0
    %201 = vmatpush1.msra.mxu0 0.0
    %202 = vmatprep.subr.mxu0 0.0
    %203 = vmatpush1.msra.mxu0 0.0
    %204 = vmatprep.subr.mxu0 0.0
    %205 = vmatpush1.msra.mxu0 0.0
    %206 = vmatprep.subr.mxu0 0.0
    %207 = vmatpush1.msra.mxu0 0.0
    %208 = vmatprep.subr.mxu0 0.0
    %209 = vmatpush1.msra.mxu0 0.0
    %210 = vmatprep.subr.mxu0 0.0
    %211 = vmatpush1.msra.mxu0 0.0
    %212 = vmatprep.subr.mxu0 0.0
    %213 = vmatpush1.msra.mxu0 0.0
    %214 = vmatprep.subr.mxu0 0.0
    %215 = vmatpush1.msra.mxu0 0.0
    %216 = vmatprep.subr.mxu0 0.0
    %217 = vmatpush1.msra.mxu0 0.0
    %218 = vmatprep.subr.mxu0 0.0
    %219 = vmatpush1.msra.mxu0 0.0
    %220 = vmatprep.subr.mxu0 0.0
    %221 = vmatpush1.msra.mxu0 0.0
    %222 = vmatprep.subr.mxu0 0.0
    %223 = vmatpush1.msra.mxu0 0.0
    %224 = vmatprep.subr.mxu0 0.0
    %225 = vmatpush1.msra.mxu0 0.0
    %226 = vmatprep.mubr.f32.mxu0 0.0
    %227 = vmatmul.mubr.f32.gmra.mrb[0].mxu0 %v157
    %v228 = vpop.f32.mrb[0].mxu0
    %v229 = vadd.f32 %v153, %v228
    %v230 = vpop.f32.mrb[0].mxu0
    %231 = vmatprep.mubr.f32.mxu0 0.0
    %232 = vmatmul.mubr.f32.gmra.mrb[0].mxu0 %v160
    %v233 = vpop.f32.mrb[0].mxu0
    %v234 = vadd.f32 %v153, %v233
    %v235 = vpop.f32.mrb[0].mxu0
    %236 = vdwg.mxu0
    %v237 = vld [vmem:[%s6] sm:$0xff]
    %v238 = vld [vmem:[%s6 + $0x8] sm:$0xff]
    %v239 = vld [vmem:[%s6 + $0x10] sm:$0xff]
    %v240 = vld [vmem:[%s6 + $0x18] sm:$0xff]
    %v241 = vld [vmem:[%s7] sm:$0x1]
    %v243 = vlaneseq
    %v244 = vshrl.u32 %v243, 7
    %v245 = vsub.s32 0, %v244
    %v246 = vrot.slane %v241, %v245
    %248 = vmatprep.subr.mxu0 0.0
    %249 = vmatpush1.msra.mxu0 %v237
    %250 = vmatprep.subr.mxu0 0.0
    %251 = vmatpush1.msra.mxu0 %v238
    %252 = vmatprep.subr.mxu0 0.0
    %253 = vmatpush1.msra.mxu0 %v239
    %254 = vmatprep.subr.mxu0 0.0
    %255 = vmatpush1.msra.mxu0 %v240
    %256 = vmatprep.subr.mxu0 0.0
    %257 = vmatpush1.msra.mxu0 0.0
    %258 = vmatprep.subr.mxu0 0.0
    %259 = vmatpush1.msra.mxu0 0.0
    %260 = vmatprep.subr.mxu0 0.0
    %261 = vmatpush1.msra.mxu0 0.0
    %262 = vmatprep.subr.mxu0 0.0
    %263 = vmatpush1.msra.mxu0 0.0
    %264 = vmatprep.subr.mxu0 0.0
    %265 = vmatpush1.msra.mxu0 0.0
    %266 = vmatprep.subr.mxu0 0.0
    %267 = vmatpush1.msra.mxu0 0.0
    %268 = vmatprep.subr.mxu0 0.0
    %269 = vmatpush1.msra.mxu0 0.0
    %270 = vmatprep.subr.mxu0 0.0
    %271 = vmatpush1.msra.mxu0 0.0
    %272 = vmatprep.subr.mxu0 0.0
    %273 = vmatpush1.msra.mxu0 0.0
    %274 = vmatprep.subr.mxu0 0.0
    %275 = vmatpush1.msra.mxu0 0.0
    %276 = vmatprep.subr.mxu0 0.0
    %277 = vmatpush1.msra.mxu0 0.0
    %278 = vmatprep.subr.mxu0 0.0
    %279 = vmatpush1.msra.mxu0 0.0
    %280 = vmatprep.subr.mxu0 0.0
    %281 = vmatpush1.msra.mxu0 0.0
    %282 = vmatprep.subr.mxu0 0.0
    %283 = vmatpush1.msra.mxu0 0.0
    %284 = vmatprep.subr.mxu0 0.0
    %285 = vmatpush1.msra.mxu0 0.0
    %286 = vmatprep.subr.mxu0 0.0
    %287 = vmatpush1.msra.mxu0 0.0
    %288 = vmatprep.subr.mxu0 0.0
    %289 = vmatpush1.msra.mxu0 0.0
    %290 = vmatprep.subr.mxu0 0.0
    %291 = vmatpush1.msra.mxu0 0.0
    %292 = vmatprep.subr.mxu0 0.0
    %293 = vmatpush1.msra.mxu0 0.0
    %294 = vmatprep.subr.mxu0 0.0
    %295 = vmatpush1.msra.mxu0 0.0
    %296 = vmatprep.subr.mxu0 0.0
    %297 = vmatpush1.msra.mxu0 0.0
    %298 = vmatprep.subr.mxu0 0.0
    %299 = vmatpush1.msra.mxu0 0.0
    %300 = vmatprep.subr.mxu0 0.0
    %301 = vmatpush1.msra.mxu0 0.0
    %302 = vmatprep.subr.mxu0 0.0
    %303 = vmatpush1.msra.mxu0 0.0
    %304 = vmatprep.subr.mxu0 0.0
    %305 = vmatpush1.msra.mxu0 0.0
    %306 = vmatprep.subr.mxu0 0.0
    %307 = vmatpush1.msra.mxu0 0.0
    %308 = vmatprep.subr.mxu0 0.0
    %309 = vmatpush1.msra.mxu0 0.0
    %310 = vmatprep.subr.mxu0 0.0
    %311 = vmatpush1.msra.mxu0 0.0
    %312 = vmatprep.mubr.f32.mxu0 0.0
    %313 = vmatmul.mubr.f32.gmra.mrb[0].mxu0 %v157
    %v314 = vpop.f32.mrb[0].mxu0
    %v315 = vadd.f32 %v246, %v314
    %v316 = vpop.f32.mrb[0].mxu0
    %317 = vmatprep.mubr.f32.mxu0 0.0
    %318 = vmatmul.mubr.f32.gmra.mrb[0].mxu0 %v160
    %v319 = vpop.f32.mrb[0].mxu0
    %v320 = vadd.f32 %v246, %v319
    %v321 = vpop.f32.mrb[0].mxu0
    %322 = vdwg.mxu0
    %v323 = vld [vmem:[%s8] sm:$0xff]
    %v324 = vld [vmem:[%s8 + $0x8] sm:$0xff]
    %v325 = vld [vmem:[%s8 + $0x10] sm:$0xff]
    %v326 = vld [vmem:[%s8 + $0x18] sm:$0xff]
    %v327 = vld [vmem:[%s9] sm:$0x1]
    %v329 = vlaneseq
    %v330 = vshrl.u32 %v329, 7
    %v331 = vsub.s32 0, %v330
    %v332 = vrot.slane %v327, %v331
    %334 = vmatprep.subr.mxu0 0.0
    %335 = vmatpush1.msra.mxu0 %v323
    %336 = vmatprep.subr.mxu0 0.0
    %337 = vmatpush1.msra.mxu0 %v324
    %338 = vmatprep.subr.mxu0 0.0
    %339 = vmatpush1.msra.mxu0 %v325
    %340 = vmatprep.subr.mxu0 0.0
    %341 = vmatpush1.msra.mxu0 %v326
    %342 = vmatprep.subr.mxu0 0.0
    %343 = vmatpush1.msra.mxu0 0.0
    %344 = vmatprep.subr.mxu0 0.0
    %345 = vmatpush1.msra.mxu0 0.0
    %346 = vmatprep.subr.mxu0 0.0
    %347 = vmatpush1.msra.mxu0 0.0
    %348 = vmatprep.subr.mxu0 0.0
    %349 = vmatpush1.msra.mxu0 0.0
    %350 = vmatprep.subr.mxu0 0.0
    %351 = vmatpush1.msra.mxu0 0.0
    %352 = vmatprep.subr.mxu0 0.0
    %353 = vmatpush1.msra.mxu0 0.0
    %354 = vmatprep.subr.mxu0 0.0
    %355 = vmatpush1.msra.mxu0 0.0
    %356 = vmatprep.subr.mxu0 0.0
    %357 = vmatpush1.msra.mxu0 0.0
    %358 = vmatprep.subr.mxu0 0.0
    %359 = vmatpush1.msra.mxu0 0.0
    %360 = vmatprep.subr.mxu0 0.0
    %361 = vmatpush1.msra.mxu0 0.0
    %362 = vmatprep.subr.mxu0 0.0
    %363 = vmatpush1.msra.mxu0 0.0
    %364 = vmatprep.subr.mxu0 0.0
    %365 = vmatpush1.msra.mxu0 0.0
    %366 = vmatprep.subr.mxu0 0.0
    %367 = vmatpush1.msra.mxu0 0.0
    %368 = vmatprep.subr.mxu0 0.0
    %369 = vmatpush1.msra.mxu0 0.0
    %370 = vmatprep.subr.mxu0 0.0
    %371 = vmatpush1.msra.mxu0 0.0
    %372 = vmatprep.subr.mxu0 0.0
    %373 = vmatpush1.msra.mxu0 0.0
    %374 = vmatprep.subr.mxu0 0.0
    %375 = vmatpush1.msra.mxu0 0.0
    %376 = vmatprep.subr.mxu0 0.0
    %377 = vmatpush1.msra.mxu0 0.0
    %378 = vmatprep.subr.mxu0 0.0
    %379 = vmatpush1.msra.mxu0 0.0
    %380 = vmatprep.subr.mxu0 0.0
    %381 = vmatpush1.msra.mxu0 0.0
    %382 = vmatprep.subr.mxu0 0.0
    %383 = vmatpush1.msra.mxu0 0.0
    %384 = vmatprep.subr.mxu0 0.0
    %385 = vmatpush1.msra.mxu0 0.0
    %386 = vmatprep.subr.mxu0 0.0
    %387 = vmatpush1.msra.mxu0 0.0
    %388 = vmatprep.subr.mxu0 0.0
    %389 = vmatpush1.msra.mxu0 0.0
    %390 = vmatprep.subr.mxu0 0.0
    %391 = vmatpush1.msra.mxu0 0.0
    %392 = vmatprep.subr.mxu0 0.0
    %393 = vmatpush1.msra.mxu0 0.0
    %394 = vmatprep.subr.mxu0 0.0
    %395 = vmatpush1.msra.mxu0 0.0
    %396 = vmatprep.subr.mxu0 0.0
    %397 = vmatpush1.msra.mxu0 0.0
    %398 = vmatprep.mubr.f32.mxu0 0.0
    %399 = vmatmul.mubr.f32.gmra.mrb[0].mxu0 %v157
    %v400 = vpop.f32.mrb[0].mxu0
    %v401 = vadd.f32 %v332, %v400
    %v402 = vpop.f32.mrb[0].mxu0
    %403 = vmatprep.mubr.f32.mxu0 0.0
    %404 = vmatmul.mubr.f32.gmra.mrb[0].mxu0 %v160
    %v405 = vpop.f32.mrb[0].mxu0
    %v406 = vadd.f32 %v332, %v405
    %v407 = vpop.f32.mrb[0].mxu0
    %408 = vdwg.mxu0
    %vm409 = vcmask 130048
    %v411 = vsel %vm409, %v229, 0
    %v414 = vsel %vm409, %v234, 0
    %v417 = vsel %vm409, %v315, 0
    %v420 = vsel %vm409, %v320, 0
    %422 = vmatprep.subr.mxu0 0.0
    %423 = vmatpush1.xpose.msra.mxu0 %v417
    %424 = vmatprep.subr.mxu0 0.0
    %425 = vmatpush1.xpose.msra.mxu0 %v420
    %426 = vmatprep.subr.mxu0 0.0
    %427 = vmatpush1.xpose.msra.mxu0 0.0
    %428 = vmatprep.subr.mxu0 0.0
    %429 = vmatpush1.xpose.msra.mxu0 0.0
    %430 = vmatprep.subr.mxu0 0.0
    %431 = vmatpush1.xpose.msra.mxu0 0.0
    %432 = vmatprep.subr.mxu0 0.0
    %433 = vmatpush1.xpose.msra.mxu0 0.0
    %434 = vmatprep.subr.mxu0 0.0
    %435 = vmatpush1.xpose.msra.mxu0 0.0
    %436 = vmatprep.subr.mxu0 0.0
    %437 = vmatpush1.xpose.msra.mxu0 0.0
    %438 = vmatprep.subr.mxu0 0.0
    %439 = vmatpush1.xpose.msra.mxu0 0.0
    %440 = vmatprep.subr.mxu0 0.0
    %441 = vmatpush1.xpose.msra.mxu0 0.0
    %442 = vmatprep.subr.mxu0 0.0
    %443 = vmatpush1.xpose.msra.mxu0 0.0
    %444 = vmatprep.subr.mxu0 0.0
    %445 = vmatpush1.xpose.msra.mxu0 0.0
    %446 = vmatprep.subr.mxu0 0.0
    %447 = vmatpush1.xpose.msra.mxu0 0.0
    %448 = vmatprep.subr.mxu0 0.0
    %449 = vmatpush1.xpose.msra.mxu0 0.0
    %450 = vmatprep.subr.mxu0 0.0
    %451 = vmatpush1.xpose.msra.mxu0 0.0
    %452 = vmatprep.subr.mxu0 0.0
    %453 = vmatpush1.xpose.msra.mxu0 0.0
    %454 = vmatprep.subr.mxu0 0.0
    %455 = vmatpush1.xpose.msra.mxu0 0.0
    %456 = vmatprep.subr.mxu0 0.0
    %457 = vmatpush1.xpose.msra.mxu0 0.0
    %458 = vmatprep.subr.mxu0 0.0
    %459 = vmatpush1.xpose.msra.mxu0 0.0
    %460 = vmatprep.subr.mxu0 0.0
    %461 = vmatpush1.xpose.msra.mxu0 0.0
    %462 = vmatprep.subr.mxu0 0.0
    %463 = vmatpush1.xpose.msra.mxu0 0.0
    %464 = vmatprep.subr.mxu0 0.0
    %465 = vmatpush1.xpose.msra.mxu0 0.0
    %466 = vmatprep.subr.mxu0 0.0
    %467 = vmatpush1.xpose.msra.mxu0 0.0
    %468 = vmatprep.subr.mxu0 0.0
    %469 = vmatpush1.xpose.msra.mxu0 0.0
    %470 = vmatprep.subr.mxu0 0.0
    %471 = vmatpush1.xpose.msra.mxu0 0.0
    %472 = vmatprep.subr.mxu0 0.0
    %473 = vmatpush1.xpose.msra.mxu0 0.0
    %474 = vmatprep.subr.mxu0 0.0
    %475 = vmatpush1.xpose.msra.mxu0 0.0
    %476 = vmatprep.subr.mxu0 0.0
    %477 = vmatpush1.xpose.msra.mxu0 0.0
    %478 = vmatprep.subr.mxu0 0.0
    %479 = vmatpush1.xpose.msra.mxu0 0.0
    %480 = vmatprep.subr.mxu0 0.0
    %481 = vmatpush1.xpose.msra.mxu0 0.0
    %482 = vmatprep.subr.mxu0 0.0
    %483 = vmatpush1.xpose.msra.mxu0 0.0
    %484 = vmatprep.subr.mxu0 0.0
    %485 = vmatpush1.xpose.msra.mxu0 0.0
    %486 = vmatprep.mubr.f32.mxu0 0.0
    %487 = vmatmul.mubr.f32.gmra.mrb[0].mxu0 %v411
    %v488 = vpop.f32.mrb[0].mxu0
    %v489 = vadd.f32 0.0, %v488
    %v490 = vpop.f32.mrb[0].mxu0
    %491 = vmatprep.mubr.f32.mxu0 0.0
    %492 = vmatmul.mubr.f32.gmra.mrb[0].mxu0 %v414
    %v493 = vpop.f32.mrb[0].mxu0
    %v494 = vadd.f32 0.0, %v493
    %v495 = vpop.f32.mrb[0].mxu0
    %496 = vdwg.mxu0
    %v497 = vmul.f32 %v489, 0.25
    %v498 = vmul.f32 %v494, 0.25
    %v500 = vlaneseq
    %v501 = vshrl.u32 %v500, 7
    %v502 = vsub.s32 0, %v501
    %v503 = vrot.slane %v79, %v502
    %v505 = vadd.f32 %v497, %v503
    %v506 = vadd.f32 %v498, %v503
    %v507 = vsel %vm409, %v505, -inf
    %508 = vmax.xlane.f32.xlu0 %v507
    %v509 = vpop.xlane.xlu0 %508
    %v510 = vsel %vm409, %v506, -inf
    %511 = vmax.xlane.f32.xlu0 %v510
    %v512 = vpop.xlane.xlu0 %511
    %v513 = vsub.f32 %v505, %v509
    %v514 = vsub.f32 %v506, %v512
    %v515 = vmul.f32 %v513, 1.442695
    %v516 = vpow.pop %v515
    %v517 = vmul.f32 %v514, 1.442695
    %v518 = vpow.pop %v517
    %v519 = vsel %vm409, %v516, 0.0
    %520 = vadd.xlane.f32.xlu0 %v519
    %v521 = vpop.xlane.xlu0 %520
    %v522 = vsel %vm409, %v518, 0.0
    %523 = vadd.xlane.f32.xlu0 %v522
    %v524 = vpop.xlane.xlu0 %523
    %v525 = vrcp.pop %v521
    %v526 = vrcp.pop %v524
    %v527 = vmul.f32 %v516, %v525
    %v528 = vmul.f32 %v518, %v526
    %v530 = vsel %vm409, %v527, 0
    %v533 = vsel %vm409, %v528, 0
    %535 = vmatprep.subr.mxu0 0.0
    %536 = vmatpush1.msra.mxu0 %v401
    %537 = vmatprep.subr.mxu0 0.0
    %538 = vmatpush1.msra.mxu0 %v406
    %539 = vmatprep.subr.mxu0 0.0
    %540 = vmatpush1.msra.mxu0 0.0
    %541 = vmatprep.subr.mxu0 0.0
    %542 = vmatpush1.msra.mxu0 0.0
    %543 = vmatprep.subr.mxu0 0.0
    %544 = vmatpush1.msra.mxu0 0.0
    %545 = vmatprep.subr.mxu0 0.0
    %546 = vmatpush1.msra.mxu0 0.0
    %547 = vmatprep.subr.mxu0 0.0
    %548 = vmatpush1.msra.mxu0 0.0
    %549 = vmatprep.subr.mxu0 0.0
    %550 = vmatpush1.msra.mxu0 0.0
    %551 = vmatprep.subr.mxu0 0.0
    %552 = vmatpush1.msra.mxu0 0.0
    %553 = vmatprep.subr.mxu0 0.0
    %554 = vmatpush1.msra.mxu0 0.0
    %555 = vmatprep.subr.mxu0 0.0
    %556 = vmatpush1.msra.mxu0 0.0
    %557 = vmatprep.subr.mxu0 0.0
    %558 = vmatpush1.msra.mxu0 0.0
    %559 = vmatprep.subr.mxu0 0.0
    %560 = vmatpush1.msra.mxu0 0.0
    %561 = vmatprep.subr.mxu0 0.0
    %562 = vmatpush1.msra.mxu0 0.0
    %563 = vmatprep.subr.mxu0 0.0
    %564 = vmatpush1.msra.mxu0 0.0
    %565 = vmatprep.subr.mxu0 0.0
    %566 = vmatpush1.msra.mxu0 0.0
    %567 = vmatprep.subr.mxu0 0.0
    %568 = vmatpush1.msra.mxu0 0.0
    %569 = vmatprep.subr.mxu0 0.0
    %570 = vmatpush1.msra.mxu0 0.0
    %571 = vmatprep.subr.mxu0 0.0
    %572 = vmatpush1.msra.mxu0 0.0
    %573 = vmatprep.subr.mxu0 0.0
    %574 = vmatpush1.msra.mxu0 0.0
    %575 = vmatprep.subr.mxu0 0.0
    %576 = vmatpush1.msra.mxu0 0.0
    %577 = vmatprep.subr.mxu0 0.0
    %578 = vmatpush1.msra.mxu0 0.0
    %579 = vmatprep.subr.mxu0 0.0
    %580 = vmatpush1.msra.mxu0 0.0
    %581 = vmatprep.subr.mxu0 0.0
    %582 = vmatpush1.msra.mxu0 0.0
    %583 = vmatprep.subr.mxu0 0.0
    %584 = vmatpush1.msra.mxu0 0.0
    %585 = vmatprep.subr.mxu0 0.0
    %586 = vmatpush1.msra.mxu0 0.0
    %587 = vmatprep.subr.mxu0 0.0
    %588 = vmatpush1.msra.mxu0 0.0
    %589 = vmatprep.subr.mxu0 0.0
    %590 = vmatpush1.msra.mxu0 0.0
    %591 = vmatprep.subr.mxu0 0.0
    %592 = vmatpush1.msra.mxu0 0.0
    %593 = vmatprep.subr.mxu0 0.0
    %594 = vmatpush1.msra.mxu0 0.0
    %595 = vmatprep.subr.mxu0 0.0
    %596 = vmatpush1.msra.mxu0 0.0
    %597 = vmatprep.subr.mxu0 0.0
    %598 = vmatpush1.msra.mxu0 0.0
    %599 = vmatprep.mubr.f32.mxu0 0.0
    %600 = vmatmul.mubr.f32.gmra.mrb[0].mxu0 %v530
    %v601 = vpop.f32.mrb[0].mxu0
    %v602 = vadd.f32 0.0, %v601
    %v603 = vpop.f32.mrb[0].mxu0
    %604 = vmatprep.mubr.f32.mxu0 0.0
    %605 = vmatmul.mubr.f32.gmra.mrb[0].mxu0 %v533
    %v606 = vpop.f32.mrb[0].mxu0
    %v607 = vadd.f32 0.0, %v606
    %v608 = vpop.f32.mrb[0].mxu0
    %609 = vdwg.mxu0
    %v610 = vld [vmem:[%s10] sm:$0xff]
    %v611 = vld [vmem:[%s10 + $0x8] sm:$0xff]
    %s612 = scalar_lea.vmem %s4, 32
    %v613 = vld [vmem:[%s612] sm:$0xff]
    %v614 = vld [vmem:[%s612 + $0x8] sm:$0xff]
    %v615 = vld [vmem:[%s612 + $0x10] sm:$0xff]
    %v616 = vld [vmem:[%s612 + $0x18] sm:$0xff]
    %s617 = scalar_lea.vmem %s5, 1
    %v618 = vld [vmem:[%s617] sm:$0x1]
    %v620 = vlaneseq
    %v621 = vshrl.u32 %v620, 7
    %v622 = vsub.s32 0, %v621
    %v623 = vrot.slane %v618, %v622
    %625 = vmatprep.subr.mxu0 0.0
    %626 = vmatpush1.msra.mxu0 %v613
    %627 = vmatprep.subr.mxu0 0.0
    %628 = vmatpush1.msra.mxu0 %v614
    %629 = vmatprep.subr.mxu0 0.0
    %630 = vmatpush1.msra.mxu0 %v615
    %631 = vmatprep.subr.mxu0 0.0
    %632 = vmatpush1.msra.mxu0 %v616
    %633 = vmatprep.subr.mxu0 0.0
    %634 = vmatpush1.msra.mxu0 0.0
    %635 = vmatprep.subr.mxu0 0.0
    %636 = vmatpush1.msra.mxu0 0.0
    %637 = vmatprep.subr.mxu0 0.0
    %638 = vmatpush1.msra.mxu0 0.0
    %639 = vmatprep.subr.mxu0 0.0
    %640 = vmatpush1.msra.mxu0 0.0
    %641 = vmatprep.subr.mxu0 0.0
    %642 = vmatpush1.msra.mxu0 0.0
    %643 = vmatprep.subr.mxu0 0.0
    %644 = vmatpush1.msra.mxu0 0.0
    %645 = vmatprep.subr.mxu0 0.0
    %646 = vmatpush1.msra.mxu0 0.0
    %647 = vmatprep.subr.mxu0 0.0
    %648 = vmatpush1.msra.mxu0 0.0
    %649 = vmatprep.subr.mxu0 0.0
    %650 = vmatpush1.msra.mxu0 0.0
    %651 = vmatprep.subr.mxu0 0.0
    %652 = vmatpush1.msra.mxu0 0.0
    %653 = vmatprep.subr.mxu0 0.0
    %654 = vmatpush1.msra.mxu0 0.0
    %655 = vmatprep.subr.mxu0 0.0
    %656 = vmatpush1.msra.mxu0 0.0
    %657 = vmatprep.subr.mxu0 0.0
    %658 = vmatpush1.msra.mxu0 0.0
    %659 = vmatprep.subr.mxu0 0.0
    %660 = vmatpush1.msra.mxu0 0.0
    %661 = vmatprep.subr.mxu0 0.0
    %662 = vmatpush1.msra.mxu0 0.0
    %663 = vmatprep.subr.mxu0 0.0
    %664 = vmatpush1.msra.mxu0 0.0
    %665 = vmatprep.subr.mxu0 0.0
    %666 = vmatpush1.msra.mxu0 0.0
    %667 = vmatprep.subr.mxu0 0.0
    %668 = vmatpush1.msra.mxu0 0.0
    %669 = vmatprep.subr.mxu0 0.0
    %670 = vmatpush1.msra.mxu0 0.0
    %671 = vmatprep.subr.mxu0 0.0
    %672 = vmatpush1.msra.mxu0 0.0
    %673 = vmatprep.subr.mxu0 0.0
    %674 = vmatpush1.msra.mxu0 0.0
    %675 = vmatprep.subr.mxu0 0.0
    %676 = vmatpush1.msra.mxu0 0.0
    %677 = vmatprep.subr.mxu0 0.0
    %678 = vmatpush1.msra.mxu0 0.0
    %679 = vmatprep.subr.mxu0 0.0
    %680 = vmatpush1.msra.mxu0 0.0
    %681 = vmatprep.subr.mxu0 0.0
    %682 = vmatpush1.msra.mxu0 0.0
    %683 = vmatprep.subr.mxu0 0.0
    %684 = vmatpush1.msra.mxu0 0.0
    %685 = vmatprep.subr.mxu0 0.0
    %686 = vmatpush1.msra.mxu0 0.0
    %687 = vmatprep.subr.mxu0 0.0
    %688 = vmatpush1.msra.mxu0 0.0
    %689 = vmatprep.mubr.f32.mxu0 0.0
    %690 = vmatmul.mubr.f32.gmra.mrb[0].mxu0 %v157
    %v691 = vpop.f32.mrb[0].mxu0
    %v692 = vadd.f32 %v623, %v691
    %v693 = vpop.f32.mrb[0].mxu0
    %694 = vmatprep.mubr.f32.mxu0 0.0
    %695 = vmatmul.mubr.f32.gmra.mrb[0].mxu0 %v160
    %v696 = vpop.f32.mrb[0].mxu0
    %v697 = vadd.f32 %v623, %v696
    %v698 = vpop.f32.mrb[0].mxu0
    %699 = vdwg.mxu0
    %s700 = scalar_lea.vmem %s6, 32
    %v701 = vld [vmem:[%s700] sm:$0xff]
    %v702 = vld [vmem:[%s700 + $0x8] sm:$0xff]
    %v703 = vld [vmem:[%s700 + $0x10] sm:$0xff]
    %v704 = vld [vmem:[%s700 + $0x18] sm:$0xff]
    %s705 = scalar_lea.vmem %s7, 1
    %v706 = vld [vmem:[%s705] sm:$0x1]
    %v708 = vlaneseq
    %v709 = vshrl.u32 %v708, 7
    %v710 = vsub.s32 0, %v709
    %v711 = vrot.slane %v706, %v710
    %713 = vmatprep.subr.mxu0 0.0
    %714 = vmatpush1.msra.mxu0 %v701
    %715 = vmatprep.subr.mxu0 0.0
    %716 = vmatpush1.msra.mxu0 %v702
    %717 = vmatprep.subr.mxu0 0.0
    %718 = vmatpush1.msra.mxu0 %v703
    %719 = vmatprep.subr.mxu0 0.0
    %720 = vmatpush1.msra.mxu0 %v704
    %721 = vmatprep.subr.mxu0 0.0
    %722 = vmatpush1.msra.mxu0 0.0
    %723 = vmatprep.subr.mxu0 0.0
    %724 = vmatpush1.msra.mxu0 0.0
    %725 = vmatprep.subr.mxu0 0.0
    %726 = vmatpush1.msra.mxu0 0.0
    %727 = vmatprep.subr.mxu0 0.0
    %728 = vmatpush1.msra.mxu0 0.0
    %729 = vmatprep.subr.mxu0 0.0
    %730 = vmatpush1.msra.mxu0 0.0
    %731 = vmatprep.subr.mxu0 0.0
    %732 = vmatpush1.msra.mxu0 0.0
    %733 = vmatprep.subr.mxu0 0.0
    %734 = vmatpush1.msra.mxu0 0.0
    %735 = vmatprep.subr.mxu0 0.0
    %736 = vmatpush1.msra.mxu0 0.0
    %737 = vmatprep.subr.mxu0 0.0
    %738 = vmatpush1.msra.mxu0 0.0
    %739 = vmatprep.subr.mxu0 0.0
    %740 = vmatpush1.msra.mxu0 0.0
    %741 = vmatprep.subr.mxu0 0.0
    %742 = vmatpush1.msra.mxu0 0.0
    %743 = vmatprep.subr.mxu0 0.0
    %744 = vmatpush1.msra.mxu0 0.0
    %745 = vmatprep.subr.mxu0 0.0
    %746 = vmatpush1.msra.mxu0 0.0
    %747 = vmatprep.subr.mxu0 0.0
    %748 = vmatpush1.msra.mxu0 0.0
    %749 = vmatprep.subr.mxu0 0.0
    %750 = vmatpush1.msra.mxu0 0.0
    %751 = vmatprep.subr.mxu0 0.0
    %752 = vmatpush1.msra.mxu0 0.0
    %753 = vmatprep.subr.mxu0 0.0
    %754 = vmatpush1.msra.mxu0 0.0
    %755 = vmatprep.subr.mxu0 0.0
    %756 = vmatpush1.msra.mxu0 0.0
    %757 = vmatprep.subr.mxu0 0.0
    %758 = vmatpush1.msra.mxu0 0.0
    %759 = vmatprep.subr.mxu0 0.0
    %760 = vmatpush1.msra.mxu0 0.0
    %761 = vmatprep.subr.mxu0 0.0
    %762 = vmatpush1.msra.mxu0 0.0
    %763 = vmatprep.subr.mxu0 0.0
    %764 = vmatpush1.msra.mxu0 0.0
    %765 = vmatprep.subr.mxu0 0.0
    %766 = vmatpush1.msra.mxu0 0.0
    %767 = vmatprep.subr.mxu0 0.0
    %768 = vmatpush1.msra.mxu0 0.0
    %769 = vmatprep.subr.mxu0 0.0
    %770 = vmatpush1.msra.mxu0 0.0
    %771 = vmatprep.subr.mxu0 0.0
    %772 = vmatpush1.msra.mxu0 0.0
    %773 = vmatprep.subr.mxu0 0.0
    %774 = vmatpush1.msra.mxu0 0.0
    %775 = vmatprep.subr.mxu0 0.0
    %776 = vmatpush1.msra.mxu0 0.0
    %777 = vmatprep.mubr.f32.mxu0 0.0
    %778 = vmatmul.mubr.f32.gmra.mrb[0].mxu0 %v157
    %v779 = vpop.f32.mrb[0].mxu0
    %v780 = vadd.f32 %v711, %v779
    %v781 = vpop.f32.mrb[0].mxu0
    %782 = vmatprep.mubr.f32.mxu0 0.0
    %783 = vmatmul.mubr.f32.gmra.mrb[0].mxu0 %v160
    %v784 = vpop.f32.mrb[0].mxu0
    %v785 = vadd.f32 %v711, %v784
    %v786 = vpop.f32.mrb[0].mxu0
    %787 = vdwg.mxu0
    %s788 = scalar_lea.vmem %s8, 32
    %v789 = vld [vmem:[%s788] sm:$0xff]
    %v790 = vld [vmem:[%s788 + $0x8] sm:$0xff]
    %v791 = vld [vmem:[%s788 + $0x10] sm:$0xff]
    %v792 = vld [vmem:[%s788 + $0x18] sm:$0xff]
    %s793 = scalar_lea.vmem %s9, 1
    %v794 = vld [vmem:[%s793] sm:$0x1]
    %v796 = vlaneseq
    %v797 = vshrl.u32 %v796, 7
    %v798 = vsub.s32 0, %v797
    %v799 = vrot.slane %v794, %v798
    %801 = vmatprep.subr.mxu0 0.0
    %802 = vmatpush1.msra.mxu0 %v789
    %803 = vmatprep.subr.mxu0 0.0
    %804 = vmatpush1.msra.mxu0 %v790
    %805 = vmatprep.subr.mxu0 0.0
    %806 = vmatpush1.msra.mxu0 %v791
    %807 = vmatprep.subr.mxu0 0.0
    %808 = vmatpush1.msra.mxu0 %v792
    %809 = vmatprep.subr.mxu0 0.0
    %810 = vmatpush1.msra.mxu0 0.0
    %811 = vmatprep.subr.mxu0 0.0
    %812 = vmatpush1.msra.mxu0 0.0
    %813 = vmatprep.subr.mxu0 0.0
    %814 = vmatpush1.msra.mxu0 0.0
    %815 = vmatprep.subr.mxu0 0.0
    %816 = vmatpush1.msra.mxu0 0.0
    %817 = vmatprep.subr.mxu0 0.0
    %818 = vmatpush1.msra.mxu0 0.0
    %819 = vmatprep.subr.mxu0 0.0
    %820 = vmatpush1.msra.mxu0 0.0
    %821 = vmatprep.subr.mxu0 0.0
    %822 = vmatpush1.msra.mxu0 0.0
    %823 = vmatprep.subr.mxu0 0.0
    %824 = vmatpush1.msra.mxu0 0.0
    %825 = vmatprep.subr.mxu0 0.0
    %826 = vmatpush1.msra.mxu0 0.0
    %827 = vmatprep.subr.mxu0 0.0
    %828 = vmatpush1.msra.mxu0 0.0
    %829 = vmatprep.subr.mxu0 0.0
    %830 = vmatpush1.msra.mxu0 0.0
    %831 = vmatprep.subr.mxu0 0.0
    %832 = vmatpush1.msra.mxu0 0.0
    %833 = vmatprep.subr.mxu0 0.0
    %834 = vmatpush1.msra.mxu0 0.0
    %835 = vmatprep.subr.mxu0 0.0
    %836 = vmatpush1.msra.mxu0 0.0
    %837 = vmatprep.subr.mxu0 0.0
    %838 = vmatpush1.msra.mxu0 0.0
    %839 = vmatprep.subr.mxu0 0.0
    %840 = vmatpush1.msra.mxu0 0.0
    %841 = vmatprep.subr.mxu0 0.0
    %842 = vmatpush1.msra.mxu0 0.0
    %843 = vmatprep.subr.mxu0 0.0
    %844 = vmatpush1.msra.mxu0 0.0
    %845 = vmatprep.subr.mxu0 0.0
    %846 = vmatpush1.msra.mxu0 0.0
    %847 = vmatprep.subr.mxu0 0.0
    %848 = vmatpush1.msra.mxu0 0.0
    %849 = vmatprep.subr.mxu0 0.0
    %850 = vmatpush1.msra.mxu0 0.0
    %851 = vmatprep.subr.mxu0 0.0
    %852 = vmatpush1.msra.mxu0 0.0
    %853 = vmatprep.subr.mxu0 0.0
    %854 = vmatpush1.msra.mxu0 0.0
    %855 = vmatprep.subr.mxu0 0.0
    %856 = vmatpush1.msra.mxu0 0.0
    %857 = vmatprep.subr.mxu0 0.0
    %858 = vmatpush1.msra.mxu0 0.0
    %859 = vmatprep.subr.mxu0 0.0
    %860 = vmatpush1.msra.mxu0 0.0
    %861 = vmatprep.subr.mxu0 0.0
    %862 = vmatpush1.msra.mxu0 0.0
    %863 = vmatprep.subr.mxu0 0.0
    %864 = vmatpush1.msra.mxu0 0.0
    %865 = vmatprep.mubr.f32.mxu0 0.0
    %866 = vmatmul.mubr.f32.gmra.mrb[0].mxu0 %v157
    %v867 = vpop.f32.mrb[0].mxu0
    %v868 = vadd.f32 %v799, %v867
    %v869 = vpop.f32.mrb[0].mxu0
    %870 = vmatprep.mubr.f32.mxu0 0.0
    %871 = vmatmul.mubr.f32.gmra.mrb[0].mxu0 %v160
    %v872 = vpop.f32.mrb[0].mxu0
    %v873 = vadd.f32 %v799, %v872
    %v874 = vpop.f32.mrb[0].mxu0
    %875 = vdwg.mxu0
    %v877 = vsel %vm409, %v692, 0
    %v880 = vsel %vm409, %v697, 0
    %v883 = vsel %vm409, %v780, 0
    %v886 = vsel %vm409, %v785, 0
    %888 = vmatprep.subr.mxu0 0.0
    %889 = vmatpush1.xpose.msra.mxu0 %v883
    %890 = vmatprep.subr.mxu0 0.0
    %891 = vmatpush1.xpose.msra.mxu0 %v886
    %892 = vmatprep.subr.mxu0 0.0
    %893 = vmatpush1.xpose.msra.mxu0 0.0
    %894 = vmatprep.subr.mxu0 0.0
    %895 = vmatpush1.xpose.msra.mxu0 0.0
    %896 = vmatprep.subr.mxu0 0.0
    %897 = vmatpush1.xpose.msra.mxu0 0.0
    %898 = vmatprep.subr.mxu0 0.0
    %899 = vmatpush1.xpose.msra.mxu0 0.0
    %900 = vmatprep.subr.mxu0 0.0
    %901 = vmatpush1.xpose.msra.mxu0 0.0
    %902 = vmatprep.subr.mxu0 0.0
    %903 = vmatpush1.xpose.msra.mxu0 0.0
    %904 = vmatprep.subr.mxu0 0.0
    %905 = vmatpush1.xpose.msra.mxu0 0.0
    %906 = vmatprep.subr.mxu0 0.0
    %907 = vmatpush1.xpose.msra.mxu0 0.0
    %908 = vmatprep.subr.mxu0 0.0
    %909 = vmatpush1.xpose.msra.mxu0 0.0
    %910 = vmatprep.subr.mxu0 0.0
    %911 = vmatpush1.xpose.msra.mxu0 0.0
    %912 = vmatprep.subr.mxu0 0.0
    %913 = vmatpush1.xpose.msra.mxu0 0.0
    %914 = vmatprep.subr.mxu0 0.0
    %915 = vmatpush1.xpose.msra.mxu0 0.0
    %916 = vmatprep.subr.mxu0 0.0
    %917 = vmatpush1.xpose.msra.mxu0 0.0
    %918 = vmatprep.subr.mxu0 0.0
    %919 = vmatpush1.xpose.msra.mxu0 0.0
    %920 = vmatprep.subr.mxu0 0.0
    %921 = vmatpush1.xpose.msra.mxu0 0.0
    %922 = vmatprep.subr.mxu0 0.0
    %923 = vmatpush1.xpose.msra.mxu0 0.0
    %924 = vmatprep.subr.mxu0 0.0
    %925 = vmatpush1.xpose.msra.mxu0 0.0
    %926 = vmatprep.subr.mxu0 0.0
    %927 = vmatpush1.xpose.msra.mxu0 0.0
    %928 = vmatprep.subr.mxu0 0.0
    %929 = vmatpush1.xpose.msra.mxu0 0.0
    %930 = vmatprep.subr.mxu0 0.0
    %931 = vmatpush1.xpose.msra.mxu0 0.0
    %932 = vmatprep.subr.mxu0 0.0
    %933 = vmatpush1.xpose.msra.mxu0 0.0
    %934 = vmatprep.subr.mxu0 0.0
    %935 = vmatpush1.xpose.msra.mxu0 0.0
    %936 = vmatprep.subr.mxu0 0.0
    %937 = vmatpush1.xpose.msra.mxu0 0.0
    %938 = vmatprep.subr.mxu0 0.0
    %939 = vmatpush1.xpose.msra.mxu0 0.0
    %940 = vmatprep.subr.mxu0 0.0
    %941 = vmatpush1.xpose.msra.mxu0 0.0
    %942 = vmatprep.subr.mxu0 0.0
    %943 = vmatpush1.xpose.msra.mxu0 0.0
    %944 = vmatprep.subr.mxu0 0.0
    %945 = vmatpush1.xpose.msra.mxu0 0.0
    %946 = vmatprep.subr.mxu0 0.0
    %947 = vmatpush1.xpose.msra.mxu0 0.0
    %948 = vmatprep.subr.mxu0 0.0
    %949 = vmatpush1.xpose.msra.mxu0 0.0
    %950 = vmatprep.subr.mxu0 0.0
    %951 = vmatpush1.xpose.msra.mxu0 0.0
    %952 = vmatprep.mubr.f32.mxu0 0.0
    %953 = vmatmul.mubr.f32.gmra.mrb[0].mxu0 %v877
    %v954 = vpop.f32.mrb[0].mxu0
    %v955 = vadd.f32 0.0, %v954
    %v956 = vpop.f32.mrb[0].mxu0
    %957 = vmatprep.mubr.f32.mxu0 0.0
    %958 = vmatmul.mubr.f32.gmra.mrb[0].mxu0 %v880
    %v959 = vpop.f32.mrb[0].mxu0
    %v960 = vadd.f32 0.0, %v959
    %v961 = vpop.f32.mrb[0].mxu0
    %962 = vdwg.mxu0
    %v963 = vmul.f32 %v955, 0.25
    %v964 = vmul.f32 %v960, 0.25
    %v965 = vadd.f32 %v963, %v503
    %v966 = vadd.f32 %v964, %v503
    %v967 = vsel %vm409, %v965, -inf
    %968 = vmax.xlane.f32.xlu0 %v967
    %v969 = vpop.xlane.xlu0 %968
    %v970 = vsel %vm409, %v966, -inf
    %971 = vmax.xlane.f32.xlu0 %v970
    %v972 = vpop.xlane.xlu0 %971
    %v973 = vsub.f32 %v965, %v969
    %v974 = vsub.f32 %v966, %v972
    %v975 = vmul.f32 %v973, 1.442695
    %v976 = vpow.pop %v975
    %v977 = vmul.f32 %v974, 1.442695
    %v978 = vpow.pop %v977
    %v979 = vsel %vm409, %v976, 0.0
    %980 = vadd.xlane.f32.xlu0 %v979
    %v981 = vpop.xlane.xlu0 %980
    %v982 = vsel %vm409, %v978, 0.0
    %983 = vadd.xlane.f32.xlu0 %v982
    %v984 = vpop.xlane.xlu0 %983
    %v985 = vrcp.pop %v981
    %v986 = vrcp.pop %v984
    %v987 = vmul.f32 %v976, %v985
    %v988 = vmul.f32 %v978, %v986
    %v990 = vsel %vm409, %v987, 0
    %v993 = vsel %vm409, %v988, 0
    %995 = vmatprep.subr.mxu0 0.0
    %996 = vmatpush1.msra.mxu0 %v868
    %997 = vmatprep.subr.mxu0 0.0
    %998 = vmatpush1.msra.mxu0 %v873
    %999 = vmatprep.subr.mxu0 0.0
    %1000 = vmatpush1.msra.mxu0 0.0
    %1001 = vmatprep.subr.mxu0 0.0
    %1002 = vmatpush1.msra.mxu0 0.0
    %1003 = vmatprep.subr.mxu0 0.0
    %1004 = vmatpush1.msra.mxu0 0.0
    %1005 = vmatprep.subr.mxu0 0.0
    %1006 = vmatpush1.msra.mxu0 0.0
    %1007 = vmatprep.subr.mxu0 0.0
    %1008 = vmatpush1.msra.mxu0 0.0
    %1009 = vmatprep.subr.mxu0 0.0
    %1010 = vmatpush1.msra.mxu0 0.0
    %1011 = vmatprep.subr.mxu0 0.0
    %1012 = vmatpush1.msra.mxu0 0.0
    %1013 = vmatprep.subr.mxu0 0.0
    %1014 = vmatpush1.msra.mxu0 0.0
    %1015 = vmatprep.subr.mxu0 0.0
    %1016 = vmatpush1.msra.mxu0 0.0
    %1017 = vmatprep.subr.mxu0 0.0
    %1018 = vmatpush1.msra.mxu0 0.0
    %1019 = vmatprep.subr.mxu0 0.0
    %1020 = vmatpush1.msra.mxu0 0.0
    %1021 = vmatprep.subr.mxu0 0.0
    %1022 = vmatpush1.msra.mxu0 0.0
    %1023 = vmatprep.subr.mxu0 0.0
    %1024 = vmatpush1.msra.mxu0 0.0
    %1025 = vmatprep.subr.mxu0 0.0
    %1026 = vmatpush1.msra.mxu0 0.0
    %1027 = vmatprep.subr.mxu0 0.0
    %1028 = vmatpush1.msra.mxu0 0.0
    %1029 = vmatprep.subr.mxu0 0.0
    %1030 = vmatpush1.msra.mxu0 0.0
    %1031 = vmatprep.subr.mxu0 0.0
    %1032 = vmatpush1.msra.mxu0 0.0
    %1033 = vmatprep.subr.mxu0 0.0
    %1034 = vmatpush1.msra.mxu0 0.0
    %1035 = vmatprep.subr.mxu0 0.0
    %1036 = vmatpush1.msra.mxu0 0.0
    %1037 = vmatprep.subr.mxu0 0.0
    %1038 = vmatpush1.msra.mxu0 0.0
    %1039 = vmatprep.subr.mxu0 0.0
    %1040 = vmatpush1.msra.mxu0 0.0
    %1041 = vmatprep.subr.mxu0 0.0
    %1042 = vmatpush1.msra.mxu0 0.0
    %1043 = vmatprep.subr.mxu0 0.0
    %1044 = vmatpush1.msra.mxu0 0.0
    %1045 = vmatprep.subr.mxu0 0.0
    %1046 = vmatpush1.msra.mxu0 0.0
    %1047 = vmatprep.subr.mxu0 0.0
    %1048 = vmatpush1.msra.mxu0 0.0
    %1049 = vmatprep.subr.mxu0 0.0
    %1050 = vmatpush1.msra.mxu0 0.0
    %1051 = vmatprep.subr.mxu0 0.0
    %1052 = vmatpush1.msra.mxu0 0.0
    %1053 = vmatprep.subr.mxu0 0.0
    %1054 = vmatpush1.msra.mxu0 0.0
    %1055 = vmatprep.subr.mxu0 0.0
    %1056 = vmatpush1.msra.mxu0 0.0
    %1057 = vmatprep.subr.mxu0 0.0
    %1058 = vmatpush1.msra.mxu0 0.0
    %1059 = vmatprep.mubr.f32.mxu0 0.0
    %1060 = vmatmul.mubr.f32.gmra.mrb[0].mxu0 %v990
    %v1061 = vpop.f32.mrb[0].mxu0
    %v1062 = vadd.f32 0.0, %v1061
    %v1063 = vpop.f32.mrb[0].mxu0
    %1064 = vmatprep.mubr.f32.mxu0 0.0
    %1065 = vmatmul.mubr.f32.gmra.mrb[0].mxu0 %v993
    %v1066 = vpop.f32.mrb[0].mxu0
    %v1067 = vadd.f32 0.0, %v1066
    %v1068 = vpop.f32.mrb[0].mxu0
    %1069 = vdwg.mxu0
    %s1070 = scalar_lea.vmem %s10, 16
    %v1071 = vld [vmem:[%s1070] sm:$0xff]
    %v1072 = vld [vmem:[%s1070 + $0x8] sm:$0xff]
    %v1074 = vsel %vm409, %v1062, 0
    %v1077 = vsel %vm409, %v1067, 0
    %1079 = vmatprep.subr.mxu0 0.0
    %1080 = vmatpush1.msra.mxu0 %v1071
    %1081 = vmatprep.subr.mxu0 0.0
    %1082 = vmatpush1.msra.mxu0 %v1072
    %1083 = vmatprep.subr.mxu0 0.0
    %1084 = vmatpush1.msra.mxu0 0.0
    %1085 = vmatprep.subr.mxu0 0.0
    %1086 = vmatpush1.msra.mxu0 0.0
    %1087 = vmatprep.subr.mxu0 0.0
    %1088 = vmatpush1.msra.mxu0 0.0
    %1089 = vmatprep.subr.mxu0 0.0
    %1090 = vmatpush1.msra.mxu0 0.0
    %1091 = vmatprep.subr.mxu0 0.0
    %1092 = vmatpush1.msra.mxu0 0.0
    %1093 = vmatprep.subr.mxu0 0.0
    %1094 = vmatpush1.msra.mxu0 0.0
    %1095 = vmatprep.subr.mxu0 0.0
    %1096 = vmatpush1.msra.mxu0 0.0
    %1097 = vmatprep.subr.mxu0 0.0
    %1098 = vmatpush1.msra.mxu0 0.0
    %1099 = vmatprep.subr.mxu0 0.0
    %1100 = vmatpush1.msra.mxu0 0.0
    %1101 = vmatprep.subr.mxu0 0.0
    %1102 = vmatpush1.msra.mxu0 0.0
    %1103 = vmatprep.subr.mxu0 0.0
    %1104 = vmatpush1.msra.mxu0 0.0
    %1105 = vmatprep.subr.mxu0 0.0
    %1106 = vmatpush1.msra.mxu0 0.0
    %1107 = vmatprep.subr.mxu0 0.0
    %1108 = vmatpush1.msra.mxu0 0.0
    %1109 = vmatprep.subr.mxu0 0.0
    %1110 = vmatpush1.msra.mxu0 0.0
    %1111 = vmatprep.subr.mxu0 0.0
    %1112 = vmatpush1.msra.mxu0 0.0
    %1113 = vmatprep.subr.mxu0 0.0
    %1114 = vmatpush1.msra.mxu0 0.0
    %1115 = vmatprep.subr.mxu0 0.0
    %1116 = vmatpush1.msra.mxu0 0.0
    %1117 = vmatprep.subr.mxu0 0.0
    %1118 = vmatpush1.msra.mxu0 0.0
    %1119 = vmatprep.subr.mxu0 0.0
    %1120 = vmatpush1.msra.mxu0 0.0
    %1121 = vmatprep.subr.mxu0 0.0
    %1122 = vmatpush1.msra.mxu0 0.0
    %1123 = vmatprep.subr.mxu0 0.0
    %1124 = vmatpush1.msra.mxu0 0.0
    %1125 = vmatprep.subr.mxu0 0.0
    %1126 = vmatpush1.msra.mxu0 0.0
    %1127 = vmatprep.subr.mxu0 0.0
    %1128 = vmatpush1.msra.mxu0 0.0
    %1129 = vmatprep.subr.mxu0 0.0
    %1130 = vmatpush1.msra.mxu0 0.0
    %1131 = vmatprep.subr.mxu0 0.0
    %1132 = vmatpush1.msra.mxu0 0.0
    %1133 = vmatprep.subr.mxu0 0.0
    %1134 = vmatpush1.msra.mxu0 0.0
    %1135 = vmatprep.subr.mxu0 0.0
    %1136 = vmatpush1.msra.mxu0 0.0
    %1137 = vmatprep.subr.mxu0 0.0
    %1138 = vmatpush1.msra.mxu0 0.0
    %1139 = vmatprep.subr.mxu0 0.0
    %1140 = vmatpush1.msra.mxu0 0.0
    %1141 = vmatprep.subr.mxu0 0.0
    %1142 = vmatpush1.msra.mxu0 0.0
    %1143 = vmatprep.mubr.f32.mxu0 0.0
    %1144 = vmatmul.mubr.f32.gmra.mrb[0].mxu0 %v1074
    %v1145 = vpop.f32.mrb[0].mxu0
    %v1146 = vadd.f32 0.0, %v1145
    %v1147 = vpop.f32.mrb[0].mxu0
    %1148 = vmatprep.mubr.f32.mxu0 0.0
    %1149 = vmatmul.mubr.f32.gmra.mrb[0].mxu0 %v1077
    %v1150 = vpop.f32.mrb[0].mxu0
    %v1151 = vadd.f32 0.0, %v1150
    %v1152 = vpop.f32.mrb[0].mxu0
    %1153 = vdwg.mxu0
    %v1155 = vsel %vm409, %v602, 0
    %v1158 = vsel %vm409, %v607, 0
    %1160 = vmatprep.subr.mxu0 0.0
    %1161 = vmatpush1.msra.mxu0 %v610
    %1162 = vmatprep.subr.mxu0 0.0
    %1163 = vmatpush1.msra.mxu0 %v611
    %1164 = vmatprep.subr.mxu0 0.0
    %1165 = vmatpush1.msra.mxu0 0.0
    %1166 = vmatprep.subr.mxu0 0.0
    %1167 = vmatpush1.msra.mxu0 0.0
    %1168 = vmatprep.subr.mxu0 0.0
    %1169 = vmatpush1.msra.mxu0 0.0
    %1170 = vmatprep.subr.mxu0 0.0
    %1171 = vmatpush1.msra.mxu0 0.0
    %1172 = vmatprep.subr.mxu0 0.0
    %1173 = vmatpush1.msra.mxu0 0.0
    %1174 = vmatprep.subr.mxu0 0.0
    %1175 = vmatpush1.msra.mxu0 0.0
    %1176 = vmatprep.subr.mxu0 0.0
    %1177 = vmatpush1.msra.mxu0 0.0
    %1178 = vmatprep.subr.mxu0 0.0
    %1179 = vmatpush1.msra.mxu0 0.0
    %1180 = vmatprep.subr.mxu0 0.0
    %1181 = vmatpush1.msra.mxu0 0.0
    %1182 = vmatprep.subr.mxu0 0.0
    %1183 = vmatpush1.msra.mxu0 0.0
    %1184 = vmatprep.subr.mxu0 0.0
    %1185 = vmatpush1.msra.mxu0 0.0
    %1186 = vmatprep.subr.mxu0 0.0
    %1187 = vmatpush1.msra.mxu0 0.0
    %1188 = vmatprep.subr.mxu0 0.0
    %1189 = vmatpush1.msra.mxu0 0.0
    %1190 = vmatprep.subr.mxu0 0.0
    %1191 = vmatpush1.msra.mxu0 0.0
    %1192 = vmatprep.subr.mxu0 0.0
    %1193 = vmatpush1.msra.mxu0 0.0
    %1194 = vmatprep.subr.mxu0 0.0
    %1195 = vmatpush1.msra.mxu0 0.0
    %1196 = vmatprep.subr.mxu0 0.0
    %1197 = vmatpush1.msra.mxu0 0.0
    %1198 = vmatprep.subr.mxu0 0.0
    %1199 = vmatpush1.msra.mxu0 0.0
    %1200 = vmatprep.subr.mxu0 0.0
    %1201 = vmatpush1.msra.mxu0 0.0
    %1202 = vmatprep.subr.mxu0 0.0
    %1203 = vmatpush1.msra.mxu0 0.0
    %1204 = vmatprep.subr.mxu0 0.0
    %1205 = vmatpush1.msra.mxu0 0.0
    %1206 = vmatprep.subr.mxu0 0.0
    %1207 = vmatpush1.msra.mxu0 0.0
    %1208 = vmatprep.subr.mxu0 0.0
    %1209 = vmatpush1.msra.mxu0 0.0
    %1210 = vmatprep.subr.mxu0 0.0
    %1211 = vmatpush1.msra.mxu0 0.0
    %1212 = vmatprep.subr.mxu0 0.0
    %1213 = vmatpush1.msra.mxu0 0.0
    %1214 = vmatprep.subr.mxu0 0.0
    %1215 = vmatpush1.msra.mxu0 0.0
    %1216 = vmatprep.subr.mxu0 0.0
    %1217 = vmatpush1.msra.mxu0 0.0
    %1218 = vmatprep.subr.mxu0 0.0
    %1219 = vmatpush1.msra.mxu0 0.0
    %1220 = vmatprep.subr.mxu0 0.0
    %1221 = vmatpush1.msra.mxu0 0.0
    %1222 = vmatprep.subr.mxu0 0.0
    %1223 = vmatpush1.msra.mxu0 0.0
    %1224 = vmatprep.mubr.f32.mxu0 0.0
    %1225 = vmatmul.mubr.f32.gmra.mrb[0].mxu0 %v1155
    %v1226 = vpop.f32.mrb[0].mxu0
    %v1227 = vadd.f32 %v1146, %v1226
    %v1228 = vpop.f32.mrb[0].mxu0
    %1229 = vmatprep.mubr.f32.mxu0 0.0
    %1230 = vmatmul.mubr.f32.gmra.mrb[0].mxu0 %v1158
    %v1231 = vpop.f32.mrb[0].mxu0
    %v1232 = vadd.f32 %v1151, %v1231
    %v1233 = vpop.f32.mrb[0].mxu0
    %1234 = vdwg.mxu0
    %v1235 = vlaneseq
    %v1236 = vshrl.u32 %v1235, 7
    %v1237 = vsub.s32 0, %v1236
    %v1238 = vrot.slane %v97, %v1237
    %v1239 = vadd.f32 %v1227, %v1238
    %v1240 = vadd.f32 %v1232, %v1238
    %v1241 = vadd.f32 %v1239, %v70
    %v1242 = vadd.f32 %v1240, %v71
    %v1243 = vsel %vm155, %v1241, 0.0
    %1244 = vadd.xlane.f32.xlu0 %v1243
    %v1245 = vpop.xlane.xlu0 %1244
    %v1246 = vsel %vm155, %v1242, 0.0
    %1247 = vadd.xlane.f32.xlu0 %v1246
    %v1248 = vpop.xlane.xlu0 %1247
    %v1249 = vrcp.pop 32.0
    %v1250 = vmul.f32 %v1245, %v1249
    %v1251 = vmul.f32 %v1248, %v1249
    %v1252 = vsub.f32 %v1241, %v1250
    %v1253 = vsub.f32 %v1242, %v1251
    %v1254 = vmul.f32 %v1252, %v1252
    %v1255 = vmul.f32 %v1253, %v1253
    %v1256 = vsel %vm155, %v1254, 0.0
    %1257 = vadd.xlane.f32.xlu0 %v1256
    %v1258 = vpop.xlane.xlu0 %1257
    %v1259 = vsel %vm155, %v1255, 0.0
    %1260 = vadd.xlane.f32.xlu0 %v1259
    %v1261 = vpop.xlane.xlu0 %1260
    %v1262 = vmul.f32 %v1258, %v1249
    %v1263 = vmul.f32 %v1261, %v1249
    %v1264 = vadd.f32 %v1262, 1e-05
    %v1265 = vadd.f32 %v1263, 1e-05
    %v1266 = vrsqrt.pop %v1264
    %v1267 = vrsqrt.pop %v1265
    %v1268 = vmul.f32 %v1252, %v1266
    %v1269 = vmul.f32 %v1253, %v1267
    %v1270 = vlaneseq
    %v1271 = vshrl.u32 %v1270, 7
    %v1272 = vsub.s32 0, %v1271
    %v1273 = vrot.slane %v93, %v1272
    %v1274 = vmul.f32 %v1268, %v1273
    %v1275 = vmul.f32 %v1269, %v1273
    %v1276 = vlaneseq
    %v1277 = vshrl.u32 %v1276, 7
    %v1278 = vsub.s32 0, %v1277
    %v1279 = vrot.slane %v94, %v1278
    %v1280 = vadd.f32 %v1274, %v1279
    %v1281 = vadd.f32 %v1275, %v1279
    %v1282 = vsel %vm86, 1, 0
    %v1283 = vsel %vm87, 1, 0
    %1284 = vset.pattern.permute.xlu0 0
    %1285 = vperm.xlu0 %1284, %v1282
    %v1286 = vpop.permute.xlu0 %1285
    %1287 = vset.pattern.permute.xlu0 0
    %1288 = vperm.xlu0 %1287, %v1283
    %v1289 = vpop.permute.xlu0 %1288
    %vm1290 = vcmp.eq.s32.totalorder %v1286, 1
    %vm1291 = vcmp.eq.s32.totalorder %v1289, 1
    %v1292 = vsel %vm1290, 0.0, %v1280
    %v1293 = vsel %vm1291, 0.0, %v1281
    %vm1296 = vcmask 1043456
    %v1297 = vrot.slane %v1292, 4
    %v1298 = vrot.slane %v1293, 4
    %v1299 = vsel %vm1296, %v1297, %v1298
    %v1303 = vsel %vm1296, 0.0, %v1297
    %v1304 = vsel %vm1296, %v1298, 0.0
    %vm1307 = vcmask 1046528
    %v1308 = vrot.slane %v1303, 1
    %v1309 = vrot.slane %v1299, 1
    %v1310 = vsel %vm1307, %v1308, %v1309
    %v1311 = vrot.slane %v1304, 1
    %v1312 = vsel %vm1307, %v1309, %v1311
    %1313 = vrot.lane.b32.xlu0 %v1310, 32
    %v1314 = vpop.permute.xlu0 %1313
    %1315 = vrot.lane.b32.xlu0 %v1312, 32
    %v1316 = vpop.permute.xlu0 %1315
    %vm1319 = vcmask 1045504
    %v1320 = vrot.slane %v1303, 2
    %v1321 = vrot.slane %v1299, 2
    %v1322 = vsel %vm1319, %v1320, %v1321
    %v1323 = vrot.slane %v1304, 2
    %v1324 = vsel %vm1319, %v1321, %v1323
    %1325 = vrot.lane.b32.xlu0 %v1322, 64
    %v1326 = vpop.permute.xlu0 %1325
    %1327 = vrot.lane.b32.xlu0 %v1324, 64
    %v1328 = vpop.permute.xlu0 %1327
    %vm1331 = vcmask 1044480
    %v1332 = vrot.slane %v1303, 3
    %v1333 = vrot.slane %v1299, 3
    %v1334 = vsel %vm1331, %v1332, %v1333
    %v1335 = vrot.slane %v1304, 3
    %v1336 = vsel %vm1331, %v1333, %v1335
    %1337 = vrot.lane.b32.xlu0 %v1334, 96
    %v1338 = vpop.permute.xlu0 %1337
    %1339 = vrot.lane.b32.xlu0 %v1336, 96
    %v1340 = vpop.permute.xlu0 %1339
    %v1343 = vrot.slane %v1303, 4
    %v1344 = vrot.slane %v1299, 4
    %v1345 = vsel %vm1296, %v1343, %v1344
    %v1346 = vrot.slane %v1304, 4
    %v1347 = vsel %vm1296, %v1344, %v1346
    %vm1350 = vcmask 1042432
    %v1351 = vrot.slane %v1303, 5
    %v1352 = vrot.slane %v1299, 5
    %v1353 = vsel %vm1350, %v1351, %v1352
    %v1354 = vrot.slane %v1304, 5
    %v1355 = vsel %vm1350, %v1352, %v1354
    %1356 = vrot.lane.b32.xlu0 %v1353, 32
    %v1357 = vpop.permute.xlu0 %1356
    %1358 = vrot.lane.b32.xlu0 %v1355, 32
    %v1359 = vpop.permute.xlu0 %1358
    %vm1362 = vcmask 1041408
    %v1363 = vrot.slane %v1303, 6
    %v1364 = vrot.slane %v1299, 6
    %v1365 = vsel %vm1362, %v1363, %v1364
    %v1366 = vrot.slane %v1304, 6
    %v1367 = vsel %vm1362, %v1364, %v1366
    %1368 = vrot.lane.b32.xlu0 %v1365, 64
    %v1369 = vpop.permute.xlu0 %1368
    %1370 = vrot.lane.b32.xlu0 %v1367, 64
    %v1371 = vpop.permute.xlu0 %1370
    %vm1374 = vcmask 1040384
    %v1375 = vrot.slane %v1303, 7
    %v1376 = vrot.slane %v1299, 7
    %v1377 = vsel %vm1374, %v1375, %v1376
    %v1378 = vrot.slane %v1304, 7
    %v1379 = vsel %vm1374, %v1376, %v1378
    %1380 = vrot.lane.b32.xlu0 %v1377, 96
    %v1381 = vpop.permute.xlu0 %1380
    %1382 = vrot.lane.b32.xlu0 %v1379, 96
    %v1383 = vpop.permute.xlu0 %1382
    %v1386 = vsel %vm155, %v1303, %v1314
    %v1387 = vsel %vm155, %v1299, %v1316
    %vm1388 = vcmask 523264
    %v1389 = vsel %vm1388, %v1386, %v1326
    %v1390 = vsel %vm1388, %v1387, %v1328
    %vm1391 = vcmask 785408
    %v1392 = vsel %vm1391, %v1389, %v1338
    %v1393 = vsel %vm1391, %v1390, %v1340
    %v1394 = vsel %vm155, %v1345, %v1357
    %v1395 = vsel %vm155, %v1347, %v1359
    %v1396 = vsel %vm1388, %v1394, %v1369
    %v1397 = vsel %vm1388, %v1395, %v1371
    %v1398 = vsel %vm1391, %v1396, %v1381
    %v1399 = vsel %vm1391, %v1397, %v1383
    %v1400 = vlaneseq
    %v1401 = vshrl.u32 %v1400, 7
    %v1402 = vsub.s32 0, %v1401
    %v1403 = vrot.slane %v134, %v1402
    %v1404 = vsel %vm155, %v1299, 0
    %v1406 = vsel %vm155, %v1304, 0
    %1408 = vmatprep.subr.mxu0 0.0
    %1409 = vmatpush1.msra.mxu0 %v98
    %1410 = vmatprep.subr.mxu0 0.0
    %1411 = vmatpush1.msra.mxu0 %v99
    %1412 = vmatprep.subr.mxu0 0.0
    %1413 = vmatpush1.msra.mxu0 %v100
    %1414 = vmatprep.subr.mxu0 0.0
    %1415 = vmatpush1.msra.mxu0 %v101
    %1416 = vmatprep.subr.mxu0 0.0
    %1417 = vmatpush1.msra.mxu0 %v102
    %1418 = vmatprep.subr.mxu0 0.0
    %1419 = vmatpush1.msra.mxu0 %v103
    %1420 = vmatprep.subr.mxu0 0.0
    %1421 = vmatpush1.msra.mxu0 %v104
    %1422 = vmatprep.subr.mxu0 0.0
    %1423 = vmatpush1.msra.mxu0 %v105
    %1424 = vmatprep.subr.mxu0 0.0
    %1425 = vmatpush1.msra.mxu0 %v106
    %1426 = vmatprep.subr.mxu0 0.0
    %1427 = vmatpush1.msra.mxu0 %v107
    %1428 = vmatprep.subr.mxu0 0.0
    %1429 = vmatpush1.msra.mxu0 %v108
    %1430 = vmatprep.subr.mxu0 0.0
    %1431 = vmatpush1.msra.mxu0 %v109
    %1432 = vmatprep.subr.mxu0 0.0
    %1433 = vmatpush1.msra.mxu0 %v110
    %1434 = vmatprep.subr.mxu0 0.0
    %1435 = vmatpush1.msra.mxu0 %v111
    %1436 = vmatprep.subr.mxu0 0.0
    %1437 = vmatpush1.msra.mxu0 %v112
    %1438 = vmatprep.subr.mxu0 0.0
    %1439 = vmatpush1.msra.mxu0 %v113
    %1440 = vmatprep.subr.mxu0 0.0
    %1441 = vmatpush1.msra.mxu0 %v114
    %1442 = vmatprep.subr.mxu0 0.0
    %1443 = vmatpush1.msra.mxu0 %v115
    %1444 = vmatprep.subr.mxu0 0.0
    %1445 = vmatpush1.msra.mxu0 %v116
    %1446 = vmatprep.subr.mxu0 0.0
    %1447 = vmatpush1.msra.mxu0 %v117
    %1448 = vmatprep.subr.mxu0 0.0
    %1449 = vmatpush1.msra.mxu0 %v118
    %1450 = vmatprep.subr.mxu0 0.0
    %1451 = vmatpush1.msra.mxu0 %v119
    %1452 = vmatprep.subr.mxu0 0.0
    %1453 = vmatpush1.msra.mxu0 %v120
    %1454 = vmatprep.subr.mxu0 0.0
    %1455 = vmatpush1.msra.mxu0 %v121
    %1456 = vmatprep.subr.mxu0 0.0
    %1457 = vmatpush1.msra.mxu0 %v122
    %1458 = vmatprep.subr.mxu0 0.0
    %1459 = vmatpush1.msra.mxu0 %v123
    %1460 = vmatprep.subr.mxu0 0.0
    %1461 = vmatpush1.msra.mxu0 %v124
    %1462 = vmatprep.subr.mxu0 0.0
    %1463 = vmatpush1.msra.mxu0 %v125
    %1464 = vmatprep.subr.mxu0 0.0
    %1465 = vmatpush1.msra.mxu0 %v126
    %1466 = vmatprep.subr.mxu0 0.0
    %1467 = vmatpush1.msra.mxu0 %v127
    %1468 = vmatprep.subr.mxu0 0.0
    %1469 = vmatpush1.msra.mxu0 %v128
    %1470 = vmatprep.subr.mxu0 0.0
    %1471 = vmatpush1.msra.mxu0 %v129
    %1472 = vmatprep.mubr.f32.mxu0 %v1398
    %1473 = vmatmul.mubr.f32.gmra.mrb[0].mxu0 %v1392
    %v1474 = vpop.f32.mrb[0].mxu0
    %v1475 = vadd.f32 %v1403, %v1474
    %v1476 = vpop.f32.mrb[0].mxu0
    %1477 = vmatprep.mubr.f32.mxu0 %v1399
    %1478 = vmatmul.mubr.f32.gmra.mrb[0].mxu0 %v1393
    %v1479 = vpop.f32.mrb[0].mxu0
    %v1480 = vadd.f32 %v1403, %v1479
    %v1481 = vpop.f32.mrb[0].mxu0
    %1482 = vdwg.mxu0
    %1483 = vmatprep.subr.mxu0 0.0
    %1484 = vmatpush1.msra.mxu0 %v130
    %1485 = vmatprep.subr.mxu0 0.0
    %1486 = vmatpush1.msra.mxu0 %v131
    %1487 = vmatprep.subr.mxu0 0.0
    %1488 = vmatpush1.msra.mxu0 %v132
    %1489 = vmatprep.subr.mxu0 0.0
    %1490 = vmatpush1.msra.mxu0 %v133
    %1491 = vmatprep.subr.mxu0 0.0
    %1492 = vmatpush1.msra.mxu0 0.0
    %1493 = vmatprep.subr.mxu0 0.0
    %1494 = vmatpush1.msra.mxu0 0.0
    %1495 = vmatprep.subr.mxu0 0.0
    %1496 = vmatpush1.msra.mxu0 0.0
    %1497 = vmatprep.subr.mxu0 0.0
    %1498 = vmatpush1.msra.mxu0 0.0
    %1499 = vmatprep.subr.mxu0 0.0
    %1500 = vmatpush1.msra.mxu0 0.0
    %1501 = vmatprep.subr.mxu0 0.0
    %1502 = vmatpush1.msra.mxu0 0.0
    %1503 = vmatprep.subr.mxu0 0.0
    %1504 = vmatpush1.msra.mxu0 0.0
    %1505 = vmatprep.subr.mxu0 0.0
    %1506 = vmatpush1.msra.mxu0 0.0
    %1507 = vmatprep.subr.mxu0 0.0
    %1508 = vmatpush1.msra.mxu0 0.0
    %1509 = vmatprep.subr.mxu0 0.0
    %1510 = vmatpush1.msra.mxu0 0.0
    %1511 = vmatprep.subr.mxu0 0.0
    %1512 = vmatpush1.msra.mxu0 0.0
    %1513 = vmatprep.subr.mxu0 0.0
    %1514 = vmatpush1.msra.mxu0 0.0
    %1515 = vmatprep.subr.mxu0 0.0
    %1516 = vmatpush1.msra.mxu0 0.0
    %1517 = vmatprep.subr.mxu0 0.0
    %1518 = vmatpush1.msra.mxu0 0.0
    %1519 = vmatprep.subr.mxu0 0.0
    %1520 = vmatpush1.msra.mxu0 0.0
    %1521 = vmatprep.subr.mxu0 0.0
    %1522 = vmatpush1.msra.mxu0 0.0
    %1523 = vmatprep.subr.mxu0 0.0
    %1524 = vmatpush1.msra.mxu0 0.0
    %1525 = vmatprep.subr.mxu0 0.0
    %1526 = vmatpush1.msra.mxu0 0.0
    %1527 = vmatprep.subr.mxu0 0.0
    %1528 = vmatpush1.msra.mxu0 0.0
    %1529 = vmatprep.subr.mxu0 0.0
    %1530 = vmatpush1.msra.mxu0 0.0
    %1531 = vmatprep.subr.mxu0 0.0
    %1532 = vmatpush1.msra.mxu0 0.0
    %1533 = vmatprep.subr.mxu0 0.0
    %1534 = vmatpush1.msra.mxu0 0.0
    %1535 = vmatprep.subr.mxu0 0.0
    %1536 = vmatpush1.msra.mxu0 0.0
    %1537 = vmatprep.subr.mxu0 0.0
    %1538 = vmatpush1.msra.mxu0 0.0
    %1539 = vmatprep.subr.mxu0 0.0
    %1540 = vmatpush1.msra.mxu0 0.0
    %1541 = vmatprep.subr.mxu0 0.0
    %1542 = vmatpush1.msra.mxu0 0.0
    %1543 = vmatprep.subr.mxu0 0.0
    %1544 = vmatpush1.msra.mxu0 0.0
    %1545 = vmatprep.subr.mxu0 0.0
    %1546 = vmatpush1.msra.mxu0 0.0
    %1547 = vmatprep.mubr.f32.mxu0 0.0
    %1548 = vmatmul.mubr.f32.gmra.mrb[0].mxu0 %v1404
    %v1549 = vpop.f32.mrb[0].mxu0
    %v1550 = vadd.f32 %v1475, %v1549
    %v1551 = vpop.f32.mrb[0].mxu0
    %1552 = vmatprep.mubr.f32.mxu0 0.0
    %1553 = vmatmul.mubr.f32.gmra.mrb[0].mxu0 %v1406
    %v1554 = vpop.f32.mrb[0].mxu0
    %v1555 = vadd.f32 %v1480, %v1554
    %v1556 = vpop.f32.mrb[0].mxu0
    %1557 = vdwg.mxu0
    %v1558 = vmax.f32 %v1550, 0.0
    %v1559 = vmax.f32 %v1555, 0.0
    %v1560 = vlaneseq
    %v1561 = vshrl.u32 %v1560, 7
    %v1562 = vsub.s32 0, %v1561
    %v1563 = vrot.slane %v143, %v1562
    %v1565 = vsel %vm1388, %v1558, 0
    %v1568 = vsel %vm1388, %v1559, 0
    %1570 = vmatprep.subr.mxu0 0.0
    %1571 = vmatpush1.msra.mxu0 %v135
    %1572 = vmatprep.subr.mxu0 0.0
    %1573 = vmatpush1.msra.mxu0 %v136
    %1574 = vmatprep.subr.mxu0 0.0
    %1575 = vmatpush1.msra.mxu0 %v137
    %1576 = vmatprep.subr.mxu0 0.0
    %1577 = vmatpush1.msra.mxu0 %v138
    %1578 = vmatprep.subr.mxu0 0.0
    %1579 = vmatpush1.msra.mxu0 %v139
    %1580 = vmatprep.subr.mxu0 0.0
    %1581 = vmatpush1.msra.mxu0 %v140
    %1582 = vmatprep.subr.mxu0 0.0
    %1583 = vmatpush1.msra.mxu0 %v141
    %1584 = vmatprep.subr.mxu0 0.0
    %1585 = vmatpush1.msra.mxu0 %v142
    %1586 = vmatprep.subr.mxu0 0.0
    %1587 = vmatpush1.msra.mxu0 0.0
    %1588 = vmatprep.subr.mxu0 0.0
    %1589 = vmatpush1.msra.mxu0 0.0
    %1590 = vmatprep.subr.mxu0 0.0
    %1591 = vmatpush1.msra.mxu0 0.0
    %1592 = vmatprep.subr.mxu0 0.0
    %1593 = vmatpush1.msra.mxu0 0.0
    %1594 = vmatprep.subr.mxu0 0.0
    %1595 = vmatpush1.msra.mxu0 0.0
    %1596 = vmatprep.subr.mxu0 0.0
    %1597 = vmatpush1.msra.mxu0 0.0
    %1598 = vmatprep.subr.mxu0 0.0
    %1599 = vmatpush1.msra.mxu0 0.0
    %1600 = vmatprep.subr.mxu0 0.0
    %1601 = vmatpush1.msra.mxu0 0.0
    %1602 = vmatprep.subr.mxu0 0.0
    %1603 = vmatpush1.msra.mxu0 0.0
    %1604 = vmatprep.subr.mxu0 0.0
    %1605 = vmatpush1.msra.mxu0 0.0
    %1606 = vmatprep.subr.mxu0 0.0
    %1607 = vmatpush1.msra.mxu0 0.0
    %1608 = vmatprep.subr.mxu0 0.0
    %1609 = vmatpush1.msra.mxu0 0.0
    %1610 = vmatprep.subr.mxu0 0.0
    %1611 = vmatpush1.msra.mxu0 0.0
    %1612 = vmatprep.subr.mxu0 0.0
    %1613 = vmatpush1.msra.mxu0 0.0
    %1614 = vmatprep.subr.mxu0 0.0
    %1615 = vmatpush1.msra.mxu0 0.0
    %1616 = vmatprep.subr.mxu0 0.0
    %1617 = vmatpush1.msra.mxu0 0.0
    %1618 = vmatprep.subr.mxu0 0.0
    %1619 = vmatpush1.msra.mxu0 0.0
    %1620 = vmatprep.subr.mxu0 0.0
    %1621 = vmatpush1.msra.mxu0 0.0
    %1622 = vmatprep.subr.mxu0 0.0
    %1623 = vmatpush1.msra.mxu0 0.0
    %1624 = vmatprep.subr.mxu0 0.0
    %1625 = vmatpush1.msra.mxu0 0.0
    %1626 = vmatprep.subr.mxu0 0.0
    %1627 = vmatpush1.msra.mxu0 0.0
    %1628 = vmatprep.subr.mxu0 0.0
    %1629 = vmatpush1.msra.mxu0 0.0
    %1630 = vmatprep.subr.mxu0 0.0
    %1631 = vmatpush1.msra.mxu0 0.0
    %1632 = vmatprep.subr.mxu0 0.0
    %1633 = vmatpush1.msra.mxu0 0.0
    %1634 = vmatprep.mubr.f32.mxu0 0.0
    %1635 = vmatmul.mubr.f32.gmra.mrb[0].mxu0 %v1565
    %v1636 = vpop.f32.mrb[0].mxu0
    %v1637 = vadd.f32 %v1563, %v1636
    %v1638 = vpop.f32.mrb[0].mxu0
    %1639 = vmatprep.mubr.f32.mxu0 0.0
    %1640 = vmatmul.mubr.f32.gmra.mrb[0].mxu0 %v1568
    %v1641 = vpop.f32.mrb[0].mxu0
    %v1642 = vadd.f32 %v1563, %v1641
    %v1643 = vpop.f32.mrb[0].mxu0
    %1644 = vdwg.mxu0
    %v1645 = vadd.f32 %v1637, %v1292
    %v1646 = vadd.f32 %v1642, %v1293
    %v1647 = vsel %vm155, %v1645, 0.0
    %1648 = vadd.xlane.f32.xlu0 %v1647
    %v1649 = vpop.xlane.xlu0 %1648
    %v1650 = vsel %vm155, %v1646, 0.0
    %1651 = vadd.xlane.f32.xlu0 %v1650
    %v1652 = vpop.xlane.xlu0 %1651
    %v1653 = vmul.f32 %v1649, %v1249
    %v1654 = vmul.f32 %v1652, %v1249
    %v1655 = vsub.f32 %v1645, %v1653
    %v1656 = vsub.f32 %v1646, %v1654
    %v1657 = vmul.f32 %v1655, %v1655
    %v1658 = vmul.f32 %v1656, %v1656
    %v1659 = vsel %vm155, %v1657, 0.0
    %1660 = vadd.xlane.f32.xlu0 %v1659
    %v1661 = vpop.xlane.xlu0 %1660
    %v1662 = vsel %vm155, %v1658, 0.0
    %1663 = vadd.xlane.f32.xlu0 %v1662
    %v1664 = vpop.xlane.xlu0 %1663
    %v1665 = vmul.f32 %v1661, %v1249
    %v1666 = vmul.f32 %v1664, %v1249
    %v1667 = vadd.f32 %v1665, 1e-05
    %v1668 = vadd.f32 %v1666, 1e-05
    %v1669 = vrsqrt.pop %v1667
    %v1670 = vrsqrt.pop %v1668
    %v1671 = vmul.f32 %v1655, %v1669
    %v1672 = vmul.f32 %v1656, %v1670
    %v1673 = vlaneseq
    %v1674 = vshrl.u32 %v1673, 7
    %v1675 = vsub.s32 0, %v1674
    %v1676 = vrot.slane %v95, %v1675
    %v1677 = vmul.f32 %v1671, %v1676
    %v1678 = vmul.f32 %v1672, %v1676
    %v1679 = vlaneseq
    %v1680 = vshrl.u32 %v1679, 7
    %v1681 = vsub.s32 0, %v1680
    %v1682 = vrot.slane %v96, %v1681
    %v1683 = vadd.f32 %v1677, %v1682
    %v1684 = vadd.f32 %v1678, %v1682
    %v1685 = vsel %vm1290, 0.0, %v1683
    %v1686 = vsel %vm1291, 0.0, %v1684
    %v1688 = vsel %vm155, %v75, 0
    %v1691 = vsel %vm155, %v76, 0
    %1693 = vmatprep.subr.mxu0 0.0
    %1694 = vmatpush1.msra.mxu0 %v144
    %1695 = vmatprep.subr.mxu0 0.0
    %1696 = vmatpush1.msra.mxu0 %v145
    %1697 = vmatprep.subr.mxu0 0.0
    %1698 = vmatpush1.msra.mxu0 %v146
    %1699 = vmatprep.subr.mxu0 0.0
    %1700 = vmatpush1.msra.mxu0 %v147
    %1701 = vmatprep.subr.mxu0 0.0
    %1702 = vmatpush1.msra.mxu0 0.0
    %1703 = vmatprep.subr.mxu0 0.0
    %1704 = vmatpush1.msra.mxu0 0.0
    %1705 = vmatprep.subr.mxu0 0.0
    %1706 = vmatpush1.msra.mxu0 0.0
    %1707 = vmatprep.subr.mxu0 0.0
    %1708 = vmatpush1.msra.mxu0 0.0
    %1709 = vmatprep.subr.mxu0 0.0
    %1710 = vmatpush1.msra.mxu0 0.0
    %1711 = vmatprep.subr.mxu0 0.0
    %1712 = vmatpush1.msra.mxu0 0.0
    %1713 = vmatprep.subr.mxu0 0.0
    %1714 = vmatpush1.msra.mxu0 0.0
    %1715 = vmatprep.subr.mxu0 0.0
    %1716 = vmatpush1.msra.mxu0 0.0
    %1717 = vmatprep.subr.mxu0 0.0
    %1718 = vmatpush1.msra.mxu0 0.0
    %1719 = vmatprep.subr.mxu0 0.0
    %1720 = vmatpush1.msra.mxu0 0.0
    %1721 = vmatprep.subr.mxu0 0.0
    %1722 = vmatpush1.msra.mxu0 0.0
    %1723 = vmatprep.subr.mxu0 0.0
    %1724 = vmatpush1.msra.mxu0 0.0
    %1725 = vmatprep.subr.mxu0 0.0
    %1726 = vmatpush1.msra.mxu0 0.0
    %1727 = vmatprep.subr.mxu0 0.0
    %1728 = vmatpush1.msra.mxu0 0.0
    %1729 = vmatprep.subr.mxu0 0.0
    %1730 = vmatpush1.msra.mxu0 0.0
    %1731 = vmatprep.subr.mxu0 0.0
    %1732 = vmatpush1.msra.mxu0 0.0
    %1733 = vmatprep.subr.mxu0 0.0
    %1734 = vmatpush1.msra.mxu0 0.0
    %1735 = vmatprep.subr.mxu0 0.0
    %1736 = vmatpush1.msra.mxu0 0.0
    %1737 = vmatprep.subr.mxu0 0.0
    %1738 = vmatpush1.msra.mxu0 0.0
    %1739 = vmatprep.subr.mxu0 0.0
    %1740 = vmatpush1.msra.mxu0 0.0
    %1741 = vmatprep.subr.mxu0 0.0
    %1742 = vmatpush1.msra.mxu0 0.0
    %1743 = vmatprep.subr.mxu0 0.0
    %1744 = vmatpush1.msra.mxu0 0.0
    %1745 = vmatprep.subr.mxu0 0.0
    %1746 = vmatpush1.msra.mxu0 0.0
    %1747 = vmatprep.subr.mxu0 0.0
    %1748 = vmatpush1.msra.mxu0 0.0
    %1749 = vmatprep.subr.mxu0 0.0
    %1750 = vmatpush1.msra.mxu0 0.0
    %1751 = vmatprep.subr.mxu0 0.0
    %1752 = vmatpush1.msra.mxu0 0.0
    %1753 = vmatprep.subr.mxu0 0.0
    %1754 = vmatpush1.msra.mxu0 0.0
    %1755 = vmatprep.subr.mxu0 0.0
    %1756 = vmatpush1.msra.mxu0 0.0
    %1757 = vmatprep.mubr.f32.mxu0 0.0
    %1758 = vmatmul.mubr.f32.gmra.mrb[0].mxu0 %v1688
    %v1759 = vpop.f32.mrb[0].mxu0
    %v1760 = vadd.f32 %v153, %v1759
    %v1761 = vpop.f32.mrb[0].mxu0
    %1762 = vmatprep.mubr.f32.mxu0 0.0
    %1763 = vmatmul.mubr.f32.gmra.mrb[0].mxu0 %v1691
    %v1764 = vpop.f32.mrb[0].mxu0
    %v1765 = vadd.f32 %v153, %v1764
    %v1766 = vpop.f32.mrb[0].mxu0
    %1767 = vdwg.mxu0
    %1768 = vmatprep.subr.mxu0 0.0
    %1769 = vmatpush1.msra.mxu0 %v237
    %1770 = vmatprep.subr.mxu0 0.0
    %1771 = vmatpush1.msra.mxu0 %v238
    %1772 = vmatprep.subr.mxu0 0.0
    %1773 = vmatpush1.msra.mxu0 %v239
    %1774 = vmatprep.subr.mxu0 0.0
    %1775 = vmatpush1.msra.mxu0 %v240
    %1776 = vmatprep.subr.mxu0 0.0
    %1777 = vmatpush1.msra.mxu0 0.0
    %1778 = vmatprep.subr.mxu0 0.0
    %1779 = vmatpush1.msra.mxu0 0.0
    %1780 = vmatprep.subr.mxu0 0.0
    %1781 = vmatpush1.msra.mxu0 0.0
    %1782 = vmatprep.subr.mxu0 0.0
    %1783 = vmatpush1.msra.mxu0 0.0
    %1784 = vmatprep.subr.mxu0 0.0
    %1785 = vmatpush1.msra.mxu0 0.0
    %1786 = vmatprep.subr.mxu0 0.0
    %1787 = vmatpush1.msra.mxu0 0.0
    %1788 = vmatprep.subr.mxu0 0.0
    %1789 = vmatpush1.msra.mxu0 0.0
    %1790 = vmatprep.subr.mxu0 0.0
    %1791 = vmatpush1.msra.mxu0 0.0
    %1792 = vmatprep.subr.mxu0 0.0
    %1793 = vmatpush1.msra.mxu0 0.0
    %1794 = vmatprep.subr.mxu0 0.0
    %1795 = vmatpush1.msra.mxu0 0.0
    %1796 = vmatprep.subr.mxu0 0.0
    %1797 = vmatpush1.msra.mxu0 0.0
    %1798 = vmatprep.subr.mxu0 0.0
    %1799 = vmatpush1.msra.mxu0 0.0
    %1800 = vmatprep.subr.mxu0 0.0
    %1801 = vmatpush1.msra.mxu0 0.0
    %1802 = vmatprep.subr.mxu0 0.0
    %1803 = vmatpush1.msra.mxu0 0.0
    %1804 = vmatprep.subr.mxu0 0.0
    %1805 = vmatpush1.msra.mxu0 0.0
    %1806 = vmatprep.subr.mxu0 0.0
    %1807 = vmatpush1.msra.mxu0 0.0
    %1808 = vmatprep.subr.mxu0 0.0
    %1809 = vmatpush1.msra.mxu0 0.0
    %1810 = vmatprep.subr.mxu0 0.0
    %1811 = vmatpush1.msra.mxu0 0.0
    %1812 = vmatprep.subr.mxu0 0.0
    %1813 = vmatpush1.msra.mxu0 0.0
    %1814 = vmatprep.subr.mxu0 0.0
    %1815 = vmatpush1.msra.mxu0 0.0
    %1816 = vmatprep.subr.mxu0 0.0
    %1817 = vmatpush1.msra.mxu0 0.0
    %1818 = vmatprep.subr.mxu0 0.0
    %1819 = vmatpush1.msra.mxu0 0.0
    %1820 = vmatprep.subr.mxu0 0.0
    %1821 = vmatpush1.msra.mxu0 0.0
    %1822 = vmatprep.subr.mxu0 0.0
    %1823 = vmatpush1.msra.mxu0 0.0
    %1824 = vmatprep.subr.mxu0 0.0
    %1825 = vmatpush1.msra.mxu0 0.0
    %1826 = vmatprep.subr.mxu0 0.0
    %1827 = vmatpush1.msra.mxu0 0.0
    %1828 = vmatprep.subr.mxu0 0.0
    %1829 = vmatpush1.msra.mxu0 0.0
    %1830 = vmatprep.subr.mxu0 0.0
    %1831 = vmatpush1.msra.mxu0 0.0
    %1832 = vmatprep.mubr.f32.mxu0 0.0
    %1833 = vmatmul.mubr.f32.gmra.mrb[0].mxu0 %v1688
    %v1834 = vpop.f32.mrb[0].mxu0
    %v1835 = vadd.f32 %v246, %v1834
    %v1836 = vpop.f32.mrb[0].mxu0
    %1837 = vmatprep.mubr.f32.mxu0 0.0
    %1838 = vmatmul.mubr.f32.gmra.mrb[0].mxu0 %v1691
    %v1839 = vpop.f32.mrb[0].mxu0
    %v1840 = vadd.f32 %v246, %v1839
    %v1841 = vpop.f32.mrb[0].mxu0
    %1842 = vdwg.mxu0
    %1843 = vmatprep.subr.mxu0 0.0
    %1844 = vmatpush1.msra.mxu0 %v323
    %1845 = vmatprep.subr.mxu0 0.0
    %1846 = vmatpush1.msra.mxu0 %v324
    %1847 = vmatprep.subr.mxu0 0.0
    %1848 = vmatpush1.msra.mxu0 %v325
    %1849 = vmatprep.subr.mxu0 0.0
    %1850 = vmatpush1.msra.mxu0 %v326
    %1851 = vmatprep.subr.mxu0 0.0
    %1852 = vmatpush1.msra.mxu0 0.0
    %1853 = vmatprep.subr.mxu0 0.0
    %1854 = vmatpush1.msra.mxu0 0.0
    %1855 = vmatprep.subr.mxu0 0.0
    %1856 = vmatpush1.msra.mxu0 0.0
    %1857 = vmatprep.subr.mxu0 0.0
    %1858 = vmatpush1.msra.mxu0 0.0
    %1859 = vmatprep.subr.mxu0 0.0
    %1860 = vmatpush1.msra.mxu0 0.0
    %1861 = vmatprep.subr.mxu0 0.0
    %1862 = vmatpush1.msra.mxu0 0.0
    %1863 = vmatprep.subr.mxu0 0.0
    %1864 = vmatpush1.msra.mxu0 0.0
    %1865 = vmatprep.subr.mxu0 0.0
    %1866 = vmatpush1.msra.mxu0 0.0
    %1867 = vmatprep.subr.mxu0 0.0
    %1868 = vmatpush1.msra.mxu0 0.0
    %1869 = vmatprep.subr.mxu0 0.0
    %1870 = vmatpush1.msra.mxu0 0.0
    %1871 = vmatprep.subr.mxu0 0.0
    %1872 = vmatpush1.msra.mxu0 0.0
    %1873 = vmatprep.subr.mxu0 0.0
    %1874 = vmatpush1.msra.mxu0 0.0
    %1875 = vmatprep.subr.mxu0 0.0
    %1876 = vmatpush1.msra.mxu0 0.0
    %1877 = vmatprep.subr.mxu0 0.0
    %1878 = vmatpush1.msra.mxu0 0.0
    %1879 = vmatprep.subr.mxu0 0.0
    %1880 = vmatpush1.msra.mxu0 0.0
    %1881 = vmatprep.subr.mxu0 0.0
    %1882 = vmatpush1.msra.mxu0 0.0
    %1883 = vmatprep.subr.mxu0 0.0
    %1884 = vmatpush1.msra.mxu0 0.0
    %1885 = vmatprep.subr.mxu0 0.0
    %1886 = vmatpush1.msra.mxu0 0.0
    %1887 = vmatprep.subr.mxu0 0.0
    %1888 = vmatpush1.msra.mxu0 0.0
    %1889 = vmatprep.subr.mxu0 0.0
    %1890 = vmatpush1.msra.mxu0 0.0
    %1891 = vmatprep.subr.mxu0 0.0
    %1892 = vmatpush1.msra.mxu0 0.0
    %1893 = vmatprep.subr.mxu0 0.0
    %1894 = vmatpush1.msra.mxu0 0.0
    %1895 = vmatprep.subr.mxu0 0.0
    %1896 = vmatpush1.msra.mxu0 0.0
    %1897 = vmatprep.subr.mxu0 0.0
    %1898 = vmatpush1.msra.mxu0 0.0
    %1899 = vmatprep.subr.mxu0 0.0
    %1900 = vmatpush1.msra.mxu0 0.0
    %1901 = vmatprep.subr.mxu0 0.0
    %1902 = vmatpush1.msra.mxu0 0.0
    %1903 = vmatprep.subr.mxu0 0.0
    %1904 = vmatpush1.msra.mxu0 0.0
    %1905 = vmatprep.subr.mxu0 0.0
    %1906 = vmatpush1.msra.mxu0 0.0
    %1907 = vmatprep.mubr.f32.mxu0 0.0
    %1908 = vmatmul.mubr.f32.gmra.mrb[0].mxu0 %v1688
    %v1909 = vpop.f32.mrb[0].mxu0
    %v1910 = vadd.f32 %v332, %v1909
    %v1911 = vpop.f32.mrb[0].mxu0
    %1912 = vmatprep.mubr.f32.mxu0 0.0
    %1913 = vmatmul.mubr.f32.gmra.mrb[0].mxu0 %v1691
    %v1914 = vpop.f32.mrb[0].mxu0
    %v1915 = vadd.f32 %v332, %v1914
    %v1916 = vpop.f32.mrb[0].mxu0
    %1917 = vdwg.mxu0
    %v1919 = vsel %vm409, %v1760, 0
    %v1922 = vsel %vm409, %v1765, 0
    %v1925 = vsel %vm409, %v1835, 0
    %v1928 = vsel %vm409, %v1840, 0
    %1930 = vmatprep.subr.mxu0 0.0
    %1931 = vmatpush1.xpose.msra.mxu0 %v1925
    %1932 = vmatprep.subr.mxu0 0.0
    %1933 = vmatpush1.xpose.msra.mxu0 %v1928
    %1934 = vmatprep.subr.mxu0 0.0
    %1935 = vmatpush1.xpose.msra.mxu0 0.0
    %1936 = vmatprep.subr.mxu0 0.0
    %1937 = vmatpush1.xpose.msra.mxu0 0.0
    %1938 = vmatprep.subr.mxu0 0.0
    %1939 = vmatpush1.xpose.msra.mxu0 0.0
    %1940 = vmatprep.subr.mxu0 0.0
    %1941 = vmatpush1.xpose.msra.mxu0 0.0
    %1942 = vmatprep.subr.mxu0 0.0
    %1943 = vmatpush1.xpose.msra.mxu0 0.0
    %1944 = vmatprep.subr.mxu0 0.0
    %1945 = vmatpush1.xpose.msra.mxu0 0.0
    %1946 = vmatprep.subr.mxu0 0.0
    %1947 = vmatpush1.xpose.msra.mxu0 0.0
    %1948 = vmatprep.subr.mxu0 0.0
    %1949 = vmatpush1.xpose.msra.mxu0 0.0
    %1950 = vmatprep.subr.mxu0 0.0
    %1951 = vmatpush1.xpose.msra.mxu0 0.0
    %1952 = vmatprep.subr.mxu0 0.0
    %1953 = vmatpush1.xpose.msra.mxu0 0.0
    %1954 = vmatprep.subr.mxu0 0.0
    %1955 = vmatpush1.xpose.msra.mxu0 0.0
    %1956 = vmatprep.subr.mxu0 0.0
    %1957 = vmatpush1.xpose.msra.mxu0 0.0
    %1958 = vmatprep.subr.mxu0 0.0
    %1959 = vmatpush1.xpose.msra.mxu0 0.0
    %1960 = vmatprep.subr.mxu0 0.0
    %1961 = vmatpush1.xpose.msra.mxu0 0.0
    %1962 = vmatprep.subr.mxu0 0.0
    %1963 = vmatpush1.xpose.msra.mxu0 0.0
    %1964 = vmatprep.subr.mxu0 0.0
    %1965 = vmatpush1.xpose.msra.mxu0 0.0
    %1966 = vmatprep.subr.mxu0 0.0
    %1967 = vmatpush1.xpose.msra.mxu0 0.0
    %1968 = vmatprep.subr.mxu0 0.0
    %1969 = vmatpush1.xpose.msra.mxu0 0.0
    %1970 = vmatprep.subr.mxu0 0.0
    %1971 = vmatpush1.xpose.msra.mxu0 0.0
    %1972 = vmatprep.subr.mxu0 0.0
    %1973 = vmatpush1.xpose.msra.mxu0 0.0
    %1974 = vmatprep.subr.mxu0 0.0
    %1975 = vmatpush1.xpose.msra.mxu0 0.0
    %1976 = vmatprep.subr.mxu0 0.0
    %1977 = vmatpush1.xpose.msra.mxu0 0.0
    %1978 = vmatprep.subr.mxu0 0.0
    %1979 = vmatpush1.xpose.msra.mxu0 0.0
    %1980 = vmatprep.subr.mxu0 0.0
    %1981 = vmatpush1.xpose.msra.mxu0 0.0
    %1982 = vmatprep.subr.mxu0 0.0
    %1983 = vmatpush1.xpose.msra.mxu0 0.0
    %1984 = vmatprep.subr.mxu0 0.0
    %1985 = vmatpush1.xpose.msra.mxu0 0.0
    %1986 = vmatprep.subr.mxu0 0.0
    %1987 = vmatpush1.xpose.msra.mxu0 0.0
    %1988 = vmatprep.subr.mxu0 0.0
    %1989 = vmatpush1.xpose.msra.mxu0 0.0
    %1990 = vmatprep.subr.mxu0 0.0
    %1991 = vmatpush1.xpose.msra.mxu0 0.0
    %1992 = vmatprep.subr.mxu0 0.0
    %1993 = vmatpush1.xpose.msra.mxu0 0.0
    %1994 = vmatprep.mubr.f32.mxu0 0.0
    %1995 = vmatmul.mubr.f32.gmra.mrb[0].mxu0 %v1919
    %v1996 = vpop.f32.mrb[0].mxu0
    %v1997 = vadd.f32 0.0, %v1996
    %v1998 = vpop.f32.mrb[0].mxu0
    %1999 = vmatprep.mubr.f32.mxu0 0.0
    %2000 = vmatmul.mubr.f32.gmra.mrb[0].mxu0 %v1922
    %v2001 = vpop.f32.mrb[0].mxu0
    %v2002 = vadd.f32 0.0, %v2001
    %v2003 = vpop.f32.mrb[0].mxu0
    %2004 = vdwg.mxu0
    %v2005 = vmul.f32 %v1997, 0.25
    %v2006 = vmul.f32 %v2002, 0.25
    %v2008 = vlaneseq
    %v2009 = vshrl.u32 %v2008, 7
    %v2010 = vsub.s32 0, %v2009
    %v2011 = vrot.slane %v83, %v2010
    %v2013 = vadd.f32 %v2005, %v2011
    %v2014 = vadd.f32 %v2006, %v2011
    %v2015 = vsel %vm409, %v2013, -inf
    %2016 = vmax.xlane.f32.xlu0 %v2015
    %v2017 = vpop.xlane.xlu0 %2016
    %v2018 = vsel %vm409, %v2014, -inf
    %2019 = vmax.xlane.f32.xlu0 %v2018
    %v2020 = vpop.xlane.xlu0 %2019
    %v2021 = vsub.f32 %v2013, %v2017
    %v2022 = vsub.f32 %v2014, %v2020
    %v2023 = vmul.f32 %v2021, 1.442695
    %v2024 = vpow.pop %v2023
    %v2025 = vmul.f32 %v2022, 1.442695
    %v2026 = vpow.pop %v2025
    %v2027 = vsel %vm409, %v2024, 0.0
    %2028 = vadd.xlane.f32.xlu0 %v2027
    %v2029 = vpop.xlane.xlu0 %2028
    %v2030 = vsel %vm409, %v2026, 0.0
    %2031 = vadd.xlane.f32.xlu0 %v2030
    %v2032 = vpop.xlane.xlu0 %2031
    %v2033 = vrcp.pop %v2029
    %v2034 = vrcp.pop %v2032
    %v2035 = vmul.f32 %v2024, %v2033
    %v2036 = vmul.f32 %v2026, %v2034
    %v2038 = vsel %vm409, %v2035, 0
    %v2041 = vsel %vm409, %v2036, 0
    %2043 = vmatprep.subr.mxu0 0.0
    %2044 = vmatpush1.msra.mxu0 %v1910
    %2045 = vmatprep.subr.mxu0 0.0
    %2046 = vmatpush1.msra.mxu0 %v1915
    %2047 = vmatprep.subr.mxu0 0.0
    %2048 = vmatpush1.msra.mxu0 0.0
    %2049 = vmatprep.subr.mxu0 0.0
    %2050 = vmatpush1.msra.mxu0 0.0
    %2051 = vmatprep.subr.mxu0 0.0
    %2052 = vmatpush1.msra.mxu0 0.0
    %2053 = vmatprep.subr.mxu0 0.0
    %2054 = vmatpush1.msra.mxu0 0.0
    %2055 = vmatprep.subr.mxu0 0.0
    %2056 = vmatpush1.msra.mxu0 0.0
    %2057 = vmatprep.subr.mxu0 0.0
    %2058 = vmatpush1.msra.mxu0 0.0
    %2059 = vmatprep.subr.mxu0 0.0
    %2060 = vmatpush1.msra.mxu0 0.0
    %2061 = vmatprep.subr.mxu0 0.0
    %2062 = vmatpush1.msra.mxu0 0.0
    %2063 = vmatprep.subr.mxu0 0.0
    %2064 = vmatpush1.msra.mxu0 0.0
    %2065 = vmatprep.subr.mxu0 0.0
    %2066 = vmatpush1.msra.mxu0 0.0
    %2067 = vmatprep.subr.mxu0 0.0
    %2068 = vmatpush1.msra.mxu0 0.0
    %2069 = vmatprep.subr.mxu0 0.0
    %2070 = vmatpush1.msra.mxu0 0.0
    %2071 = vmatprep.subr.mxu0 0.0
    %2072 = vmatpush1.msra.mxu0 0.0
    %2073 = vmatprep.subr.mxu0 0.0
    %2074 = vmatpush1.msra.mxu0 0.0
    %2075 = vmatprep.subr.mxu0 0.0
    %2076 = vmatpush1.msra.mxu0 0.0
    %2077 = vmatprep.subr.mxu0 0.0
    %2078 = vmatpush1.msra.mxu0 0.0
    %2079 = vmatprep.subr.mxu0 0.0
    %2080 = vmatpush1.msra.mxu0 0.0
    %2081 = vmatprep.subr.mxu0 0.0
    %2082 = vmatpush1.msra.mxu0 0.0
    %2083 = vmatprep.subr.mxu0 0.0
    %2084 = vmatpush1.msra.mxu0 0.0
    %2085 = vmatprep.subr.mxu0 0.0
    %2086 = vmatpush1.msra.mxu0 0.0
    %2087 = vmatprep.subr.mxu0 0.0
    %2088 = vmatpush1.msra.mxu0 0.0
    %2089 = vmatprep.subr.mxu0 0.0
    %2090 = vmatpush1.msra.mxu0 0.0
    %2091 = vmatprep.subr.mxu0 0.0
    %2092 = vmatpush1.msra.mxu0 0.0
    %2093 = vmatprep.subr.mxu0 0.0
    %2094 = vmatpush1.msra.mxu0 0.0
    %2095 = vmatprep.subr.mxu0 0.0
    %2096 = vmatpush1.msra.mxu0 0.0
    %2097 = vmatprep.subr.mxu0 0.0
    %2098 = vmatpush1.msra.mxu0 0.0
    %2099 = vmatprep.subr.mxu0 0.0
    %2100 = vmatpush1.msra.mxu0 0.0
    %2101 = vmatprep.subr.mxu0 0.0
    %2102 = vmatpush1.msra.mxu0 0.0
    %2103 = vmatprep.subr.mxu0 0.0
    %2104 = vmatpush1.msra.mxu0 0.0
    %2105 = vmatprep.subr.mxu0 0.0
    %2106 = vmatpush1.msra.mxu0 0.0
    %2107 = vmatprep.mubr.f32.mxu0 0.0
    %2108 = vmatmul.mubr.f32.gmra.mrb[0].mxu0 %v2038
    %v2109 = vpop.f32.mrb[0].mxu0
    %v2110 = vadd.f32 0.0, %v2109
    %v2111 = vpop.f32.mrb[0].mxu0
    %2112 = vmatprep.mubr.f32.mxu0 0.0
    %2113 = vmatmul.mubr.f32.gmra.mrb[0].mxu0 %v2041
    %v2114 = vpop.f32.mrb[0].mxu0
    %v2115 = vadd.f32 0.0, %v2114
    %v2116 = vpop.f32.mrb[0].mxu0
    %2117 = vdwg.mxu0
    %2118 = vmatprep.subr.mxu0 0.0
    %2119 = vmatpush1.msra.mxu0 %v613
    %2120 = vmatprep.subr.mxu0 0.0
    %2121 = vmatpush1.msra.mxu0 %v614
    %2122 = vmatprep.subr.mxu0 0.0
    %2123 = vmatpush1.msra.mxu0 %v615
    %2124 = vmatprep.subr.mxu0 0.0
    %2125 = vmatpush1.msra.mxu0 %v616
    %2126 = vmatprep.subr.mxu0 0.0
    %2127 = vmatpush1.msra.mxu0 0.0
    %2128 = vmatprep.subr.mxu0 0.0
    %2129 = vmatpush1.msra.mxu0 0.0
    %2130 = vmatprep.subr.mxu0 0.0
    %2131 = vmatpush1.msra.mxu0 0.0
    %2132 = vmatprep.subr.mxu0 0.0
    %2133 = vmatpush1.msra.mxu0 0.0
    %2134 = vmatprep.subr.mxu0 0.0
    %2135 = vmatpush1.msra.mxu0 0.0
    %2136 = vmatprep.subr.mxu0 0.0
    %2137 = vmatpush1.msra.mxu0 0.0
    %2138 = vmatprep.subr.mxu0 0.0
    %2139 = vmatpush1.msra.mxu0 0.0
    %2140 = vmatprep.subr.mxu0 0.0
    %2141 = vmatpush1.msra.mxu0 0.0
    %2142 = vmatprep.subr.mxu0 0.0
    %2143 = vmatpush1.msra.mxu0 0.0
    %2144 = vmatprep.subr.mxu0 0.0
    %2145 = vmatpush1.msra.mxu0 0.0
    %2146 = vmatprep.subr.mxu0 0.0
    %2147 = vmatpush1.msra.mxu0 0.0
    %2148 = vmatprep.subr.mxu0 0.0
    %2149 = vmatpush1.msra.mxu0 0.0
    %2150 = vmatprep.subr.mxu0 0.0
    %2151 = vmatpush1.msra.mxu0 0.0
    %2152 = vmatprep.subr.mxu0 0.0
    %2153 = vmatpush1.msra.mxu0 0.0
    %2154 = vmatprep.subr.mxu0 0.0
    %2155 = vmatpush1.msra.mxu0 0.0
    %2156 = vmatprep.subr.mxu0 0.0
    %2157 = vmatpush1.msra.mxu0 0.0
    %2158 = vmatprep.subr.mxu0 0.0
    %2159 = vmatpush1.msra.mxu0 0.0
    %2160 = vmatprep.subr.mxu0 0.0
    %2161 = vmatpush1.msra.mxu0 0.0
    %2162 = vmatprep.subr.mxu0 0.0
    %2163 = vmatpush1.msra.mxu0 0.0
    %2164 = vmatprep.subr.mxu0 0.0
    %2165 = vmatpush1.msra.mxu0 0.0
    %2166 = vmatprep.subr.mxu0 0.0
    %2167 = vmatpush1.msra.mxu0 0.0
    %2168 = vmatprep.subr.mxu0 0.0
    %2169 = vmatpush1.msra.mxu0 0.0
    %2170 = vmatprep.subr.mxu0 0.0
    %2171 = vmatpush1.msra.mxu0 0.0
    %2172 = vmatprep.subr.mxu0 0.0
    %2173 = vmatpush1.msra.mxu0 0.0
    %2174 = vmatprep.subr.mxu0 0.0
    %2175 = vmatpush1.msra.mxu0 0.0
    %2176 = vmatprep.subr.mxu0 0.0
    %2177 = vmatpush1.msra.mxu0 0.0
    %2178 = vmatprep.subr.mxu0 0.0
    %2179 = vmatpush1.msra.mxu0 0.0
    %2180 = vmatprep.subr.mxu0 0.0
    %2181 = vmatpush1.msra.mxu0 0.0
    %2182 = vmatprep.mubr.f32.mxu0 0.0
    %2183 = vmatmul.mubr.f32.gmra.mrb[0].mxu0 %v1688
    %v2184 = vpop.f32.mrb[0].mxu0
    %v2185 = vadd.f32 %v623, %v2184
    %v2186 = vpop.f32.mrb[0].mxu0
    %2187 = vmatprep.mubr.f32.mxu0 0.0
    %2188 = vmatmul.mubr.f32.gmra.mrb[0].mxu0 %v1691
    %v2189 = vpop.f32.mrb[0].mxu0
    %v2190 = vadd.f32 %v623, %v2189
    %v2191 = vpop.f32.mrb[0].mxu0
    %2192 = vdwg.mxu0
    %2193 = vmatprep.subr.mxu0 0.0
    %2194 = vmatpush1.msra.mxu0 %v701
    %2195 = vmatprep.subr.mxu0 0.0
    %2196 = vmatpush1.msra.mxu0 %v702
    %2197 = vmatprep.subr.mxu0 0.0
    %2198 = vmatpush1.msra.mxu0 %v703
    %2199 = vmatprep.subr.mxu0 0.0
    %2200 = vmatpush1.msra.mxu0 %v704
    %2201 = vmatprep.subr.mxu0 0.0
    %2202 = vmatpush1.msra.mxu0 0.0
    %2203 = vmatprep.subr.mxu0 0.0
    %2204 = vmatpush1.msra.mxu0 0.0
    %2205 = vmatprep.subr.mxu0 0.0
    %2206 = vmatpush1.msra.mxu0 0.0
    %2207 = vmatprep.subr.mxu0 0.0
    %2208 = vmatpush1.msra.mxu0 0.0
    %2209 = vmatprep.subr.mxu0 0.0
    %2210 = vmatpush1.msra.mxu0 0.0
    %2211 = vmatprep.subr.mxu0 0.0
    %2212 = vmatpush1.msra.mxu0 0.0
    %2213 = vmatprep.subr.mxu0 0.0
    %2214 = vmatpush1.msra.mxu0 0.0
    %2215 = vmatprep.subr.mxu0 0.0
    %2216 = vmatpush1.msra.mxu0 0.0
    %2217 = vmatprep.subr.mxu0 0.0
    %2218 = vmatpush1.msra.mxu0 0.0
    %2219 = vmatprep.subr.mxu0 0.0
    %2220 = vmatpush1.msra.mxu0 0.0
    %2221 = vmatprep.subr.mxu0 0.0
    %2222 = vmatpush1.msra.mxu0 0.0
    %2223 = vmatprep.subr.mxu0 0.0
    %2224 = vmatpush1.msra.mxu0 0.0
    %2225 = vmatprep.subr.mxu0 0.0
    %2226 = vmatpush1.msra.mxu0 0.0
    %2227 = vmatprep.subr.mxu0 0.0
    %2228 = vmatpush1.msra.mxu0 0.0
    %2229 = vmatprep.subr.mxu0 0.0
    %2230 = vmatpush1.msra.mxu0 0.0
    %2231 = vmatprep.subr.mxu0 0.0
    %2232 = vmatpush1.msra.mxu0 0.0
    %2233 = vmatprep.subr.mxu0 0.0
    %2234 = vmatpush1.msra.mxu0 0.0
    %2235 = vmatprep.subr.mxu0 0.0
    %2236 = vmatpush1.msra.mxu0 0.0
    %2237 = vmatprep.subr.mxu0 0.0
    %2238 = vmatpush1.msra.mxu0 0.0
    %2239 = vmatprep.subr.mxu0 0.0
    %2240 = vmatpush1.msra.mxu0 0.0
    %2241 = vmatprep.subr.mxu0 0.0
    %2242 = vmatpush1.msra.mxu0 0.0
    %2243 = vmatprep.subr.mxu0 0.0
    %2244 = vmatpush1.msra.mxu0 0.0
    %2245 = vmatprep.subr.mxu0 0.0
    %2246 = vmatpush1.msra.mxu0 0.0
    %2247 = vmatprep.subr.mxu0 0.0
    %2248 = vmatpush1.msra.mxu0 0.0
    %2249 = vmatprep.subr.mxu0 0.0
    %2250 = vmatpush1.msra.mxu0 0.0
    %2251 = vmatprep.subr.mxu0 0.0
    %2252 = vmatpush1.msra.mxu0 0.0
    %2253 = vmatprep.subr.mxu0 0.0
    %2254 = vmatpush1.msra.mxu0 0.0
    %2255 = vmatprep.subr.mxu0 0.0
    %2256 = vmatpush1.msra.mxu0 0.0
    %2257 = vmatprep.mubr.f32.mxu0 0.0
    %2258 = vmatmul.mubr.f32.gmra.mrb[0].mxu0 %v1688
    %v2259 = vpop.f32.mrb[0].mxu0
    %v2260 = vadd.f32 %v711, %v2259
    %v2261 = vpop.f32.mrb[0].mxu0
    %2262 = vmatprep.mubr.f32.mxu0 0.0
    %2263 = vmatmul.mubr.f32.gmra.mrb[0].mxu0 %v1691
    %v2264 = vpop.f32.mrb[0].mxu0
    %v2265 = vadd.f32 %v711, %v2264
    %v2266 = vpop.f32.mrb[0].mxu0
    %2267 = vdwg.mxu0
    %2268 = vmatprep.subr.mxu0 0.0
    %2269 = vmatpush1.msra.mxu0 %v789
    %2270 = vmatprep.subr.mxu0 0.0
    %2271 = vmatpush1.msra.mxu0 %v790
    %2272 = vmatprep.subr.mxu0 0.0
    %2273 = vmatpush1.msra.mxu0 %v791
    %2274 = vmatprep.subr.mxu0 0.0
    %2275 = vmatpush1.msra.mxu0 %v792
    %2276 = vmatprep.subr.mxu0 0.0
    %2277 = vmatpush1.msra.mxu0 0.0
    %2278 = vmatprep.subr.mxu0 0.0
    %2279 = vmatpush1.msra.mxu0 0.0
    %2280 = vmatprep.subr.mxu0 0.0
    %2281 = vmatpush1.msra.mxu0 0.0
    %2282 = vmatprep.subr.mxu0 0.0
    %2283 = vmatpush1.msra.mxu0 0.0
    %2284 = vmatprep.subr.mxu0 0.0
    %2285 = vmatpush1.msra.mxu0 0.0
    %2286 = vmatprep.subr.mxu0 0.0
    %2287 = vmatpush1.msra.mxu0 0.0
    %2288 = vmatprep.subr.mxu0 0.0
    %2289 = vmatpush1.msra.mxu0 0.0
    %2290 = vmatprep.subr.mxu0 0.0
    %2291 = vmatpush1.msra.mxu0 0.0
    %2292 = vmatprep.subr.mxu0 0.0
    %2293 = vmatpush1.msra.mxu0 0.0
    %2294 = vmatprep.subr.mxu0 0.0
    %2295 = vmatpush1.msra.mxu0 0.0
    %2296 = vmatprep.subr.mxu0 0.0
    %2297 = vmatpush1.msra.mxu0 0.0
    %2298 = vmatprep.subr.mxu0 0.0
    %2299 = vmatpush1.msra.mxu0 0.0
    %2300 = vmatprep.subr.mxu0 0.0
    %2301 = vmatpush1.msra.mxu0 0.0
    %2302 = vmatprep.subr.mxu0 0.0
    %2303 = vmatpush1.msra.mxu0 0.0
    %2304 = vmatprep.subr.mxu0 0.0
    %2305 = vmatpush1.msra.mxu0 0.0
    %2306 = vmatprep.subr.mxu0 0.0
    %2307 = vmatpush1.msra.mxu0 0.0
    %2308 = vmatprep.subr.mxu0 0.0
    %2309 = vmatpush1.msra.mxu0 0.0
    %2310 = vmatprep.subr.mxu0 0.0
    %2311 = vmatpush1.msra.mxu0 0.0
    %2312 = vmatprep.subr.mxu0 0.0
    %2313 = vmatpush1.msra.mxu0 0.0
    %2314 = vmatprep.subr.mxu0 0.0
    %2315 = vmatpush1.msra.mxu0 0.0
    %2316 = vmatprep.subr.mxu0 0.0
    %2317 = vmatpush1.msra.mxu0 0.0
    %2318 = vmatprep.subr.mxu0 0.0
    %2319 = vmatpush1.msra.mxu0 0.0
    %2320 = vmatprep.subr.mxu0 0.0
    %2321 = vmatpush1.msra.mxu0 0.0
    %2322 = vmatprep.subr.mxu0 0.0
    %2323 = vmatpush1.msra.mxu0 0.0
    %2324 = vmatprep.subr.mxu0 0.0
    %2325 = vmatpush1.msra.mxu0 0.0
    %2326 = vmatprep.subr.mxu0 0.0
    %2327 = vmatpush1.msra.mxu0 0.0
    %2328 = vmatprep.subr.mxu0 0.0
    %2329 = vmatpush1.msra.mxu0 0.0
    %2330 = vmatprep.subr.mxu0 0.0
    %2331 = vmatpush1.msra.mxu0 0.0
    %2332 = vmatprep.mubr.f32.mxu0 0.0
    %2333 = vmatmul.mubr.f32.gmra.mrb[0].mxu0 %v1688
    %v2334 = vpop.f32.mrb[0].mxu0
    %v2335 = vadd.f32 %v799, %v2334
    %v2336 = vpop.f32.mrb[0].mxu0
    %2337 = vmatprep.mubr.f32.mxu0 0.0
    %2338 = vmatmul.mubr.f32.gmra.mrb[0].mxu0 %v1691
    %v2339 = vpop.f32.mrb[0].mxu0
    %v2340 = vadd.f32 %v799, %v2339
    %v2341 = vpop.f32.mrb[0].mxu0
    %2342 = vdwg.mxu0
    %v2344 = vsel %vm409, %v2185, 0
    %v2347 = vsel %vm409, %v2190, 0
    %v2350 = vsel %vm409, %v2260, 0
    %v2353 = vsel %vm409, %v2265, 0
    %2355 = vmatprep.subr.mxu0 0.0
    %2356 = vmatpush1.xpose.msra.mxu0 %v2350
    %2357 = vmatprep.subr.mxu0 0.0
    %2358 = vmatpush1.xpose.msra.mxu0 %v2353
    %2359 = vmatprep.subr.mxu0 0.0
    %2360 = vmatpush1.xpose.msra.mxu0 0.0
    %2361 = vmatprep.subr.mxu0 0.0
    %2362 = vmatpush1.xpose.msra.mxu0 0.0
    %2363 = vmatprep.subr.mxu0 0.0
    %2364 = vmatpush1.xpose.msra.mxu0 0.0
    %2365 = vmatprep.subr.mxu0 0.0
    %2366 = vmatpush1.xpose.msra.mxu0 0.0
    %2367 = vmatprep.subr.mxu0 0.0
    %2368 = vmatpush1.xpose.msra.mxu0 0.0
    %2369 = vmatprep.subr.mxu0 0.0
    %2370 = vmatpush1.xpose.msra.mxu0 0.0
    %2371 = vmatprep.subr.mxu0 0.0
    %2372 = vmatpush1.xpose.msra.mxu0 0.0
    %2373 = vmatprep.subr.mxu0 0.0
    %2374 = vmatpush1.xpose.msra.mxu0 0.0
    %2375 = vmatprep.subr.mxu0 0.0
    %2376 = vmatpush1.xpose.msra.mxu0 0.0
    %2377 = vmatprep.subr.mxu0 0.0
    %2378 = vmatpush1.xpose.msra.mxu0 0.0
    %2379 = vmatprep.subr.mxu0 0.0
    %2380 = vmatpush1.xpose.msra.mxu0 0.0
    %2381 = vmatprep.subr.mxu0 0.0
    %2382 = vmatpush1.xpose.msra.mxu0 0.0
    %2383 = vmatprep.subr.mxu0 0.0
    %2384 = vmatpush1.xpose.msra.mxu0 0.0
    %2385 = vmatprep.subr.mxu0 0.0
    %2386 = vmatpush1.xpose.msra.mxu0 0.0
    %2387 = vmatprep.subr.mxu0 0.0
    %2388 = vmatpush1.xpose.msra.mxu0 0.0
    %2389 = vmatprep.subr.mxu0 0.0
    %2390 = vmatpush1.xpose.msra.mxu0 0.0
    %2391 = vmatprep.subr.mxu0 0.0
    %2392 = vmatpush1.xpose.msra.mxu0 0.0
    %2393 = vmatprep.subr.mxu0 0.0
    %2394 = vmatpush1.xpose.msra.mxu0 0.0
    %2395 = vmatprep.subr.mxu0 0.0
    %2396 = vmatpush1.xpose.msra.mxu0 0.0
    %2397 = vmatprep.subr.mxu0 0.0
    %2398 = vmatpush1.xpose.msra.mxu0 0.0
    %2399 = vmatprep.subr.mxu0 0.0
    %2400 = vmatpush1.xpose.msra.mxu0 0.0
    %2401 = vmatprep.subr.mxu0 0.0
    %2402 = vmatpush1.xpose.msra.mxu0 0.0
    %2403 = vmatprep.subr.mxu0 0.0
    %2404 = vmatpush1.xpose.msra.mxu0 0.0
    %2405 = vmatprep.subr.mxu0 0.0
    %2406 = vmatpush1.xpose.msra.mxu0 0.0
    %2407 = vmatprep.subr.mxu0 0.0
    %2408 = vmatpush1.xpose.msra.mxu0 0.0
    %2409 = vmatprep.subr.mxu0 0.0
    %2410 = vmatpush1.xpose.msra.mxu0 0.0
    %2411 = vmatprep.subr.mxu0 0.0
    %2412 = vmatpush1.xpose.msra.mxu0 0.0
    %2413 = vmatprep.subr.mxu0 0.0
    %2414 = vmatpush1.xpose.msra.mxu0 0.0
    %2415 = vmatprep.subr.mxu0 0.0
    %2416 = vmatpush1.xpose.msra.mxu0 0.0
    %2417 = vmatprep.subr.mxu0 0.0
    %2418 = vmatpush1.xpose.msra.mxu0 0.0
    %2419 = vmatprep.mubr.f32.mxu0 0.0
    %2420 = vmatmul.mubr.f32.gmra.mrb[0].mxu0 %v2344
    %v2421 = vpop.f32.mrb[0].mxu0
    %v2422 = vadd.f32 0.0, %v2421
    %v2423 = vpop.f32.mrb[0].mxu0
    %2424 = vmatprep.mubr.f32.mxu0 0.0
    %2425 = vmatmul.mubr.f32.gmra.mrb[0].mxu0 %v2347
    %v2426 = vpop.f32.mrb[0].mxu0
    %v2427 = vadd.f32 0.0, %v2426
    %v2428 = vpop.f32.mrb[0].mxu0
    %2429 = vdwg.mxu0
    %v2430 = vmul.f32 %v2422, 0.25
    %v2431 = vmul.f32 %v2427, 0.25
    %v2432 = vadd.f32 %v2430, %v2011
    %v2433 = vadd.f32 %v2431, %v2011
    %v2434 = vsel %vm409, %v2432, -inf
    %2435 = vmax.xlane.f32.xlu0 %v2434
    %v2436 = vpop.xlane.xlu0 %2435
    %v2437 = vsel %vm409, %v2433, -inf
    %2438 = vmax.xlane.f32.xlu0 %v2437
    %v2439 = vpop.xlane.xlu0 %2438
    %v2440 = vsub.f32 %v2432, %v2436
    %v2441 = vsub.f32 %v2433, %v2439
    %v2442 = vmul.f32 %v2440, 1.442695
    %v2443 = vpow.pop %v2442
    %v2444 = vmul.f32 %v2441, 1.442695
    %v2445 = vpow.pop %v2444
    %v2446 = vsel %vm409, %v2443, 0.0
    %2447 = vadd.xlane.f32.xlu0 %v2446
    %v2448 = vpop.xlane.xlu0 %2447
    %v2449 = vsel %vm409, %v2445, 0.0
    %2450 = vadd.xlane.f32.xlu0 %v2449
    %v2451 = vpop.xlane.xlu0 %2450
    %v2452 = vrcp.pop %v2448
    %v2453 = vrcp.pop %v2451
    %v2454 = vmul.f32 %v2443, %v2452
    %v2455 = vmul.f32 %v2445, %v2453
    %v2457 = vsel %vm409, %v2454, 0
    %v2460 = vsel %vm409, %v2455, 0
    %2462 = vmatprep.subr.mxu0 0.0
    %2463 = vmatpush1.msra.mxu0 %v2335
    %2464 = vmatprep.subr.mxu0 0.0
    %2465 = vmatpush1.msra.mxu0 %v2340
    %2466 = vmatprep.subr.mxu0 0.0
    %2467 = vmatpush1.msra.mxu0 0.0
    %2468 = vmatprep.subr.mxu0 0.0
    %2469 = vmatpush1.msra.mxu0 0.0
    %2470 = vmatprep.subr.mxu0 0.0
    %2471 = vmatpush1.msra.mxu0 0.0
    %2472 = vmatprep.subr.mxu0 0.0
    %2473 = vmatpush1.msra.mxu0 0.0
    %2474 = vmatprep.subr.mxu0 0.0
    %2475 = vmatpush1.msra.mxu0 0.0
    %2476 = vmatprep.subr.mxu0 0.0
    %2477 = vmatpush1.msra.mxu0 0.0
    %2478 = vmatprep.subr.mxu0 0.0
    %2479 = vmatpush1.msra.mxu0 0.0
    %2480 = vmatprep.subr.mxu0 0.0
    %2481 = vmatpush1.msra.mxu0 0.0
    %2482 = vmatprep.subr.mxu0 0.0
    %2483 = vmatpush1.msra.mxu0 0.0
    %2484 = vmatprep.subr.mxu0 0.0
    %2485 = vmatpush1.msra.mxu0 0.0
    %2486 = vmatprep.subr.mxu0 0.0
    %2487 = vmatpush1.msra.mxu0 0.0
    %2488 = vmatprep.subr.mxu0 0.0
    %2489 = vmatpush1.msra.mxu0 0.0
    %2490 = vmatprep.subr.mxu0 0.0
    %2491 = vmatpush1.msra.mxu0 0.0
    %2492 = vmatprep.subr.mxu0 0.0
    %2493 = vmatpush1.msra.mxu0 0.0
    %2494 = vmatprep.subr.mxu0 0.0
    %2495 = vmatpush1.msra.mxu0 0.0
    %2496 = vmatprep.subr.mxu0 0.0
    %2497 = vmatpush1.msra.mxu0 0.0
    %2498 = vmatprep.subr.mxu0 0.0
    %2499 = vmatpush1.msra.mxu0 0.0
    %2500 = vmatprep.subr.mxu0 0.0
    %2501 = vmatpush1.msra.mxu0 0.0
    %2502 = vmatprep.subr.mxu0 0.0
    %2503 = vmatpush1.msra.mxu0 0.0
    %2504 = vmatprep.subr.mxu0 0.0
    %2505 = vmatpush1.msra.mxu0 0.0
    %2506 = vmatprep.subr.mxu0 0.0
    %2507 = vmatpush1.msra.mxu0 0.0
    %2508 = vmatprep.subr.mxu0 0.0
    %2509 = vmatpush1.msra.mxu0 0.0
    %2510 = vmatprep.subr.mxu0 0.0
    %2511 = vmatpush1.msra.mxu0 0.0
    %2512 = vmatprep.subr.mxu0 0.0
    %2513 = vmatpush1.msra.mxu0 0.0
    %2514 = vmatprep.subr.mxu0 0.0
    %2515 = vmatpush1.msra.mxu0 0.0
    %2516 = vmatprep.subr.mxu0 0.0
    %2517 = vmatpush1.msra.mxu0 0.0
    %2518 = vmatprep.subr.mxu0 0.0
    %2519 = vmatpush1.msra.mxu0 0.0
    %2520 = vmatprep.subr.mxu0 0.0
    %2521 = vmatpush1.msra.mxu0 0.0
    %2522 = vmatprep.subr.mxu0 0.0
    %2523 = vmatpush1.msra.mxu0 0.0
    %2524 = vmatprep.subr.mxu0 0.0
    %2525 = vmatpush1.msra.mxu0 0.0
    %2526 = vmatprep.mubr.f32.mxu0 0.0
    %2527 = vmatmul.mubr.f32.gmra.mrb[0].mxu0 %v2457
    %v2528 = vpop.f32.mrb[0].mxu0
    %v2529 = vadd.f32 0.0, %v2528
    %v2530 = vpop.f32.mrb[0].mxu0
    %2531 = vmatprep.mubr.f32.mxu0 0.0
    %2532 = vmatmul.mubr.f32.gmra.mrb[0].mxu0 %v2460
    %v2533 = vpop.f32.mrb[0].mxu0
    %v2534 = vadd.f32 0.0, %v2533
    %v2535 = vpop.f32.mrb[0].mxu0
    %2536 = vdwg.mxu0
    %v2538 = vsel %vm409, %v2529, 0
    %v2541 = vsel %vm409, %v2534, 0
    %2543 = vmatprep.subr.mxu0 0.0
    %2544 = vmatpush1.msra.mxu0 %v1071
    %2545 = vmatprep.subr.mxu0 0.0
    %2546 = vmatpush1.msra.mxu0 %v1072
    %2547 = vmatprep.subr.mxu0 0.0
    %2548 = vmatpush1.msra.mxu0 0.0
    %2549 = vmatprep.subr.mxu0 0.0
    %2550 = vmatpush1.msra.mxu0 0.0
    %2551 = vmatprep.subr.mxu0 0.0
    %2552 = vmatpush1.msra.mxu0 0.0
    %2553 = vmatprep.subr.mxu0 0.0
    %2554 = vmatpush1.msra.mxu0 0.0
    %2555 = vmatprep.subr.mxu0 0.0
    %2556 = vmatpush1.msra.mxu0 0.0
    %2557 = vmatprep.subr.mxu0 0.0
    %2558 = vmatpush1.msra.mxu0 0.0
    %2559 = vmatprep.subr.mxu0 0.0
    %2560 = vmatpush1.msra.mxu0 0.0
    %2561 = vmatprep.subr.mxu0 0.0
    %2562 = vmatpush1.msra.mxu0 0.0
    %2563 = vmatprep.subr.mxu0 0.0
    %2564 = vmatpush1.msra.mxu0 0.0
    %2565 = vmatprep.subr.mxu0 0.0
    %2566 = vmatpush1.msra.mxu0 0.0
    %2567 = vmatprep.subr.mxu0 0.0
    %2568 = vmatpush1.msra.mxu0 0.0
    %2569 = vmatprep.subr.mxu0 0.0
    %2570 = vmatpush1.msra.mxu0 0.0
    %2571 = vmatprep.subr.mxu0 0.0
    %2572 = vmatpush1.msra.mxu0 0.0
    %2573 = vmatprep.subr.mxu0 0.0
    %2574 = vmatpush1.msra.mxu0 0.0
    %2575 = vmatprep.subr.mxu0 0.0
    %2576 = vmatpush1.msra.mxu0 0.0
    %2577 = vmatprep.subr.mxu0 0.0
    %2578 = vmatpush1.msra.mxu0 0.0
    %2579 = vmatprep.subr.mxu0 0.0
    %2580 = vmatpush1.msra.mxu0 0.0
    %2581 = vmatprep.subr.mxu0 0.0
    %2582 = vmatpush1.msra.mxu0 0.0
    %2583 = vmatprep.subr.mxu0 0.0
    %2584 = vmatpush1.msra.mxu0 0.0
    %2585 = vmatprep.subr.mxu0 0.0
    %2586 = vmatpush1.msra.mxu0 0.0
    %2587 = vmatprep.subr.mxu0 0.0
    %2588 = vmatpush1.msra.mxu0 0.0
    %2589 = vmatprep.subr.mxu0 0.0
    %2590 = vmatpush1.msra.mxu0 0.0
    %2591 = vmatprep.subr.mxu0 0.0
    %2592 = vmatpush1.msra.mxu0 0.0
    %2593 = vmatprep.subr.mxu0 0.0
    %2594 = vmatpush1.msra.mxu0 0.0
    %2595 = vmatprep.subr.mxu0 0.0
    %2596 = vmatpush1.msra.mxu0 0.0
    %2597 = vmatprep.subr.mxu0 0.0
    %2598 = vmatpush1.msra.mxu0 0.0
    %2599 = vmatprep.subr.mxu0 0.0
    %2600 = vmatpush1.msra.mxu0 0.0
    %2601 = vmatprep.subr.mxu0 0.0
    %2602 = vmatpush1.msra.mxu0 0.0
    %2603 = vmatprep.subr.mxu0 0.0
    %2604 = vmatpush1.msra.mxu0 0.0
    %2605 = vmatprep.subr.mxu0 0.0
    %2606 = vmatpush1.msra.mxu0 0.0
    %2607 = vmatprep.mubr.f32.mxu0 0.0
    %2608 = vmatmul.mubr.f32.gmra.mrb[0].mxu0 %v2538
    %v2609 = vpop.f32.mrb[0].mxu0
    %v2610 = vadd.f32 0.0, %v2609
    %v2611 = vpop.f32.mrb[0].mxu0
    %2612 = vmatprep.mubr.f32.mxu0 0.0
    %2613 = vmatmul.mubr.f32.gmra.mrb[0].mxu0 %v2541
    %v2614 = vpop.f32.mrb[0].mxu0
    %v2615 = vadd.f32 0.0, %v2614
    %v2616 = vpop.f32.mrb[0].mxu0
    %2617 = vdwg.mxu0
    %v2619 = vsel %vm409, %v2110, 0
    %v2622 = vsel %vm409, %v2115, 0
    %2624 = vmatprep.subr.mxu0 0.0
    %2625 = vmatpush1.msra.mxu0 %v610
    %2626 = vmatprep.subr.mxu0 0.0
    %2627 = vmatpush1.msra.mxu0 %v611
    %2628 = vmatprep.subr.mxu0 0.0
    %2629 = vmatpush1.msra.mxu0 0.0
    %2630 = vmatprep.subr.mxu0 0.0
    %2631 = vmatpush1.msra.mxu0 0.0
    %2632 = vmatprep.subr.mxu0 0.0
    %2633 = vmatpush1.msra.mxu0 0.0
    %2634 = vmatprep.subr.mxu0 0.0
    %2635 = vmatpush1.msra.mxu0 0.0
    %2636 = vmatprep.subr.mxu0 0.0
    %2637 = vmatpush1.msra.mxu0 0.0
    %2638 = vmatprep.subr.mxu0 0.0
    %2639 = vmatpush1.msra.mxu0 0.0
    %2640 = vmatprep.subr.mxu0 0.0
    %2641 = vmatpush1.msra.mxu0 0.0
    %2642 = vmatprep.subr.mxu0 0.0
    %2643 = vmatpush1.msra.mxu0 0.0
    %2644 = vmatprep.subr.mxu0 0.0
    %2645 = vmatpush1.msra.mxu0 0.0
    %2646 = vmatprep.subr.mxu0 0.0
    %2647 = vmatpush1.msra.mxu0 0.0
    %2648 = vmatprep.subr.mxu0 0.0
    %2649 = vmatpush1.msra.mxu0 0.0
    %2650 = vmatprep.subr.mxu0 0.0
    %2651 = vmatpush1.msra.mxu0 0.0
    %2652 = vmatprep.subr.mxu0 0.0
    %2653 = vmatpush1.msra.mxu0 0.0
    %2654 = vmatprep.subr.mxu0 0.0
    %2655 = vmatpush1.msra.mxu0 0.0
    %2656 = vmatprep.subr.mxu0 0.0
    %2657 = vmatpush1.msra.mxu0 0.0
    %2658 = vmatprep.subr.mxu0 0.0
    %2659 = vmatpush1.msra.mxu0 0.0
    %2660 = vmatprep.subr.mxu0 0.0
    %2661 = vmatpush1.msra.mxu0 0.0
    %2662 = vmatprep.subr.mxu0 0.0
    %2663 = vmatpush1.msra.mxu0 0.0
    %2664 = vmatprep.subr.mxu0 0.0
    %2665 = vmatpush1.msra.mxu0 0.0
    %2666 = vmatprep.subr.mxu0 0.0
    %2667 = vmatpush1.msra.mxu0 0.0
    %2668 = vmatprep.subr.mxu0 0.0
    %2669 = vmatpush1.msra.mxu0 0.0
    %2670 = vmatprep.subr.mxu0 0.0
    %2671 = vmatpush1.msra.mxu0 0.0
    %2672 = vmatprep.subr.mxu0 0.0
    %2673 = vmatpush1.msra.mxu0 0.0
    %2674 = vmatprep.subr.mxu0 0.0
    %2675 = vmatpush1.msra.mxu0 0.0
    %2676 = vmatprep.subr.mxu0 0.0
    %2677 = vmatpush1.msra.mxu0 0.0
    %2678 = vmatprep.subr.mxu0 0.0
    %2679 = vmatpush1.msra.mxu0 0.0
    %2680 = vmatprep.subr.mxu0 0.0
    %2681 = vmatpush1.msra.mxu0 0.0
    %2682 = vmatprep.subr.mxu0 0.0
    %2683 = vmatpush1.msra.mxu0 0.0
    %2684 = vmatprep.subr.mxu0 0.0
    %2685 = vmatpush1.msra.mxu0 0.0
    %2686 = vmatprep.subr.mxu0 0.0
    %2687 = vmatpush1.msra.mxu0 0.0
    %2688 = vmatprep.mubr.f32.mxu0 0.0
    %2689 = vmatmul.mubr.f32.gmra.mrb[0].mxu0 %v2619
    %v2690 = vpop.f32.mrb[0].mxu0
    %v2691 = vadd.f32 %v2610, %v2690
    %v2692 = vpop.f32.mrb[0].mxu0
    %2693 = vmatprep.mubr.f32.mxu0 0.0
    %2694 = vmatmul.mubr.f32.gmra.mrb[0].mxu0 %v2622
    %v2695 = vpop.f32.mrb[0].mxu0
    %v2696 = vadd.f32 %v2615, %v2695
    %v2697 = vpop.f32.mrb[0].mxu0
    %2698 = vdwg.mxu0
    %v2699 = vadd.f32 %v2691, %v1238
    %v2700 = vadd.f32 %v2696, %v1238
    %v2701 = vadd.f32 %v2699, %v75
    %v2702 = vadd.f32 %v2700, %v76
    %v2703 = vsel %vm155, %v2701, 0.0
    %2704 = vadd.xlane.f32.xlu0 %v2703
    %v2705 = vpop.xlane.xlu0 %2704
    %v2706 = vsel %vm155, %v2702, 0.0
    %2707 = vadd.xlane.f32.xlu0 %v2706
    %v2708 = vpop.xlane.xlu0 %2707
    %v2709 = vmul.f32 %v2705, %v1249
    %v2710 = vmul.f32 %v2708, %v1249
    %v2711 = vsub.f32 %v2701, %v2709
    %v2712 = vsub.f32 %v2702, %v2710
    %v2713 = vmul.f32 %v2711, %v2711
    %v2714 = vmul.f32 %v2712, %v2712
    %v2715 = vsel %vm155, %v2713, 0.0
    %2716 = vadd.xlane.f32.xlu0 %v2715
    %v2717 = vpop.xlane.xlu0 %2716
    %v2718 = vsel %vm155, %v2714, 0.0
    %2719 = vadd.xlane.f32.xlu0 %v2718
    %v2720 = vpop.xlane.xlu0 %2719
    %v2721 = vmul.f32 %v2717, %v1249
    %v2722 = vmul.f32 %v2720, %v1249
    %v2723 = vadd.f32 %v2721, 1e-05
    %v2724 = vadd.f32 %v2722, 1e-05
    %v2725 = vrsqrt.pop %v2723
    %v2726 = vrsqrt.pop %v2724
    %v2727 = vmul.f32 %v2711, %v2725
    %v2728 = vmul.f32 %v2712, %v2726
    %v2729 = vmul.f32 %v2727, %v1273
    %v2730 = vmul.f32 %v2728, %v1273
    %v2731 = vadd.f32 %v2729, %v1279
    %v2732 = vadd.f32 %v2730, %v1279
    %v2733 = vsel %vm91, 1, 0
    %v2734 = vsel %vm92, 1, 0
    %2735 = vset.pattern.permute.xlu0 0
    %2736 = vperm.xlu0 %2735, %v2733
    %v2737 = vpop.permute.xlu0 %2736
    %2738 = vset.pattern.permute.xlu0 0
    %2739 = vperm.xlu0 %2738, %v2734
    %v2740 = vpop.permute.xlu0 %2739
    %vm2741 = vcmp.eq.s32.totalorder %v2737, 1
    %vm2742 = vcmp.eq.s32.totalorder %v2740, 1
    %v2743 = vsel %vm2741, 0.0, %v2731
    %v2744 = vsel %vm2742, 0.0, %v2732
    %v2747 = vrot.slane %v2743, 4
    %v2748 = vrot.slane %v2744, 4
    %v2749 = vsel %vm1296, %v2747, %v2748
    %v2753 = vsel %vm1296, 0.0, %v2747
    %v2754 = vsel %vm1296, %v2748, 0.0
    %v2757 = vrot.slane %v2753, 1
    %v2758 = vrot.slane %v2749, 1
    %v2759 = vsel %vm1307, %v2757, %v2758
    %v2760 = vrot.slane %v2754, 1
    %v2761 = vsel %vm1307, %v2758, %v2760
    %2762 = vrot.lane.b32.xlu0 %v2759, 32
    %v2763 = vpop.permute.xlu0 %2762
    %2764 = vrot.lane.b32.xlu0 %v2761, 32
    %v2765 = vpop.permute.xlu0 %2764
    %v2768 = vrot.slane %v2753, 2
    %v2769 = vrot.slane %v2749, 2
    %v2770 = vsel %vm1319, %v2768, %v2769
    %v2771 = vrot.slane %v2754, 2
    %v2772 = vsel %vm1319, %v2769, %v2771
    %2773 = vrot.lane.b32.xlu0 %v2770, 64
    %v2774 = vpop.permute.xlu0 %2773
    %2775 = vrot.lane.b32.xlu0 %v2772, 64
    %v2776 = vpop.permute.xlu0 %2775
    %v2779 = vrot.slane %v2753, 3
    %v2780 = vrot.slane %v2749, 3
    %v2781 = vsel %vm1331, %v2779, %v2780
    %v2782 = vrot.slane %v2754, 3
    %v2783 = vsel %vm1331, %v2780, %v2782
    %2784 = vrot.lane.b32.xlu0 %v2781, 96
    %v2785 = vpop.permute.xlu0 %2784
    %2786 = vrot.lane.b32.xlu0 %v2783, 96
    %v2787 = vpop.permute.xlu0 %2786
    %v2790 = vrot.slane %v2753, 4
    %v2791 = vrot.slane %v2749, 4
    %v2792 = vsel %vm1296, %v2790, %v2791
    %v2793 = vrot.slane %v2754, 4
    %v2794 = vsel %vm1296, %v2791, %v2793
    %v2797 = vrot.slane %v2753, 5
    %v2798 = vrot.slane %v2749, 5
    %v2799 = vsel %vm1350, %v2797, %v2798
    %v2800 = vrot.slane %v2754, 5
    %v2801 = vsel %vm1350, %v2798, %v2800
    %2802 = vrot.lane.b32.xlu0 %v2799, 32
    %v2803 = vpop.permute.xlu0 %2802
    %2804 = vrot.lane.b32.xlu0 %v2801, 32
    %v2805 = vpop.permute.xlu0 %2804
    %v2808 = vrot.slane %v2753, 6
    %v2809 = vrot.slane %v2749, 6
    %v2810 = vsel %vm1362, %v2808, %v2809
    %v2811 = vrot.slane %v2754, 6
    %v2812 = vsel %vm1362, %v2809, %v2811
    %2813 = vrot.lane.b32.xlu0 %v2810, 64
    %v2814 = vpop.permute.xlu0 %2813
    %2815 = vrot.lane.b32.xlu0 %v2812, 64
    %v2816 = vpop.permute.xlu0 %2815
    %v2819 = vrot.slane %v2753, 7
    %v2820 = vrot.slane %v2749, 7
    %v2821 = vsel %vm1374, %v2819, %v2820
    %v2822 = vrot.slane %v2754, 7
    %v2823 = vsel %vm1374, %v2820, %v2822
    %2824 = vrot.lane.b32.xlu0 %v2821, 96
    %v2825 = vpop.permute.xlu0 %2824
    %2826 = vrot.lane.b32.xlu0 %v2823, 96
    %v2827 = vpop.permute.xlu0 %2826
    %v2830 = vsel %vm155, %v2753, %v2763
    %v2831 = vsel %vm155, %v2749, %v2765
    %v2832 = vsel %vm1388, %v2830, %v2774
    %v2833 = vsel %vm1388, %v2831, %v2776
    %v2834 = vsel %vm1391, %v2832, %v2785
    %v2835 = vsel %vm1391, %v2833, %v2787
    %v2836 = vsel %vm155, %v2792, %v2803
    %v2837 = vsel %vm155, %v2794, %v2805
    %v2838 = vsel %vm1388, %v2836, %v2814
    %v2839 = vsel %vm1388, %v2837, %v2816
    %v2840 = vsel %vm1391, %v2838, %v2825
    %v2841 = vsel %vm1391, %v2839, %v2827
    %v2842 = vsel %vm155, %v2749, 0
    %v2844 = vsel %vm155, %v2754, 0
    %2846 = vmatprep.subr.mxu0 0.0
    %2847 = vmatpush1.msra.mxu0 %v98
    %2848 = vmatprep.subr.mxu0 0.0
    %2849 = vmatpush1.msra.mxu0 %v99
    %2850 = vmatprep.subr.mxu0 0.0
    %2851 = vmatpush1.msra.mxu0 %v100
    %2852 = vmatprep.subr.mxu0 0.0
    %2853 = vmatpush1.msra.mxu0 %v101
    %2854 = vmatprep.subr.mxu0 0.0
    %2855 = vmatpush1.msra.mxu0 %v102
    %2856 = vmatprep.subr.mxu0 0.0
    %2857 = vmatpush1.msra.mxu0 %v103
    %2858 = vmatprep.subr.mxu0 0.0
    %2859 = vmatpush1.msra.mxu0 %v104
    %2860 = vmatprep.subr.mxu0 0.0
    %2861 = vmatpush1.msra.mxu0 %v105
    %2862 = vmatprep.subr.mxu0 0.0
    %2863 = vmatpush1.msra.mxu0 %v106
    %2864 = vmatprep.subr.mxu0 0.0
    %2865 = vmatpush1.msra.mxu0 %v107
    %2866 = vmatprep.subr.mxu0 0.0
    %2867 = vmatpush1.msra.mxu0 %v108
    %2868 = vmatprep.subr.mxu0 0.0
    %2869 = vmatpush1.msra.mxu0 %v109
    %2870 = vmatprep.subr.mxu0 0.0
    %2871 = vmatpush1.msra.mxu0 %v110
    %2872 = vmatprep.subr.mxu0 0.0
    %2873 = vmatpush1.msra.mxu0 %v111
    %2874 = vmatprep.subr.mxu0 0.0
    %2875 = vmatpush1.msra.mxu0 %v112
    %2876 = vmatprep.subr.mxu0 0.0
    %2877 = vmatpush1.msra.mxu0 %v113
    %2878 = vmatprep.subr.mxu0 0.0
    %2879 = vmatpush1.msra.mxu0 %v114
    %2880 = vmatprep.subr.mxu0 0.0
    %2881 = vmatpush1.msra.mxu0 %v115
    %2882 = vmatprep.subr.mxu0 0.0
    %2883 = vmatpush1.msra.mxu0 %v116
    %2884 = vmatprep.subr.mxu0 0.0
    %2885 = vmatpush1.msra.mxu0 %v117
    %2886 = vmatprep.subr.mxu0 0.0
    %2887 = vmatpush1.msra.mxu0 %v118
    %2888 = vmatprep.subr.mxu0 0.0
    %2889 = vmatpush1.msra.mxu0 %v119
    %2890 = vmatprep.subr.mxu0 0.0
    %2891 = vmatpush1.msra.mxu0 %v120
    %2892 = vmatprep.subr.mxu0 0.0
    %2893 = vmatpush1.msra.mxu0 %v121
    %2894 = vmatprep.subr.mxu0 0.0
    %2895 = vmatpush1.msra.mxu0 %v122
    %2896 = vmatprep.subr.mxu0 0.0
    %2897 = vmatpush1.msra.mxu0 %v123
    %2898 = vmatprep.subr.mxu0 0.0
    %2899 = vmatpush1.msra.mxu0 %v124
    %2900 = vmatprep.subr.mxu0 0.0
    %2901 = vmatpush1.msra.mxu0 %v125
    %2902 = vmatprep.subr.mxu0 0.0
    %2903 = vmatpush1.msra.mxu0 %v126
    %2904 = vmatprep.subr.mxu0 0.0
    %2905 = vmatpush1.msra.mxu0 %v127
    %2906 = vmatprep.subr.mxu0 0.0
    %2907 = vmatpush1.msra.mxu0 %v128
    %2908 = vmatprep.subr.mxu0 0.0
    %2909 = vmatpush1.msra.mxu0 %v129
    %2910 = vmatprep.mubr.f32.mxu0 %v2840
    %2911 = vmatmul.mubr.f32.gmra.mrb[0].mxu0 %v2834
    %v2912 = vpop.f32.mrb[0].mxu0
    %v2913 = vadd.f32 %v1403, %v2912
    %v2914 = vpop.f32.mrb[0].mxu0
    %2915 = vmatprep.mubr.f32.mxu0 %v2841
    %2916 = vmatmul.mubr.f32.gmra.mrb[0].mxu0 %v2835
    %v2917 = vpop.f32.mrb[0].mxu0
    %v2918 = vadd.f32 %v1403, %v2917
    %v2919 = vpop.f32.mrb[0].mxu0
    %2920 = vdwg.mxu0
    %2921 = vmatprep.subr.mxu0 0.0
    %2922 = vmatpush1.msra.mxu0 %v130
    %2923 = vmatprep.subr.mxu0 0.0
    %2924 = vmatpush1.msra.mxu0 %v131
    %2925 = vmatprep.subr.mxu0 0.0
    %2926 = vmatpush1.msra.mxu0 %v132
    %2927 = vmatprep.subr.mxu0 0.0
    %2928 = vmatpush1.msra.mxu0 %v133
    %2929 = vmatprep.subr.mxu0 0.0
    %2930 = vmatpush1.msra.mxu0 0.0
    %2931 = vmatprep.subr.mxu0 0.0
    %2932 = vmatpush1.msra.mxu0 0.0
    %2933 = vmatprep.subr.mxu0 0.0
    %2934 = vmatpush1.msra.mxu0 0.0
    %2935 = vmatprep.subr.mxu0 0.0
    %2936 = vmatpush1.msra.mxu0 0.0
    %2937 = vmatprep.subr.mxu0 0.0
    %2938 = vmatpush1.msra.mxu0 0.0
    %2939 = vmatprep.subr.mxu0 0.0
    %2940 = vmatpush1.msra.mxu0 0.0
    %2941 = vmatprep.subr.mxu0 0.0
    %2942 = vmatpush1.msra.mxu0 0.0
    %2943 = vmatprep.subr.mxu0 0.0
    %2944 = vmatpush1.msra.mxu0 0.0
    %2945 = vmatprep.subr.mxu0 0.0
    %2946 = vmatpush1.msra.mxu0 0.0
    %2947 = vmatprep.subr.mxu0 0.0
    %2948 = vmatpush1.msra.mxu0 0.0
    %2949 = vmatprep.subr.mxu0 0.0
    %2950 = vmatpush1.msra.mxu0 0.0
    %2951 = vmatprep.subr.mxu0 0.0
    %2952 = vmatpush1.msra.mxu0 0.0
    %2953 = vmatprep.subr.mxu0 0.0
    %2954 = vmatpush1.msra.mxu0 0.0
    %2955 = vmatprep.subr.mxu0 0.0
    %2956 = vmatpush1.msra.mxu0 0.0
    %2957 = vmatprep.subr.mxu0 0.0
    %2958 = vmatpush1.msra.mxu0 0.0
    %2959 = vmatprep.subr.mxu0 0.0
    %2960 = vmatpush1.msra.mxu0 0.0
    %2961 = vmatprep.subr.mxu0 0.0
    %2962 = vmatpush1.msra.mxu0 0.0
    %2963 = vmatprep.subr.mxu0 0.0
    %2964 = vmatpush1.msra.mxu0 0.0
    %2965 = vmatprep.subr.mxu0 0.0
    %2966 = vmatpush1.msra.mxu0 0.0
    %2967 = vmatprep.subr.mxu0 0.0
    %2968 = vmatpush1.msra.mxu0 0.0
    %2969 = vmatprep.subr.mxu0 0.0
    %2970 = vmatpush1.msra.mxu0 0.0
    %2971 = vmatprep.subr.mxu0 0.0
    %2972 = vmatpush1.msra.mxu0 0.0
    %2973 = vmatprep.subr.mxu0 0.0
    %2974 = vmatpush1.msra.mxu0 0.0
    %2975 = vmatprep.subr.mxu0 0.0
    %2976 = vmatpush1.msra.mxu0 0.0
    %2977 = vmatprep.subr.mxu0 0.0
    %2978 = vmatpush1.msra.mxu0 0.0
    %2979 = vmatprep.subr.mxu0 0.0
    %2980 = vmatpush1.msra.mxu0 0.0
    %2981 = vmatprep.subr.mxu0 0.0
    %2982 = vmatpush1.msra.mxu0 0.0
    %2983 = vmatprep.subr.mxu0 0.0
    %2984 = vmatpush1.msra.mxu0 0.0
    %2985 = vmatprep.mubr.f32.mxu0 0.0
    %2986 = vmatmul.mubr.f32.gmra.mrb[0].mxu0 %v2842
    %v2987 = vpop.f32.mrb[0].mxu0
    %v2988 = vadd.f32 %v2913, %v2987
    %v2989 = vpop.f32.mrb[0].mxu0
    %2990 = vmatprep.mubr.f32.mxu0 0.0
    %2991 = vmatmul.mubr.f32.gmra.mrb[0].mxu0 %v2844
    %v2992 = vpop.f32.mrb[0].mxu0
    %v2993 = vadd.f32 %v2918, %v2992
    %v2994 = vpop.f32.mrb[0].mxu0
    %2995 = vdwg.mxu0
    %v2996 = vmax.f32 %v2988, 0.0
    %v2997 = vmax.f32 %v2993, 0.0
    %v2999 = vsel %vm1388, %v2996, 0
    %v3002 = vsel %vm1388, %v2997, 0
    %3004 = vmatprep.subr.mxu0 0.0
    %3005 = vmatpush1.msra.mxu0 %v135
    %3006 = vmatprep.subr.mxu0 0.0
    %3007 = vmatpush1.msra.mxu0 %v136
    %3008 = vmatprep.subr.mxu0 0.0
    %3009 = vmatpush1.msra.mxu0 %v137
    %3010 = vmatprep.subr.mxu0 0.0
    %3011 = vmatpush1.msra.mxu0 %v138
    %3012 = vmatprep.subr.mxu0 0.0
    %3013 = vmatpush1.msra.mxu0 %v139
    %3014 = vmatprep.subr.mxu0 0.0
    %3015 = vmatpush1.msra.mxu0 %v140
    %3016 = vmatprep.subr.mxu0 0.0
    %3017 = vmatpush1.msra.mxu0 %v141
    %3018 = vmatprep.subr.mxu0 0.0
    %3019 = vmatpush1.msra.mxu0 %v142
    %3020 = vmatprep.subr.mxu0 0.0
    %3021 = vmatpush1.msra.mxu0 0.0
    %3022 = vmatprep.subr.mxu0 0.0
    %3023 = vmatpush1.msra.mxu0 0.0
    %3024 = vmatprep.subr.mxu0 0.0
    %3025 = vmatpush1.msra.mxu0 0.0
    %3026 = vmatprep.subr.mxu0 0.0
    %3027 = vmatpush1.msra.mxu0 0.0
    %3028 = vmatprep.subr.mxu0 0.0
    %3029 = vmatpush1.msra.mxu0 0.0
    %3030 = vmatprep.subr.mxu0 0.0
    %3031 = vmatpush1.msra.mxu0 0.0
    %3032 = vmatprep.subr.mxu0 0.0
    %3033 = vmatpush1.msra.mxu0 0.0
    %3034 = vmatprep.subr.mxu0 0.0
    %3035 = vmatpush1.msra.mxu0 0.0
    %3036 = vmatprep.subr.mxu0 0.0
    %3037 = vmatpush1.msra.mxu0 0.0
    %3038 = vmatprep.subr.mxu0 0.0
    %3039 = vmatpush1.msra.mxu0 0.0
    %3040 = vmatprep.subr.mxu0 0.0
    %3041 = vmatpush1.msra.mxu0 0.0
    %3042 = vmatprep.subr.mxu0 0.0
    %3043 = vmatpush1.msra.mxu0 0.0
    %3044 = vmatprep.subr.mxu0 0.0
    %3045 = vmatpush1.msra.mxu0 0.0
    %3046 = vmatprep.subr.mxu0 0.0
    %3047 = vmatpush1.msra.mxu0 0.0
    %3048 = vmatprep.subr.mxu0 0.0
    %3049 = vmatpush1.msra.mxu0 0.0
    %3050 = vmatprep.subr.mxu0 0.0
    %3051 = vmatpush1.msra.mxu0 0.0
    %3052 = vmatprep.subr.mxu0 0.0
    %3053 = vmatpush1.msra.mxu0 0.0
    %3054 = vmatprep.subr.mxu0 0.0
    %3055 = vmatpush1.msra.mxu0 0.0
    %3056 = vmatprep.subr.mxu0 0.0
    %3057 = vmatpush1.msra.mxu0 0.0
    %3058 = vmatprep.subr.mxu0 0.0
    %3059 = vmatpush1.msra.mxu0 0.0
    %3060 = vmatprep.subr.mxu0 0.0
    %3061 = vmatpush1.msra.mxu0 0.0
    %3062 = vmatprep.subr.mxu0 0.0
    %3063 = vmatpush1.msra.mxu0 0.0
    %3064 = vmatprep.subr.mxu0 0.0
    %3065 = vmatpush1.msra.mxu0 0.0
    %3066 = vmatprep.subr.mxu0 0.0
    %3067 = vmatpush1.msra.mxu0 0.0
    %3068 = vmatprep.mubr.f32.mxu0 0.0
    %3069 = vmatmul.mubr.f32.gmra.mrb[0].mxu0 %v2999
    %v3070 = vpop.f32.mrb[0].mxu0
    %v3071 = vadd.f32 %v1563, %v3070
    %v3072 = vpop.f32.mrb[0].mxu0
    %3073 = vmatprep.mubr.f32.mxu0 0.0
    %3074 = vmatmul.mubr.f32.gmra.mrb[0].mxu0 %v3002
    %v3075 = vpop.f32.mrb[0].mxu0
    %v3076 = vadd.f32 %v1563, %v3075
    %v3077 = vpop.f32.mrb[0].mxu0
    %3078 = vdwg.mxu0
    %v3079 = vadd.f32 %v3071, %v2743
    %v3080 = vadd.f32 %v3076, %v2744
    %v3081 = vsel %vm155, %v3079, 0.0
    %3082 = vadd.xlane.f32.xlu0 %v3081
    %v3083 = vpop.xlane.xlu0 %3082
    %v3084 = vsel %vm155, %v3080, 0.0
    %3085 = vadd.xlane.f32.xlu0 %v3084
    %v3086 = vpop.xlane.xlu0 %3085
    %v3087 = vmul.f32 %v3083, %v1249
    %v3088 = vmul.f32 %v3086, %v1249
    %v3089 = vsub.f32 %v3079, %v3087
    %v3090 = vsub.f32 %v3080, %v3088
    %v3091 = vmul.f32 %v3089, %v3089
    %v3092 = vmul.f32 %v3090, %v3090
    %v3093 = vsel %vm155, %v3091, 0.0
    %3094 = vadd.xlane.f32.xlu0 %v3093
    %v3095 = vpop.xlane.xlu0 %3094
    %v3096 = vsel %vm155, %v3092, 0.0
    %3097 = vadd.xlane.f32.xlu0 %v3096
    %v3098 = vpop.xlane.xlu0 %3097
    %v3099 = vmul.f32 %v3095, %v1249
    %v3100 = vmul.f32 %v3098, %v1249
    %v3101 = vadd.f32 %v3099, 1e-05
    %v3102 = vadd.f32 %v3100, 1e-05
    %v3103 = vrsqrt.pop %v3101
    %v3104 = vrsqrt.pop %v3102
    %v3105 = vmul.f32 %v3089, %v3103
    %v3106 = vmul.f32 %v3090, %v3104
    %v3107 = vmul.f32 %v3105, %v1676
    %v3108 = vmul.f32 %v3106, %v1676
    %v3109 = vadd.f32 %v3107, %v1682
    %v3110 = vadd.f32 %v3108, %v1682
    %v3111 = vsel %vm2741, 0.0, %v3109
    %v3112 = vsel %vm2742, 0.0, %v3110
    %v3113 = vld [vmem:[%s12 + $0x1] sm:$0x1]
    %v3114 = vld [vmem:[%s13 + $0x1] sm:$0x1]
    %v3115 = vld [vmem:[%s18 + $0x1] sm:$0x1]
    %v3116 = vld [vmem:[%s19 + $0x1] sm:$0x1]
    %v3117 = vld [vmem:[%s11 + $0x1] sm:$0x1]
    %s3118 = scalar_lea.vmem %s14, 288
    %v3119 = vld [vmem:[%s3118] sm:$0xff]
    %v3120 = vld [vmem:[%s3118 + $0x8] sm:$0xff]
    %v3121 = vld [vmem:[%s3118 + $0x10] sm:$0xff]
    %v3122 = vld [vmem:[%s3118 + $0x18] sm:$0xff]
    %v3123 = vld [vmem:[%s3118 + $0x20] sm:$0xff]
    %v3124 = vld [vmem:[%s3118 + $0x28] sm:$0xff]
    %v3125 = vld [vmem:[%s3118 + $0x30] sm:$0xff]
    %v3126 = vld [vmem:[%s3118 + $0x38] sm:$0xff]
    %v3127 = vld [vmem:[%s3118 + $0x40] sm:$0xff]
    %v3128 = vld [vmem:[%s3118 + $0x48] sm:$0xff]
    %v3129 = vld [vmem:[%s3118 + $0x50] sm:$0xff]
    %v3130 = vld [vmem:[%s3118 + $0x58] sm:$0xff]
    %v3131 = vld [vmem:[%s3118 + $0x60] sm:$0xff]
    %v3132 = vld [vmem:[%s3118 + $0x68] sm:$0xff]
    %v3133 = vld [vmem:[%s3118 + $0x70] sm:$0xff]
    %v3134 = vld [vmem:[%s3118 + $0x78] sm:$0xff]
    %v3135 = vld [vmem:[%s3118 + $0x80] sm:$0xff]
    %v3136 = vld [vmem:[%s3118 + $0x88] sm:$0xff]
    %v3137 = vld [vmem:[%s3118 + $0x90] sm:$0xff]
    %v3138 = vld [vmem:[%s3118 + $0x98] sm:$0xff]
    %v3139 = vld [vmem:[%s3118 + $0xa0] sm:$0xff]
    %v3140 = vld [vmem:[%s3118 + $0xa8] sm:$0xff]
    %v3141 = vld [vmem:[%s3118 + $0xb0] sm:$0xff]
    %v3142 = vld [vmem:[%s3118 + $0xb8] sm:$0xff]
    %v3143 = vld [vmem:[%s3118 + $0xc0] sm:$0xff]
    %v3144 = vld [vmem:[%s3118 + $0xc8] sm:$0xff]
    %v3145 = vld [vmem:[%s3118 + $0xd0] sm:$0xff]
    %v3146 = vld [vmem:[%s3118 + $0xd8] sm:$0xff]
    %v3147 = vld [vmem:[%s3118 + $0xe0] sm:$0xff]
    %v3148 = vld [vmem:[%s3118 + $0xe8] sm:$0xff]
    %v3149 = vld [vmem:[%s3118 + $0xf0] sm:$0xff]
    %v3150 = vld [vmem:[%s3118 + $0xf8] sm:$0xff]
    %v3151 = vld [vmem:[%s3118 + $0x100] sm:$0xff]
    %v3152 = vld [vmem:[%s3118 + $0x108] sm:$0xff]
    %v3153 = vld [vmem:[%s3118 + $0x110] sm:$0xff]
    %v3154 = vld [vmem:[%s3118 + $0x118] sm:$0xff]
    %v3155 = vld [vmem:[%s15 + $0x1] sm:$0x1]
    %s3156 = scalar_lea.vmem %s16, 64
    %v3157 = vld [vmem:[%s3156] sm:$0xff]
    %v3158 = vld [vmem:[%s3156 + $0x8] sm:$0xff]
    %v3159 = vld [vmem:[%s3156 + $0x10] sm:$0xff]
    %v3160 = vld [vmem:[%s3156 + $0x18] sm:$0xff]
    %v3161 = vld [vmem:[%s3156 + $0x20] sm:$0xff]
    %v3162 = vld [vmem:[%s3156 + $0x28] sm:$0xff]
    %v3163 = vld [vmem:[%s3156 + $0x30] sm:$0xff]
    %v3164 = vld [vmem:[%s3156 + $0x38] sm:$0xff]
    %v3165 = vld [vmem:[%s17 + $0x1] sm:$0x1]
    %s3166 = scalar_lea.vmem %s4, 64
    %v3167 = vld [vmem:[%s3166] sm:$0xff]
    %v3168 = vld [vmem:[%s3166 + $0x8] sm:$0xff]
    %v3169 = vld [vmem:[%s3166 + $0x10] sm:$0xff]
    %v3170 = vld [vmem:[%s3166 + $0x18] sm:$0xff]
    %s3171 = scalar_lea.vmem %s5, 2
    %v3172 = vld [vmem:[%s3171] sm:$0x1]
    %v3174 = vlaneseq
    %v3175 = vshrl.u32 %v3174, 7
    %v3176 = vsub.s32 0, %v3175
    %v3177 = vrot.slane %v3172, %v3176
    %v3180 = vsel %vm155, %v1685, 0
    %v3183 = vsel %vm155, %v1686, 0
    %3185 = vmatprep.subr.mxu0 0.0
    %3186 = vmatpush1.msra.mxu0 %v3167
    %3187 = vmatprep.subr.mxu0 0.0
    %3188 = vmatpush1.msra.mxu0 %v3168
    %3189 = vmatprep.subr.mxu0 0.0
    %3190 = vmatpush1.msra.mxu0 %v3169
    %3191 = vmatprep.subr.mxu0 0.0
    %3192 = vmatpush1.msra.mxu0 %v3170
    %3193 = vmatprep.subr.mxu0 0.0
    %3194 = vmatpush1.msra.mxu0 0.0
    %3195 = vmatprep.subr.mxu0 0.0
    %3196 = vmatpush1.msra.mxu0 0.0
    %3197 = vmatprep.subr.mxu0 0.0
    %3198 = vmatpush1.msra.mxu0 0.0
    %3199 = vmatprep.subr.mxu0 0.0
    %3200 = vmatpush1.msra.mxu0 0.0
    %3201 = vmatprep.subr.mxu0 0.0
    %3202 = vmatpush1.msra.mxu0 0.0
    %3203 = vmatprep.subr.mxu0 0.0
    %3204 = vmatpush1.msra.mxu0 0.0
    %3205 = vmatprep.subr.mxu0 0.0
    %3206 = vmatpush1.msra.mxu0 0.0
    %3207 = vmatprep.subr.mxu0 0.0
    %3208 = vmatpush1.msra.mxu0 0.0
    %3209 = vmatprep.subr.mxu0 0.0
    %3210 = vmatpush1.msra.mxu0 0.0
    %3211 = vmatprep.subr.mxu0 0.0
    %3212 = vmatpush1.msra.mxu0 0.0
    %3213 = vmatprep.subr.mxu0 0.0
    %3214 = vmatpush1.msra.mxu0 0.0
    %3215 = vmatprep.subr.mxu0 0.0
    %3216 = vmatpush1.msra.mxu0 0.0
    %3217 = vmatprep.subr.mxu0 0.0
    %3218 = vmatpush1.msra.mxu0 0.0
    %3219 = vmatprep.subr.mxu0 0.0
    %3220 = vmatpush1.msra.mxu0 0.0
    %3221 = vmatprep.subr.mxu0 0.0
    %3222 = vmatpush1.msra.mxu0 0.0
    %3223 = vmatprep.subr.mxu0 0.0
    %3224 = vmatpush1.msra.mxu0 0.0
    %3225 = vmatprep.subr.mxu0 0.0
    %3226 = vmatpush1.msra.mxu0 0.0
    %3227 = vmatprep.subr.mxu0 0.0
    %3228 = vmatpush1.msra.mxu0 0.0
    %3229 = vmatprep.subr.mxu0 0.0
    %3230 = vmatpush1.msra.mxu0 0.0
    %3231 = vmatprep.subr.mxu0 0.0
    %3232 = vmatpush1.msra.mxu0 0.0
    %3233 = vmatprep.subr.mxu0 0.0
    %3234 = vmatpush1.msra.mxu0 0.0
    %3235 = vmatprep.subr.mxu0 0.0
    %3236 = vmatpush1.msra.mxu0 0.0
    %3237 = vmatprep.subr.mxu0 0.0
    %3238 = vmatpush1.msra.mxu0 0.0
    %3239 = vmatprep.subr.mxu0 0.0
    %3240 = vmatpush1.msra.mxu0 0.0
    %3241 = vmatprep.subr.mxu0 0.0
    %3242 = vmatpush1.msra.mxu0 0.0
    %3243 = vmatprep.subr.mxu0 0.0
    %3244 = vmatpush1.msra.mxu0 0.0
    %3245 = vmatprep.subr.mxu0 0.0
    %3246 = vmatpush1.msra.mxu0 0.0
    %3247 = vmatprep.subr.mxu0 0.0
    %3248 = vmatpush1.msra.mxu0 0.0
    %3249 = vmatprep.mubr.f32.mxu0 0.0
    %3250 = vmatmul.mubr.f32.gmra.mrb[0].mxu0 %v3180
    %v3251 = vpop.f32.mrb[0].mxu0
    %v3252 = vadd.f32 %v3177, %v3251
    %v3253 = vpop.f32.mrb[0].mxu0
    %3254 = vmatprep.mubr.f32.mxu0 0.0
    %3255 = vmatmul.mubr.f32.gmra.mrb[0].mxu0 %v3183
    %v3256 = vpop.f32.mrb[0].mxu0
    %v3257 = vadd.f32 %v3177, %v3256
    %v3258 = vpop.f32.mrb[0].mxu0
    %3259 = vdwg.mxu0
    %s3260 = scalar_lea.vmem %s6, 64
    %v3261 = vld [vmem:[%s3260] sm:$0xff]
    %v3262 = vld [vmem:[%s3260 + $0x8] sm:$0xff]
    %v3263 = vld [vmem:[%s3260 + $0x10] sm:$0xff]
    %v3264 = vld [vmem:[%s3260 + $0x18] sm:$0xff]
    %s3265 = scalar_lea.vmem %s7, 2
    %v3266 = vld [vmem:[%s3265] sm:$0x1]
    %v3268 = vlaneseq
    %v3269 = vshrl.u32 %v3268, 7
    %v3270 = vsub.s32 0, %v3269
    %v3271 = vrot.slane %v3266, %v3270
    %3273 = vmatprep.subr.mxu0 0.0
    %3274 = vmatpush1.msra.mxu0 %v3261
    %3275 = vmatprep.subr.mxu0 0.0
    %3276 = vmatpush1.msra.mxu0 %v3262
    %3277 = vmatprep.subr.mxu0 0.0
    %3278 = vmatpush1.msra.mxu0 %v3263
    %3279 = vmatprep.subr.mxu0 0.0
    %3280 = vmatpush1.msra.mxu0 %v3264
    %3281 = vmatprep.subr.mxu0 0.0
    %3282 = vmatpush1.msra.mxu0 0.0
    %3283 = vmatprep.subr.mxu0 0.0
    %3284 = vmatpush1.msra.mxu0 0.0
    %3285 = vmatprep.subr.mxu0 0.0
    %3286 = vmatpush1.msra.mxu0 0.0
    %3287 = vmatprep.subr.mxu0 0.0
    %3288 = vmatpush1.msra.mxu0 0.0
    %3289 = vmatprep.subr.mxu0 0.0
    %3290 = vmatpush1.msra.mxu0 0.0
    %3291 = vmatprep.subr.mxu0 0.0
    %3292 = vmatpush1.msra.mxu0 0.0
    %3293 = vmatprep.subr.mxu0 0.0
    %3294 = vmatpush1.msra.mxu0 0.0
    %3295 = vmatprep.subr.mxu0 0.0
    %3296 = vmatpush1.msra.mxu0 0.0
    %3297 = vmatprep.subr.mxu0 0.0
    %3298 = vmatpush1.msra.mxu0 0.0
    %3299 = vmatprep.subr.mxu0 0.0
    %3300 = vmatpush1.msra.mxu0 0.0
    %3301 = vmatprep.subr.mxu0 0.0
    %3302 = vmatpush1.msra.mxu0 0.0
    %3303 = vmatprep.subr.mxu0 0.0
    %3304 = vmatpush1.msra.mxu0 0.0
    %3305 = vmatprep.subr.mxu0 0.0
    %3306 = vmatpush1.msra.mxu0 0.0
    %3307 = vmatprep.subr.mxu0 0.0
    %3308 = vmatpush1.msra.mxu0 0.0
    %3309 = vmatprep.subr.mxu0 0.0
    %3310 = vmatpush1.msra.mxu0 0.0
    %3311 = vmatprep.subr.mxu0 0.0
    %3312 = vmatpush1.msra.mxu0 0.0
    %3313 = vmatprep.subr.mxu0 0.0
    %3314 = vmatpush1.msra.mxu0 0.0
    %3315 = vmatprep.subr.mxu0 0.0
    %3316 = vmatpush1.msra.mxu0 0.0
    %3317 = vmatprep.subr.mxu0 0.0
    %3318 = vmatpush1.msra.mxu0 0.0
    %3319 = vmatprep.subr.mxu0 0.0
    %3320 = vmatpush1.msra.mxu0 0.0
    %3321 = vmatprep.subr.mxu0 0.0
    %3322 = vmatpush1.msra.mxu0 0.0
    %3323 = vmatprep.subr.mxu0 0.0
    %3324 = vmatpush1.msra.mxu0 0.0
    %3325 = vmatprep.subr.mxu0 0.0
    %3326 = vmatpush1.msra.mxu0 0.0
    %3327 = vmatprep.subr.mxu0 0.0
    %3328 = vmatpush1.msra.mxu0 0.0
    %3329 = vmatprep.subr.mxu0 0.0
    %3330 = vmatpush1.msra.mxu0 0.0
    %3331 = vmatprep.subr.mxu0 0.0
    %3332 = vmatpush1.msra.mxu0 0.0
    %3333 = vmatprep.subr.mxu0 0.0
    %3334 = vmatpush1.msra.mxu0 0.0
    %3335 = vmatprep.subr.mxu0 0.0
    %3336 = vmatpush1.msra.mxu0 0.0
    %3337 = vmatprep.mubr.f32.mxu0 0.0
    %3338 = vmatmul.mubr.f32.gmra.mrb[0].mxu0 %v3180
    %v3339 = vpop.f32.mrb[0].mxu0
    %v3340 = vadd.f32 %v3271, %v3339
    %v3341 = vpop.f32.mrb[0].mxu0
    %3342 = vmatprep.mubr.f32.mxu0 0.0
    %3343 = vmatmul.mubr.f32.gmra.mrb[0].mxu0 %v3183
    %v3344 = vpop.f32.mrb[0].mxu0
    %v3345 = vadd.f32 %v3271, %v3344
    %v3346 = vpop.f32.mrb[0].mxu0
    %3347 = vdwg.mxu0
    %s3348 = scalar_lea.vmem %s8, 64
    %v3349 = vld [vmem:[%s3348] sm:$0xff]
    %v3350 = vld [vmem:[%s3348 + $0x8] sm:$0xff]
    %v3351 = vld [vmem:[%s3348 + $0x10] sm:$0xff]
    %v3352 = vld [vmem:[%s3348 + $0x18] sm:$0xff]
    %s3353 = scalar_lea.vmem %s9, 2
    %v3354 = vld [vmem:[%s3353] sm:$0x1]
    %v3356 = vlaneseq
    %v3357 = vshrl.u32 %v3356, 7
    %v3358 = vsub.s32 0, %v3357
    %v3359 = vrot.slane %v3354, %v3358
    %3361 = vmatprep.subr.mxu0 0.0
    %3362 = vmatpush1.msra.mxu0 %v3349
    %3363 = vmatprep.subr.mxu0 0.0
    %3364 = vmatpush1.msra.mxu0 %v3350
    %3365 = vmatprep.subr.mxu0 0.0
    %3366 = vmatpush1.msra.mxu0 %v3351
    %3367 = vmatprep.subr.mxu0 0.0
    %3368 = vmatpush1.msra.mxu0 %v3352
    %3369 = vmatprep.subr.mxu0 0.0
    %3370 = vmatpush1.msra.mxu0 0.0
    %3371 = vmatprep.subr.mxu0 0.0
    %3372 = vmatpush1.msra.mxu0 0.0
    %3373 = vmatprep.subr.mxu0 0.0
    %3374 = vmatpush1.msra.mxu0 0.0
    %3375 = vmatprep.subr.mxu0 0.0
    %3376 = vmatpush1.msra.mxu0 0.0
    %3377 = vmatprep.subr.mxu0 0.0
    %3378 = vmatpush1.msra.mxu0 0.0
    %3379 = vmatprep.subr.mxu0 0.0
    %3380 = vmatpush1.msra.mxu0 0.0
    %3381 = vmatprep.subr.mxu0 0.0
    %3382 = vmatpush1.msra.mxu0 0.0
    %3383 = vmatprep.subr.mxu0 0.0
    %3384 = vmatpush1.msra.mxu0 0.0
    %3385 = vmatprep.subr.mxu0 0.0
    %3386 = vmatpush1.msra.mxu0 0.0
    %3387 = vmatprep.subr.mxu0 0.0
    %3388 = vmatpush1.msra.mxu0 0.0
    %3389 = vmatprep.subr.mxu0 0.0
    %3390 = vmatpush1.msra.mxu0 0.0
    %3391 = vmatprep.subr.mxu0 0.0
    %3392 = vmatpush1.msra.mxu0 0.0
    %3393 = vmatprep.subr.mxu0 0.0
    %3394 = vmatpush1.msra.mxu0 0.0
    %3395 = vmatprep.subr.mxu0 0.0
    %3396 = vmatpush1.msra.mxu0 0.0
    %3397 = vmatprep.subr.mxu0 0.0
    %3398 = vmatpush1.msra.mxu0 0.0
    %3399 = vmatprep.subr.mxu0 0.0
    %3400 = vmatpush1.msra.mxu0 0.0
    %3401 = vmatprep.subr.mxu0 0.0
    %3402 = vmatpush1.msra.mxu0 0.0
    %3403 = vmatprep.subr.mxu0 0.0
    %3404 = vmatpush1.msra.mxu0 0.0
    %3405 = vmatprep.subr.mxu0 0.0
    %3406 = vmatpush1.msra.mxu0 0.0
    %3407 = vmatprep.subr.mxu0 0.0
    %3408 = vmatpush1.msra.mxu0 0.0
    %3409 = vmatprep.subr.mxu0 0.0
    %3410 = vmatpush1.msra.mxu0 0.0
    %3411 = vmatprep.subr.mxu0 0.0
    %3412 = vmatpush1.msra.mxu0 0.0
    %3413 = vmatprep.subr.mxu0 0.0
    %3414 = vmatpush1.msra.mxu0 0.0
    %3415 = vmatprep.subr.mxu0 0.0
    %3416 = vmatpush1.msra.mxu0 0.0
    %3417 = vmatprep.subr.mxu0 0.0
    %3418 = vmatpush1.msra.mxu0 0.0
    %3419 = vmatprep.subr.mxu0 0.0
    %3420 = vmatpush1.msra.mxu0 0.0
    %3421 = vmatprep.subr.mxu0 0.0
    %3422 = vmatpush1.msra.mxu0 0.0
    %3423 = vmatprep.subr.mxu0 0.0
    %3424 = vmatpush1.msra.mxu0 0.0
    %3425 = vmatprep.mubr.f32.mxu0 0.0
    %3426 = vmatmul.mubr.f32.gmra.mrb[0].mxu0 %v3180
    %v3427 = vpop.f32.mrb[0].mxu0
    %v3428 = vadd.f32 %v3359, %v3427
    %v3429 = vpop.f32.mrb[0].mxu0
    %3430 = vmatprep.mubr.f32.mxu0 0.0
    %3431 = vmatmul.mubr.f32.gmra.mrb[0].mxu0 %v3183
    %v3432 = vpop.f32.mrb[0].mxu0
    %v3433 = vadd.f32 %v3359, %v3432
    %v3434 = vpop.f32.mrb[0].mxu0
    %3435 = vdwg.mxu0
    %v3437 = vsel %vm409, %v3252, 0
    %v3440 = vsel %vm409, %v3257, 0
    %v3443 = vsel %vm409, %v3340, 0
    %v3446 = vsel %vm409, %v3345, 0
    %3448 = vmatprep.subr.mxu0 0.0
    %3449 = vmatpush1.xpose.msra.mxu0 %v3443
    %3450 = vmatprep.subr.mxu0 0.0
    %3451 = vmatpush1.xpose.msra.mxu0 %v3446
    %3452 = vmatprep.subr.mxu0 0.0
    %3453 = vmatpush1.xpose.msra.mxu0 0.0
    %3454 = vmatprep.subr.mxu0 0.0
    %3455 = vmatpush1.xpose.msra.mxu0 0.0
    %3456 = vmatprep.subr.mxu0 0.0
    %3457 = vmatpush1.xpose.msra.mxu0 0.0
    %3458 = vmatprep.subr.mxu0 0.0
    %3459 = vmatpush1.xpose.msra.mxu0 0.0
    %3460 = vmatprep.subr.mxu0 0.0
    %3461 = vmatpush1.xpose.msra.mxu0 0.0
    %3462 = vmatprep.subr.mxu0 0.0
    %3463 = vmatpush1.xpose.msra.mxu0 0.0
    %3464 = vmatprep.subr.mxu0 0.0
    %3465 = vmatpush1.xpose.msra.mxu0 0.0
    %3466 = vmatprep.subr.mxu0 0.0
    %3467 = vmatpush1.xpose.msra.mxu0 0.0
    %3468 = vmatprep.subr.mxu0 0.0
    %3469 = vmatpush1.xpose.msra.mxu0 0.0
    %3470 = vmatprep.subr.mxu0 0.0
    %3471 = vmatpush1.xpose.msra.mxu0 0.0
    %3472 = vmatprep.subr.mxu0 0.0
    %3473 = vmatpush1.xpose.msra.mxu0 0.0
    %3474 = vmatprep.subr.mxu0 0.0
    %3475 = vmatpush1.xpose.msra.mxu0 0.0
    %3476 = vmatprep.subr.mxu0 0.0
    %3477 = vmatpush1.xpose.msra.mxu0 0.0
    %3478 = vmatprep.subr.mxu0 0.0
    %3479 = vmatpush1.xpose.msra.mxu0 0.0
    %3480 = vmatprep.subr.mxu0 0.0
    %3481 = vmatpush1.xpose.msra.mxu0 0.0
    %3482 = vmatprep.subr.mxu0 0.0
    %3483 = vmatpush1.xpose.msra.mxu0 0.0
    %3484 = vmatprep.subr.mxu0 0.0
    %3485 = vmatpush1.xpose.msra.mxu0 0.0
    %3486 = vmatprep.subr.mxu0 0.0
    %3487 = vmatpush1.xpose.msra.mxu0 0.0
    %3488 = vmatprep.subr.mxu0 0.0
    %3489 = vmatpush1.xpose.msra.mxu0 0.0
    %3490 = vmatprep.subr.mxu0 0.0
    %3491 = vmatpush1.xpose.msra.mxu0 0.0
    %3492 = vmatprep.subr.mxu0 0.0
    %3493 = vmatpush1.xpose.msra.mxu0 0.0
    %3494 = vmatprep.subr.mxu0 0.0
    %3495 = vmatpush1.xpose.msra.mxu0 0.0
    %3496 = vmatprep.subr.mxu0 0.0
    %3497 = vmatpush1.xpose.msra.mxu0 0.0
    %3498 = vmatprep.subr.mxu0 0.0
    %3499 = vmatpush1.xpose.msra.mxu0 0.0
    %3500 = vmatprep.subr.mxu0 0.0
    %3501 = vmatpush1.xpose.msra.mxu0 0.0
    %3502 = vmatprep.subr.mxu0 0.0
    %3503 = vmatpush1.xpose.msra.mxu0 0.0
    %3504 = vmatprep.subr.mxu0 0.0
    %3505 = vmatpush1.xpose.msra.mxu0 0.0
    %3506 = vmatprep.subr.mxu0 0.0
    %3507 = vmatpush1.xpose.msra.mxu0 0.0
    %3508 = vmatprep.subr.mxu0 0.0
    %3509 = vmatpush1.xpose.msra.mxu0 0.0
    %3510 = vmatprep.subr.mxu0 0.0
    %3511 = vmatpush1.xpose.msra.mxu0 0.0
    %3512 = vmatprep.mubr.f32.mxu0 0.0
    %3513 = vmatmul.mubr.f32.gmra.mrb[0].mxu0 %v3437
    %v3514 = vpop.f32.mrb[0].mxu0
    %v3515 = vadd.f32 0.0, %v3514
    %v3516 = vpop.f32.mrb[0].mxu0
    %3517 = vmatprep.mubr.f32.mxu0 0.0
    %3518 = vmatmul.mubr.f32.gmra.mrb[0].mxu0 %v3440
    %v3519 = vpop.f32.mrb[0].mxu0
    %v3520 = vadd.f32 0.0, %v3519
    %v3521 = vpop.f32.mrb[0].mxu0
    %3522 = vdwg.mxu0
    %v3523 = vmul.f32 %v3515, 0.25
    %v3524 = vmul.f32 %v3520, 0.25
    %v3525 = vadd.f32 %v3523, %v503
    %v3526 = vadd.f32 %v3524, %v503
    %v3527 = vsel %vm409, %v3525, -inf
    %3528 = vmax.xlane.f32.xlu0 %v3527
    %v3529 = vpop.xlane.xlu0 %3528
    %v3530 = vsel %vm409, %v3526, -inf
    %3531 = vmax.xlane.f32.xlu0 %v3530
    %v3532 = vpop.xlane.xlu0 %3531
    %v3533 = vsub.f32 %v3525, %v3529
    %v3534 = vsub.f32 %v3526, %v3532
    %v3535 = vmul.f32 %v3533, 1.442695
    %v3536 = vpow.pop %v3535
    %v3537 = vmul.f32 %v3534, 1.442695
    %v3538 = vpow.pop %v3537
    %v3539 = vsel %vm409, %v3536, 0.0
    %3540 = vadd.xlane.f32.xlu0 %v3539
    %v3541 = vpop.xlane.xlu0 %3540
    %v3542 = vsel %vm409, %v3538, 0.0
    %3543 = vadd.xlane.f32.xlu0 %v3542
    %v3544 = vpop.xlane.xlu0 %3543
    %v3545 = vrcp.pop %v3541
    %v3546 = vrcp.pop %v3544
    %v3547 = vmul.f32 %v3536, %v3545
    %v3548 = vmul.f32 %v3538, %v3546
    %v3550 = vsel %vm409, %v3547, 0
    %v3553 = vsel %vm409, %v3548, 0
    %3555 = vmatprep.subr.mxu0 0.0
    %3556 = vmatpush1.msra.mxu0 %v3428
    %3557 = vmatprep.subr.mxu0 0.0
    %3558 = vmatpush1.msra.mxu0 %v3433
    %3559 = vmatprep.subr.mxu0 0.0
    %3560 = vmatpush1.msra.mxu0 0.0
    %3561 = vmatprep.subr.mxu0 0.0
    %3562 = vmatpush1.msra.mxu0 0.0
    %3563 = vmatprep.subr.mxu0 0.0
    %3564 = vmatpush1.msra.mxu0 0.0
    %3565 = vmatprep.subr.mxu0 0.0
    %3566 = vmatpush1.msra.mxu0 0.0
    %3567 = vmatprep.subr.mxu0 0.0
    %3568 = vmatpush1.msra.mxu0 0.0
    %3569 = vmatprep.subr.mxu0 0.0
    %3570 = vmatpush1.msra.mxu0 0.0
    %3571 = vmatprep.subr.mxu0 0.0
    %3572 = vmatpush1.msra.mxu0 0.0
    %3573 = vmatprep.subr.mxu0 0.0
    %3574 = vmatpush1.msra.mxu0 0.0
    %3575 = vmatprep.subr.mxu0 0.0
    %3576 = vmatpush1.msra.mxu0 0.0
    %3577 = vmatprep.subr.mxu0 0.0
    %3578 = vmatpush1.msra.mxu0 0.0
    %3579 = vmatprep.subr.mxu0 0.0
    %3580 = vmatpush1.msra.mxu0 0.0
    %3581 = vmatprep.subr.mxu0 0.0
    %3582 = vmatpush1.msra.mxu0 0.0
    %3583 = vmatprep.subr.mxu0 0.0
    %3584 = vmatpush1.msra.mxu0 0.0
    %3585 = vmatprep.subr.mxu0 0.0
    %3586 = vmatpush1.msra.mxu0 0.0
    %3587 = vmatprep.subr.mxu0 0.0
    %3588 = vmatpush1.msra.mxu0 0.0
    %3589 = vmatprep.subr.mxu0 0.0
    %3590 = vmatpush1.msra.mxu0 0.0
    %3591 = vmatprep.subr.mxu0 0.0
    %3592 = vmatpush1.msra.mxu0 0.0
    %3593 = vmatprep.subr.mxu0 0.0
    %3594 = vmatpush1.msra.mxu0 0.0
    %3595 = vmatprep.subr.mxu0 0.0
    %3596 = vmatpush1.msra.mxu0 0.0
    %3597 = vmatprep.subr.mxu0 0.0
    %3598 = vmatpush1.msra.mxu0 0.0
    %3599 = vmatprep.subr.mxu0 0.0
    %3600 = vmatpush1.msra.mxu0 0.0
    %3601 = vmatprep.subr.mxu0 0.0
    %3602 = vmatpush1.msra.mxu0 0.0
    %3603 = vmatprep.subr.mxu0 0.0
    %3604 = vmatpush1.msra.mxu0 0.0
    %3605 = vmatprep.subr.mxu0 0.0
    %3606 = vmatpush1.msra.mxu0 0.0
    %3607 = vmatprep.subr.mxu0 0.0
    %3608 = vmatpush1.msra.mxu0 0.0
    %3609 = vmatprep.subr.mxu0 0.0
    %3610 = vmatpush1.msra.mxu0 0.0
    %3611 = vmatprep.subr.mxu0 0.0
    %3612 = vmatpush1.msra.mxu0 0.0
    %3613 = vmatprep.subr.mxu0 0.0
    %3614 = vmatpush1.msra.mxu0 0.0
    %3615 = vmatprep.subr.mxu0 0.0
    %3616 = vmatpush1.msra.mxu0 0.0
    %3617 = vmatprep.subr.mxu0 0.0
    %3618 = vmatpush1.msra.mxu0 0.0
    %3619 = vmatprep.mubr.f32.mxu0 0.0
    %3620 = vmatmul.mubr.f32.gmra.mrb[0].mxu0 %v3550
    %v3621 = vpop.f32.mrb[0].mxu0
    %v3622 = vadd.f32 0.0, %v3621
    %v3623 = vpop.f32.mrb[0].mxu0
    %3624 = vmatprep.mubr.f32.mxu0 0.0
    %3625 = vmatmul.mubr.f32.gmra.mrb[0].mxu0 %v3553
    %v3626 = vpop.f32.mrb[0].mxu0
    %v3627 = vadd.f32 0.0, %v3626
    %v3628 = vpop.f32.mrb[0].mxu0
    %3629 = vdwg.mxu0
    %s3630 = scalar_lea.vmem %s10, 32
    %v3631 = vld [vmem:[%s3630] sm:$0xff]
    %v3632 = vld [vmem:[%s3630 + $0x8] sm:$0xff]
    %s3633 = scalar_lea.vmem %s4, 96
    %v3634 = vld [vmem:[%s3633] sm:$0xff]
    %v3635 = vld [vmem:[%s3633 + $0x8] sm:$0xff]
    %v3636 = vld [vmem:[%s3633 + $0x10] sm:$0xff]
    %v3637 = vld [vmem:[%s3633 + $0x18] sm:$0xff]
    %s3638 = scalar_lea.vmem %s5, 3
    %v3639 = vld [vmem:[%s3638] sm:$0x1]
    %v3641 = vlaneseq
    %v3642 = vshrl.u32 %v3641, 7
    %v3643 = vsub.s32 0, %v3642
    %v3644 = vrot.slane %v3639, %v3643
    %3646 = vmatprep.subr.mxu0 0.0
    %3647 = vmatpush1.msra.mxu0 %v3634
    %3648 = vmatprep.subr.mxu0 0.0
    %3649 = vmatpush1.msra.mxu0 %v3635
    %3650 = vmatprep.subr.mxu0 0.0
    %3651 = vmatpush1.msra.mxu0 %v3636
    %3652 = vmatprep.subr.mxu0 0.0
    %3653 = vmatpush1.msra.mxu0 %v3637
    %3654 = vmatprep.subr.mxu0 0.0
    %3655 = vmatpush1.msra.mxu0 0.0
    %3656 = vmatprep.subr.mxu0 0.0
    %3657 = vmatpush1.msra.mxu0 0.0
    %3658 = vmatprep.subr.mxu0 0.0
    %3659 = vmatpush1.msra.mxu0 0.0
    %3660 = vmatprep.subr.mxu0 0.0
    %3661 = vmatpush1.msra.mxu0 0.0
    %3662 = vmatprep.subr.mxu0 0.0
    %3663 = vmatpush1.msra.mxu0 0.0
    %3664 = vmatprep.subr.mxu0 0.0
    %3665 = vmatpush1.msra.mxu0 0.0
    %3666 = vmatprep.subr.mxu0 0.0
    %3667 = vmatpush1.msra.mxu0 0.0
    %3668 = vmatprep.subr.mxu0 0.0
    %3669 = vmatpush1.msra.mxu0 0.0
    %3670 = vmatprep.subr.mxu0 0.0
    %3671 = vmatpush1.msra.mxu0 0.0
    %3672 = vmatprep.subr.mxu0 0.0
    %3673 = vmatpush1.msra.mxu0 0.0
    %3674 = vmatprep.subr.mxu0 0.0
    %3675 = vmatpush1.msra.mxu0 0.0
    %3676 = vmatprep.subr.mxu0 0.0
    %3677 = vmatpush1.msra.mxu0 0.0
    %3678 = vmatprep.subr.mxu0 0.0
    %3679 = vmatpush1.msra.mxu0 0.0
    %3680 = vmatprep.subr.mxu0 0.0
    %3681 = vmatpush1.msra.mxu0 0.0
    %3682 = vmatprep.subr.mxu0 0.0
    %3683 = vmatpush1.msra.mxu0 0.0
    %3684 = vmatprep.subr.mxu0 0.0
    %3685 = vmatpush1.msra.mxu0 0.0
    %3686 = vmatprep.subr.mxu0 0.0
    %3687 = vmatpush1.msra.mxu0 0.0
    %3688 = vmatprep.subr.mxu0 0.0
    %3689 = vmatpush1.msra.mxu0 0.0
    %3690 = vmatprep.subr.mxu0 0.0
    %3691 = vmatpush1.msra.mxu0 0.0
    %3692 = vmatprep.subr.mxu0 0.0
    %3693 = vmatpush1.msra.mxu0 0.0
    %3694 = vmatprep.subr.mxu0 0.0
    %3695 = vmatpush1.msra.mxu0 0.0
    %3696 = vmatprep.subr.mxu0 0.0
    %3697 = vmatpush1.msra.mxu0 0.0
    %3698 = vmatprep.subr.mxu0 0.0
    %3699 = vmatpush1.msra.mxu0 0.0
    %3700 = vmatprep.subr.mxu0 0.0
    %3701 = vmatpush1.msra.mxu0 0.0
    %3702 = vmatprep.subr.mxu0 0.0
    %3703 = vmatpush1.msra.mxu0 0.0
    %3704 = vmatprep.subr.mxu0 0.0
    %3705 = vmatpush1.msra.mxu0 0.0
    %3706 = vmatprep.subr.mxu0 0.0
    %3707 = vmatpush1.msra.mxu0 0.0
    %3708 = vmatprep.subr.mxu0 0.0
    %3709 = vmatpush1.msra.mxu0 0.0
    %3710 = vmatprep.mubr.f32.mxu0 0.0
    %3711 = vmatmul.mubr.f32.gmra.mrb[0].mxu0 %v3180
    %v3712 = vpop.f32.mrb[0].mxu0
    %v3713 = vadd.f32 %v3644, %v3712
    %v3714 = vpop.f32.mrb[0].mxu0
    %3715 = vmatprep.mubr.f32.mxu0 0.0
    %3716 = vmatmul.mubr.f32.gmra.mrb[0].mxu0 %v3183
    %v3717 = vpop.f32.mrb[0].mxu0
    %v3718 = vadd.f32 %v3644, %v3717
    %v3719 = vpop.f32.mrb[0].mxu0
    %3720 = vdwg.mxu0
    %s3721 = scalar_lea.vmem %s6, 96
    %v3722 = vld [vmem:[%s3721] sm:$0xff]
    %v3723 = vld [vmem:[%s3721 + $0x8] sm:$0xff]
    %v3724 = vld [vmem:[%s3721 + $0x10] sm:$0xff]
    %v3725 = vld [vmem:[%s3721 + $0x18] sm:$0xff]
    %s3726 = scalar_lea.vmem %s7, 3
    %v3727 = vld [vmem:[%s3726] sm:$0x1]
    %v3729 = vlaneseq
    %v3730 = vshrl.u32 %v3729, 7
    %v3731 = vsub.s32 0, %v3730
    %v3732 = vrot.slane %v3727, %v3731
    %3734 = vmatprep.subr.mxu0 0.0
    %3735 = vmatpush1.msra.mxu0 %v3722
    %3736 = vmatprep.subr.mxu0 0.0
    %3737 = vmatpush1.msra.mxu0 %v3723
    %3738 = vmatprep.subr.mxu0 0.0
    %3739 = vmatpush1.msra.mxu0 %v3724
    %3740 = vmatprep.subr.mxu0 0.0
    %3741 = vmatpush1.msra.mxu0 %v3725
    %3742 = vmatprep.subr.mxu0 0.0
    %3743 = vmatpush1.msra.mxu0 0.0
    %3744 = vmatprep.subr.mxu0 0.0
    %3745 = vmatpush1.msra.mxu0 0.0
    %3746 = vmatprep.subr.mxu0 0.0
    %3747 = vmatpush1.msra.mxu0 0.0
    %3748 = vmatprep.subr.mxu0 0.0
    %3749 = vmatpush1.msra.mxu0 0.0
    %3750 = vmatprep.subr.mxu0 0.0
    %3751 = vmatpush1.msra.mxu0 0.0
    %3752 = vmatprep.subr.mxu0 0.0
    %3753 = vmatpush1.msra.mxu0 0.0
    %3754 = vmatprep.subr.mxu0 0.0
    %3755 = vmatpush1.msra.mxu0 0.0
    %3756 = vmatprep.subr.mxu0 0.0
    %3757 = vmatpush1.msra.mxu0 0.0
    %3758 = vmatprep.subr.mxu0 0.0
    %3759 = vmatpush1.msra.mxu0 0.0
    %3760 = vmatprep.subr.mxu0 0.0
    %3761 = vmatpush1.msra.mxu0 0.0
    %3762 = vmatprep.subr.mxu0 0.0
    %3763 = vmatpush1.msra.mxu0 0.0
    %3764 = vmatprep.subr.mxu0 0.0
    %3765 = vmatpush1.msra.mxu0 0.0
    %3766 = vmatprep.subr.mxu0 0.0
    %3767 = vmatpush1.msra.mxu0 0.0
    %3768 = vmatprep.subr.mxu0 0.0
    %3769 = vmatpush1.msra.mxu0 0.0
    %3770 = vmatprep.subr.mxu0 0.0
    %3771 = vmatpush1.msra.mxu0 0.0
    %3772 = vmatprep.subr.mxu0 0.0
    %3773 = vmatpush1.msra.mxu0 0.0
    %3774 = vmatprep.subr.mxu0 0.0
    %3775 = vmatpush1.msra.mxu0 0.0
    %3776 = vmatprep.subr.mxu0 0.0
    %3777 = vmatpush1.msra.mxu0 0.0
    %3778 = vmatprep.subr.mxu0 0.0
    %3779 = vmatpush1.msra.mxu0 0.0
    %3780 = vmatprep.subr.mxu0 0.0
    %3781 = vmatpush1.msra.mxu0 0.0
    %3782 = vmatprep.subr.mxu0 0.0
    %3783 = vmatpush1.msra.mxu0 0.0
    %3784 = vmatprep.subr.mxu0 0.0
    %3785 = vmatpush1.msra.mxu0 0.0
    %3786 = vmatprep.subr.mxu0 0.0
    %3787 = vmatpush1.msra.mxu0 0.0
    %3788 = vmatprep.subr.mxu0 0.0
    %3789 = vmatpush1.msra.mxu0 0.0
    %3790 = vmatprep.subr.mxu0 0.0
    %3791 = vmatpush1.msra.mxu0 0.0
    %3792 = vmatprep.subr.mxu0 0.0
    %3793 = vmatpush1.msra.mxu0 0.0
    %3794 = vmatprep.subr.mxu0 0.0
    %3795 = vmatpush1.msra.mxu0 0.0
    %3796 = vmatprep.subr.mxu0 0.0
    %3797 = vmatpush1.msra.mxu0 0.0
    %3798 = vmatprep.mubr.f32.mxu0 0.0
    %3799 = vmatmul.mubr.f32.gmra.mrb[0].mxu0 %v3180
    %v3800 = vpop.f32.mrb[0].mxu0
    %v3801 = vadd.f32 %v3732, %v3800
    %v3802 = vpop.f32.mrb[0].mxu0
    %3803 = vmatprep.mubr.f32.mxu0 0.0
    %3804 = vmatmul.mubr.f32.gmra.mrb[0].mxu0 %v3183
    %v3805 = vpop.f32.mrb[0].mxu0
    %v3806 = vadd.f32 %v3732, %v3805
    %v3807 = vpop.f32.mrb[0].mxu0
    %3808 = vdwg.mxu0
    %s3809 = scalar_lea.vmem %s8, 96
    %v3810 = vld [vmem:[%s3809] sm:$0xff]
    %v3811 = vld [vmem:[%s3809 + $0x8] sm:$0xff]
    %v3812 = vld [vmem:[%s3809 + $0x10] sm:$0xff]
    %v3813 = vld [vmem:[%s3809 + $0x18] sm:$0xff]
    %s3814 = scalar_lea.vmem %s9, 3
    %v3815 = vld [vmem:[%s3814] sm:$0x1]
    %v3817 = vlaneseq
    %v3818 = vshrl.u32 %v3817, 7
    %v3819 = vsub.s32 0, %v3818
    %v3820 = vrot.slane %v3815, %v3819
    %3822 = vmatprep.subr.mxu0 0.0
    %3823 = vmatpush1.msra.mxu0 %v3810
    %3824 = vmatprep.subr.mxu0 0.0
    %3825 = vmatpush1.msra.mxu0 %v3811
    %3826 = vmatprep.subr.mxu0 0.0
    %3827 = vmatpush1.msra.mxu0 %v3812
    %3828 = vmatprep.subr.mxu0 0.0
    %3829 = vmatpush1.msra.mxu0 %v3813
    %3830 = vmatprep.subr.mxu0 0.0
    %3831 = vmatpush1.msra.mxu0 0.0
    %3832 = vmatprep.subr.mxu0 0.0
    %3833 = vmatpush1.msra.mxu0 0.0
    %3834 = vmatprep.subr.mxu0 0.0
    %3835 = vmatpush1.msra.mxu0 0.0
    %3836 = vmatprep.subr.mxu0 0.0
    %3837 = vmatpush1.msra.mxu0 0.0
    %3838 = vmatprep.subr.mxu0 0.0
    %3839 = vmatpush1.msra.mxu0 0.0
    %3840 = vmatprep.subr.mxu0 0.0
    %3841 = vmatpush1.msra.mxu0 0.0
    %3842 = vmatprep.subr.mxu0 0.0
    %3843 = vmatpush1.msra.mxu0 0.0
    %3844 = vmatprep.subr.mxu0 0.0
    %3845 = vmatpush1.msra.mxu0 0.0
    %3846 = vmatprep.subr.mxu0 0.0
    %3847 = vmatpush1.msra.mxu0 0.0
    %3848 = vmatprep.subr.mxu0 0.0
    %3849 = vmatpush1.msra.mxu0 0.0
    %3850 = vmatprep.subr.mxu0 0.0
    %3851 = vmatpush1.msra.mxu0 0.0
    %3852 = vmatprep.subr.mxu0 0.0
    %3853 = vmatpush1.msra.mxu0 0.0
    %3854 = vmatprep.subr.mxu0 0.0
    %3855 = vmatpush1.msra.mxu0 0.0
    %3856 = vmatprep.subr.mxu0 0.0
    %3857 = vmatpush1.msra.mxu0 0.0
    %3858 = vmatprep.subr.mxu0 0.0
    %3859 = vmatpush1.msra.mxu0 0.0
    %3860 = vmatprep.subr.mxu0 0.0
    %3861 = vmatpush1.msra.mxu0 0.0
    %3862 = vmatprep.subr.mxu0 0.0
    %3863 = vmatpush1.msra.mxu0 0.0
    %3864 = vmatprep.subr.mxu0 0.0
    %3865 = vmatpush1.msra.mxu0 0.0
    %3866 = vmatprep.subr.mxu0 0.0
    %3867 = vmatpush1.msra.mxu0 0.0
    %3868 = vmatprep.subr.mxu0 0.0
    %3869 = vmatpush1.msra.mxu0 0.0
    %3870 = vmatprep.subr.mxu0 0.0
    %3871 = vmatpush1.msra.mxu0 0.0
    %3872 = vmatprep.subr.mxu0 0.0
    %3873 = vmatpush1.msra.mxu0 0.0
    %3874 = vmatprep.subr.mxu0 0.0
    %3875 = vmatpush1.msra.mxu0 0.0
    %3876 = vmatprep.subr.mxu0 0.0
    %3877 = vmatpush1.msra.mxu0 0.0
    %3878 = vmatprep.subr.mxu0 0.0
    %3879 = vmatpush1.msra.mxu0 0.0
    %3880 = vmatprep.subr.mxu0 0.0
    %3881 = vmatpush1.msra.mxu0 0.0
    %3882 = vmatprep.subr.mxu0 0.0
    %3883 = vmatpush1.msra.mxu0 0.0
    %3884 = vmatprep.subr.mxu0 0.0
    %3885 = vmatpush1.msra.mxu0 0.0
    %3886 = vmatprep.mubr.f32.mxu0 0.0
    %3887 = vmatmul.mubr.f32.gmra.mrb[0].mxu0 %v3180
    %v3888 = vpop.f32.mrb[0].mxu0
    %v3889 = vadd.f32 %v3820, %v3888
    %v3890 = vpop.f32.mrb[0].mxu0
    %3891 = vmatprep.mubr.f32.mxu0 0.0
    %3892 = vmatmul.mubr.f32.gmra.mrb[0].mxu0 %v3183
    %v3893 = vpop.f32.mrb[0].mxu0
    %v3894 = vadd.f32 %v3820, %v3893
    %v3895 = vpop.f32.mrb[0].mxu0
    %3896 = vdwg.mxu0
    %v3898 = vsel %vm409, %v3713, 0
    %v3901 = vsel %vm409, %v3718, 0
    %v3904 = vsel %vm409, %v3801, 0
    %v3907 = vsel %vm409, %v3806, 0
    %3909 = vmatprep.subr.mxu0 0.0
    %3910 = vmatpush1.xpose.msra.mxu0 %v3904
    %3911 = vmatprep.subr.mxu0 0.0
    %3912 = vmatpush1.xpose.msra.mxu0 %v3907
    %3913 = vmatprep.subr.mxu0 0.0
    %3914 = vmatpush1.xpose.msra.mxu0 0.0
    %3915 = vmatprep.subr.mxu0 0.0
    %3916 = vmatpush1.xpose.msra.mxu0 0.0
    %3917 = vmatprep.subr.mxu0 0.0
    %3918 = vmatpush1.xpose.msra.mxu0 0.0
    %3919 = vmatprep.subr.mxu0 0.0
    %3920 = vmatpush1.xpose.msra.mxu0 0.0
    %3921 = vmatprep.subr.mxu0 0.0
    %3922 = vmatpush1.xpose.msra.mxu0 0.0
    %3923 = vmatprep.subr.mxu0 0.0
    %3924 = vmatpush1.xpose.msra.mxu0 0.0
    %3925 = vmatprep.subr.mxu0 0.0
    %3926 = vmatpush1.xpose.msra.mxu0 0.0
    %3927 = vmatprep.subr.mxu0 0.0
    %3928 = vmatpush1.xpose.msra.mxu0 0.0
    %3929 = vmatprep.subr.mxu0 0.0
    %3930 = vmatpush1.xpose.msra.mxu0 0.0
    %3931 = vmatprep.subr.mxu0 0.0
    %3932 = vmatpush1.xpose.msra.mxu0 0.0
    %3933 = vmatprep.subr.mxu0 0.0
    %3934 = vmatpush1.xpose.msra.mxu0 0.0
    %3935 = vmatprep.subr.mxu0 0.0
    %3936 = vmatpush1.xpose.msra.mxu0 0.0
    %3937 = vmatprep.subr.mxu0 0.0
    %3938 = vmatpush1.xpose.msra.mxu0 0.0
    %3939 = vmatprep.subr.mxu0 0.0
    %3940 = vmatpush1.xpose.msra.mxu0 0.0
    %3941 = vmatprep.subr.mxu0 0.0
    %3942 = vmatpush1.xpose.msra.mxu0 0.0
    %3943 = vmatprep.subr.mxu0 0.0
    %3944 = vmatpush1.xpose.msra.mxu0 0.0
    %3945 = vmatprep.subr.mxu0 0.0
    %3946 = vmatpush1.xpose.msra.mxu0 0.0
    %3947 = vmatprep.subr.mxu0 0.0
    %3948 = vmatpush1.xpose.msra.mxu0 0.0
    %3949 = vmatprep.subr.mxu0 0.0
    %3950 = vmatpush1.xpose.msra.mxu0 0.0
    %3951 = vmatprep.subr.mxu0 0.0
    %3952 = vmatpush1.xpose.msra.mxu0 0.0
    %3953 = vmatprep.subr.mxu0 0.0
    %3954 = vmatpush1.xpose.msra.mxu0 0.0
    %3955 = vmatprep.subr.mxu0 0.0
    %3956 = vmatpush1.xpose.msra.mxu0 0.0
    %3957 = vmatprep.subr.mxu0 0.0
    %3958 = vmatpush1.xpose.msra.mxu0 0.0
    %3959 = vmatprep.subr.mxu0 0.0
    %3960 = vmatpush1.xpose.msra.mxu0 0.0
    %3961 = vmatprep.subr.mxu0 0.0
    %3962 = vmatpush1.xpose.msra.mxu0 0.0
    %3963 = vmatprep.subr.mxu0 0.0
    %3964 = vmatpush1.xpose.msra.mxu0 0.0
    %3965 = vmatprep.subr.mxu0 0.0
    %3966 = vmatpush1.xpose.msra.mxu0 0.0
    %3967 = vmatprep.subr.mxu0 0.0
    %3968 = vmatpush1.xpose.msra.mxu0 0.0
    %3969 = vmatprep.subr.mxu0 0.0
    %3970 = vmatpush1.xpose.msra.mxu0 0.0
    %3971 = vmatprep.subr.mxu0 0.0
    %3972 = vmatpush1.xpose.msra.mxu0 0.0
    %3973 = vmatprep.mubr.f32.mxu0 0.0
    %3974 = vmatmul.mubr.f32.gmra.mrb[0].mxu0 %v3898
    %v3975 = vpop.f32.mrb[0].mxu0
    %v3976 = vadd.f32 0.0, %v3975
    %v3977 = vpop.f32.mrb[0].mxu0
    %3978 = vmatprep.mubr.f32.mxu0 0.0
    %3979 = vmatmul.mubr.f32.gmra.mrb[0].mxu0 %v3901
    %v3980 = vpop.f32.mrb[0].mxu0
    %v3981 = vadd.f32 0.0, %v3980
    %v3982 = vpop.f32.mrb[0].mxu0
    %3983 = vdwg.mxu0
    %v3984 = vmul.f32 %v3976, 0.25
    %v3985 = vmul.f32 %v3981, 0.25
    %v3986 = vadd.f32 %v3984, %v503
    %v3987 = vadd.f32 %v3985, %v503
    %v3988 = vsel %vm409, %v3986, -inf
    %3989 = vmax.xlane.f32.xlu0 %v3988
    %v3990 = vpop.xlane.xlu0 %3989
    %v3991 = vsel %vm409, %v3987, -inf
    %3992 = vmax.xlane.f32.xlu0 %v3991
    %v3993 = vpop.xlane.xlu0 %3992
    %v3994 = vsub.f32 %v3986, %v3990
    %v3995 = vsub.f32 %v3987, %v3993
    %v3996 = vmul.f32 %v3994, 1.442695
    %v3997 = vpow.pop %v3996
    %v3998 = vmul.f32 %v3995, 1.442695
    %v3999 = vpow.pop %v3998
    %v4000 = vsel %vm409, %v3997, 0.0
    %4001 = vadd.xlane.f32.xlu0 %v4000
    %v4002 = vpop.xlane.xlu0 %4001
    %v4003 = vsel %vm409, %v3999, 0.0
    %4004 = vadd.xlane.f32.xlu0 %v4003
    %v4005 = vpop.xlane.xlu0 %4004
    %v4006 = vrcp.pop %v4002
    %v4007 = vrcp.pop %v4005
    %v4008 = vmul.f32 %v3997, %v4006
    %v4009 = vmul.f32 %v3999, %v4007
    %v4011 = vsel %vm409, %v4008, 0
    %v4014 = vsel %vm409, %v4009, 0
    %4016 = vmatprep.subr.mxu0 0.0
    %4017 = vmatpush1.msra.mxu0 %v3889
    %4018 = vmatprep.subr.mxu0 0.0
    %4019 = vmatpush1.msra.mxu0 %v3894
    %4020 = vmatprep.subr.mxu0 0.0
    %4021 = vmatpush1.msra.mxu0 0.0
    %4022 = vmatprep.subr.mxu0 0.0
    %4023 = vmatpush1.msra.mxu0 0.0
    %4024 = vmatprep.subr.mxu0 0.0
    %4025 = vmatpush1.msra.mxu0 0.0
    %4026 = vmatprep.subr.mxu0 0.0
    %4027 = vmatpush1.msra.mxu0 0.0
    %4028 = vmatprep.subr.mxu0 0.0
    %4029 = vmatpush1.msra.mxu0 0.0
    %4030 = vmatprep.subr.mxu0 0.0
    %4031 = vmatpush1.msra.mxu0 0.0
    %4032 = vmatprep.subr.mxu0 0.0
    %4033 = vmatpush1.msra.mxu0 0.0
    %4034 = vmatprep.subr.mxu0 0.0
    %4035 = vmatpush1.msra.mxu0 0.0
    %4036 = vmatprep.subr.mxu0 0.0
    %4037 = vmatpush1.msra.mxu0 0.0
    %4038 = vmatprep.subr.mxu0 0.0
    %4039 = vmatpush1.msra.mxu0 0.0
    %4040 = vmatprep.subr.mxu0 0.0
    %4041 = vmatpush1.msra.mxu0 0.0
    %4042 = vmatprep.subr.mxu0 0.0
    %4043 = vmatpush1.msra.mxu0 0.0
    %4044 = vmatprep.subr.mxu0 0.0
    %4045 = vmatpush1.msra.mxu0 0.0
    %4046 = vmatprep.subr.mxu0 0.0
    %4047 = vmatpush1.msra.mxu0 0.0
    %4048 = vmatprep.subr.mxu0 0.0
    %4049 = vmatpush1.msra.mxu0 0.0
    %4050 = vmatprep.subr.mxu0 0.0
    %4051 = vmatpush1.msra.mxu0 0.0
    %4052 = vmatprep.subr.mxu0 0.0
    %4053 = vmatpush1.msra.mxu0 0.0
    %4054 = vmatprep.subr.mxu0 0.0
    %4055 = vmatpush1.msra.mxu0 0.0
    %4056 = vmatprep.subr.mxu0 0.0
    %4057 = vmatpush1.msra.mxu0 0.0
    %4058 = vmatprep.subr.mxu0 0.0
    %4059 = vmatpush1.msra.mxu0 0.0
    %4060 = vmatprep.subr.mxu0 0.0
    %4061 = vmatpush1.msra.mxu0 0.0
    %4062 = vmatprep.subr.mxu0 0.0
    %4063 = vmatpush1.msra.mxu0 0.0
    %4064 = vmatprep.subr.mxu0 0.0
    %4065 = vmatpush1.msra.mxu0 0.0
    %4066 = vmatprep.subr.mxu0 0.0
    %4067 = vmatpush1.msra.mxu0 0.0
    %4068 = vmatprep.subr.mxu0 0.0
    %4069 = vmatpush1.msra.mxu0 0.0
    %4070 = vmatprep.subr.mxu0 0.0
    %4071 = vmatpush1.msra.mxu0 0.0
    %4072 = vmatprep.subr.mxu0 0.0
    %4073 = vmatpush1.msra.mxu0 0.0
    %4074 = vmatprep.subr.mxu0 0.0
    %4075 = vmatpush1.msra.mxu0 0.0
    %4076 = vmatprep.subr.mxu0 0.0
    %4077 = vmatpush1.msra.mxu0 0.0
    %4078 = vmatprep.subr.mxu0 0.0
    %4079 = vmatpush1.msra.mxu0 0.0
    %4080 = vmatprep.mubr.f32.mxu0 0.0
    %4081 = vmatmul.mubr.f32.gmra.mrb[0].mxu0 %v4011
    %v4082 = vpop.f32.mrb[0].mxu0
    %v4083 = vadd.f32 0.0, %v4082
    %v4084 = vpop.f32.mrb[0].mxu0
    %4085 = vmatprep.mubr.f32.mxu0 0.0
    %4086 = vmatmul.mubr.f32.gmra.mrb[0].mxu0 %v4014
    %v4087 = vpop.f32.mrb[0].mxu0
    %v4088 = vadd.f32 0.0, %v4087
    %v4089 = vpop.f32.mrb[0].mxu0
    %4090 = vdwg.mxu0
    %s4091 = scalar_lea.vmem %s10, 48
    %v4092 = vld [vmem:[%s4091] sm:$0xff]
    %v4093 = vld [vmem:[%s4091 + $0x8] sm:$0xff]
    %v4095 = vsel %vm409, %v4083, 0
    %v4098 = vsel %vm409, %v4088, 0
    %4100 = vmatprep.subr.mxu0 0.0
    %4101 = vmatpush1.msra.mxu0 %v4092
    %4102 = vmatprep.subr.mxu0 0.0
    %4103 = vmatpush1.msra.mxu0 %v4093
    %4104 = vmatprep.subr.mxu0 0.0
    %4105 = vmatpush1.msra.mxu0 0.0
    %4106 = vmatprep.subr.mxu0 0.0
    %4107 = vmatpush1.msra.mxu0 0.0
    %4108 = vmatprep.subr.mxu0 0.0
    %4109 = vmatpush1.msra.mxu0 0.0
    %4110 = vmatprep.subr.mxu0 0.0
    %4111 = vmatpush1.msra.mxu0 0.0
    %4112 = vmatprep.subr.mxu0 0.0
    %4113 = vmatpush1.msra.mxu0 0.0
    %4114 = vmatprep.subr.mxu0 0.0
    %4115 = vmatpush1.msra.mxu0 0.0
    %4116 = vmatprep.subr.mxu0 0.0
    %4117 = vmatpush1.msra.mxu0 0.0
    %4118 = vmatprep.subr.mxu0 0.0
    %4119 = vmatpush1.msra.mxu0 0.0
    %4120 = vmatprep.subr.mxu0 0.0
    %4121 = vmatpush1.msra.mxu0 0.0
    %4122 = vmatprep.subr.mxu0 0.0
    %4123 = vmatpush1.msra.mxu0 0.0
    %4124 = vmatprep.subr.mxu0 0.0
    %4125 = vmatpush1.msra.mxu0 0.0
    %4126 = vmatprep.subr.mxu0 0.0
    %4127 = vmatpush1.msra.mxu0 0.0
    %4128 = vmatprep.subr.mxu0 0.0
    %4129 = vmatpush1.msra.mxu0 0.0
    %4130 = vmatprep.subr.mxu0 0.0
    %4131 = vmatpush1.msra.mxu0 0.0
    %4132 = vmatprep.subr.mxu0 0.0
    %4133 = vmatpush1.msra.mxu0 0.0
    %4134 = vmatprep.subr.mxu0 0.0
    %4135 = vmatpush1.msra.mxu0 0.0
    %4136 = vmatprep.subr.mxu0 0.0
    %4137 = vmatpush1.msra.mxu0 0.0
    %4138 = vmatprep.subr.mxu0 0.0
    %4139 = vmatpush1.msra.mxu0 0.0
    %4140 = vmatprep.subr.mxu0 0.0
    %4141 = vmatpush1.msra.mxu0 0.0
    %4142 = vmatprep.subr.mxu0 0.0
    %4143 = vmatpush1.msra.mxu0 0.0
    %4144 = vmatprep.subr.mxu0 0.0
    %4145 = vmatpush1.msra.mxu0 0.0
    %4146 = vmatprep.subr.mxu0 0.0
    %4147 = vmatpush1.msra.mxu0 0.0
    %4148 = vmatprep.subr.mxu0 0.0
    %4149 = vmatpush1.msra.mxu0 0.0
    %4150 = vmatprep.subr.mxu0 0.0
    %4151 = vmatpush1.msra.mxu0 0.0
    %4152 = vmatprep.subr.mxu0 0.0
    %4153 = vmatpush1.msra.mxu0 0.0
    %4154 = vmatprep.subr.mxu0 0.0
    %4155 = vmatpush1.msra.mxu0 0.0
    %4156 = vmatprep.subr.mxu0 0.0
    %4157 = vmatpush1.msra.mxu0 0.0
    %4158 = vmatprep.subr.mxu0 0.0
    %4159 = vmatpush1.msra.mxu0 0.0
    %4160 = vmatprep.subr.mxu0 0.0
    %4161 = vmatpush1.msra.mxu0 0.0
    %4162 = vmatprep.subr.mxu0 0.0
    %4163 = vmatpush1.msra.mxu0 0.0
    %4164 = vmatprep.mubr.f32.mxu0 0.0
    %4165 = vmatmul.mubr.f32.gmra.mrb[0].mxu0 %v4095
    %v4166 = vpop.f32.mrb[0].mxu0
    %v4167 = vadd.f32 0.0, %v4166
    %v4168 = vpop.f32.mrb[0].mxu0
    %4169 = vmatprep.mubr.f32.mxu0 0.0
    %4170 = vmatmul.mubr.f32.gmra.mrb[0].mxu0 %v4098
    %v4171 = vpop.f32.mrb[0].mxu0
    %v4172 = vadd.f32 0.0, %v4171
    %v4173 = vpop.f32.mrb[0].mxu0
    %4174 = vdwg.mxu0
    %v4176 = vsel %vm409, %v3622, 0
    %v4179 = vsel %vm409, %v3627, 0
    %4181 = vmatprep.subr.mxu0 0.0
    %4182 = vmatpush1.msra.mxu0 %v3631
    %4183 = vmatprep.subr.mxu0 0.0
    %4184 = vmatpush1.msra.mxu0 %v3632
    %4185 = vmatprep.subr.mxu0 0.0
    %4186 = vmatpush1.msra.mxu0 0.0
    %4187 = vmatprep.subr.mxu0 0.0
    %4188 = vmatpush1.msra.mxu0 0.0
    %4189 = vmatprep.subr.mxu0 0.0
    %4190 = vmatpush1.msra.mxu0 0.0
    %4191 = vmatprep.subr.mxu0 0.0
    %4192 = vmatpush1.msra.mxu0 0.0
    %4193 = vmatprep.subr.mxu0 0.0
    %4194 = vmatpush1.msra.mxu0 0.0
    %4195 = vmatprep.subr.mxu0 0.0
    %4196 = vmatpush1.msra.mxu0 0.0
    %4197 = vmatprep.subr.mxu0 0.0
    %4198 = vmatpush1.msra.mxu0 0.0
    %4199 = vmatprep.subr.mxu0 0.0
    %4200 = vmatpush1.msra.mxu0 0.0
    %4201 = vmatprep.subr.mxu0 0.0
    %4202 = vmatpush1.msra.mxu0 0.0
    %4203 = vmatprep.subr.mxu0 0.0
    %4204 = vmatpush1.msra.mxu0 0.0
    %4205 = vmatprep.subr.mxu0 0.0
    %4206 = vmatpush1.msra.mxu0 0.0
    %4207 = vmatprep.subr.mxu0 0.0
    %4208 = vmatpush1.msra.mxu0 0.0
    %4209 = vmatprep.subr.mxu0 0.0
    %4210 = vmatpush1.msra.mxu0 0.0
    %4211 = vmatprep.subr.mxu0 0.0
    %4212 = vmatpush1.msra.mxu0 0.0
    %4213 = vmatprep.subr.mxu0 0.0
    %4214 = vmatpush1.msra.mxu0 0.0
    %4215 = vmatprep.subr.mxu0 0.0
    %4216 = vmatpush1.msra.mxu0 0.0
    %4217 = vmatprep.subr.mxu0 0.0
    %4218 = vmatpush1.msra.mxu0 0.0
    %4219 = vmatprep.subr.mxu0 0.0
    %4220 = vmatpush1.msra.mxu0 0.0
    %4221 = vmatprep.subr.mxu0 0.0
    %4222 = vmatpush1.msra.mxu0 0.0
    %4223 = vmatprep.subr.mxu0 0.0
    %4224 = vmatpush1.msra.mxu0 0.0
    %4225 = vmatprep.subr.mxu0 0.0
    %4226 = vmatpush1.msra.mxu0 0.0
    %4227 = vmatprep.subr.mxu0 0.0
    %4228 = vmatpush1.msra.mxu0 0.0
    %4229 = vmatprep.subr.mxu0 0.0
    %4230 = vmatpush1.msra.mxu0 0.0
    %4231 = vmatprep.subr.mxu0 0.0
    %4232 = vmatpush1.msra.mxu0 0.0
    %4233 = vmatprep.subr.mxu0 0.0
    %4234 = vmatpush1.msra.mxu0 0.0
    %4235 = vmatprep.subr.mxu0 0.0
    %4236 = vmatpush1.msra.mxu0 0.0
    %4237 = vmatprep.subr.mxu0 0.0
    %4238 = vmatpush1.msra.mxu0 0.0
    %4239 = vmatprep.subr.mxu0 0.0
    %4240 = vmatpush1.msra.mxu0 0.0
    %4241 = vmatprep.subr.mxu0 0.0
    %4242 = vmatpush1.msra.mxu0 0.0
    %4243 = vmatprep.subr.mxu0 0.0
    %4244 = vmatpush1.msra.mxu0 0.0
    %4245 = vmatprep.mubr.f32.mxu0 0.0
    %4246 = vmatmul.mubr.f32.gmra.mrb[0].mxu0 %v4176
    %v4247 = vpop.f32.mrb[0].mxu0
    %v4248 = vadd.f32 %v4167, %v4247
    %v4249 = vpop.f32.mrb[0].mxu0
    %4250 = vmatprep.mubr.f32.mxu0 0.0
    %4251 = vmatmul.mubr.f32.gmra.mrb[0].mxu0 %v4179
    %v4252 = vpop.f32.mrb[0].mxu0
    %v4253 = vadd.f32 %v4172, %v4252
    %v4254 = vpop.f32.mrb[0].mxu0
    %4255 = vdwg.mxu0
    %v4256 = vlaneseq
    %v4257 = vshrl.u32 %v4256, 7
    %v4258 = vsub.s32 0, %v4257
    %v4259 = vrot.slane %v3117, %v4258
    %v4260 = vadd.f32 %v4248, %v4259
    %v4261 = vadd.f32 %v4253, %v4259
    %v4262 = vadd.f32 %v4260, %v1685
    %v4263 = vadd.f32 %v4261, %v1686
    %v4264 = vsel %vm155, %v4262, 0.0
    %4265 = vadd.xlane.f32.xlu0 %v4264
    %v4266 = vpop.xlane.xlu0 %4265
    %v4267 = vsel %vm155, %v4263, 0.0
    %4268 = vadd.xlane.f32.xlu0 %v4267
    %v4269 = vpop.xlane.xlu0 %4268
    %v4270 = vmul.f32 %v4266, %v1249
    %v4271 = vmul.f32 %v4269, %v1249
    %v4272 = vsub.f32 %v4262, %v4270
    %v4273 = vsub.f32 %v4263, %v4271
    %v4274 = vmul.f32 %v4272, %v4272
    %v4275 = vmul.f32 %v4273, %v4273
    %v4276 = vsel %vm155, %v4274, 0.0
    %4277 = vadd.xlane.f32.xlu0 %v4276
    %v4278 = vpop.xlane.xlu0 %4277
    %v4279 = vsel %vm155, %v4275, 0.0
    %4280 = vadd.xlane.f32.xlu0 %v4279
    %v4281 = vpop.xlane.xlu0 %4280
    %v4282 = vmul.f32 %v4278, %v1249
    %v4283 = vmul.f32 %v4281, %v1249
    %v4284 = vadd.f32 %v4282, 1e-05
    %v4285 = vadd.f32 %v4283, 1e-05
    %v4286 = vrsqrt.pop %v4284
    %v4287 = vrsqrt.pop %v4285
    %v4288 = vmul.f32 %v4272, %v4286
    %v4289 = vmul.f32 %v4273, %v4287
    %v4290 = vlaneseq
    %v4291 = vshrl.u32 %v4290, 7
    %v4292 = vsub.s32 0, %v4291
    %v4293 = vrot.slane %v3113, %v4292
    %v4294 = vmul.f32 %v4288, %v4293
    %v4295 = vmul.f32 %v4289, %v4293
    %v4296 = vlaneseq
    %v4297 = vshrl.u32 %v4296, 7
    %v4298 = vsub.s32 0, %v4297
    %v4299 = vrot.slane %v3114, %v4298
    %v4300 = vadd.f32 %v4294, %v4299
    %v4301 = vadd.f32 %v4295, %v4299
    %v4302 = vsel %vm1290, 0.0, %v4300
    %v4303 = vsel %vm1291, 0.0, %v4301
    %v4306 = vrot.slane %v4302, 4
    %v4307 = vrot.slane %v4303, 4
    %v4308 = vsel %vm1296, %v4306, %v4307
    %v4312 = vsel %vm1296, 0.0, %v4306
    %v4313 = vsel %vm1296, %v4307, 0.0
    %v4316 = vrot.slane %v4312, 1
    %v4317 = vrot.slane %v4308, 1
    %v4318 = vsel %vm1307, %v4316, %v4317
    %v4319 = vrot.slane %v4313, 1
    %v4320 = vsel %vm1307, %v4317, %v4319
    %4321 = vrot.lane.b32.xlu0 %v4318, 32
    %v4322 = vpop.permute.xlu0 %4321
    %4323 = vrot.lane.b32.xlu0 %v4320, 32
    %v4324 = vpop.permute.xlu0 %4323
    %v4327 = vrot.slane %v4312, 2
    %v4328 = vrot.slane %v4308, 2
    %v4329 = vsel %vm1319, %v4327, %v4328
    %v4330 = vrot.slane %v4313, 2
    %v4331 = vsel %vm1319, %v4328, %v4330
    %4332 = vrot.lane.b32.xlu0 %v4329, 64
    %v4333 = vpop.permute.xlu0 %4332
    %4334 = vrot.lane.b32.xlu0 %v4331, 64
    %v4335 = vpop.permute.xlu0 %4334
    %v4338 = vrot.slane %v4312, 3
    %v4339 = vrot.slane %v4308, 3
    %v4340 = vsel %vm1331, %v4338, %v4339
    %v4341 = vrot.slane %v4313, 3
    %v4342 = vsel %vm1331, %v4339, %v4341
    %4343 = vrot.lane.b32.xlu0 %v4340, 96
    %v4344 = vpop.permute.xlu0 %4343
    %4345 = vrot.lane.b32.xlu0 %v4342, 96
    %v4346 = vpop.permute.xlu0 %4345
    %v4349 = vrot.slane %v4312, 4
    %v4350 = vrot.slane %v4308, 4
    %v4351 = vsel %vm1296, %v4349, %v4350
    %v4352 = vrot.slane %v4313, 4
    %v4353 = vsel %vm1296, %v4350, %v4352
    %v4356 = vrot.slane %v4312, 5
    %v4357 = vrot.slane %v4308, 5
    %v4358 = vsel %vm1350, %v4356, %v4357
    %v4359 = vrot.slane %v4313, 5
    %v4360 = vsel %vm1350, %v4357, %v4359
    %4361 = vrot.lane.b32.xlu0 %v4358, 32
    %v4362 = vpop.permute.xlu0 %4361
    %4363 = vrot.lane.b32.xlu0 %v4360, 32
    %v4364 = vpop.permute.xlu0 %4363
    %v4367 = vrot.slane %v4312, 6
    %v4368 = vrot.slane %v4308, 6
    %v4369 = vsel %vm1362, %v4367, %v4368
    %v4370 = vrot.slane %v4313, 6
    %v4371 = vsel %vm1362, %v4368, %v4370
    %4372 = vrot.lane.b32.xlu0 %v4369, 64
    %v4373 = vpop.permute.xlu0 %4372
    %4374 = vrot.lane.b32.xlu0 %v4371, 64
    %v4375 = vpop.permute.xlu0 %4374
    %v4378 = vrot.slane %v4312, 7
    %v4379 = vrot.slane %v4308, 7
    %v4380 = vsel %vm1374, %v4378, %v4379
    %v4381 = vrot.slane %v4313, 7
    %v4382 = vsel %vm1374, %v4379, %v4381
    %4383 = vrot.lane.b32.xlu0 %v4380, 96
    %v4384 = vpop.permute.xlu0 %4383
    %4385 = vrot.lane.b32.xlu0 %v4382, 96
    %v4386 = vpop.permute.xlu0 %4385
    %v4389 = vsel %vm155, %v4312, %v4322
    %v4390 = vsel %vm155, %v4308, %v4324
    %v4391 = vsel %vm1388, %v4389, %v4333
    %v4392 = vsel %vm1388, %v4390, %v4335
    %v4393 = vsel %vm1391, %v4391, %v4344
    %v4394 = vsel %vm1391, %v4392, %v4346
    %v4395 = vsel %vm155, %v4351, %v4362
    %v4396 = vsel %vm155, %v4353, %v4364
    %v4397 = vsel %vm1388, %v4395, %v4373
    %v4398 = vsel %vm1388, %v4396, %v4375
    %v4399 = vsel %vm1391, %v4397, %v4384
    %v4400 = vsel %vm1391, %v4398, %v4386
    %v4401 = vlaneseq
    %v4402 = vshrl.u32 %v4401, 7
    %v4403 = vsub.s32 0, %v4402
    %v4404 = vrot.slane %v3155, %v4403
    %v4405 = vsel %vm155, %v4308, 0
    %v4407 = vsel %vm155, %v4313, 0
    %4409 = vmatprep.subr.mxu0 0.0
    %4410 = vmatpush1.msra.mxu0 %v3119
    %4411 = vmatprep.subr.mxu0 0.0
    %4412 = vmatpush1.msra.mxu0 %v3120
    %4413 = vmatprep.subr.mxu0 0.0
    %4414 = vmatpush1.msra.mxu0 %v3121
    %4415 = vmatprep.subr.mxu0 0.0
    %4416 = vmatpush1.msra.mxu0 %v3122
    %4417 = vmatprep.subr.mxu0 0.0
    %4418 = vmatpush1.msra.mxu0 %v3123
    %4419 = vmatprep.subr.mxu0 0.0
    %4420 = vmatpush1.msra.mxu0 %v3124
    %4421 = vmatprep.subr.mxu0 0.0
    %4422 = vmatpush1.msra.mxu0 %v3125
    %4423 = vmatprep.subr.mxu0 0.0
    %4424 = vmatpush1.msra.mxu0 %v3126
    %4425 = vmatprep.subr.mxu0 0.0
    %4426 = vmatpush1.msra.mxu0 %v3127
    %4427 = vmatprep.subr.mxu0 0.0
    %4428 = vmatpush1.msra.mxu0 %v3128
    %4429 = vmatprep.subr.mxu0 0.0
    %4430 = vmatpush1.msra.mxu0 %v3129
    %4431 = vmatprep.subr.mxu0 0.0
    %4432 = vmatpush1.msra.mxu0 %v3130
    %4433 = vmatprep.subr.mxu0 0.0
    %4434 = vmatpush1.msra.mxu0 %v3131
    %4435 = vmatprep.subr.mxu0 0.0
    %4436 = vmatpush1.msra.mxu0 %v3132
    %4437 = vmatprep.subr.mxu0 0.0
    %4438 = vmatpush1.msra.mxu0 %v3133
    %4439 = vmatprep.subr.mxu0 0.0
    %4440 = vmatpush1.msra.mxu0 %v3134
    %4441 = vmatprep.subr.mxu0 0.0
    %4442 = vmatpush1.msra.mxu0 %v3135
    %4443 = vmatprep.subr.mxu0 0.0
    %4444 = vmatpush1.msra.mxu0 %v3136
    %4445 = vmatprep.subr.mxu0 0.0
    %4446 = vmatpush1.msra.mxu0 %v3137
    %4447 = vmatprep.subr.mxu0 0.0
    %4448 = vmatpush1.msra.mxu0 %v3138
    %4449 = vmatprep.subr.mxu0 0.0
    %4450 = vmatpush1.msra.mxu0 %v3139
    %4451 = vmatprep.subr.mxu0 0.0
    %4452 = vmatpush1.msra.mxu0 %v3140
    %4453 = vmatprep.subr.mxu0 0.0
    %4454 = vmatpush1.msra.mxu0 %v3141
    %4455 = vmatprep.subr.mxu0 0.0
    %4456 = vmatpush1.msra.mxu0 %v3142
    %4457 = vmatprep.subr.mxu0 0.0
    %4458 = vmatpush1.msra.mxu0 %v3143
    %4459 = vmatprep.subr.mxu0 0.0
    %4460 = vmatpush1.msra.mxu0 %v3144
    %4461 = vmatprep.subr.mxu0 0.0
    %4462 = vmatpush1.msra.mxu0 %v3145
    %4463 = vmatprep.subr.mxu0 0.0
    %4464 = vmatpush1.msra.mxu0 %v3146
    %4465 = vmatprep.subr.mxu0 0.0
    %4466 = vmatpush1.msra.mxu0 %v3147
    %4467 = vmatprep.subr.mxu0 0.0
    %4468 = vmatpush1.msra.mxu0 %v3148
    %4469 = vmatprep.subr.mxu0 0.0
    %4470 = vmatpush1.msra.mxu0 %v3149
    %4471 = vmatprep.subr.mxu0 0.0
    %4472 = vmatpush1.msra.mxu0 %v3150
    %4473 = vmatprep.mubr.f32.mxu0 %v4399
    %4474 = vmatmul.mubr.f32.gmra.mrb[0].mxu0 %v4393
    %v4475 = vpop.f32.mrb[0].mxu0
    %v4476 = vadd.f32 %v4404, %v4475
    %v4477 = vpop.f32.mrb[0].mxu0
    %4478 = vmatprep.mubr.f32.mxu0 %v4400
    %4479 = vmatmul.mubr.f32.gmra.mrb[0].mxu0 %v4394
    %v4480 = vpop.f32.mrb[0].mxu0
    %v4481 = vadd.f32 %v4404, %v4480
    %v4482 = vpop.f32.mrb[0].mxu0
    %4483 = vdwg.mxu0
    %4484 = vmatprep.subr.mxu0 0.0
    %4485 = vmatpush1.msra.mxu0 %v3151
    %4486 = vmatprep.subr.mxu0 0.0
    %4487 = vmatpush1.msra.mxu0 %v3152
    %4488 = vmatprep.subr.mxu0 0.0
    %4489 = vmatpush1.msra.mxu0 %v3153
    %4490 = vmatprep.subr.mxu0 0.0
    %4491 = vmatpush1.msra.mxu0 %v3154
    %4492 = vmatprep.subr.mxu0 0.0
    %4493 = vmatpush1.msra.mxu0 0.0
    %4494 = vmatprep.subr.mxu0 0.0
    %4495 = vmatpush1.msra.mxu0 0.0
    %4496 = vmatprep.subr.mxu0 0.0
    %4497 = vmatpush1.msra.mxu0 0.0
    %4498 = vmatprep.subr.mxu0 0.0
    %4499 = vmatpush1.msra.mxu0 0.0
    %4500 = vmatprep.subr.mxu0 0.0
    %4501 = vmatpush1.msra.mxu0 0.0
    %4502 = vmatprep.subr.mxu0 0.0
    %4503 = vmatpush1.msra.mxu0 0.0
    %4504 = vmatprep.subr.mxu0 0.0
    %4505 = vmatpush1.msra.mxu0 0.0
    %4506 = vmatprep.subr.mxu0 0.0
    %4507 = vmatpush1.msra.mxu0 0.0
    %4508 = vmatprep.subr.mxu0 0.0
    %4509 = vmatpush1.msra.mxu0 0.0
    %4510 = vmatprep.subr.mxu0 0.0
    %4511 = vmatpush1.msra.mxu0 0.0
    %4512 = vmatprep.subr.mxu0 0.0
    %4513 = vmatpush1.msra.mxu0 0.0
    %4514 = vmatprep.subr.mxu0 0.0
    %4515 = vmatpush1.msra.mxu0 0.0
    %4516 = vmatprep.subr.mxu0 0.0
    %4517 = vmatpush1.msra.mxu0 0.0
    %4518 = vmatprep.subr.mxu0 0.0
    %4519 = vmatpush1.msra.mxu0 0.0
    %4520 = vmatprep.subr.mxu0 0.0
    %4521 = vmatpush1.msra.mxu0 0.0
    %4522 = vmatprep.subr.mxu0 0.0
    %4523 = vmatpush1.msra.mxu0 0.0
    %4524 = vmatprep.subr.mxu0 0.0
    %4525 = vmatpush1.msra.mxu0 0.0
    %4526 = vmatprep.subr.mxu0 0.0
    %4527 = vmatpush1.msra.mxu0 0.0
    %4528 = vmatprep.subr.mxu0 0.0
    %4529 = vmatpush1.msra.mxu0 0.0
    %4530 = vmatprep.subr.mxu0 0.0
    %4531 = vmatpush1.msra.mxu0 0.0
    %4532 = vmatprep.subr.mxu0 0.0
    %4533 = vmatpush1.msra.mxu0 0.0
    %4534 = vmatprep.subr.mxu0 0.0
    %4535 = vmatpush1.msra.mxu0 0.0
    %4536 = vmatprep.subr.mxu0 0.0
    %4537 = vmatpush1.msra.mxu0 0.0
    %4538 = vmatprep.subr.mxu0 0.0
    %4539 = vmatpush1.msra.mxu0 0.0
    %4540 = vmatprep.subr.mxu0 0.0
    %4541 = vmatpush1.msra.mxu0 0.0
    %4542 = vmatprep.subr.mxu0 0.0
    %4543 = vmatpush1.msra.mxu0 0.0
    %4544 = vmatprep.subr.mxu0 0.0
    %4545 = vmatpush1.msra.mxu0 0.0
    %4546 = vmatprep.subr.mxu0 0.0
    %4547 = vmatpush1.msra.mxu0 0.0
    %4548 = vmatprep.mubr.f32.mxu0 0.0
    %4549 = vmatmul.mubr.f32.gmra.mrb[0].mxu0 %v4405
    %v4550 = vpop.f32.mrb[0].mxu0
    %v4551 = vadd.f32 %v4476, %v4550
    %v4552 = vpop.f32.mrb[0].mxu0
    %4553 = vmatprep.mubr.f32.mxu0 0.0
    %4554 = vmatmul.mubr.f32.gmra.mrb[0].mxu0 %v4407
    %v4555 = vpop.f32.mrb[0].mxu0
    %v4556 = vadd.f32 %v4481, %v4555
    %v4557 = vpop.f32.mrb[0].mxu0
    %4558 = vdwg.mxu0
    %v4559 = vmax.f32 %v4551, 0.0
    %v4560 = vmax.f32 %v4556, 0.0
    %v4561 = vlaneseq
    %v4562 = vshrl.u32 %v4561, 7
    %v4563 = vsub.s32 0, %v4562
    %v4564 = vrot.slane %v3165, %v4563
    %v4566 = vsel %vm1388, %v4559, 0
    %v4569 = vsel %vm1388, %v4560, 0
    %4571 = vmatprep.subr.mxu0 0.0
    %4572 = vmatpush1.msra.mxu0 %v3157
    %4573 = vmatprep.subr.mxu0 0.0
    %4574 = vmatpush1.msra.mxu0 %v3158
    %4575 = vmatprep.subr.mxu0 0.0
    %4576 = vmatpush1.msra.mxu0 %v3159
    %4577 = vmatprep.subr.mxu0 0.0
    %4578 = vmatpush1.msra.mxu0 %v3160
    %4579 = vmatprep.subr.mxu0 0.0
    %4580 = vmatpush1.msra.mxu0 %v3161
    %4581 = vmatprep.subr.mxu0 0.0
    %4582 = vmatpush1.msra.mxu0 %v3162
    %4583 = vmatprep.subr.mxu0 0.0
    %4584 = vmatpush1.msra.mxu0 %v3163
    %4585 = vmatprep.subr.mxu0 0.0
    %4586 = vmatpush1.msra.mxu0 %v3164
    %4587 = vmatprep.subr.mxu0 0.0
    %4588 = vmatpush1.msra.mxu0 0.0
    %4589 = vmatprep.subr.mxu0 0.0
    %4590 = vmatpush1.msra.mxu0 0.0
    %4591 = vmatprep.subr.mxu0 0.0
    %4592 = vmatpush1.msra.mxu0 0.0
    %4593 = vmatprep.subr.mxu0 0.0
    %4594 = vmatpush1.msra.mxu0 0.0
    %4595 = vmatprep.subr.mxu0 0.0
    %4596 = vmatpush1.msra.mxu0 0.0
    %4597 = vmatprep.subr.mxu0 0.0
    %4598 = vmatpush1.msra.mxu0 0.0
    %4599 = vmatprep.subr.mxu0 0.0
    %4600 = vmatpush1.msra.mxu0 0.0
    %4601 = vmatprep.subr.mxu0 0.0
    %4602 = vmatpush1.msra.mxu0 0.0
    %4603 = vmatprep.subr.mxu0 0.0
    %4604 = vmatpush1.msra.mxu0 0.0
    %4605 = vmatprep.subr.mxu0 0.0
    %4606 = vmatpush1.msra.mxu0 0.0
    %4607 = vmatprep.subr.mxu0 0.0
    %4608 = vmatpush1.msra.mxu0 0.0
    %4609 = vmatprep.subr.mxu0 0.0
    %4610 = vmatpush1.msra.mxu0 0.0
    %4611 = vmatprep.subr.mxu0 0.0
    %4612 = vmatpush1.msra.mxu0 0.0
    %4613 = vmatprep.subr.mxu0 0.0
    %4614 = vmatpush1.msra.mxu0 0.0
    %4615 = vmatprep.subr.mxu0 0.0
    %4616 = vmatpush1.msra.mxu0 0.0
    %4617 = vmatprep.subr.mxu0 0.0
    %4618 = vmatpush1.msra.mxu0 0.0
    %4619 = vmatprep.subr.mxu0 0.0
    %4620 = vmatpush1.msra.mxu0 0.0
    %4621 = vmatprep.subr.mxu0 0.0
    %4622 = vmatpush1.msra.mxu0 0.0
    %4623 = vmatprep.subr.mxu0 0.0
    %4624 = vmatpush1.msra.mxu0 0.0
    %4625 = vmatprep.subr.mxu0 0.0
    %4626 = vmatpush1.msra.mxu0 0.0
    %4627 = vmatprep.subr.mxu0 0.0
    %4628 = vmatpush1.msra.mxu0 0.0
    %4629 = vmatprep.subr.mxu0 0.0
    %4630 = vmatpush1.msra.mxu0 0.0
    %4631 = vmatprep.subr.mxu0 0.0
    %4632 = vmatpush1.msra.mxu0 0.0
    %4633 = vmatprep.subr.mxu0 0.0
    %4634 = vmatpush1.msra.mxu0 0.0
    %4635 = vmatprep.mubr.f32.mxu0 0.0
    %4636 = vmatmul.mubr.f32.gmra.mrb[0].mxu0 %v4566
    %v4637 = vpop.f32.mrb[0].mxu0
    %v4638 = vadd.f32 %v4564, %v4637
    %v4639 = vpop.f32.mrb[0].mxu0
    %4640 = vmatprep.mubr.f32.mxu0 0.0
    %4641 = vmatmul.mubr.f32.gmra.mrb[0].mxu0 %v4569
    %v4642 = vpop.f32.mrb[0].mxu0
    %v4643 = vadd.f32 %v4564, %v4642
    %v4644 = vpop.f32.mrb[0].mxu0
    %4645 = vdwg.mxu0
    %v4646 = vadd.f32 %v4638, %v4302
    %v4647 = vadd.f32 %v4643, %v4303
    %v4648 = vsel %vm155, %v4646, 0.0
    %4649 = vadd.xlane.f32.xlu0 %v4648
    %v4650 = vpop.xlane.xlu0 %4649
    %v4651 = vsel %vm155, %v4647, 0.0
    %4652 = vadd.xlane.f32.xlu0 %v4651
    %v4653 = vpop.xlane.xlu0 %4652
    %v4654 = vmul.f32 %v4650, %v1249
    %v4655 = vmul.f32 %v4653, %v1249
    %v4656 = vsub.f32 %v4646, %v4654
    %v4657 = vsub.f32 %v4647, %v4655
    %v4658 = vmul.f32 %v4656, %v4656
    %v4659 = vmul.f32 %v4657, %v4657
    %v4660 = vsel %vm155, %v4658, 0.0
    %4661 = vadd.xlane.f32.xlu0 %v4660
    %v4662 = vpop.xlane.xlu0 %4661
    %v4663 = vsel %vm155, %v4659, 0.0
    %4664 = vadd.xlane.f32.xlu0 %v4663
    %v4665 = vpop.xlane.xlu0 %4664
    %v4666 = vmul.f32 %v4662, %v1249
    %v4667 = vmul.f32 %v4665, %v1249
    %v4668 = vadd.f32 %v4666, 1e-05
    %v4669 = vadd.f32 %v4667, 1e-05
    %v4670 = vrsqrt.pop %v4668
    %v4671 = vrsqrt.pop %v4669
    %v4672 = vmul.f32 %v4656, %v4670
    %v4673 = vmul.f32 %v4657, %v4671
    %v4674 = vlaneseq
    %v4675 = vshrl.u32 %v4674, 7
    %v4676 = vsub.s32 0, %v4675
    %v4677 = vrot.slane %v3115, %v4676
    %v4678 = vmul.f32 %v4672, %v4677
    %v4679 = vmul.f32 %v4673, %v4677
    %v4680 = vlaneseq
    %v4681 = vshrl.u32 %v4680, 7
    %v4682 = vsub.s32 0, %v4681
    %v4683 = vrot.slane %v3116, %v4682
    %v4684 = vadd.f32 %v4678, %v4683
    %v4685 = vadd.f32 %v4679, %v4683
    %v4686 = vsel %vm1290, 0.0, %v4684
    %v4687 = vsel %vm1291, 0.0, %v4685
    %v4689 = vsel %vm155, %v3111, 0
    %v4692 = vsel %vm155, %v3112, 0
    %4694 = vmatprep.subr.mxu0 0.0
    %4695 = vmatpush1.msra.mxu0 %v3167
    %4696 = vmatprep.subr.mxu0 0.0
    %4697 = vmatpush1.msra.mxu0 %v3168
    %4698 = vmatprep.subr.mxu0 0.0
    %4699 = vmatpush1.msra.mxu0 %v3169
    %4700 = vmatprep.subr.mxu0 0.0
    %4701 = vmatpush1.msra.mxu0 %v3170
    %4702 = vmatprep.subr.mxu0 0.0
    %4703 = vmatpush1.msra.mxu0 0.0
    %4704 = vmatprep.subr.mxu0 0.0
    %4705 = vmatpush1.msra.mxu0 0.0
    %4706 = vmatprep.subr.mxu0 0.0
    %4707 = vmatpush1.msra.mxu0 0.0
    %4708 = vmatprep.subr.mxu0 0.0
    %4709 = vmatpush1.msra.mxu0 0.0
    %4710 = vmatprep.subr.mxu0 0.0
    %4711 = vmatpush1.msra.mxu0 0.0
    %4712 = vmatprep.subr.mxu0 0.0
    %4713 = vmatpush1.msra.mxu0 0.0
    %4714 = vmatprep.subr.mxu0 0.0
    %4715 = vmatpush1.msra.mxu0 0.0
    %4716 = vmatprep.subr.mxu0 0.0
    %4717 = vmatpush1.msra.mxu0 0.0
    %4718 = vmatprep.subr.mxu0 0.0
    %4719 = vmatpush1.msra.mxu0 0.0
    %4720 = vmatprep.subr.mxu0 0.0
    %4721 = vmatpush1.msra.mxu0 0.0
    %4722 = vmatprep.subr.mxu0 0.0
    %4723 = vmatpush1.msra.mxu0 0.0
    %4724 = vmatprep.subr.mxu0 0.0
    %4725 = vmatpush1.msra.mxu0 0.0
    %4726 = vmatprep.subr.mxu0 0.0
    %4727 = vmatpush1.msra.mxu0 0.0
    %4728 = vmatprep.subr.mxu0 0.0
    %4729 = vmatpush1.msra.mxu0 0.0
    %4730 = vmatprep.subr.mxu0 0.0
    %4731 = vmatpush1.msra.mxu0 0.0
    %4732 = vmatprep.subr.mxu0 0.0
    %4733 = vmatpush1.msra.mxu0 0.0
    %4734 = vmatprep.subr.mxu0 0.0
    %4735 = vmatpush1.msra.mxu0 0.0
    %4736 = vmatprep.subr.mxu0 0.0
    %4737 = vmatpush1.msra.mxu0 0.0
    %4738 = vmatprep.subr.mxu0 0.0
    %4739 = vmatpush1.msra.mxu0 0.0
    %4740 = vmatprep.subr.mxu0 0.0
    %4741 = vmatpush1.msra.mxu0 0.0
    %4742 = vmatprep.subr.mxu0 0.0
    %4743 = vmatpush1.msra.mxu0 0.0
    %4744 = vmatprep.subr.mxu0 0.0
    %4745 = vmatpush1.msra.mxu0 0.0
    %4746 = vmatprep.subr.mxu0 0.0
    %4747 = vmatpush1.msra.mxu0 0.0
    %4748 = vmatprep.subr.mxu0 0.0
    %4749 = vmatpush1.msra.mxu0 0.0
    %4750 = vmatprep.subr.mxu0 0.0
    %4751 = vmatpush1.msra.mxu0 0.0
    %4752 = vmatprep.subr.mxu0 0.0
    %4753 = vmatpush1.msra.mxu0 0.0
    %4754 = vmatprep.subr.mxu0 0.0
    %4755 = vmatpush1.msra.mxu0 0.0
    %4756 = vmatprep.subr.mxu0 0.0
    %4757 = vmatpush1.msra.mxu0 0.0
    %4758 = vmatprep.mubr.f32.mxu0 0.0
    %4759 = vmatmul.mubr.f32.gmra.mrb[0].mxu0 %v4689
    %v4760 = vpop.f32.mrb[0].mxu0
    %v4761 = vadd.f32 %v3177, %v4760
    %v4762 = vpop.f32.mrb[0].mxu0
    %4763 = vmatprep.mubr.f32.mxu0 0.0
    %4764 = vmatmul.mubr.f32.gmra.mrb[0].mxu0 %v4692
    %v4765 = vpop.f32.mrb[0].mxu0
    %v4766 = vadd.f32 %v3177, %v4765
    %v4767 = vpop.f32.mrb[0].mxu0
    %4768 = vdwg.mxu0
    %4769 = vmatprep.subr.mxu0 0.0
    %4770 = vmatpush1.msra.mxu0 %v3261
    %4771 = vmatprep.subr.mxu0 0.0
    %4772 = vmatpush1.msra.mxu0 %v3262
    %4773 = vmatprep.subr.mxu0 0.0
    %4774 = vmatpush1.msra.mxu0 %v3263
    %4775 = vmatprep.subr.mxu0 0.0
    %4776 = vmatpush1.msra.mxu0 %v3264
    %4777 = vmatprep.subr.mxu0 0.0
    %4778 = vmatpush1.msra.mxu0 0.0
    %4779 = vmatprep.subr.mxu0 0.0
    %4780 = vmatpush1.msra.mxu0 0.0
    %4781 = vmatprep.subr.mxu0 0.0
    %4782 = vmatpush1.msra.mxu0 0.0
    %4783 = vmatprep.subr.mxu0 0.0
    %4784 = vmatpush1.msra.mxu0 0.0
    %4785 = vmatprep.subr.mxu0 0.0
    %4786 = vmatpush1.msra.mxu0 0.0
    %4787 = vmatprep.subr.mxu0 0.0
    %4788 = vmatpush1.msra.mxu0 0.0
    %4789 = vmatprep.subr.mxu0 0.0
    %4790 = vmatpush1.msra.mxu0 0.0
    %4791 = vmatprep.subr.mxu0 0.0
    %4792 = vmatpush1.msra.mxu0 0.0
    %4793 = vmatprep.subr.mxu0 0.0
    %4794 = vmatpush1.msra.mxu0 0.0
    %4795 = vmatprep.subr.mxu0 0.0
    %4796 = vmatpush1.msra.mxu0 0.0
    %4797 = vmatprep.subr.mxu0 0.0
    %4798 = vmatpush1.msra.mxu0 0.0
    %4799 = vmatprep.subr.mxu0 0.0
    %4800 = vmatpush1.msra.mxu0 0.0
    %4801 = vmatprep.subr.mxu0 0.0
    %4802 = vmatpush1.msra.mxu0 0.0
    %4803 = vmatprep.subr.mxu0 0.0
    %4804 = vmatpush1.msra.mxu0 0.0
    %4805 = vmatprep.subr.mxu0 0.0
    %4806 = vmatpush1.msra.mxu0 0.0
    %4807 = vmatprep.subr.mxu0 0.0
    %4808 = vmatpush1.msra.mxu0 0.0
    %4809 = vmatprep.subr.mxu0 0.0
    %4810 = vmatpush1.msra.mxu0 0.0
    %4811 = vmatprep.subr.mxu0 0.0
    %4812 = vmatpush1.msra.mxu0 0.0
    %4813 = vmatprep.subr.mxu0 0.0
    %4814 = vmatpush1.msra.mxu0 0.0
    %4815 = vmatprep.subr.mxu0 0.0
    %4816 = vmatpush1.msra.mxu0 0.0
    %4817 = vmatprep.subr.mxu0 0.0
    %4818 = vmatpush1.msra.mxu0 0.0
    %4819 = vmatprep.subr.mxu0 0.0
    %4820 = vmatpush1.msra.mxu0 0.0
    %4821 = vmatprep.subr.mxu0 0.0
    %4822 = vmatpush1.msra.mxu0 0.0
    %4823 = vmatprep.subr.mxu0 0.0
    %4824 = vmatpush1.msra.mxu0 0.0
    %4825 = vmatprep.subr.mxu0 0.0
    %4826 = vmatpush1.msra.mxu0 0.0
    %4827 = vmatprep.subr.mxu0 0.0
    %4828 = vmatpush1.msra.mxu0 0.0
    %4829 = vmatprep.subr.mxu0 0.0
    %4830 = vmatpush1.msra.mxu0 0.0
    %4831 = vmatprep.subr.mxu0 0.0
    %4832 = vmatpush1.msra.mxu0 0.0
    %4833 = vmatprep.mubr.f32.mxu0 0.0
    %4834 = vmatmul.mubr.f32.gmra.mrb[0].mxu0 %v4689
    %v4835 = vpop.f32.mrb[0].mxu0
    %v4836 = vadd.f32 %v3271, %v4835
    %v4837 = vpop.f32.mrb[0].mxu0
    %4838 = vmatprep.mubr.f32.mxu0 0.0
    %4839 = vmatmul.mubr.f32.gmra.mrb[0].mxu0 %v4692
    %v4840 = vpop.f32.mrb[0].mxu0
    %v4841 = vadd.f32 %v3271, %v4840
    %v4842 = vpop.f32.mrb[0].mxu0
    %4843 = vdwg.mxu0
    %4844 = vmatprep.subr.mxu0 0.0
    %4845 = vmatpush1.msra.mxu0 %v3349
    %4846 = vmatprep.subr.mxu0 0.0
    %4847 = vmatpush1.msra.mxu0 %v3350
    %4848 = vmatprep.subr.mxu0 0.0
    %4849 = vmatpush1.msra.mxu0 %v3351
    %4850 = vmatprep.subr.mxu0 0.0
    %4851 = vmatpush1.msra.mxu0 %v3352
    %4852 = vmatprep.subr.mxu0 0.0
    %4853 = vmatpush1.msra.mxu0 0.0
    %4854 = vmatprep.subr.mxu0 0.0
    %4855 = vmatpush1.msra.mxu0 0.0
    %4856 = vmatprep.subr.mxu0 0.0
    %4857 = vmatpush1.msra.mxu0 0.0
    %4858 = vmatprep.subr.mxu0 0.0
    %4859 = vmatpush1.msra.mxu0 0.0
    %4860 = vmatprep.subr.mxu0 0.0
    %4861 = vmatpush1.msra.mxu0 0.0
    %4862 = vmatprep.subr.mxu0 0.0
    %4863 = vmatpush1.msra.mxu0 0.0
    %4864 = vmatprep.subr.mxu0 0.0
    %4865 = vmatpush1.msra.mxu0 0.0
    %4866 = vmatprep.subr.mxu0 0.0
    %4867 = vmatpush1.msra.mxu0 0.0
    %4868 = vmatprep.subr.mxu0 0.0
    %4869 = vmatpush1.msra.mxu0 0.0
    %4870 = vmatprep.subr.mxu0 0.0
    %4871 = vmatpush1.msra.mxu0 0.0
    %4872 = vmatprep.subr.mxu0 0.0
    %4873 = vmatpush1.msra.mxu0 0.0
    %4874 = vmatprep.subr.mxu0 0.0
    %4875 = vmatpush1.msra.mxu0 0.0
    %4876 = vmatprep.subr.mxu0 0.0
    %4877 = vmatpush1.msra.mxu0 0.0
    %4878 = vmatprep.subr.mxu0 0.0
    %4879 = vmatpush1.msra.mxu0 0.0
    %4880 = vmatprep.subr.mxu0 0.0
    %4881 = vmatpush1.msra.mxu0 0.0
    %4882 = vmatprep.subr.mxu0 0.0
    %4883 = vmatpush1.msra.mxu0 0.0
    %4884 = vmatprep.subr.mxu0 0.0
    %4885 = vmatpush1.msra.mxu0 0.0
    %4886 = vmatprep.subr.mxu0 0.0
    %4887 = vmatpush1.msra.mxu0 0.0
    %4888 = vmatprep.subr.mxu0 0.0
    %4889 = vmatpush1.msra.mxu0 0.0
    %4890 = vmatprep.subr.mxu0 0.0
    %4891 = vmatpush1.msra.mxu0 0.0
    %4892 = vmatprep.subr.mxu0 0.0
    %4893 = vmatpush1.msra.mxu0 0.0
    %4894 = vmatprep.subr.mxu0 0.0
    %4895 = vmatpush1.msra.mxu0 0.0
    %4896 = vmatprep.subr.mxu0 0.0
    %4897 = vmatpush1.msra.mxu0 0.0
    %4898 = vmatprep.subr.mxu0 0.0
    %4899 = vmatpush1.msra.mxu0 0.0
    %4900 = vmatprep.subr.mxu0 0.0
    %4901 = vmatpush1.msra.mxu0 0.0
    %4902 = vmatprep.subr.mxu0 0.0
    %4903 = vmatpush1.msra.mxu0 0.0
    %4904 = vmatprep.subr.mxu0 0.0
    %4905 = vmatpush1.msra.mxu0 0.0
    %4906 = vmatprep.subr.mxu0 0.0
    %4907 = vmatpush1.msra.mxu0 0.0
    %4908 = vmatprep.mubr.f32.mxu0 0.0
    %4909 = vmatmul.mubr.f32.gmra.mrb[0].mxu0 %v4689
    %v4910 = vpop.f32.mrb[0].mxu0
    %v4911 = vadd.f32 %v3359, %v4910
    %v4912 = vpop.f32.mrb[0].mxu0
    %4913 = vmatprep.mubr.f32.mxu0 0.0
    %4914 = vmatmul.mubr.f32.gmra.mrb[0].mxu0 %v4692
    %v4915 = vpop.f32.mrb[0].mxu0
    %v4916 = vadd.f32 %v3359, %v4915
    %v4917 = vpop.f32.mrb[0].mxu0
    %4918 = vdwg.mxu0
    %v4920 = vsel %vm409, %v4761, 0
    %v4923 = vsel %vm409, %v4766, 0
    %v4926 = vsel %vm409, %v4836, 0
    %v4929 = vsel %vm409, %v4841, 0
    %4931 = vmatprep.subr.mxu0 0.0
    %4932 = vmatpush1.xpose.msra.mxu0 %v4926
    %4933 = vmatprep.subr.mxu0 0.0
    %4934 = vmatpush1.xpose.msra.mxu0 %v4929
    %4935 = vmatprep.subr.mxu0 0.0
    %4936 = vmatpush1.xpose.msra.mxu0 0.0
    %4937 = vmatprep.subr.mxu0 0.0
    %4938 = vmatpush1.xpose.msra.mxu0 0.0
    %4939 = vmatprep.subr.mxu0 0.0
    %4940 = vmatpush1.xpose.msra.mxu0 0.0
    %4941 = vmatprep.subr.mxu0 0.0
    %4942 = vmatpush1.xpose.msra.mxu0 0.0
    %4943 = vmatprep.subr.mxu0 0.0
    %4944 = vmatpush1.xpose.msra.mxu0 0.0
    %4945 = vmatprep.subr.mxu0 0.0
    %4946 = vmatpush1.xpose.msra.mxu0 0.0
    %4947 = vmatprep.subr.mxu0 0.0
    %4948 = vmatpush1.xpose.msra.mxu0 0.0
    %4949 = vmatprep.subr.mxu0 0.0
    %4950 = vmatpush1.xpose.msra.mxu0 0.0
    %4951 = vmatprep.subr.mxu0 0.0
    %4952 = vmatpush1.xpose.msra.mxu0 0.0
    %4953 = vmatprep.subr.mxu0 0.0
    %4954 = vmatpush1.xpose.msra.mxu0 0.0
    %4955 = vmatprep.subr.mxu0 0.0
    %4956 = vmatpush1.xpose.msra.mxu0 0.0
    %4957 = vmatprep.subr.mxu0 0.0
    %4958 = vmatpush1.xpose.msra.mxu0 0.0
    %4959 = vmatprep.subr.mxu0 0.0
    %4960 = vmatpush1.xpose.msra.mxu0 0.0
    %4961 = vmatprep.subr.mxu0 0.0
    %4962 = vmatpush1.xpose.msra.mxu0 0.0
    %4963 = vmatprep.subr.mxu0 0.0
    %4964 = vmatpush1.xpose.msra.mxu0 0.0
    %4965 = vmatprep.subr.mxu0 0.0
    %4966 = vmatpush1.xpose.msra.mxu0 0.0
    %4967 = vmatprep.subr.mxu0 0.0
    %4968 = vmatpush1.xpose.msra.mxu0 0.0
    %4969 = vmatprep.subr.mxu0 0.0
    %4970 = vmatpush1.xpose.msra.mxu0 0.0
    %4971 = vmatprep.subr.mxu0 0.0
    %4972 = vmatpush1.xpose.msra.mxu0 0.0
    %4973 = vmatprep.subr.mxu0 0.0
    %4974 = vmatpush1.xpose.msra.mxu0 0.0
    %4975 = vmatprep.subr.mxu0 0.0
    %4976 = vmatpush1.xpose.msra.mxu0 0.0
    %4977 = vmatprep.subr.mxu0 0.0
    %4978 = vmatpush1.xpose.msra.mxu0 0.0
    %4979 = vmatprep.subr.mxu0 0.0
    %4980 = vmatpush1.xpose.msra.mxu0 0.0
    %4981 = vmatprep.subr.mxu0 0.0
    %4982 = vmatpush1.xpose.msra.mxu0 0.0
    %4983 = vmatprep.subr.mxu0 0.0
    %4984 = vmatpush1.xpose.msra.mxu0 0.0
    %4985 = vmatprep.subr.mxu0 0.0
    %4986 = vmatpush1.xpose.msra.mxu0 0.0
    %4987 = vmatprep.subr.mxu0 0.0
    %4988 = vmatpush1.xpose.msra.mxu0 0.0
    %4989 = vmatprep.subr.mxu0 0.0
    %4990 = vmatpush1.xpose.msra.mxu0 0.0
    %4991 = vmatprep.subr.mxu0 0.0
    %4992 = vmatpush1.xpose.msra.mxu0 0.0
    %4993 = vmatprep.subr.mxu0 0.0
    %4994 = vmatpush1.xpose.msra.mxu0 0.0
    %4995 = vmatprep.mubr.f32.mxu0 0.0
    %4996 = vmatmul.mubr.f32.gmra.mrb[0].mxu0 %v4920
    %v4997 = vpop.f32.mrb[0].mxu0
    %v4998 = vadd.f32 0.0, %v4997
    %v4999 = vpop.f32.mrb[0].mxu0
    %5000 = vmatprep.mubr.f32.mxu0 0.0
    %5001 = vmatmul.mubr.f32.gmra.mrb[0].mxu0 %v4923
    %v5002 = vpop.f32.mrb[0].mxu0
    %v5003 = vadd.f32 0.0, %v5002
    %v5004 = vpop.f32.mrb[0].mxu0
    %5005 = vdwg.mxu0
    %v5006 = vmul.f32 %v4998, 0.25
    %v5007 = vmul.f32 %v5003, 0.25
    %v5008 = vadd.f32 %v5006, %v2011
    %v5009 = vadd.f32 %v5007, %v2011
    %v5010 = vsel %vm409, %v5008, -inf
    %5011 = vmax.xlane.f32.xlu0 %v5010
    %v5012 = vpop.xlane.xlu0 %5011
    %v5013 = vsel %vm409, %v5009, -inf
    %5014 = vmax.xlane.f32.xlu0 %v5013
    %v5015 = vpop.xlane.xlu0 %5014
    %v5016 = vsub.f32 %v5008, %v5012
    %v5017 = vsub.f32 %v5009, %v5015
    %v5018 = vmul.f32 %v5016, 1.442695
    %v5019 = vpow.pop %v5018
    %v5020 = vmul.f32 %v5017, 1.442695
    %v5021 = vpow.pop %v5020
    %v5022 = vsel %vm409, %v5019, 0.0
    %5023 = vadd.xlane.f32.xlu0 %v5022
    %v5024 = vpop.xlane.xlu0 %5023
    %v5025 = vsel %vm409, %v5021, 0.0
    %5026 = vadd.xlane.f32.xlu0 %v5025
    %v5027 = vpop.xlane.xlu0 %5026
    %v5028 = vrcp.pop %v5024
    %v5029 = vrcp.pop %v5027
    %v5030 = vmul.f32 %v5019, %v5028
    %v5031 = vmul.f32 %v5021, %v5029
    %v5033 = vsel %vm409, %v5030, 0
    %v5036 = vsel %vm409, %v5031, 0
    %5038 = vmatprep.subr.mxu0 0.0
    %5039 = vmatpush1.msra.mxu0 %v4911
    %5040 = vmatprep.subr.mxu0 0.0
    %5041 = vmatpush1.msra.mxu0 %v4916
    %5042 = vmatprep.subr.mxu0 0.0
    %5043 = vmatpush1.msra.mxu0 0.0
    %5044 = vmatprep.subr.mxu0 0.0
    %5045 = vmatpush1.msra.mxu0 0.0
    %5046 = vmatprep.subr.mxu0 0.0
    %5047 = vmatpush1.msra.mxu0 0.0
    %5048 = vmatprep.subr.mxu0 0.0
    %5049 = vmatpush1.msra.mxu0 0.0
    %5050 = vmatprep.subr.mxu0 0.0
    %5051 = vmatpush1.msra.mxu0 0.0
    %5052 = vmatprep.subr.mxu0 0.0
    %5053 = vmatpush1.msra.mxu0 0.0
    %5054 = vmatprep.subr.mxu0 0.0
    %5055 = vmatpush1.msra.mxu0 0.0
    %5056 = vmatprep.subr.mxu0 0.0
    %5057 = vmatpush1.msra.mxu0 0.0
    %5058 = vmatprep.subr.mxu0 0.0
    %5059 = vmatpush1.msra.mxu0 0.0
    %5060 = vmatprep.subr.mxu0 0.0
    %5061 = vmatpush1.msra.mxu0 0.0
    %5062 = vmatprep.subr.mxu0 0.0
    %5063 = vmatpush1.msra.mxu0 0.0
    %5064 = vmatprep.subr.mxu0 0.0
    %5065 = vmatpush1.msra.mxu0 0.0
    %5066 = vmatprep.subr.mxu0 0.0
    %5067 = vmatpush1.msra.mxu0 0.0
    %5068 = vmatprep.subr.mxu0 0.0
    %5069 = vmatpush1.msra.mxu0 0.0
    %5070 = vmatprep.subr.mxu0 0.0
    %5071 = vmatpush1.msra.mxu0 0.0
    %5072 = vmatprep.subr.mxu0 0.0
    %5073 = vmatpush1.msra.mxu0 0.0
    %5074 = vmatprep.subr.mxu0 0.0
    %5075 = vmatpush1.msra.mxu0 0.0
    %5076 = vmatprep.subr.mxu0 0.0
    %5077 = vmatpush1.msra.mxu0 0.0
    %5078 = vmatprep.subr.mxu0 0.0
    %5079 = vmatpush1.msra.mxu0 0.0
    %5080 = vmatprep.subr.mxu0 0.0
    %5081 = vmatpush1.msra.mxu0 0.0
    %5082 = vmatprep.subr.mxu0 0.0
    %5083 = vmatpush1.msra.mxu0 0.0
    %5084 = vmatprep.subr.mxu0 0.0
    %5085 = vmatpush1.msra.mxu0 0.0
    %5086 = vmatprep.subr.mxu0 0.0
    %5087 = vmatpush1.msra.mxu0 0.0
    %5088 = vmatprep.subr.mxu0 0.0
    %5089 = vmatpush1.msra.mxu0 0.0
    %5090 = vmatprep.subr.mxu0 0.0
    %5091 = vmatpush1.msra.mxu0 0.0
    %5092 = vmatprep.subr.mxu0 0.0
    %5093 = vmatpush1.msra.mxu0 0.0
    %5094 = vmatprep.subr.mxu0 0.0
    %5095 = vmatpush1.msra.mxu0 0.0
    %5096 = vmatprep.subr.mxu0 0.0
    %5097 = vmatpush1.msra.mxu0 0.0
    %5098 = vmatprep.subr.mxu0 0.0
    %5099 = vmatpush1.msra.mxu0 0.0
    %5100 = vmatprep.subr.mxu0 0.0
    %5101 = vmatpush1.msra.mxu0 0.0
    %5102 = vmatprep.mubr.f32.mxu0 0.0
    %5103 = vmatmul.mubr.f32.gmra.mrb[0].mxu0 %v5033
    %v5104 = vpop.f32.mrb[0].mxu0
    %v5105 = vadd.f32 0.0, %v5104
    %v5106 = vpop.f32.mrb[0].mxu0
    %5107 = vmatprep.mubr.f32.mxu0 0.0
    %5108 = vmatmul.mubr.f32.gmra.mrb[0].mxu0 %v5036
    %v5109 = vpop.f32.mrb[0].mxu0
    %v5110 = vadd.f32 0.0, %v5109
    %v5111 = vpop.f32.mrb[0].mxu0
    %5112 = vdwg.mxu0
    %5113 = vmatprep.subr.mxu0 0.0
    %5114 = vmatpush1.msra.mxu0 %v3634
    %5115 = vmatprep.subr.mxu0 0.0
    %5116 = vmatpush1.msra.mxu0 %v3635
    %5117 = vmatprep.subr.mxu0 0.0
    %5118 = vmatpush1.msra.mxu0 %v3636
    %5119 = vmatprep.subr.mxu0 0.0
    %5120 = vmatpush1.msra.mxu0 %v3637
    %5121 = vmatprep.subr.mxu0 0.0
    %5122 = vmatpush1.msra.mxu0 0.0
    %5123 = vmatprep.subr.mxu0 0.0
    %5124 = vmatpush1.msra.mxu0 0.0
    %5125 = vmatprep.subr.mxu0 0.0
    %5126 = vmatpush1.msra.mxu0 0.0
    %5127 = vmatprep.subr.mxu0 0.0
    %5128 = vmatpush1.msra.mxu0 0.0
    %5129 = vmatprep.subr.mxu0 0.0
    %5130 = vmatpush1.msra.mxu0 0.0
    %5131 = vmatprep.subr.mxu0 0.0
    %5132 = vmatpush1.msra.mxu0 0.0
    %5133 = vmatprep.subr.mxu0 0.0
    %5134 = vmatpush1.msra.mxu0 0.0
    %5135 = vmatprep.subr.mxu0 0.0
    %5136 = vmatpush1.msra.mxu0 0.0
    %5137 = vmatprep.subr.mxu0 0.0
    %5138 = vmatpush1.msra.mxu0 0.0
    %5139 = vmatprep.subr.mxu0 0.0
    %5140 = vmatpush1.msra.mxu0 0.0
    %5141 = vmatprep.subr.mxu0 0.0
    %5142 = vmatpush1.msra.mxu0 0.0
    %5143 = vmatprep.subr.mxu0 0.0
    %5144 = vmatpush1.msra.mxu0 0.0
    %5145 = vmatprep.subr.mxu0 0.0
    %5146 = vmatpush1.msra.mxu0 0.0
    %5147 = vmatprep.subr.mxu0 0.0
    %5148 = vmatpush1.msra.mxu0 0.0
    %5149 = vmatprep.subr.mxu0 0.0
    %5150 = vmatpush1.msra.mxu0 0.0
    %5151 = vmatprep.subr.mxu0 0.0
    %5152 = vmatpush1.msra.mxu0 0.0
    %5153 = vmatprep.subr.mxu0 0.0
    %5154 = vmatpush1.msra.mxu0 0.0
    %5155 = vmatprep.subr.mxu0 0.0
    %5156 = vmatpush1.msra.mxu0 0.0
    %5157 = vmatprep.subr.mxu0 0.0
    %5158 = vmatpush1.msra.mxu0 0.0
    %5159 = vmatprep.subr.mxu0 0.0
    %5160 = vmatpush1.msra.mxu0 0.0
    %5161 = vmatprep.subr.mxu0 0.0
    %5162 = vmatpush1.msra.mxu0 0.0
    %5163 = vmatprep.subr.mxu0 0.0
    %5164 = vmatpush1.msra.mxu0 0.0
    %5165 = vmatprep.subr.mxu0 0.0
    %5166 = vmatpush1.msra.mxu0 0.0
    %5167 = vmatprep.subr.mxu0 0.0
    %5168 = vmatpush1.msra.mxu0 0.0
    %5169 = vmatprep.subr.mxu0 0.0
    %5170 = vmatpush1.msra.mxu0 0.0
    %5171 = vmatprep.subr.mxu0 0.0
    %5172 = vmatpush1.msra.mxu0 0.0
    %5173 = vmatprep.subr.mxu0 0.0
    %5174 = vmatpush1.msra.mxu0 0.0
    %5175 = vmatprep.subr.mxu0 0.0
    %5176 = vmatpush1.msra.mxu0 0.0
    %5177 = vmatprep.mubr.f32.mxu0 0.0
    %5178 = vmatmul.mubr.f32.gmra.mrb[0].mxu0 %v4689
    %v5179 = vpop.f32.mrb[0].mxu0
    %v5180 = vadd.f32 %v3644, %v5179
    %v5181 = vpop.f32.mrb[0].mxu0
    %5182 = vmatprep.mubr.f32.mxu0 0.0
    %5183 = vmatmul.mubr.f32.gmra.mrb[0].mxu0 %v4692
    %v5184 = vpop.f32.mrb[0].mxu0
    %v5185 = vadd.f32 %v3644, %v5184
    %v5186 = vpop.f32.mrb[0].mxu0
    %5187 = vdwg.mxu0
    %5188 = vmatprep.subr.mxu0 0.0
    %5189 = vmatpush1.msra.mxu0 %v3722
    %5190 = vmatprep.subr.mxu0 0.0
    %5191 = vmatpush1.msra.mxu0 %v3723
    %5192 = vmatprep.subr.mxu0 0.0
    %5193 = vmatpush1.msra.mxu0 %v3724
    %5194 = vmatprep.subr.mxu0 0.0
    %5195 = vmatpush1.msra.mxu0 %v3725
    %5196 = vmatprep.subr.mxu0 0.0
    %5197 = vmatpush1.msra.mxu0 0.0
    %5198 = vmatprep.subr.mxu0 0.0
    %5199 = vmatpush1.msra.mxu0 0.0
    %5200 = vmatprep.subr.mxu0 0.0
    %5201 = vmatpush1.msra.mxu0 0.0
    %5202 = vmatprep.subr.mxu0 0.0
    %5203 = vmatpush1.msra.mxu0 0.0
    %5204 = vmatprep.subr.mxu0 0.0
    %5205 = vmatpush1.msra.mxu0 0.0
    %5206 = vmatprep.subr.mxu0 0.0
    %5207 = vmatpush1.msra.mxu0 0.0
    %5208 = vmatprep.subr.mxu0 0.0
    %5209 = vmatpush1.msra.mxu0 0.0
    %5210 = vmatprep.subr.mxu0 0.0
    %5211 = vmatpush1.msra.mxu0 0.0
    %5212 = vmatprep.subr.mxu0 0.0
    %5213 = vmatpush1.msra.mxu0 0.0
    %5214 = vmatprep.subr.mxu0 0.0
    %5215 = vmatpush1.msra.mxu0 0.0
    %5216 = vmatprep.subr.mxu0 0.0
    %5217 = vmatpush1.msra.mxu0 0.0
    %5218 = vmatprep.subr.mxu0 0.0
    %5219 = vmatpush1.msra.mxu0 0.0
    %5220 = vmatprep.subr.mxu0 0.0
    %5221 = vmatpush1.msra.mxu0 0.0
    %5222 = vmatprep.subr.mxu0 0.0
    %5223 = vmatpush1.msra.mxu0 0.0
    %5224 = vmatprep.subr.mxu0 0.0
    %5225 = vmatpush1.msra.mxu0 0.0
    %5226 = vmatprep.subr.mxu0 0.0
    %5227 = vmatpush1.msra.mxu0 0.0
    %5228 = vmatprep.subr.mxu0 0.0
    %5229 = vmatpush1.msra.mxu0 0.0
    %5230 = vmatprep.subr.mxu0 0.0
    %5231 = vmatpush1.msra.mxu0 0.0
    %5232 = vmatprep.subr.mxu0 0.0
    %5233 = vmatpush1.msra.mxu0 0.0
    %5234 = vmatprep.subr.mxu0 0.0
    %5235 = vmatpush1.msra.mxu0 0.0
    %5236 = vmatprep.subr.mxu0 0.0
    %5237 = vmatpush1.msra.mxu0 0.0
    %5238 = vmatprep.subr.mxu0 0.0
    %5239 = vmatpush1.msra.mxu0 0.0
    %5240 = vmatprep.subr.mxu0 0.0
    %5241 = vmatpush1.msra.mxu0 0.0
    %5242 = vmatprep.subr.mxu0 0.0
    %5243 = vmatpush1.msra.mxu0 0.0
    %5244 = vmatprep.subr.mxu0 0.0
    %5245 = vmatpush1.msra.mxu0 0.0
    %5246 = vmatprep.subr.mxu0 0.0
    %5247 = vmatpush1.msra.mxu0 0.0
    %5248 = vmatprep.subr.mxu0 0.0
    %5249 = vmatpush1.msra.mxu0 0.0
    %5250 = vmatprep.subr.mxu0 0.0
    %5251 = vmatpush1.msra.mxu0 0.0
    %5252 = vmatprep.mubr.f32.mxu0 0.0
    %5253 = vmatmul.mubr.f32.gmra.mrb[0].mxu0 %v4689
    %v5254 = vpop.f32.mrb[0].mxu0
    %v5255 = vadd.f32 %v3732, %v5254
    %v5256 = vpop.f32.mrb[0].mxu0
    %5257 = vmatprep.mubr.f32.mxu0 0.0
    %5258 = vmatmul.mubr.f32.gmra.mrb[0].mxu0 %v4692
    %v5259 = vpop.f32.mrb[0].mxu0
    %v5260 = vadd.f32 %v3732, %v5259
    %v5261 = vpop.f32.mrb[0].mxu0
    %5262 = vdwg.mxu0
    %5263 = vmatprep.subr.mxu0 0.0
    %5264 = vmatpush1.msra.mxu0 %v3810
    %5265 = vmatprep.subr.mxu0 0.0
    %5266 = vmatpush1.msra.mxu0 %v3811
    %5267 = vmatprep.subr.mxu0 0.0
    %5268 = vmatpush1.msra.mxu0 %v3812
    %5269 = vmatprep.subr.mxu0 0.0
    %5270 = vmatpush1.msra.mxu0 %v3813
    %5271 = vmatprep.subr.mxu0 0.0
    %5272 = vmatpush1.msra.mxu0 0.0
    %5273 = vmatprep.subr.mxu0 0.0
    %5274 = vmatpush1.msra.mxu0 0.0
    %5275 = vmatprep.subr.mxu0 0.0
    %5276 = vmatpush1.msra.mxu0 0.0
    %5277 = vmatprep.subr.mxu0 0.0
    %5278 = vmatpush1.msra.mxu0 0.0
    %5279 = vmatprep.subr.mxu0 0.0
    %5280 = vmatpush1.msra.mxu0 0.0
    %5281 = vmatprep.subr.mxu0 0.0
    %5282 = vmatpush1.msra.mxu0 0.0
    %5283 = vmatprep.subr.mxu0 0.0
    %5284 = vmatpush1.msra.mxu0 0.0
    %5285 = vmatprep.subr.mxu0 0.0
    %5286 = vmatpush1.msra.mxu0 0.0
    %5287 = vmatprep.subr.mxu0 0.0
    %5288 = vmatpush1.msra.mxu0 0.0
    %5289 = vmatprep.subr.mxu0 0.0
    %5290 = vmatpush1.msra.mxu0 0.0
    %5291 = vmatprep.subr.mxu0 0.0
    %5292 = vmatpush1.msra.mxu0 0.0
    %5293 = vmatprep.subr.mxu0 0.0
    %5294 = vmatpush1.msra.mxu0 0.0
    %5295 = vmatprep.subr.mxu0 0.0
    %5296 = vmatpush1.msra.mxu0 0.0
    %5297 = vmatprep.subr.mxu0 0.0
    %5298 = vmatpush1.msra.mxu0 0.0
    %5299 = vmatprep.subr.mxu0 0.0
    %5300 = vmatpush1.msra.mxu0 0.0
    %5301 = vmatprep.subr.mxu0 0.0
    %5302 = vmatpush1.msra.mxu0 0.0
    %5303 = vmatprep.subr.mxu0 0.0
    %5304 = vmatpush1.msra.mxu0 0.0
    %5305 = vmatprep.subr.mxu0 0.0
    %5306 = vmatpush1.msra.mxu0 0.0
    %5307 = vmatprep.subr.mxu0 0.0
    %5308 = vmatpush1.msra.mxu0 0.0
    %5309 = vmatprep.subr.mxu0 0.0
    %5310 = vmatpush1.msra.mxu0 0.0
    %5311 = vmatprep.subr.mxu0 0.0
    %5312 = vmatpush1.msra.mxu0 0.0
    %5313 = vmatprep.subr.mxu0 0.0
    %5314 = vmatpush1.msra.mxu0 0.0
    %5315 = vmatprep.subr.mxu0 0.0
    %5316 = vmatpush1.msra.mxu0 0.0
    %5317 = vmatprep.subr.mxu0 0.0
    %5318 = vmatpush1.msra.mxu0 0.0
    %5319 = vmatprep.subr.mxu0 0.0
    %5320 = vmatpush1.msra.mxu0 0.0
    %5321 = vmatprep.subr.mxu0 0.0
    %5322 = vmatpush1.msra.mxu0 0.0
    %5323 = vmatprep.subr.mxu0 0.0
    %5324 = vmatpush1.msra.mxu0 0.0
    %5325 = vmatprep.subr.mxu0 0.0
    %5326 = vmatpush1.msra.mxu0 0.0
    %5327 = vmatprep.mubr.f32.mxu0 0.0
    %5328 = vmatmul.mubr.f32.gmra.mrb[0].mxu0 %v4689
    %v5329 = vpop.f32.mrb[0].mxu0
    %v5330 = vadd.f32 %v3820, %v5329
    %v5331 = vpop.f32.mrb[0].mxu0
    %5332 = vmatprep.mubr.f32.mxu0 0.0
    %5333 = vmatmul.mubr.f32.gmra.mrb[0].mxu0 %v4692
    %v5334 = vpop.f32.mrb[0].mxu0
    %v5335 = vadd.f32 %v3820, %v5334
    %v5336 = vpop.f32.mrb[0].mxu0
    %5337 = vdwg.mxu0
    %v5339 = vsel %vm409, %v5180, 0
    %v5342 = vsel %vm409, %v5185, 0
    %v5345 = vsel %vm409, %v5255, 0
    %v5348 = vsel %vm409, %v5260, 0
    %5350 = vmatprep.subr.mxu0 0.0
    %5351 = vmatpush1.xpose.msra.mxu0 %v5345
    %5352 = vmatprep.subr.mxu0 0.0
    %5353 = vmatpush1.xpose.msra.mxu0 %v5348
    %5354 = vmatprep.subr.mxu0 0.0
    %5355 = vmatpush1.xpose.msra.mxu0 0.0
    %5356 = vmatprep.subr.mxu0 0.0
    %5357 = vmatpush1.xpose.msra.mxu0 0.0
    %5358 = vmatprep.subr.mxu0 0.0
    %5359 = vmatpush1.xpose.msra.mxu0 0.0
    %5360 = vmatprep.subr.mxu0 0.0
    %5361 = vmatpush1.xpose.msra.mxu0 0.0
    %5362 = vmatprep.subr.mxu0 0.0
    %5363 = vmatpush1.xpose.msra.mxu0 0.0
    %5364 = vmatprep.subr.mxu0 0.0
    %5365 = vmatpush1.xpose.msra.mxu0 0.0
    %5366 = vmatprep.subr.mxu0 0.0
    %5367 = vmatpush1.xpose.msra.mxu0 0.0
    %5368 = vmatprep.subr.mxu0 0.0
    %5369 = vmatpush1.xpose.msra.mxu0 0.0
    %5370 = vmatprep.subr.mxu0 0.0
    %5371 = vmatpush1.xpose.msra.mxu0 0.0
    %5372 = vmatprep.subr.mxu0 0.0
    %5373 = vmatpush1.xpose.msra.mxu0 0.0
    %5374 = vmatprep.subr.mxu0 0.0
    %5375 = vmatpush1.xpose.msra.mxu0 0.0
    %5376 = vmatprep.subr.mxu0 0.0
    %5377 = vmatpush1.xpose.msra.mxu0 0.0
    %5378 = vmatprep.subr.mxu0 0.0
    %5379 = vmatpush1.xpose.msra.mxu0 0.0
    %5380 = vmatprep.subr.mxu0 0.0
    %5381 = vmatpush1.xpose.msra.mxu0 0.0
    %5382 = vmatprep.subr.mxu0 0.0
    %5383 = vmatpush1.xpose.msra.mxu0 0.0
    %5384 = vmatprep.subr.mxu0 0.0
    %5385 = vmatpush1.xpose.msra.mxu0 0.0
    %5386 = vmatprep.subr.mxu0 0.0
    %5387 = vmatpush1.xpose.msra.mxu0 0.0
    %5388 = vmatprep.subr.mxu0 0.0
    %5389 = vmatpush1.xpose.msra.mxu0 0.0
    %5390 = vmatprep.subr.mxu0 0.0
    %5391 = vmatpush1.xpose.msra.mxu0 0.0
    %5392 = vmatprep.subr.mxu0 0.0
    %5393 = vmatpush1.xpose.msra.mxu0 0.0
    %5394 = vmatprep.subr.mxu0 0.0
    %5395 = vmatpush1.xpose.msra.mxu0 0.0
    %5396 = vmatprep.subr.mxu0 0.0
    %5397 = vmatpush1.xpose.msra.mxu0 0.0
    %5398 = vmatprep.subr.mxu0 0.0
    %5399 = vmatpush1.xpose.msra.mxu0 0.0
    %5400 = vmatprep.subr.mxu0 0.0
    %5401 = vmatpush1.xpose.msra.mxu0 0.0
    %5402 = vmatprep.subr.mxu0 0.0
    %5403 = vmatpush1.xpose.msra.mxu0 0.0
    %5404 = vmatprep.subr.mxu0 0.0
    %5405 = vmatpush1.xpose.msra.mxu0 0.0
    %5406 = vmatprep.subr.mxu0 0.0
    %5407 = vmatpush1.xpose.msra.mxu0 0.0
    %5408 = vmatprep.subr.mxu0 0.0
    %5409 = vmatpush1.xpose.msra.mxu0 0.0
    %5410 = vmatprep.subr.mxu0 0.0
    %5411 = vmatpush1.xpose.msra.mxu0 0.0
    %5412 = vmatprep.subr.mxu0 0.0
    %5413 = vmatpush1.xpose.msra.mxu0 0.0
    %5414 = vmatprep.mubr.f32.mxu0 0.0
    %5415 = vmatmul.mubr.f32.gmra.mrb[0].mxu0 %v5339
    %v5416 = vpop.f32.mrb[0].mxu0
    %v5417 = vadd.f32 0.0, %v5416
    %v5418 = vpop.f32.mrb[0].mxu0
    %5419 = vmatprep.mubr.f32.mxu0 0.0
    %5420 = vmatmul.mubr.f32.gmra.mrb[0].mxu0 %v5342
    %v5421 = vpop.f32.mrb[0].mxu0
    %v5422 = vadd.f32 0.0, %v5421
    %v5423 = vpop.f32.mrb[0].mxu0
    %5424 = vdwg.mxu0
    %v5425 = vmul.f32 %v5417, 0.25
    %v5426 = vmul.f32 %v5422, 0.25
    %v5427 = vadd.f32 %v5425, %v2011
    %v5428 = vadd.f32 %v5426, %v2011
    %v5429 = vsel %vm409, %v5427, -inf
    %5430 = vmax.xlane.f32.xlu0 %v5429
    %v5431 = vpop.xlane.xlu0 %5430
    %v5432 = vsel %vm409, %v5428, -inf
    %5433 = vmax.xlane.f32.xlu0 %v5432
    %v5434 = vpop.xlane.xlu0 %5433
    %v5435 = vsub.f32 %v5427, %v5431
    %v5436 = vsub.f32 %v5428, %v5434
    %v5437 = vmul.f32 %v5435, 1.442695
    %v5438 = vpow.pop %v5437
    %v5439 = vmul.f32 %v5436, 1.442695
    %v5440 = vpow.pop %v5439
    %v5441 = vsel %vm409, %v5438, 0.0
    %5442 = vadd.xlane.f32.xlu0 %v5441
    %v5443 = vpop.xlane.xlu0 %5442
    %v5444 = vsel %vm409, %v5440, 0.0
    %5445 = vadd.xlane.f32.xlu0 %v5444
    %v5446 = vpop.xlane.xlu0 %5445
    %v5447 = vrcp.pop %v5443
    %v5448 = vrcp.pop %v5446
    %v5449 = vmul.f32 %v5438, %v5447
    %v5450 = vmul.f32 %v5440, %v5448
    %v5452 = vsel %vm409, %v5449, 0
    %v5455 = vsel %vm409, %v5450, 0
    %5457 = vmatprep.subr.mxu0 0.0
    %5458 = vmatpush1.msra.mxu0 %v5330
    %5459 = vmatprep.subr.mxu0 0.0
    %5460 = vmatpush1.msra.mxu0 %v5335
    %5461 = vmatprep.subr.mxu0 0.0
    %5462 = vmatpush1.msra.mxu0 0.0
    %5463 = vmatprep.subr.mxu0 0.0
    %5464 = vmatpush1.msra.mxu0 0.0
    %5465 = vmatprep.subr.mxu0 0.0
    %5466 = vmatpush1.msra.mxu0 0.0
    %5467 = vmatprep.subr.mxu0 0.0
    %5468 = vmatpush1.msra.mxu0 0.0
    %5469 = vmatprep.subr.mxu0 0.0
    %5470 = vmatpush1.msra.mxu0 0.0
    %5471 = vmatprep.subr.mxu0 0.0
    %5472 = vmatpush1.msra.mxu0 0.0
    %5473 = vmatprep.subr.mxu0 0.0
    %5474 = vmatpush1.msra.mxu0 0.0
    %5475 = vmatprep.subr.mxu0 0.0
    %5476 = vmatpush1.msra.mxu0 0.0
    %5477 = vmatprep.subr.mxu0 0.0
    %5478 = vmatpush1.msra.mxu0 0.0
    %5479 = vmatprep.subr.mxu0 0.0
    %5480 = vmatpush1.msra.mxu0 0.0
    %5481 = vmatprep.subr.mxu0 0.0
    %5482 = vmatpush1.msra.mxu0 0.0
    %5483 = vmatprep.subr.mxu0 0.0
    %5484 = vmatpush1.msra.mxu0 0.0
    %5485 = vmatprep.subr.mxu0 0.0
    %5486 = vmatpush1.msra.mxu0 0.0
    %5487 = vmatprep.subr.mxu0 0.0
    %5488 = vmatpush1.msra.mxu0 0.0
    %5489 = vmatprep.subr.mxu0 0.0
    %5490 = vmatpush1.msra.mxu0 0.0
    %5491 = vmatprep.subr.mxu0 0.0
    %5492 = vmatpush1.msra.mxu0 0.0
    %5493 = vmatprep.subr.mxu0 0.0
    %5494 = vmatpush1.msra.mxu0 0.0
    %5495 = vmatprep.subr.mxu0 0.0
    %5496 = vmatpush1.msra.mxu0 0.0
    %5497 = vmatprep.subr.mxu0 0.0
    %5498 = vmatpush1.msra.mxu0 0.0
    %5499 = vmatprep.subr.mxu0 0.0
    %5500 = vmatpush1.msra.mxu0 0.0
    %5501 = vmatprep.subr.mxu0 0.0
    %5502 = vmatpush1.msra.mxu0 0.0
    %5503 = vmatprep.subr.mxu0 0.0
    %5504 = vmatpush1.msra.mxu0 0.0
    %5505 = vmatprep.subr.mxu0 0.0
    %5506 = vmatpush1.msra.mxu0 0.0
    %5507 = vmatprep.subr.mxu0 0.0
    %5508 = vmatpush1.msra.mxu0 0.0
    %5509 = vmatprep.subr.mxu0 0.0
    %5510 = vmatpush1.msra.mxu0 0.0
    %5511 = vmatprep.subr.mxu0 0.0
    %5512 = vmatpush1.msra.mxu0 0.0
    %5513 = vmatprep.subr.mxu0 0.0
    %5514 = vmatpush1.msra.mxu0 0.0
    %5515 = vmatprep.subr.mxu0 0.0
    %5516 = vmatpush1.msra.mxu0 0.0
    %5517 = vmatprep.subr.mxu0 0.0
    %5518 = vmatpush1.msra.mxu0 0.0
    %5519 = vmatprep.subr.mxu0 0.0
    %5520 = vmatpush1.msra.mxu0 0.0
    %5521 = vmatprep.mubr.f32.mxu0 0.0
    %5522 = vmatmul.mubr.f32.gmra.mrb[0].mxu0 %v5452
    %v5523 = vpop.f32.mrb[0].mxu0
    %v5524 = vadd.f32 0.0, %v5523
    %v5525 = vpop.f32.mrb[0].mxu0
    %5526 = vmatprep.mubr.f32.mxu0 0.0
    %5527 = vmatmul.mubr.f32.gmra.mrb[0].mxu0 %v5455
    %v5528 = vpop.f32.mrb[0].mxu0
    %v5529 = vadd.f32 0.0, %v5528
    %v5530 = vpop.f32.mrb[0].mxu0
    %5531 = vdwg.mxu0
    %v5533 = vsel %vm409, %v5524, 0
    %v5536 = vsel %vm409, %v5529, 0
    %5538 = vmatprep.subr.mxu0 0.0
    %5539 = vmatpush1.msra.mxu0 %v4092
    %5540 = vmatprep.subr.mxu0 0.0
    %5541 = vmatpush1.msra.mxu0 %v4093
    %5542 = vmatprep.subr.mxu0 0.0
    %5543 = vmatpush1.msra.mxu0 0.0
    %5544 = vmatprep.subr.mxu0 0.0
    %5545 = vmatpush1.msra.mxu0 0.0
    %5546 = vmatprep.subr.mxu0 0.0
    %5547 = vmatpush1.msra.mxu0 0.0
    %5548 = vmatprep.subr.mxu0 0.0
    %5549 = vmatpush1.msra.mxu0 0.0
    %5550 = vmatprep.subr.mxu0 0.0
    %5551 = vmatpush1.msra.mxu0 0.0
    %5552 = vmatprep.subr.mxu0 0.0
    %5553 = vmatpush1.msra.mxu0 0.0
    %5554 = vmatprep.subr.mxu0 0.0
    %5555 = vmatpush1.msra.mxu0 0.0
    %5556 = vmatprep.subr.mxu0 0.0
    %5557 = vmatpush1.msra.mxu0 0.0
    %5558 = vmatprep.subr.mxu0 0.0
    %5559 = vmatpush1.msra.mxu0 0.0
    %5560 = vmatprep.subr.mxu0 0.0
    %5561 = vmatpush1.msra.mxu0 0.0
    %5562 = vmatprep.subr.mxu0 0.0
    %5563 = vmatpush1.msra.mxu0 0.0
    %5564 = vmatprep.subr.mxu0 0.0
    %5565 = vmatpush1.msra.mxu0 0.0
    %5566 = vmatprep.subr.mxu0 0.0
    %5567 = vmatpush1.msra.mxu0 0.0
    %5568 = vmatprep.subr.mxu0 0.0
    %5569 = vmatpush1.msra.mxu0 0.0
    %5570 = vmatprep.subr.mxu0 0.0
    %5571 = vmatpush1.msra.mxu0 0.0
    %5572 = vmatprep.subr.mxu0 0.0
    %5573 = vmatpush1.msra.mxu0 0.0
    %5574 = vmatprep.subr.mxu0 0.0
    %5575 = vmatpush1.msra.mxu0 0.0
    %5576 = vmatprep.subr.mxu0 0.0
    %5577 = vmatpush1.msra.mxu0 0.0
    %5578 = vmatprep.subr.mxu0 0.0
    %5579 = vmatpush1.msra.mxu0 0.0
    %5580 = vmatprep.subr.mxu0 0.0
    %5581 = vmatpush1.msra.mxu0 0.0
    %5582 = vmatprep.subr.mxu0 0.0
    %5583 = vmatpush1.msra.mxu0 0.0
    %5584 = vmatprep.subr.mxu0 0.0
    %5585 = vmatpush1.msra.mxu0 0.0
    %5586 = vmatprep.subr.mxu0 0.0
    %5587 = vmatpush1.msra.mxu0 0.0
    %5588 = vmatprep.subr.mxu0 0.0
    %5589 = vmatpush1.msra.mxu0 0.0
    %5590 = vmatprep.subr.mxu0 0.0
    %5591 = vmatpush1.msra.mxu0 0.0
    %5592 = vmatprep.subr.mxu0 0.0
    %5593 = vmatpush1.msra.mxu0 0.0
    %5594 = vmatprep.subr.mxu0 0.0
    %5595 = vmatpush1.msra.mxu0 0.0
    %5596 = vmatprep.subr.mxu0 0.0
    %5597 = vmatpush1.msra.mxu0 0.0
    %5598 = vmatprep.subr.mxu0 0.0
    %5599 = vmatpush1.msra.mxu0 0.0
    %5600 = vmatprep.subr.mxu0 0.0
    %5601 = vmatpush1.msra.mxu0 0.0
    %5602 = vmatprep.mubr.f32.mxu0 0.0
    %5603 = vmatmul.mubr.f32.gmra.mrb[0].mxu0 %v5533
    %v5604 = vpop.f32.mrb[0].mxu0
    %v5605 = vadd.f32 0.0, %v5604
    %v5606 = vpop.f32.mrb[0].mxu0
    %5607 = vmatprep.mubr.f32.mxu0 0.0
    %5608 = vmatmul.mubr.f32.gmra.mrb[0].mxu0 %v5536
    %v5609 = vpop.f32.mrb[0].mxu0
    %v5610 = vadd.f32 0.0, %v5609
    %v5611 = vpop.f32.mrb[0].mxu0
    %5612 = vdwg.mxu0
    %v5614 = vsel %vm409, %v5105, 0
    %v5617 = vsel %vm409, %v5110, 0
    %5619 = vmatprep.subr.mxu0 0.0
    %5620 = vmatpush1.msra.mxu0 %v3631
    %5621 = vmatprep.subr.mxu0 0.0
    %5622 = vmatpush1.msra.mxu0 %v3632
    %5623 = vmatprep.subr.mxu0 0.0
    %5624 = vmatpush1.msra.mxu0 0.0
    %5625 = vmatprep.subr.mxu0 0.0
    %5626 = vmatpush1.msra.mxu0 0.0
    %5627 = vmatprep.subr.mxu0 0.0
    %5628 = vmatpush1.msra.mxu0 0.0
    %5629 = vmatprep.subr.mxu0 0.0
    %5630 = vmatpush1.msra.mxu0 0.0
    %5631 = vmatprep.subr.mxu0 0.0
    %5632 = vmatpush1.msra.mxu0 0.0
    %5633 = vmatprep.subr.mxu0 0.0
    %5634 = vmatpush1.msra.mxu0 0.0
    %5635 = vmatprep.subr.mxu0 0.0
    %5636 = vmatpush1.msra.mxu0 0.0
    %5637 = vmatprep.subr.mxu0 0.0
    %5638 = vmatpush1.msra.mxu0 0.0
    %5639 = vmatprep.subr.mxu0 0.0
    %5640 = vmatpush1.msra.mxu0 0.0
    %5641 = vmatprep.subr.mxu0 0.0
    %5642 = vmatpush1.msra.mxu0 0.0
    %5643 = vmatprep.subr.mxu0 0.0
    %5644 = vmatpush1.msra.mxu0 0.0
    %5645 = vmatprep.subr.mxu0 0.0
    %5646 = vmatpush1.msra.mxu0 0.0
    %5647 = vmatprep.subr.mxu0 0.0
    %5648 = vmatpush1.msra.mxu0 0.0
    %5649 = vmatprep.subr.mxu0 0.0
    %5650 = vmatpush1.msra.mxu0 0.0
    %5651 = vmatprep.subr.mxu0 0.0
    %5652 = vmatpush1.msra.mxu0 0.0
    %5653 = vmatprep.subr.mxu0 0.0
    %5654 = vmatpush1.msra.mxu0 0.0
    %5655 = vmatprep.subr.mxu0 0.0
    %5656 = vmatpush1.msra.mxu0 0.0
    %5657 = vmatprep.subr.mxu0 0.0
    %5658 = vmatpush1.msra.mxu0 0.0
    %5659 = vmatprep.subr.mxu0 0.0
    %5660 = vmatpush1.msra.mxu0 0.0
    %5661 = vmatprep.subr.mxu0 0.0
    %5662 = vmatpush1.msra.mxu0 0.0
    %5663 = vmatprep.subr.mxu0 0.0
    %5664 = vmatpush1.msra.mxu0 0.0
    %5665 = vmatprep.subr.mxu0 0.0
    %5666 = vmatpush1.msra.mxu0 0.0
    %5667 = vmatprep.subr.mxu0 0.0
    %5668 = vmatpush1.msra.mxu0 0.0
    %5669 = vmatprep.subr.mxu0 0.0
    %5670 = vmatpush1.msra.mxu0 0.0
    %5671 = vmatprep.subr.mxu0 0.0
    %5672 = vmatpush1.msra.mxu0 0.0
    %5673 = vmatprep.subr.mxu0 0.0
    %5674 = vmatpush1.msra.mxu0 0.0
    %5675 = vmatprep.subr.mxu0 0.0
    %5676 = vmatpush1.msra.mxu0 0.0
    %5677 = vmatprep.subr.mxu0 0.0
    %5678 = vmatpush1.msra.mxu0 0.0
    %5679 = vmatprep.subr.mxu0 0.0
    %5680 = vmatpush1.msra.mxu0 0.0
    %5681 = vmatprep.subr.mxu0 0.0
    %5682 = vmatpush1.msra.mxu0 0.0
    %5683 = vmatprep.mubr.f32.mxu0 0.0
    %5684 = vmatmul.mubr.f32.gmra.mrb[0].mxu0 %v5614
    %v5685 = vpop.f32.mrb[0].mxu0
    %v5686 = vadd.f32 %v5605, %v5685
    %v5687 = vpop.f32.mrb[0].mxu0
    %5688 = vmatprep.mubr.f32.mxu0 0.0
    %5689 = vmatmul.mubr.f32.gmra.mrb[0].mxu0 %v5617
    %v5690 = vpop.f32.mrb[0].mxu0
    %v5691 = vadd.f32 %v5610, %v5690
    %v5692 = vpop.f32.mrb[0].mxu0
    %5693 = vdwg.mxu0
    %v5694 = vadd.f32 %v5686, %v4259
    %v5695 = vadd.f32 %v5691, %v4259
    %v5696 = vadd.f32 %v5694, %v3111
    %v5697 = vadd.f32 %v5695, %v3112
    %v5698 = vsel %vm155, %v5696, 0.0
    %5699 = vadd.xlane.f32.xlu0 %v5698
    %v5700 = vpop.xlane.xlu0 %5699
    %v5701 = vsel %vm155, %v5697, 0.0
    %5702 = vadd.xlane.f32.xlu0 %v5701
    %v5703 = vpop.xlane.xlu0 %5702
    %v5704 = vmul.f32 %v5700, %v1249
    %v5705 = vmul.f32 %v5703, %v1249
    %v5706 = vsub.f32 %v5696, %v5704
    %v5707 = vsub.f32 %v5697, %v5705
    %v5708 = vmul.f32 %v5706, %v5706
    %v5709 = vmul.f32 %v5707, %v5707
    %v5710 = vsel %vm155, %v5708, 0.0
    %5711 = vadd.xlane.f32.xlu0 %v5710
    %v5712 = vpop.xlane.xlu0 %5711
    %v5713 = vsel %vm155, %v5709, 0.0
    %5714 = vadd.xlane.f32.xlu0 %v5713
    %v5715 = vpop.xlane.xlu0 %5714
    %v5716 = vmul.f32 %v5712, %v1249
    %v5717 = vmul.f32 %v5715, %v1249
    %v5718 = vadd.f32 %v5716, 1e-05
    %v5719 = vadd.f32 %v5717, 1e-05
    %v5720 = vrsqrt.pop %v5718
    %v5721 = vrsqrt.pop %v5719
    %v5722 = vmul.f32 %v5706, %v5720
    %v5723 = vmul.f32 %v5707, %v5721
    %v5724 = vmul.f32 %v5722, %v4293
    %v5725 = vmul.f32 %v5723, %v4293
    %v5726 = vadd.f32 %v5724, %v4299
    %v5727 = vadd.f32 %v5725, %v4299
    %v5728 = vsel %vm2741, 0.0, %v5726
    %v5729 = vsel %vm2742, 0.0, %v5727
    %v5732 = vrot.slane %v5728, 4
    %v5733 = vrot.slane %v5729, 4
    %v5734 = vsel %vm1296, %v5732, %v5733
    %v5738 = vsel %vm1296, 0.0, %v5732
    %v5739 = vsel %vm1296, %v5733, 0.0
    %v5742 = vrot.slane %v5738, 1
    %v5743 = vrot.slane %v5734, 1
    %v5744 = vsel %vm1307, %v5742, %v5743
    %v5745 = vrot.slane %v5739, 1
    %v5746 = vsel %vm1307, %v5743, %v5745
    %5747 = vrot.lane.b32.xlu0 %v5744, 32
    %v5748 = vpop.permute.xlu0 %5747
    %5749 = vrot.lane.b32.xlu0 %v5746, 32
    %v5750 = vpop.permute.xlu0 %5749
    %v5753 = vrot.slane %v5738, 2
    %v5754 = vrot.slane %v5734, 2
    %v5755 = vsel %vm1319, %v5753, %v5754
    %v5756 = vrot.slane %v5739, 2
    %v5757 = vsel %vm1319, %v5754, %v5756
    %5758 = vrot.lane.b32.xlu0 %v5755, 64
    %v5759 = vpop.permute.xlu0 %5758
    %5760 = vrot.lane.b32.xlu0 %v5757, 64
    %v5761 = vpop.permute.xlu0 %5760
    %v5764 = vrot.slane %v5738, 3
    %v5765 = vrot.slane %v5734, 3
    %v5766 = vsel %vm1331, %v5764, %v5765
    %v5767 = vrot.slane %v5739, 3
    %v5768 = vsel %vm1331, %v5765, %v5767
    %5769 = vrot.lane.b32.xlu0 %v5766, 96
    %v5770 = vpop.permute.xlu0 %5769
    %5771 = vrot.lane.b32.xlu0 %v5768, 96
    %v5772 = vpop.permute.xlu0 %5771
    %v5775 = vrot.slane %v5738, 4
    %v5776 = vrot.slane %v5734, 4
    %v5777 = vsel %vm1296, %v5775, %v5776
    %v5778 = vrot.slane %v5739, 4
    %v5779 = vsel %vm1296, %v5776, %v5778
    %v5782 = vrot.slane %v5738, 5
    %v5783 = vrot.slane %v5734, 5
    %v5784 = vsel %vm1350, %v5782, %v5783
    %v5785 = vrot.slane %v5739, 5
    %v5786 = vsel %vm1350, %v5783, %v5785
    %5787 = vrot.lane.b32.xlu0 %v5784, 32
    %v5788 = vpop.permute.xlu0 %5787
    %5789 = vrot.lane.b32.xlu0 %v5786, 32
    %v5790 = vpop.permute.xlu0 %5789
    %v5793 = vrot.slane %v5738, 6
    %v5794 = vrot.slane %v5734, 6
    %v5795 = vsel %vm1362, %v5793, %v5794
    %v5796 = vrot.slane %v5739, 6
    %v5797 = vsel %vm1362, %v5794, %v5796
    %5798 = vrot.lane.b32.xlu0 %v5795, 64
    %v5799 = vpop.permute.xlu0 %5798
    %5800 = vrot.lane.b32.xlu0 %v5797, 64
    %v5801 = vpop.permute.xlu0 %5800
    %v5804 = vrot.slane %v5738, 7
    %v5805 = vrot.slane %v5734, 7
    %v5806 = vsel %vm1374, %v5804, %v5805
    %v5807 = vrot.slane %v5739, 7
    %v5808 = vsel %vm1374, %v5805, %v5807
    %5809 = vrot.lane.b32.xlu0 %v5806, 96
    %v5810 = vpop.permute.xlu0 %5809
    %5811 = vrot.lane.b32.xlu0 %v5808, 96
    %v5812 = vpop.permute.xlu0 %5811
    %v5815 = vsel %vm155, %v5738, %v5748
    %v5816 = vsel %vm155, %v5734, %v5750
    %v5817 = vsel %vm1388, %v5815, %v5759
    %v5818 = vsel %vm1388, %v5816, %v5761
    %v5819 = vsel %vm1391, %v5817, %v5770
    %v5820 = vsel %vm1391, %v5818, %v5772
    %v5821 = vsel %vm155, %v5777, %v5788
    %v5822 = vsel %vm155, %v5779, %v5790
    %v5823 = vsel %vm1388, %v5821, %v5799
    %v5824 = vsel %vm1388, %v5822, %v5801
    %v5825 = vsel %vm1391, %v5823, %v5810
    %v5826 = vsel %vm1391, %v5824, %v5812
    %v5827 = vsel %vm155, %v5734, 0
    %v5829 = vsel %vm155, %v5739, 0
    %5831 = vmatprep.subr.mxu0 0.0
    %5832 = vmatpush1.msra.mxu0 %v3119
    %5833 = vmatprep.subr.mxu0 0.0
    %5834 = vmatpush1.msra.mxu0 %v3120
    %5835 = vmatprep.subr.mxu0 0.0
    %5836 = vmatpush1.msra.mxu0 %v3121
    %5837 = vmatprep.subr.mxu0 0.0
    %5838 = vmatpush1.msra.mxu0 %v3122
    %5839 = vmatprep.subr.mxu0 0.0
    %5840 = vmatpush1.msra.mxu0 %v3123
    %5841 = vmatprep.subr.mxu0 0.0
    %5842 = vmatpush1.msra.mxu0 %v3124
    %5843 = vmatprep.subr.mxu0 0.0
    %5844 = vmatpush1.msra.mxu0 %v3125
    %5845 = vmatprep.subr.mxu0 0.0
    %5846 = vmatpush1.msra.mxu0 %v3126
    %5847 = vmatprep.subr.mxu0 0.0
    %5848 = vmatpush1.msra.mxu0 %v3127
    %5849 = vmatprep.subr.mxu0 0.0
    %5850 = vmatpush1.msra.mxu0 %v3128
    %5851 = vmatprep.subr.mxu0 0.0
    %5852 = vmatpush1.msra.mxu0 %v3129
    %5853 = vmatprep.subr.mxu0 0.0
    %5854 = vmatpush1.msra.mxu0 %v3130
    %5855 = vmatprep.subr.mxu0 0.0
    %5856 = vmatpush1.msra.mxu0 %v3131
    %5857 = vmatprep.subr.mxu0 0.0
    %5858 = vmatpush1.msra.mxu0 %v3132
    %5859 = vmatprep.subr.mxu0 0.0
    %5860 = vmatpush1.msra.mxu0 %v3133
    %5861 = vmatprep.subr.mxu0 0.0
    %5862 = vmatpush1.msra.mxu0 %v3134
    %5863 = vmatprep.subr.mxu0 0.0
    %5864 = vmatpush1.msra.mxu0 %v3135
    %5865 = vmatprep.subr.mxu0 0.0
    %5866 = vmatpush1.msra.mxu0 %v3136
    %5867 = vmatprep.subr.mxu0 0.0
    %5868 = vmatpush1.msra.mxu0 %v3137
    %5869 = vmatprep.subr.mxu0 0.0
    %5870 = vmatpush1.msra.mxu0 %v3138
    %5871 = vmatprep.subr.mxu0 0.0
    %5872 = vmatpush1.msra.mxu0 %v3139
    %5873 = vmatprep.subr.mxu0 0.0
    %5874 = vmatpush1.msra.mxu0 %v3140
    %5875 = vmatprep.subr.mxu0 0.0
    %5876 = vmatpush1.msra.mxu0 %v3141
    %5877 = vmatprep.subr.mxu0 0.0
    %5878 = vmatpush1.msra.mxu0 %v3142
    %5879 = vmatprep.subr.mxu0 0.0
    %5880 = vmatpush1.msra.mxu0 %v3143
    %5881 = vmatprep.subr.mxu0 0.0
    %5882 = vmatpush1.msra.mxu0 %v3144
    %5883 = vmatprep.subr.mxu0 0.0
    %5884 = vmatpush1.msra.mxu0 %v3145
    %5885 = vmatprep.subr.mxu0 0.0
    %5886 = vmatpush1.msra.mxu0 %v3146
    %5887 = vmatprep.subr.mxu0 0.0
    %5888 = vmatpush1.msra.mxu0 %v3147
    %5889 = vmatprep.subr.mxu0 0.0
    %5890 = vmatpush1.msra.mxu0 %v3148
    %5891 = vmatprep.subr.mxu0 0.0
    %5892 = vmatpush1.msra.mxu0 %v3149
    %5893 = vmatprep.subr.mxu0 0.0
    %5894 = vmatpush1.msra.mxu0 %v3150
    %5895 = vmatprep.mubr.f32.mxu0 %v5825
    %5896 = vmatmul.mubr.f32.gmra.mrb[0].mxu0 %v5819
    %v5897 = vpop.f32.mrb[0].mxu0
    %v5898 = vadd.f32 %v4404, %v5897
    %v5899 = vpop.f32.mrb[0].mxu0
    %5900 = vmatprep.mubr.f32.mxu0 %v5826
    %5901 = vmatmul.mubr.f32.gmra.mrb[0].mxu0 %v5820
    %v5902 = vpop.f32.mrb[0].mxu0
    %v5903 = vadd.f32 %v4404, %v5902
    %v5904 = vpop.f32.mrb[0].mxu0
    %5905 = vdwg.mxu0
    %5906 = vmatprep.subr.mxu0 0.0
    %5907 = vmatpush1.msra.mxu0 %v3151
    %5908 = vmatprep.subr.mxu0 0.0
    %5909 = vmatpush1.msra.mxu0 %v3152
    %5910 = vmatprep.subr.mxu0 0.0
    %5911 = vmatpush1.msra.mxu0 %v3153
    %5912 = vmatprep.subr.mxu0 0.0
    %5913 = vmatpush1.msra.mxu0 %v3154
    %5914 = vmatprep.subr.mxu0 0.0
    %5915 = vmatpush1.msra.mxu0 0.0
    %5916 = vmatprep.subr.mxu0 0.0
    %5917 = vmatpush1.msra.mxu0 0.0
    %5918 = vmatprep.subr.mxu0 0.0
    %5919 = vmatpush1.msra.mxu0 0.0
    %5920 = vmatprep.subr.mxu0 0.0
    %5921 = vmatpush1.msra.mxu0 0.0
    %5922 = vmatprep.subr.mxu0 0.0
    %5923 = vmatpush1.msra.mxu0 0.0
    %5924 = vmatprep.subr.mxu0 0.0
    %5925 = vmatpush1.msra.mxu0 0.0
    %5926 = vmatprep.subr.mxu0 0.0
    %5927 = vmatpush1.msra.mxu0 0.0
    %5928 = vmatprep.subr.mxu0 0.0
    %5929 = vmatpush1.msra.mxu0 0.0
    %5930 = vmatprep.subr.mxu0 0.0
    %5931 = vmatpush1.msra.mxu0 0.0
    %5932 = vmatprep.subr.mxu0 0.0
    %5933 = vmatpush1.msra.mxu0 0.0
    %5934 = vmatprep.subr.mxu0 0.0
    %5935 = vmatpush1.msra.mxu0 0.0
    %5936 = vmatprep.subr.mxu0 0.0
    %5937 = vmatpush1.msra.mxu0 0.0
    %5938 = vmatprep.subr.mxu0 0.0
    %5939 = vmatpush1.msra.mxu0 0.0
    %5940 = vmatprep.subr.mxu0 0.0
    %5941 = vmatpush1.msra.mxu0 0.0
    %5942 = vmatprep.subr.mxu0 0.0
    %5943 = vmatpush1.msra.mxu0 0.0
    %5944 = vmatprep.subr.mxu0 0.0
    %5945 = vmatpush1.msra.mxu0 0.0
    %5946 = vmatprep.subr.mxu0 0.0
    %5947 = vmatpush1.msra.mxu0 0.0
    %5948 = vmatprep.subr.mxu0 0.0
    %5949 = vmatpush1.msra.mxu0 0.0
    %5950 = vmatprep.subr.mxu0 0.0
    %5951 = vmatpush1.msra.mxu0 0.0
    %5952 = vmatprep.subr.mxu0 0.0
    %5953 = vmatpush1.msra.mxu0 0.0
    %5954 = vmatprep.subr.mxu0 0.0
    %5955 = vmatpush1.msra.mxu0 0.0
    %5956 = vmatprep.subr.mxu0 0.0
    %5957 = vmatpush1.msra.mxu0 0.0
    %5958 = vmatprep.subr.mxu0 0.0
    %5959 = vmatpush1.msra.mxu0 0.0
    %5960 = vmatprep.subr.mxu0 0.0
    %5961 = vmatpush1.msra.mxu0 0.0
    %5962 = vmatprep.subr.mxu0 0.0
    %5963 = vmatpush1.msra.mxu0 0.0
    %5964 = vmatprep.subr.mxu0 0.0
    %5965 = vmatpush1.msra.mxu0 0.0
    %5966 = vmatprep.subr.mxu0 0.0
    %5967 = vmatpush1.msra.mxu0 0.0
    %5968 = vmatprep.subr.mxu0 0.0
    %5969 = vmatpush1.msra.mxu0 0.0
    %5970 = vmatprep.mubr.f32.mxu0 0.0
    %5971 = vmatmul.mubr.f32.gmra.mrb[0].mxu0 %v5827
    %v5972 = vpop.f32.mrb[0].mxu0
    %v5973 = vadd.f32 %v5898, %v5972
    %v5974 = vpop.f32.mrb[0].mxu0
    %5975 = vmatprep.mubr.f32.mxu0 0.0
    %5976 = vmatmul.mubr.f32.gmra.mrb[0].mxu0 %v5829
    %v5977 = vpop.f32.mrb[0].mxu0
    %v5978 = vadd.f32 %v5903, %v5977
    %v5979 = vpop.f32.mrb[0].mxu0
    %5980 = vdwg.mxu0
    %v5981 = vmax.f32 %v5973, 0.0
    %v5982 = vmax.f32 %v5978, 0.0
    %v5984 = vsel %vm1388, %v5981, 0
    %v5987 = vsel %vm1388, %v5982, 0
    %5989 = vmatprep.subr.mxu0 0.0
    %5990 = vmatpush1.msra.mxu0 %v3157
    %5991 = vmatprep.subr.mxu0 0.0
    %5992 = vmatpush1.msra.mxu0 %v3158
    %5993 = vmatprep.subr.mxu0 0.0
    %5994 = vmatpush1.msra.mxu0 %v3159
    %5995 = vmatprep.subr.mxu0 0.0
    %5996 = vmatpush1.msra.mxu0 %v3160
    %5997 = vmatprep.subr.mxu0 0.0
    %5998 = vmatpush1.msra.mxu0 %v3161
    %5999 = vmatprep.subr.mxu0 0.0
    %6000 = vmatpush1.msra.mxu0 %v3162
    %6001 = vmatprep.subr.mxu0 0.0
    %6002 = vmatpush1.msra.mxu0 %v3163
    %6003 = vmatprep.subr.mxu0 0.0
    %6004 = vmatpush1.msra.mxu0 %v3164
    %6005 = vmatprep.subr.mxu0 0.0
    %6006 = vmatpush1.msra.mxu0 0.0
    %6007 = vmatprep.subr.mxu0 0.0
    %6008 = vmatpush1.msra.mxu0 0.0
    %6009 = vmatprep.subr.mxu0 0.0
    %6010 = vmatpush1.msra.mxu0 0.0
    %6011 = vmatprep.subr.mxu0 0.0
    %6012 = vmatpush1.msra.mxu0 0.0
    %6013 = vmatprep.subr.mxu0 0.0
    %6014 = vmatpush1.msra.mxu0 0.0
    %6015 = vmatprep.subr.mxu0 0.0
    %6016 = vmatpush1.msra.mxu0 0.0
    %6017 = vmatprep.subr.mxu0 0.0
    %6018 = vmatpush1.msra.mxu0 0.0
    %6019 = vmatprep.subr.mxu0 0.0
    %6020 = vmatpush1.msra.mxu0 0.0
    %6021 = vmatprep.subr.mxu0 0.0
    %6022 = vmatpush1.msra.mxu0 0.0
    %6023 = vmatprep.subr.mxu0 0.0
    %6024 = vmatpush1.msra.mxu0 0.0
    %6025 = vmatprep.subr.mxu0 0.0
    %6026 = vmatpush1.msra.mxu0 0.0
    %6027 = vmatprep.subr.mxu0 0.0
    %6028 = vmatpush1.msra.mxu0 0.0
    %6029 = vmatprep.subr.mxu0 0.0
    %6030 = vmatpush1.msra.mxu0 0.0
    %6031 = vmatprep.subr.mxu0 0.0
    %6032 = vmatpush1.msra.mxu0 0.0
    %6033 = vmatprep.subr.mxu0 0.0
    %6034 = vmatpush1.msra.mxu0 0.0
    %6035 = vmatprep.subr.mxu0 0.0
    %6036 = vmatpush1.msra.mxu0 0.0
    %6037 = vmatprep.subr.mxu0 0.0
    %6038 = vmatpush1.msra.mxu0 0.0
    %6039 = vmatprep.subr.mxu0 0.0
    %6040 = vmatpush1.msra.mxu0 0.0
    %6041 = vmatprep.subr.mxu0 0.0
    %6042 = vmatpush1.msra.mxu0 0.0
    %6043 = vmatprep.subr.mxu0 0.0
    %6044 = vmatpush1.msra.mxu0 0.0
    %6045 = vmatprep.subr.mxu0 0.0
    %6046 = vmatpush1.msra.mxu0 0.0
    %6047 = vmatprep.subr.mxu0 0.0
    %6048 = vmatpush1.msra.mxu0 0.0
    %6049 = vmatprep.subr.mxu0 0.0
    %6050 = vmatpush1.msra.mxu0 0.0
    %6051 = vmatprep.subr.mxu0 0.0
    %6052 = vmatpush1.msra.mxu0 0.0
    %6053 = vmatprep.mubr.f32.mxu0 0.0
    %6054 = vmatmul.mubr.f32.gmra.mrb[0].mxu0 %v5984
    %v6055 = vpop.f32.mrb[0].mxu0
    %v6056 = vadd.f32 %v4564, %v6055
    %v6057 = vpop.f32.mrb[0].mxu0
    %6058 = vmatprep.mubr.f32.mxu0 0.0
    %6059 = vmatmul.mubr.f32.gmra.mrb[0].mxu0 %v5987
    %v6060 = vpop.f32.mrb[0].mxu0
    %v6061 = vadd.f32 %v4564, %v6060
    %v6062 = vpop.f32.mrb[0].mxu0
    %6063 = vdwg.mxu0
    %v6064 = vadd.f32 %v6056, %v5728
    %v6065 = vadd.f32 %v6061, %v5729
    %v6066 = vsel %vm155, %v6064, 0.0
    %6067 = vadd.xlane.f32.xlu0 %v6066
    %v6068 = vpop.xlane.xlu0 %6067
    %v6069 = vsel %vm155, %v6065, 0.0
    %6070 = vadd.xlane.f32.xlu0 %v6069
    %v6071 = vpop.xlane.xlu0 %6070
    %v6072 = vmul.f32 %v6068, %v1249
    %v6073 = vmul.f32 %v6071, %v1249
    %v6074 = vsub.f32 %v6064, %v6072
    %v6075 = vsub.f32 %v6065, %v6073
    %v6076 = vmul.f32 %v6074, %v6074
    %v6077 = vmul.f32 %v6075, %v6075
    %v6078 = vsel %vm155, %v6076, 0.0
    %6079 = vadd.xlane.f32.xlu0 %v6078
    %v6080 = vpop.xlane.xlu0 %6079
    %v6081 = vsel %vm155, %v6077, 0.0
    %6082 = vadd.xlane.f32.xlu0 %v6081
    %v6083 = vpop.xlane.xlu0 %6082
    %v6084 = vmul.f32 %v6080, %v1249
    %v6085 = vmul.f32 %v6083, %v1249
    %v6086 = vadd.f32 %v6084, 1e-05
    %v6087 = vadd.f32 %v6085, 1e-05
    %v6088 = vrsqrt.pop %v6086
    %v6089 = vrsqrt.pop %v6087
    %v6090 = vmul.f32 %v6074, %v6088
    %v6091 = vmul.f32 %v6075, %v6089
    %v6092 = vmul.f32 %v6090, %v4677
    %v6093 = vmul.f32 %v6091, %v4677
    %v6094 = vadd.f32 %v6092, %v4683
    %v6095 = vadd.f32 %v6093, %v4683
    %v6096 = vsel %vm2741, 0.0, %v6094
    %v6097 = vsel %vm2742, 0.0, %v6095
    %v6098 = vsel %vm155, %v4686, 0.0
    %v6099 = vsel %vm155, %v4687, 0.0
    %v6100 = vadd.f32 %v6098, %v6099
    %v6101 = vrot.slane %v6100, 4
    %v6102 = vadd.f32 %v6100, %v6101
    %v6103 = vrot.slane %v6102, 2
    %v6104 = vadd.f32 %v6102, %v6103
    %v6105 = vrot.slane %v6104, 1
    %v6106 = vadd.f32 %v6104, %v6105
    %v6107 = vrcp.pop 16.0
    %v6108 = vmul.f32 %v6106, %v6107
    %v6109 = vsub.f32 %v4686, %v6108
    %v6110 = vsub.f32 %v4687, %v6108
    %v6111 = vmul.f32 %v6109, %v6109
    %v6112 = vmul.f32 %v6110, %v6110
    %v6113 = vsel %vm155, %v6111, 0.0
    %v6114 = vsel %vm155, %v6112, 0.0
    %v6115 = vadd.f32 %v6113, %v6114
    %v6116 = vrot.slane %v6115, 4
    %v6117 = vadd.f32 %v6115, %v6116
    %v6118 = vrot.slane %v6117, 2
    %v6119 = vadd.f32 %v6117, %v6118
    %v6120 = vrot.slane %v6119, 1
    %v6121 = vadd.f32 %v6119, %v6120
    %v6122 = vmul.f32 %v6121, %v6107
    %v6123 = vadd.f32 %v6122, 1e-05
    %v6124 = vrsqrt.pop %v6123
    %v6125 = vmul.f32 %v6109, %v6124
    %v6126 = vmul.f32 %v6110, %v6124
    %6127 = vst.msk [vmem:[#allocation2] sm:$0xff] %vm155, %v6125
    %6128 = vst.msk [vmem:[#allocation2 + $0x8] sm:$0xff] %vm155, %v6126
    %v6129 = vsel %vm155, %v6096, 0.0
    %v6130 = vsel %vm155, %v6097, 0.0
    %v6131 = vadd.f32 %v6129, %v6130
    %v6132 = vrot.slane %v6131, 4
    %v6133 = vadd.f32 %v6131, %v6132
    %v6134 = vrot.slane %v6133, 2
    %v6135 = vadd.f32 %v6133, %v6134
    %v6136 = vrot.slane %v6135, 1
    %v6137 = vadd.f32 %v6135, %v6136
    %v6138 = vmul.f32 %v6137, %v6107
    %v6139 = vsub.f32 %v6096, %v6138
    %v6140 = vsub.f32 %v6097, %v6138
    %v6141 = vmul.f32 %v6139, %v6139
    %v6142 = vmul.f32 %v6140, %v6140
    %v6143 = vsel %vm155, %v6141, 0.0
    %v6144 = vsel %vm155, %v6142, 0.0
    %v6145 = vadd.f32 %v6143, %v6144
    %v6146 = vrot.slane %v6145, 4
    %v6147 = vadd.f32 %v6145, %v6146
    %v6148 = vrot.slane %v6147, 2
    %v6149 = vadd.f32 %v6147, %v6148
    %v6150 = vrot.slane %v6149, 1
    %v6151 = vadd.f32 %v6149, %v6150
    %v6152 = vmul.f32 %v6151, %v6107
    %v6153 = vadd.f32 %v6152, 1e-05
    %v6154 = vrsqrt.pop %v6153
    %v6155 = vmul.f32 %v6139, %v6154
    %v6156 = vmul.f32 %v6140, %v6154
    %s6157 = scalar_lea.vmem [#allocation2], 16
    %6158 = vst.msk [vmem:[%s6157] sm:$0xff] %vm155, %v6155
    %6159 = vst.msk [vmem:[%s6157 + $0x8] sm:$0xff] %vm155, %v6156
    // Predicated region
    $region82: #{tpu_custom_call.1} parent=1 // pred_check
      _
    $region83: #{tpu_custom_call.1} parent=1 // pred_check_branch
      %6161 = sbr.rel (0) target = $region85
    $region84: #{tpu_custom_call.1} parent=1 // pred_region
      %s6163 = ssub.s32 512, 512
      %6164 = vsyncadd [#allocation3], %s6163
      %s6165 = sshll.u32 [#allocation2], 4
      %s6166 = int_to_ptr.vmem [resolvable:$true] %s6165
      %6171 = dma.vmem_to_hbm [thread:$0]  %s6166, 512, %s20, [#allocation3], 128, 128, 8
    $region85: #{tpu_custom_call.1} parent=1 // pred_fallthru
      _
    // Predicated region
    $region86: #{tpu_custom_call.1} parent=1 // pred_check
      _
    $region87: #{tpu_custom_call.1} parent=1 // pred_check_branch
      %6173 = sbr.rel (0) target = $region89
    $region88: #{tpu_custom_call.1} parent=1 // pred_region
      %6174 = dma.done [#allocation3], 512
    $region89: #{tpu_custom_call.1} parent=1 // pred_fallthru
      _
    %6175 = vsyncpa [#allocation3], 1

</llo_original>
